<compile_context>
chip_gen: v7x
topology: tpu7x:2x2x1
jax: 0.10.0
libtpu: 0.0.40
codegen_flags: <defaults>
</compile_context>

<pallas_src>
import numpy as np
import jax
import jax.numpy as jnp
from jax import lax
from jax.experimental import pallas as pl
from jax.experimental.pallas import tpu as pltpu

# Scaled-down VGG19 prefix channel widths (real VGG19: 64 / 128).
C1 = 16
C2 = 32
IMAGENET_MEAN = (0.485, 0.456, 0.406)
IMAGENET_STD = (0.229, 0.224, 0.225)


def _make_content_loss_kernel(H, W, c1, c2):
    HW = H * W
    L = 2 * HW  # sr and hr stacked along the lane dimension

    def _conv3x3_relu(x, w_ref, b_ref, m_ref, cout, step):
        """3x3 'SAME' conv + ReLU on a (cin, L) lane-flattened map.

        For each of the 9 taps: lane-rotate the whole map (XLU), multiply by a
        precomputed boundary-validity mask (VPU, zero == 'SAME' padding) and
        accumulate a (cout, cin) x (cin, L) MXU matmul in f32.  `step`=2 runs
        the conv on the stride-2 sparse (pooled) grid.
        """
        acc = jnp.zeros((cout, L), jnp.float32)
        for a in range(3):
            for b in range(3):
                t = a * 3 + b
                s = step * ((a - 1) * W + (b - 1))   # source offset in lanes
                if a == 1 and b == 1:                # centre tap: no shift, always valid
                    masked = x
                else:
                    shifted = pltpu.roll(x, (-s) % L, axis=1)   # out[p] = x[p + s]
                    masked = shifted * m_ref[t]                  # (1, L) broadcast
                acc = acc + jnp.dot(w_ref[t], masked,
                                    preferred_element_type=jnp.float32)
        return jnp.maximum(acc + b_ref[...], 0.0)    # VGG uses plain ReLU

    def kernel(sr_ref, hr_ref, ns_ref, nb_ref,
               w1_ref, b1_ref, w2_ref, b2_ref, w3_ref, b3_ref,
               m12_ref, m3_ref, vmask_ref, out_ref):
        # Stack sr|hr along lanes: every pass below handles both images at once.
        x = jnp.concatenate([sr_ref[0], hr_ref[0]], axis=1)      # (3, L)
        x = x * ns_ref[...] + nb_ref[...]                        # normalize

        a1 = _conv3x3_relu(x, w1_ref, b1_ref, m12_ref, c1, 1)    # (c1, L)
        a2 = _conv3x3_relu(a1, w2_ref, b2_ref, m12_ref, c1, 1)   # (c1, L)

        # 2x2 / stride-2 max pool, kept sparse: after two rotate+max passes the
        # even-row/even-col lanes hold the pooled values; the stride-2 conv
        # below only ever reads those lanes (its tap masks guarantee it).
        hm = jnp.maximum(a2, pltpu.roll(a2, L - 1, axis=1))      # max(x[p], x[p+1])
        vm = jnp.maximum(hm, pltpu.roll(hm, L - W, axis=1))      # max over 2x2 block

        f = _conv3x3_relu(vm, w3_ref, b3_ref, m3_ref, c2, 2)     # (c2, L)

        # L1 partials: |sr_feat - hr_feat| restricted to valid pooled positions,
        # reduced over channels -> lane-dense (1, HW) store per batch item.
        d = jnp.abs(f[:, :HW] - f[:, HW:]) * vmask_ref[...]      # (c2, HW)
        out_ref[...] = jnp.sum(d, axis=0, keepdims=True).reshape(1, 1, HW)

    return kernel


def _conv_tap_masks(H, W, step):
    """(9, 1, 2*H*W) f32 validity masks for the 9 taps (1 == in-bounds source)."""
    HW = H * W
    p = np.arange(HW)
    y, x = p // W, p % W
    if step == 1:
        yy, xx, Hl, Wl = y, x, H, W
    else:                                            # stride-2 (pooled) grid
        yy, xx, Hl, Wl = y // 2, x // 2, H // 2, W // 2
    m = np.zeros((9, 1, 2 * HW), np.float32)
    for a in range(3):
        for b in range(3):
            dy, dx = a - 1, b - 1
            ok = ((yy + dy >= 0) & (yy + dy < Hl) &
                  (xx + dx >= 0) & (xx + dx < Wl)).astype(np.float32)
            m[a * 3 + b, 0] = np.concatenate([ok, ok])           # sr | hr
    return m


def _pool_valid_mask(H, W):
    """(1, H*W) f32 mask of the even-row/even-col lanes (the real pooled pixels)."""
    HW = H * W
    p = np.arange(HW)
    y, x = p // W, p % W
    return (((y % 2) == 0) & ((x % 2) == 0)).astype(np.float32).reshape(1, HW)


def init_params(key):
    """Deterministic synthetic weights for the scaled-down VGG19 prefix (HWIO)."""
    shapes = [("w1", (3, 3, 3, C1)), ("w2", (3, 3, C1, C1)), ("w3", (3, 3, C1, C2))]
    params = {}
    for name, shp in shapes:
        key, kw, kb = jax.random.split(key, 3)
        params[name] = 0.1 * jax.random.normal(kw, shp, jnp.float32)
        params["b" + name[1:]] = 0.1 * jax.random.normal(kb, (shp[-1],), jnp.float32)
    return params


@jax.jit
def content_loss(sr_nchw, hr_nchw, params):
    """Fused ContentLoss forward: normalize -> mini-VGG features -> L1 (mean)."""
    N, C, H, W = sr_nchw.shape
    assert C == 3 and H % 2 == 0 and W % 2 == 0
    HW = H * W
    H2, W2 = H // 2, W // 2

    # NCHW -> (N, C, H*W): channels on sublanes, flattened spatial on lanes.
    # Pure view reshape (no transpose, no copy).
    sr = sr_nchw.reshape(N, C, HW)
    hr = hr_nchw.reshape(N, C, HW)

    mean = np.asarray(IMAGENET_MEAN, np.float32)
    std = np.asarray(IMAGENET_STD, np.float32)
    nscale = jnp.asarray((1.0 / std).reshape(3, 1))
    nshift = jnp.asarray((-mean / std).reshape(3, 1))

    def pack_w(w):  # HWIO (3,3,ci,co) -> (9, co, ci) per-tap matmul matrices
        return jnp.transpose(w, (0, 1, 3, 2)).reshape(9, w.shape[3], w.shape[2])

    w1, w2, w3 = pack_w(params["w1"]), pack_w(params["w2"]), pack_w(params["w3"])
    b1 = params["b1"].reshape(C1, 1)
    b2 = params["b2"].reshape(C1, 1)
    b3 = params["b3"].reshape(C2, 1)

    m12 = jnp.asarray(_conv_tap_masks(H, W, 1))      # conv1 / conv2 tap masks
    m3 = jnp.asarray(_conv_tap_masks(H, W, 2))       # conv3 (stride-2 grid) masks
    vmask = jnp.asarray(_pool_valid_mask(H, W))      # valid pooled positions

    kernel = _make_content_loss_kernel(H, W, C1, C2)

    img_map = lambda n: (n, 0, 0)
    const2 = lambda n: (0, 0)
    const3 = lambda n: (0, 0, 0)
    in_specs = [
        pl.BlockSpec((1, 3, HW), img_map),            # sr
        pl.BlockSpec((1, 3, HW), img_map),            # hr
        pl.BlockSpec((3, 1), const2),                 # normalize scale (1/std)
        pl.BlockSpec((3, 1), const2),                 # normalize shift (-mean/std)
        pl.BlockSpec((9, C1, 3), const3),             # w1 (tap, cout, cin)
        pl.BlockSpec((C1, 1), const2),                # b1
        pl.BlockSpec((9, C1, C1), const3),            # w2
        pl.BlockSpec((C1, 1), const2),                # b2
        pl.BlockSpec((9, C2, C1), const3),            # w3
        pl.BlockSpec((C2, 1), const2),                # b3
        pl.BlockSpec((9, 1, 2 * HW), const3),         # conv1/2 tap masks
        pl.BlockSpec((9, 1, 2 * HW), const3),         # conv3 tap masks
        pl.BlockSpec((1, HW), const2),                # pooled-position mask
    ]
    out_spec = pl.BlockSpec((1, 1, HW), img_map)

    partials = pl.pallas_call(
        kernel,
        out_shape=jax.ShapeDtypeStruct((N, 1, HW), jnp.float32),
        grid=(N,),
        in_specs=in_specs,
        out_specs=out_spec,
        compiler_params=pltpu.CompilerParams(
            dimension_semantics=("parallel",),
            vmem_limit_bytes=32 * 1024 * 1024),
    )(sr, hr, nscale, nshift, w1, b1, w2, b2, w3, b3, m12, m3, vmask)

    return jnp.sum(partials) / (N * C2 * H2 * W2)


def _reference_content_loss(sr_nchw, hr_nchw, params):
    """Pure-JAX (XLA conv) reference for correctness checking."""
    mean = jnp.asarray(IMAGENET_MEAN, jnp.float32)
    std = jnp.asarray(IMAGENET_STD, jnp.float32)
    nscale = 1.0 / std
    nshift = -mean / std

    def conv(x, w, b):  # x NHWC, w HWIO
        y = lax.conv_general_dilated(
            x, w, window_strides=(1, 1), padding="SAME",
            dimension_numbers=("NHWC", "HWIO", "NHWC"),
            precision=lax.Precision.HIGHEST)
        return y + b[None, None, None, :]

    def feats(x_nchw):
        x = jnp.transpose(x_nchw, (0, 2, 3, 1))
        x = x * nscale[None, None, None, :] + nshift[None, None, None, :]
        x = jax.nn.relu(conv(x, params["w1"], params["b1"]))
        x = jax.nn.relu(conv(x, params["w2"], params["b2"]))
        x = lax.reduce_window(x, -jnp.inf, lax.max,
                              (1, 2, 2, 1), (1, 2, 2, 1), "VALID")
        x = jax.nn.relu(conv(x, params["w3"], params["b3"]))
        return x

    return jnp.mean(jnp.abs(feats(sr_nchw) - feats(hr_nchw)))


if __name__ == "__main__":
    N, H, W = 2, 16, 16

    key = jax.random.PRNGKey(0)
    key, ks, kh = jax.random.split(key, 3)
    sr = jax.random.uniform(ks, (N, 3, H, W), jnp.float32)   # NCHW, like the torch module
    hr = jax.random.uniform(kh, (N, 3, H, W), jnp.float32)
    params = init_params(key)

    loss = jax.block_until_ready(content_loss(sr, hr, params))
    assert loss.shape == (), loss.shape

    ref = jax.block_until_ready(_reference_content_loss(sr, hr, params))
    assert jnp.allclose(loss, ref, atol=2e-3, rtol=2e-3), (float(loss), float(ref))

    print("KERNEL_OK")
</pallas_src>

<mosaic_0001>
module attributes {stable_mosaic.version = 11 : i64} {
  func.func @kernel(%arg0: i32, %arg1: memref<1x3x256xf32, #tpu.memory_space<vmem>>, %arg2: memref<1x3x256xf32, #tpu.memory_space<vmem>>, %arg3: memref<3x1xf32, #tpu.memory_space<vmem>>, %arg4: memref<3x1xf32, #tpu.memory_space<vmem>>, %arg5: memref<9x16x3xf32, #tpu.memory_space<vmem>>, %arg6: memref<16x1xf32, #tpu.memory_space<vmem>>, %arg7: memref<9x16x16xf32, #tpu.memory_space<vmem>>, %arg8: memref<16x1xf32, #tpu.memory_space<vmem>>, %arg9: memref<9x32x16xf32, #tpu.memory_space<vmem>>, %arg10: memref<32x1xf32, #tpu.memory_space<vmem>>, %arg11: memref<9x1x512xf32, #tpu.memory_space<vmem>>, %arg12: memref<9x1x512xf32, #tpu.memory_space<vmem>>, %arg13: memref<1x256xf32, #tpu.memory_space<vmem>>, %arg14: memref<1x1x256xf32, #tpu.memory_space<vmem>>) attributes {dimension_semantics = [#tpu.dimension_semantics<parallel>], iteration_bounds = array<i64: 2>, scalar_prefetch = 0 : i64, scratch_operands = 0 : i64, tpu.core_type = #tpu.core_type<tc>, window_params = [{transform_indices = @transform_0, window_bounds = array<i64: 1, 3, 256>}, {transform_indices = @transform_1, window_bounds = array<i64: 1, 3, 256>}, {pipeline_mode = #tpu.pipeline_mode<synchronous>, transform_indices = @transform_2, window_bounds = array<i64: 3, 1>}, {pipeline_mode = #tpu.pipeline_mode<synchronous>, transform_indices = @transform_3, window_bounds = array<i64: 3, 1>}, {pipeline_mode = #tpu.pipeline_mode<synchronous>, transform_indices = @transform_4, window_bounds = array<i64: 9, 16, 3>}, {pipeline_mode = #tpu.pipeline_mode<synchronous>, transform_indices = @transform_5, window_bounds = array<i64: 16, 1>}, {pipeline_mode = #tpu.pipeline_mode<synchronous>, transform_indices = @transform_6, window_bounds = array<i64: 9, 16, 16>}, {pipeline_mode = #tpu.pipeline_mode<synchronous>, transform_indices = @transform_7, window_bounds = array<i64: 16, 1>}, {pipeline_mode = #tpu.pipeline_mode<synchronous>, transform_indices = @transform_8, window_bounds = array<i64: 9, 32, 16>}, {pipeline_mode = #tpu.pipeline_mode<synchronous>, transform_indices = @transform_9, window_bounds = array<i64: 32, 1>}, {pipeline_mode = #tpu.pipeline_mode<synchronous>, transform_indices = @transform_10, window_bounds = array<i64: 9, 1, 512>}, {pipeline_mode = #tpu.pipeline_mode<synchronous>, transform_indices = @transform_11, window_bounds = array<i64: 9, 1, 512>}, {pipeline_mode = #tpu.pipeline_mode<synchronous>, transform_indices = @transform_12, window_bounds = array<i64: 1, 256>}, {transform_indices = @transform_13, window_bounds = array<i64: 1, 1, 256>}]} {
    %c0 = arith.constant 0 : index
    %c0_0 = arith.constant 0 : index
    %c0_1 = arith.constant 0 : index
    %0 = vector.load %arg1[%c0, %c0_0, %c0_1] : memref<1x3x256xf32, #tpu.memory_space<vmem>>, vector<1x3x256xf32>
    %1 = vector.shape_cast %0 : vector<1x3x256xf32> to vector<3x256xf32>
    %c0_2 = arith.constant 0 : index
    %c0_3 = arith.constant 0 : index
    %c0_4 = arith.constant 0 : index
    %2 = vector.load %arg2[%c0_2, %c0_3, %c0_4] : memref<1x3x256xf32, #tpu.memory_space<vmem>>, vector<1x3x256xf32>
    %3 = vector.shape_cast %2 : vector<1x3x256xf32> to vector<3x256xf32>
    %4 = tpu.concatenate %1, %3 in 1 : vector<3x256xf32>, vector<3x256xf32> -> vector<3x512xf32>
    %c0_5 = arith.constant 0 : index
    %c0_6 = arith.constant 0 : index
    %5 = vector.load %arg3[%c0_5, %c0_6] : memref<3x1xf32, #tpu.memory_space<vmem>>, vector<3x1xf32>
    %6 = vector.broadcast %5 : vector<3x1xf32> to vector<3x512xf32>
    %7 = arith.mulf %4, %6 : vector<3x512xf32>
    %c0_7 = arith.constant 0 : index
    %c0_8 = arith.constant 0 : index
    %8 = vector.load %arg4[%c0_7, %c0_8] : memref<3x1xf32, #tpu.memory_space<vmem>>, vector<3x1xf32>
    %9 = vector.broadcast %8 : vector<3x1xf32> to vector<3x512xf32>
    %10 = arith.addf %7, %9 : vector<3x512xf32>
    %cst = arith.constant 0.000000e+00 : f32
    %11 = vector.broadcast %cst : f32 to vector<16x512xf32>
    %c17_i32 = arith.constant 17 : i32
    %12 = tpu.dynamic_rotate %10 by %c17_i32 dim 1 : vector<3x512xf32>, i32 -> vector<3x512xf32>
    %c0_9 = arith.constant 0 : index
    %c0_10 = arith.constant 0 : index
    %c0_11 = arith.constant 0 : index
    %13 = vector.load %arg11[%c0_9, %c0_10, %c0_11] : memref<9x1x512xf32, #tpu.memory_space<vmem>>, vector<1x1x512xf32>
    %14 = vector.shape_cast %13 : vector<1x1x512xf32> to vector<1x512xf32>
    %15 = vector.broadcast %14 : vector<1x512xf32> to vector<3x512xf32>
    %16 = arith.mulf %12, %15 : vector<3x512xf32>
    %c0_12 = arith.constant 0 : index
    %c0_13 = arith.constant 0 : index
    %c0_14 = arith.constant 0 : index
    %17 = vector.load %arg5[%c0_12, %c0_13, %c0_14] : memref<9x16x3xf32, #tpu.memory_space<vmem>>, vector<1x16x3xf32>
    %18 = vector.shape_cast %17 : vector<1x16x3xf32> to vector<16x3xf32>
    %cst_15 = arith.constant dense<0.000000e+00> : vector<16x512xf32>
    %19 = tpu.matmul %18, %16, %cst_15 {dimension_numbers = #tpu.dot_dimension_numbers<[1], [0], [0], [1], [0, 0, 1, 1], [], []>} : vector<16x3xf32>, vector<3x512xf32>, vector<16x512xf32> -> vector<16x512xf32>
    %20 = arith.addf %11, %19 : vector<16x512xf32>
    %c16_i32 = arith.constant 16 : i32
    %21 = tpu.dynamic_rotate %10 by %c16_i32 dim 1 : vector<3x512xf32>, i32 -> vector<3x512xf32>
    %c1 = arith.constant 1 : index
    %c0_16 = arith.constant 0 : index
    %c0_17 = arith.constant 0 : index
    %22 = vector.load %arg11[%c1, %c0_16, %c0_17] : memref<9x1x512xf32, #tpu.memory_space<vmem>>, vector<1x1x512xf32>
    %23 = vector.shape_cast %22 : vector<1x1x512xf32> to vector<1x512xf32>
    %24 = vector.broadcast %23 : vector<1x512xf32> to vector<3x512xf32>
    %25 = arith.mulf %21, %24 : vector<3x512xf32>
    %c1_18 = arith.constant 1 : index
    %c0_19 = arith.constant 0 : index
    %c0_20 = arith.constant 0 : index
    %26 = vector.load %arg5[%c1_18, %c0_19, %c0_20] : memref<9x16x3xf32, #tpu.memory_space<vmem>>, vector<1x16x3xf32>
    %27 = vector.shape_cast %26 : vector<1x16x3xf32> to vector<16x3xf32>
    %cst_21 = arith.constant dense<0.000000e+00> : vector<16x512xf32>
    %28 = tpu.matmul %27, %25, %cst_21 {dimension_numbers = #tpu.dot_dimension_numbers<[1], [0], [0], [1], [0, 0, 1, 1], [], []>} : vector<16x3xf32>, vector<3x512xf32>, vector<16x512xf32> -> vector<16x512xf32>
    %29 = arith.addf %20, %28 : vector<16x512xf32>
    %c15_i32 = arith.constant 15 : i32
    %30 = tpu.dynamic_rotate %10 by %c15_i32 dim 1 : vector<3x512xf32>, i32 -> vector<3x512xf32>
    %c2 = arith.constant 2 : index
    %c0_22 = arith.constant 0 : index
    %c0_23 = arith.constant 0 : index
    %31 = vector.load %arg11[%c2, %c0_22, %c0_23] : memref<9x1x512xf32, #tpu.memory_space<vmem>>, vector<1x1x512xf32>
    %32 = vector.shape_cast %31 : vector<1x1x512xf32> to vector<1x512xf32>
    %33 = vector.broadcast %32 : vector<1x512xf32> to vector<3x512xf32>
    %34 = arith.mulf %30, %33 : vector<3x512xf32>
    %c2_24 = arith.constant 2 : index
    %c0_25 = arith.constant 0 : index
    %c0_26 = arith.constant 0 : index
    %35 = vector.load %arg5[%c2_24, %c0_25, %c0_26] : memref<9x16x3xf32, #tpu.memory_space<vmem>>, vector<1x16x3xf32>
    %36 = vector.shape_cast %35 : vector<1x16x3xf32> to vector<16x3xf32>
    %cst_27 = arith.constant dense<0.000000e+00> : vector<16x512xf32>
    %37 = tpu.matmul %36, %34, %cst_27 {dimension_numbers = #tpu.dot_dimension_numbers<[1], [0], [0], [1], [0, 0, 1, 1], [], []>} : vector<16x3xf32>, vector<3x512xf32>, vector<16x512xf32> -> vector<16x512xf32>
    %38 = arith.addf %29, %37 : vector<16x512xf32>
    %c1_i32 = arith.constant 1 : i32
    %39 = tpu.dynamic_rotate %10 by %c1_i32 dim 1 : vector<3x512xf32>, i32 -> vector<3x512xf32>
    %c3 = arith.constant 3 : index
    %c0_28 = arith.constant 0 : index
    %c0_29 = arith.constant 0 : index
    %40 = vector.load %arg11[%c3, %c0_28, %c0_29] : memref<9x1x512xf32, #tpu.memory_space<vmem>>, vector<1x1x512xf32>
    %41 = vector.shape_cast %40 : vector<1x1x512xf32> to vector<1x512xf32>
    %42 = vector.broadcast %41 : vector<1x512xf32> to vector<3x512xf32>
    %43 = arith.mulf %39, %42 : vector<3x512xf32>
    %c3_30 = arith.constant 3 : index
    %c0_31 = arith.constant 0 : index
    %c0_32 = arith.constant 0 : index
    %44 = vector.load %arg5[%c3_30, %c0_31, %c0_32] : memref<9x16x3xf32, #tpu.memory_space<vmem>>, vector<1x16x3xf32>
    %45 = vector.shape_cast %44 : vector<1x16x3xf32> to vector<16x3xf32>
    %cst_33 = arith.constant dense<0.000000e+00> : vector<16x512xf32>
    %46 = tpu.matmul %45, %43, %cst_33 {dimension_numbers = #tpu.dot_dimension_numbers<[1], [0], [0], [1], [0, 0, 1, 1], [], []>} : vector<16x3xf32>, vector<3x512xf32>, vector<16x512xf32> -> vector<16x512xf32>
    %47 = arith.addf %38, %46 : vector<16x512xf32>
    %c4 = arith.constant 4 : index
    %c0_34 = arith.constant 0 : index
    %c0_35 = arith.constant 0 : index
    %48 = vector.load %arg5[%c4, %c0_34, %c0_35] : memref<9x16x3xf32, #tpu.memory_space<vmem>>, vector<1x16x3xf32>
    %49 = vector.shape_cast %48 : vector<1x16x3xf32> to vector<16x3xf32>
    %cst_36 = arith.constant dense<0.000000e+00> : vector<16x512xf32>
    %50 = tpu.matmul %49, %10, %cst_36 {dimension_numbers = #tpu.dot_dimension_numbers<[1], [0], [0], [1], [0, 0, 1, 1], [], []>} : vector<16x3xf32>, vector<3x512xf32>, vector<16x512xf32> -> vector<16x512xf32>
    %51 = arith.addf %47, %50 : vector<16x512xf32>
    %c511_i32 = arith.constant 511 : i32
    %52 = tpu.dynamic_rotate %10 by %c511_i32 dim 1 : vector<3x512xf32>, i32 -> vector<3x512xf32>
    %c5 = arith.constant 5 : index
    %c0_37 = arith.constant 0 : index
    %c0_38 = arith.constant 0 : index
    %53 = vector.load %arg11[%c5, %c0_37, %c0_38] : memref<9x1x512xf32, #tpu.memory_space<vmem>>, vector<1x1x512xf32>
    %54 = vector.shape_cast %53 : vector<1x1x512xf32> to vector<1x512xf32>
    %55 = vector.broadcast %54 : vector<1x512xf32> to vector<3x512xf32>
    %56 = arith.mulf %52, %55 : vector<3x512xf32>
    %c5_39 = arith.constant 5 : index
    %c0_40 = arith.constant 0 : index
    %c0_41 = arith.constant 0 : index
    %57 = vector.load %arg5[%c5_39, %c0_40, %c0_41] : memref<9x16x3xf32, #tpu.memory_space<vmem>>, vector<1x16x3xf32>
    %58 = vector.shape_cast %57 : vector<1x16x3xf32> to vector<16x3xf32>
    %cst_42 = arith.constant dense<0.000000e+00> : vector<16x512xf32>
    %59 = tpu.matmul %58, %56, %cst_42 {dimension_numbers = #tpu.dot_dimension_numbers<[1], [0], [0], [1], [0, 0, 1, 1], [], []>} : vector<16x3xf32>, vector<3x512xf32>, vector<16x512xf32> -> vector<16x512xf32>
    %60 = arith.addf %51, %59 : vector<16x512xf32>
    %c497_i32 = arith.constant 497 : i32
    %61 = tpu.dynamic_rotate %10 by %c497_i32 dim 1 : vector<3x512xf32>, i32 -> vector<3x512xf32>
    %c6 = arith.constant 6 : index
    %c0_43 = arith.constant 0 : index
    %c0_44 = arith.constant 0 : index
    %62 = vector.load %arg11[%c6, %c0_43, %c0_44] : memref<9x1x512xf32, #tpu.memory_space<vmem>>, vector<1x1x512xf32>
    %63 = vector.shape_cast %62 : vector<1x1x512xf32> to vector<1x512xf32>
    %64 = vector.broadcast %63 : vector<1x512xf32> to vector<3x512xf32>
    %65 = arith.mulf %61, %64 : vector<3x512xf32>
    %c6_45 = arith.constant 6 : index
    %c0_46 = arith.constant 0 : index
    %c0_47 = arith.constant 0 : index
    %66 = vector.load %arg5[%c6_45, %c0_46, %c0_47] : memref<9x16x3xf32, #tpu.memory_space<vmem>>, vector<1x16x3xf32>
    %67 = vector.shape_cast %66 : vector<1x16x3xf32> to vector<16x3xf32>
    %cst_48 = arith.constant dense<0.000000e+00> : vector<16x512xf32>
    %68 = tpu.matmul %67, %65, %cst_48 {dimension_numbers = #tpu.dot_dimension_numbers<[1], [0], [0], [1], [0, 0, 1, 1], [], []>} : vector<16x3xf32>, vector<3x512xf32>, vector<16x512xf32> -> vector<16x512xf32>
    %69 = arith.addf %60, %68 : vector<16x512xf32>
    %c496_i32 = arith.constant 496 : i32
    %70 = tpu.dynamic_rotate %10 by %c496_i32 dim 1 : vector<3x512xf32>, i32 -> vector<3x512xf32>
    %c7 = arith.constant 7 : index
    %c0_49 = arith.constant 0 : index
    %c0_50 = arith.constant 0 : index
    %71 = vector.load %arg11[%c7, %c0_49, %c0_50] : memref<9x1x512xf32, #tpu.memory_space<vmem>>, vector<1x1x512xf32>
    %72 = vector.shape_cast %71 : vector<1x1x512xf32> to vector<1x512xf32>
    %73 = vector.broadcast %72 : vector<1x512xf32> to vector<3x512xf32>
    %74 = arith.mulf %70, %73 : vector<3x512xf32>
    %c7_51 = arith.constant 7 : index
    %c0_52 = arith.constant 0 : index
    %c0_53 = arith.constant 0 : index
    %75 = vector.load %arg5[%c7_51, %c0_52, %c0_53] : memref<9x16x3xf32, #tpu.memory_space<vmem>>, vector<1x16x3xf32>
    %76 = vector.shape_cast %75 : vector<1x16x3xf32> to vector<16x3xf32>
    %cst_54 = arith.constant dense<0.000000e+00> : vector<16x512xf32>
    %77 = tpu.matmul %76, %74, %cst_54 {dimension_numbers = #tpu.dot_dimension_numbers<[1], [0], [0], [1], [0, 0, 1, 1], [], []>} : vector<16x3xf32>, vector<3x512xf32>, vector<16x512xf32> -> vector<16x512xf32>
    %78 = arith.addf %69, %77 : vector<16x512xf32>
    %c495_i32 = arith.constant 495 : i32
    %79 = tpu.dynamic_rotate %10 by %c495_i32 dim 1 : vector<3x512xf32>, i32 -> vector<3x512xf32>
    %c8 = arith.constant 8 : index
    %c0_55 = arith.constant 0 : index
    %c0_56 = arith.constant 0 : index
    %80 = vector.load %arg11[%c8, %c0_55, %c0_56] : memref<9x1x512xf32, #tpu.memory_space<vmem>>, vector<1x1x512xf32>
    %81 = vector.shape_cast %80 : vector<1x1x512xf32> to vector<1x512xf32>
    %82 = vector.broadcast %81 : vector<1x512xf32> to vector<3x512xf32>
    %83 = arith.mulf %79, %82 : vector<3x512xf32>
    %c8_57 = arith.constant 8 : index
    %c0_58 = arith.constant 0 : index
    %c0_59 = arith.constant 0 : index
    %84 = vector.load %arg5[%c8_57, %c0_58, %c0_59] : memref<9x16x3xf32, #tpu.memory_space<vmem>>, vector<1x16x3xf32>
    %85 = vector.shape_cast %84 : vector<1x16x3xf32> to vector<16x3xf32>
    %cst_60 = arith.constant dense<0.000000e+00> : vector<16x512xf32>
    %86 = tpu.matmul %85, %83, %cst_60 {dimension_numbers = #tpu.dot_dimension_numbers<[1], [0], [0], [1], [0, 0, 1, 1], [], []>} : vector<16x3xf32>, vector<3x512xf32>, vector<16x512xf32> -> vector<16x512xf32>
    %87 = arith.addf %78, %86 : vector<16x512xf32>
    %c0_61 = arith.constant 0 : index
    %c0_62 = arith.constant 0 : index
    %88 = vector.load %arg6[%c0_61, %c0_62] : memref<16x1xf32, #tpu.memory_space<vmem>>, vector<16x1xf32>
    %89 = vector.broadcast %88 : vector<16x1xf32> to vector<16x512xf32>
    %90 = arith.addf %87, %89 : vector<16x512xf32>
    %cst_63 = arith.constant 0.000000e+00 : f32
    %91 = vector.broadcast %cst_63 : f32 to vector<16x512xf32>
    %92 = arith.maximumf %90, %91 : vector<16x512xf32>
    %cst_64 = arith.constant 0.000000e+00 : f32
    %93 = vector.broadcast %cst_64 : f32 to vector<16x512xf32>
    %c17_i32_65 = arith.constant 17 : i32
    %94 = tpu.dynamic_rotate %92 by %c17_i32_65 dim 1 : vector<16x512xf32>, i32 -> vector<16x512xf32>
    %c0_66 = arith.constant 0 : index
    %c0_67 = arith.constant 0 : index
    %c0_68 = arith.constant 0 : index
    %95 = vector.load %arg11[%c0_66, %c0_67, %c0_68] : memref<9x1x512xf32, #tpu.memory_space<vmem>>, vector<1x1x512xf32>
    %96 = vector.shape_cast %95 : vector<1x1x512xf32> to vector<1x512xf32>
    %97 = vector.broadcast %96 : vector<1x512xf32> to vector<16x512xf32>
    %98 = arith.mulf %94, %97 : vector<16x512xf32>
    %c0_69 = arith.constant 0 : index
    %c0_70 = arith.constant 0 : index
    %c0_71 = arith.constant 0 : index
    %99 = vector.load %arg7[%c0_69, %c0_70, %c0_71] : memref<9x16x16xf32, #tpu.memory_space<vmem>>, vector<1x16x16xf32>
    %100 = vector.shape_cast %99 : vector<1x16x16xf32> to vector<16x16xf32>
    %cst_72 = arith.constant dense<0.000000e+00> : vector<16x512xf32>
    %101 = tpu.matmul %100, %98, %cst_72 {dimension_numbers = #tpu.dot_dimension_numbers<[1], [0], [0], [1], [0, 0, 1, 1], [], []>} : vector<16x16xf32>, vector<16x512xf32>, vector<16x512xf32> -> vector<16x512xf32>
    %102 = arith.addf %93, %101 : vector<16x512xf32>
    %c16_i32_73 = arith.constant 16 : i32
    %103 = tpu.dynamic_rotate %92 by %c16_i32_73 dim 1 : vector<16x512xf32>, i32 -> vector<16x512xf32>
    %c1_74 = arith.constant 1 : index
    %c0_75 = arith.constant 0 : index
    %c0_76 = arith.constant 0 : index
    %104 = vector.load %arg11[%c1_74, %c0_75, %c0_76] : memref<9x1x512xf32, #tpu.memory_space<vmem>>, vector<1x1x512xf32>
    %105 = vector.shape_cast %104 : vector<1x1x512xf32> to vector<1x512xf32>
    %106 = vector.broadcast %105 : vector<1x512xf32> to vector<16x512xf32>
    %107 = arith.mulf %103, %106 : vector<16x512xf32>
    %c1_77 = arith.constant 1 : index
    %c0_78 = arith.constant 0 : index
    %c0_79 = arith.constant 0 : index
    %108 = vector.load %arg7[%c1_77, %c0_78, %c0_79] : memref<9x16x16xf32, #tpu.memory_space<vmem>>, vector<1x16x16xf32>
    %109 = vector.shape_cast %108 : vector<1x16x16xf32> to vector<16x16xf32>
    %cst_80 = arith.constant dense<0.000000e+00> : vector<16x512xf32>
    %110 = tpu.matmul %109, %107, %cst_80 {dimension_numbers = #tpu.dot_dimension_numbers<[1], [0], [0], [1], [0, 0, 1, 1], [], []>} : vector<16x16xf32>, vector<16x512xf32>, vector<16x512xf32> -> vector<16x512xf32>
    %111 = arith.addf %102, %110 : vector<16x512xf32>
    %c15_i32_81 = arith.constant 15 : i32
    %112 = tpu.dynamic_rotate %92 by %c15_i32_81 dim 1 : vector<16x512xf32>, i32 -> vector<16x512xf32>
    %c2_82 = arith.constant 2 : index
    %c0_83 = arith.constant 0 : index
    %c0_84 = arith.constant 0 : index
    %113 = vector.load %arg11[%c2_82, %c0_83, %c0_84] : memref<9x1x512xf32, #tpu.memory_space<vmem>>, vector<1x1x512xf32>
    %114 = vector.shape_cast %113 : vector<1x1x512xf32> to vector<1x512xf32>
    %115 = vector.broadcast %114 : vector<1x512xf32> to vector<16x512xf32>
    %116 = arith.mulf %112, %115 : vector<16x512xf32>
    %c2_85 = arith.constant 2 : index
    %c0_86 = arith.constant 0 : index
    %c0_87 = arith.constant 0 : index
    %117 = vector.load %arg7[%c2_85, %c0_86, %c0_87] : memref<9x16x16xf32, #tpu.memory_space<vmem>>, vector<1x16x16xf32>
    %118 = vector.shape_cast %117 : vector<1x16x16xf32> to vector<16x16xf32>
    %cst_88 = arith.constant dense<0.000000e+00> : vector<16x512xf32>
    %119 = tpu.matmul %118, %116, %cst_88 {dimension_numbers = #tpu.dot_dimension_numbers<[1], [0], [0], [1], [0, 0, 1, 1], [], []>} : vector<16x16xf32>, vector<16x512xf32>, vector<16x512xf32> -> vector<16x512xf32>
    %120 = arith.addf %111, %119 : vector<16x512xf32>
    %c1_i32_89 = arith.constant 1 : i32
    %121 = tpu.dynamic_rotate %92 by %c1_i32_89 dim 1 : vector<16x512xf32>, i32 -> vector<16x512xf32>
    %c3_90 = arith.constant 3 : index
    %c0_91 = arith.constant 0 : index
    %c0_92 = arith.constant 0 : index
    %122 = vector.load %arg11[%c3_90, %c0_91, %c0_92] : memref<9x1x512xf32, #tpu.memory_space<vmem>>, vector<1x1x512xf32>
    %123 = vector.shape_cast %122 : vector<1x1x512xf32> to vector<1x512xf32>
    %124 = vector.broadcast %123 : vector<1x512xf32> to vector<16x512xf32>
    %125 = arith.mulf %121, %124 : vector<16x512xf32>
    %c3_93 = arith.constant 3 : index
    %c0_94 = arith.constant 0 : index
    %c0_95 = arith.constant 0 : index
    %126 = vector.load %arg7[%c3_93, %c0_94, %c0_95] : memref<9x16x16xf32, #tpu.memory_space<vmem>>, vector<1x16x16xf32>
    %127 = vector.shape_cast %126 : vector<1x16x16xf32> to vector<16x16xf32>
    %cst_96 = arith.constant dense<0.000000e+00> : vector<16x512xf32>
    %128 = tpu.matmul %127, %125, %cst_96 {dimension_numbers = #tpu.dot_dimension_numbers<[1], [0], [0], [1], [0, 0, 1, 1], [], []>} : vector<16x16xf32>, vector<16x512xf32>, vector<16x512xf32> -> vector<16x512xf32>
    %129 = arith.addf %120, %128 : vector<16x512xf32>
    %c4_97 = arith.constant 4 : index
    %c0_98 = arith.constant 0 : index
    %c0_99 = arith.constant 0 : index
    %130 = vector.load %arg7[%c4_97, %c0_98, %c0_99] : memref<9x16x16xf32, #tpu.memory_space<vmem>>, vector<1x16x16xf32>
    %131 = vector.shape_cast %130 : vector<1x16x16xf32> to vector<16x16xf32>
    %cst_100 = arith.constant dense<0.000000e+00> : vector<16x512xf32>
    %132 = tpu.matmul %131, %92, %cst_100 {dimension_numbers = #tpu.dot_dimension_numbers<[1], [0], [0], [1], [0, 0, 1, 1], [], []>} : vector<16x16xf32>, vector<16x512xf32>, vector<16x512xf32> -> vector<16x512xf32>
    %133 = arith.addf %129, %132 : vector<16x512xf32>
    %c511_i32_101 = arith.constant 511 : i32
    %134 = tpu.dynamic_rotate %92 by %c511_i32_101 dim 1 : vector<16x512xf32>, i32 -> vector<16x512xf32>
    %c5_102 = arith.constant 5 : index
    %c0_103 = arith.constant 0 : index
    %c0_104 = arith.constant 0 : index
    %135 = vector.load %arg11[%c5_102, %c0_103, %c0_104] : memref<9x1x512xf32, #tpu.memory_space<vmem>>, vector<1x1x512xf32>
    %136 = vector.shape_cast %135 : vector<1x1x512xf32> to vector<1x512xf32>
    %137 = vector.broadcast %136 : vector<1x512xf32> to vector<16x512xf32>
    %138 = arith.mulf %134, %137 : vector<16x512xf32>
    %c5_105 = arith.constant 5 : index
    %c0_106 = arith.constant 0 : index
    %c0_107 = arith.constant 0 : index
    %139 = vector.load %arg7[%c5_105, %c0_106, %c0_107] : memref<9x16x16xf32, #tpu.memory_space<vmem>>, vector<1x16x16xf32>
    %140 = vector.shape_cast %139 : vector<1x16x16xf32> to vector<16x16xf32>
    %cst_108 = arith.constant dense<0.000000e+00> : vector<16x512xf32>
    %141 = tpu.matmul %140, %138, %cst_108 {dimension_numbers = #tpu.dot_dimension_numbers<[1], [0], [0], [1], [0, 0, 1, 1], [], []>} : vector<16x16xf32>, vector<16x512xf32>, vector<16x512xf32> -> vector<16x512xf32>
    %142 = arith.addf %133, %141 : vector<16x512xf32>
    %c497_i32_109 = arith.constant 497 : i32
    %143 = tpu.dynamic_rotate %92 by %c497_i32_109 dim 1 : vector<16x512xf32>, i32 -> vector<16x512xf32>
    %c6_110 = arith.constant 6 : index
    %c0_111 = arith.constant 0 : index
    %c0_112 = arith.constant 0 : index
    %144 = vector.load %arg11[%c6_110, %c0_111, %c0_112] : memref<9x1x512xf32, #tpu.memory_space<vmem>>, vector<1x1x512xf32>
    %145 = vector.shape_cast %144 : vector<1x1x512xf32> to vector<1x512xf32>
    %146 = vector.broadcast %145 : vector<1x512xf32> to vector<16x512xf32>
    %147 = arith.mulf %143, %146 : vector<16x512xf32>
    %c6_113 = arith.constant 6 : index
    %c0_114 = arith.constant 0 : index
    %c0_115 = arith.constant 0 : index
    %148 = vector.load %arg7[%c6_113, %c0_114, %c0_115] : memref<9x16x16xf32, #tpu.memory_space<vmem>>, vector<1x16x16xf32>
    %149 = vector.shape_cast %148 : vector<1x16x16xf32> to vector<16x16xf32>
    %cst_116 = arith.constant dense<0.000000e+00> : vector<16x512xf32>
    %150 = tpu.matmul %149, %147, %cst_116 {dimension_numbers = #tpu.dot_dimension_numbers<[1], [0], [0], [1], [0, 0, 1, 1], [], []>} : vector<16x16xf32>, vector<16x512xf32>, vector<16x512xf32> -> vector<16x512xf32>
    %151 = arith.addf %142, %150 : vector<16x512xf32>
    %c496_i32_117 = arith.constant 496 : i32
    %152 = tpu.dynamic_rotate %92 by %c496_i32_117 dim 1 : vector<16x512xf32>, i32 -> vector<16x512xf32>
    %c7_118 = arith.constant 7 : index
    %c0_119 = arith.constant 0 : index
    %c0_120 = arith.constant 0 : index
    %153 = vector.load %arg11[%c7_118, %c0_119, %c0_120] : memref<9x1x512xf32, #tpu.memory_space<vmem>>, vector<1x1x512xf32>
    %154 = vector.shape_cast %153 : vector<1x1x512xf32> to vector<1x512xf32>
    %155 = vector.broadcast %154 : vector<1x512xf32> to vector<16x512xf32>
    %156 = arith.mulf %152, %155 : vector<16x512xf32>
    %c7_121 = arith.constant 7 : index
    %c0_122 = arith.constant 0 : index
    %c0_123 = arith.constant 0 : index
    %157 = vector.load %arg7[%c7_121, %c0_122, %c0_123] : memref<9x16x16xf32, #tpu.memory_space<vmem>>, vector<1x16x16xf32>
    %158 = vector.shape_cast %157 : vector<1x16x16xf32> to vector<16x16xf32>
    %cst_124 = arith.constant dense<0.000000e+00> : vector<16x512xf32>
    %159 = tpu.matmul %158, %156, %cst_124 {dimension_numbers = #tpu.dot_dimension_numbers<[1], [0], [0], [1], [0, 0, 1, 1], [], []>} : vector<16x16xf32>, vector<16x512xf32>, vector<16x512xf32> -> vector<16x512xf32>
    %160 = arith.addf %151, %159 : vector<16x512xf32>
    %c495_i32_125 = arith.constant 495 : i32
    %161 = tpu.dynamic_rotate %92 by %c495_i32_125 dim 1 : vector<16x512xf32>, i32 -> vector<16x512xf32>
    %c8_126 = arith.constant 8 : index
    %c0_127 = arith.constant 0 : index
    %c0_128 = arith.constant 0 : index
    %162 = vector.load %arg11[%c8_126, %c0_127, %c0_128] : memref<9x1x512xf32, #tpu.memory_space<vmem>>, vector<1x1x512xf32>
    %163 = vector.shape_cast %162 : vector<1x1x512xf32> to vector<1x512xf32>
    %164 = vector.broadcast %163 : vector<1x512xf32> to vector<16x512xf32>
    %165 = arith.mulf %161, %164 : vector<16x512xf32>
    %c8_129 = arith.constant 8 : index
    %c0_130 = arith.constant 0 : index
    %c0_131 = arith.constant 0 : index
    %166 = vector.load %arg7[%c8_129, %c0_130, %c0_131] : memref<9x16x16xf32, #tpu.memory_space<vmem>>, vector<1x16x16xf32>
    %167 = vector.shape_cast %166 : vector<1x16x16xf32> to vector<16x16xf32>
    %cst_132 = arith.constant dense<0.000000e+00> : vector<16x512xf32>
    %168 = tpu.matmul %167, %165, %cst_132 {dimension_numbers = #tpu.dot_dimension_numbers<[1], [0], [0], [1], [0, 0, 1, 1], [], []>} : vector<16x16xf32>, vector<16x512xf32>, vector<16x512xf32> -> vector<16x512xf32>
    %169 = arith.addf %160, %168 : vector<16x512xf32>
    %c0_133 = arith.constant 0 : index
    %c0_134 = arith.constant 0 : index
    %170 = vector.load %arg8[%c0_133, %c0_134] : memref<16x1xf32, #tpu.memory_space<vmem>>, vector<16x1xf32>
    %171 = vector.broadcast %170 : vector<16x1xf32> to vector<16x512xf32>
    %172 = arith.addf %169, %171 : vector<16x512xf32>
    %cst_135 = arith.constant 0.000000e+00 : f32
    %173 = vector.broadcast %cst_135 : f32 to vector<16x512xf32>
    %174 = arith.maximumf %172, %173 : vector<16x512xf32>
    %c511_i32_136 = arith.constant 511 : i32
    %175 = tpu.dynamic_rotate %174 by %c511_i32_136 dim 1 : vector<16x512xf32>, i32 -> vector<16x512xf32>
    %176 = arith.maximumf %174, %175 : vector<16x512xf32>
    %c496_i32_137 = arith.constant 496 : i32
    %177 = tpu.dynamic_rotate %176 by %c496_i32_137 dim 1 : vector<16x512xf32>, i32 -> vector<16x512xf32>
    %178 = arith.maximumf %176, %177 : vector<16x512xf32>
    %cst_138 = arith.constant 0.000000e+00 : f32
    %179 = vector.broadcast %cst_138 : f32 to vector<32x512xf32>
    %c34_i32 = arith.constant 34 : i32
    %180 = tpu.dynamic_rotate %178 by %c34_i32 dim 1 : vector<16x512xf32>, i32 -> vector<16x512xf32>
    %c0_139 = arith.constant 0 : index
    %c0_140 = arith.constant 0 : index
    %c0_141 = arith.constant 0 : index
    %181 = vector.load %arg12[%c0_139, %c0_140, %c0_141] : memref<9x1x512xf32, #tpu.memory_space<vmem>>, vector<1x1x512xf32>
    %182 = vector.shape_cast %181 : vector<1x1x512xf32> to vector<1x512xf32>
    %183 = vector.broadcast %182 : vector<1x512xf32> to vector<16x512xf32>
    %184 = arith.mulf %180, %183 : vector<16x512xf32>
    %c0_142 = arith.constant 0 : index
    %c0_143 = arith.constant 0 : index
    %c0_144 = arith.constant 0 : index
    %185 = vector.load %arg9[%c0_142, %c0_143, %c0_144] : memref<9x32x16xf32, #tpu.memory_space<vmem>>, vector<1x32x16xf32>
    %186 = vector.shape_cast %185 : vector<1x32x16xf32> to vector<32x16xf32>
    %cst_145 = arith.constant dense<0.000000e+00> : vector<32x512xf32>
    %187 = tpu.matmul %186, %184, %cst_145 {dimension_numbers = #tpu.dot_dimension_numbers<[1], [0], [0], [1], [0, 0, 1, 1], [], []>} : vector<32x16xf32>, vector<16x512xf32>, vector<32x512xf32> -> vector<32x512xf32>
    %188 = arith.addf %179, %187 : vector<32x512xf32>
    %c32_i32 = arith.constant 32 : i32
    %189 = tpu.dynamic_rotate %178 by %c32_i32 dim 1 : vector<16x512xf32>, i32 -> vector<16x512xf32>
    %c1_146 = arith.constant 1 : index
    %c0_147 = arith.constant 0 : index
    %c0_148 = arith.constant 0 : index
    %190 = vector.load %arg12[%c1_146, %c0_147, %c0_148] : memref<9x1x512xf32, #tpu.memory_space<vmem>>, vector<1x1x512xf32>
    %191 = vector.shape_cast %190 : vector<1x1x512xf32> to vector<1x512xf32>
    %192 = vector.broadcast %191 : vector<1x512xf32> to vector<16x512xf32>
    %193 = arith.mulf %189, %192 : vector<16x512xf32>
    %c1_149 = arith.constant 1 : index
    %c0_150 = arith.constant 0 : index
    %c0_151 = arith.constant 0 : index
    %194 = vector.load %arg9[%c1_149, %c0_150, %c0_151] : memref<9x32x16xf32, #tpu.memory_space<vmem>>, vector<1x32x16xf32>
    %195 = vector.shape_cast %194 : vector<1x32x16xf32> to vector<32x16xf32>
    %cst_152 = arith.constant dense<0.000000e+00> : vector<32x512xf32>
    %196 = tpu.matmul %195, %193, %cst_152 {dimension_numbers = #tpu.dot_dimension_numbers<[1], [0], [0], [1], [0, 0, 1, 1], [], []>} : vector<32x16xf32>, vector<16x512xf32>, vector<32x512xf32> -> vector<32x512xf32>
    %197 = arith.addf %188, %196 : vector<32x512xf32>
    %c30_i32 = arith.constant 30 : i32
    %198 = tpu.dynamic_rotate %178 by %c30_i32 dim 1 : vector<16x512xf32>, i32 -> vector<16x512xf32>
    %c2_153 = arith.constant 2 : index
    %c0_154 = arith.constant 0 : index
    %c0_155 = arith.constant 0 : index
    %199 = vector.load %arg12[%c2_153, %c0_154, %c0_155] : memref<9x1x512xf32, #tpu.memory_space<vmem>>, vector<1x1x512xf32>
    %200 = vector.shape_cast %199 : vector<1x1x512xf32> to vector<1x512xf32>
    %201 = vector.broadcast %200 : vector<1x512xf32> to vector<16x512xf32>
    %202 = arith.mulf %198, %201 : vector<16x512xf32>
    %c2_156 = arith.constant 2 : index
    %c0_157 = arith.constant 0 : index
    %c0_158 = arith.constant 0 : index
    %203 = vector.load %arg9[%c2_156, %c0_157, %c0_158] : memref<9x32x16xf32, #tpu.memory_space<vmem>>, vector<1x32x16xf32>
    %204 = vector.shape_cast %203 : vector<1x32x16xf32> to vector<32x16xf32>
    %cst_159 = arith.constant dense<0.000000e+00> : vector<32x512xf32>
    %205 = tpu.matmul %204, %202, %cst_159 {dimension_numbers = #tpu.dot_dimension_numbers<[1], [0], [0], [1], [0, 0, 1, 1], [], []>} : vector<32x16xf32>, vector<16x512xf32>, vector<32x512xf32> -> vector<32x512xf32>
    %206 = arith.addf %197, %205 : vector<32x512xf32>
    %c2_i32 = arith.constant 2 : i32
    %207 = tpu.dynamic_rotate %178 by %c2_i32 dim 1 : vector<16x512xf32>, i32 -> vector<16x512xf32>
    %c3_160 = arith.constant 3 : index
    %c0_161 = arith.constant 0 : index
    %c0_162 = arith.constant 0 : index
    %208 = vector.load %arg12[%c3_160, %c0_161, %c0_162] : memref<9x1x512xf32, #tpu.memory_space<vmem>>, vector<1x1x512xf32>
    %209 = vector.shape_cast %208 : vector<1x1x512xf32> to vector<1x512xf32>
    %210 = vector.broadcast %209 : vector<1x512xf32> to vector<16x512xf32>
    %211 = arith.mulf %207, %210 : vector<16x512xf32>
    %c3_163 = arith.constant 3 : index
    %c0_164 = arith.constant 0 : index
    %c0_165 = arith.constant 0 : index
    %212 = vector.load %arg9[%c3_163, %c0_164, %c0_165] : memref<9x32x16xf32, #tpu.memory_space<vmem>>, vector<1x32x16xf32>
    %213 = vector.shape_cast %212 : vector<1x32x16xf32> to vector<32x16xf32>
    %cst_166 = arith.constant dense<0.000000e+00> : vector<32x512xf32>
    %214 = tpu.matmul %213, %211, %cst_166 {dimension_numbers = #tpu.dot_dimension_numbers<[1], [0], [0], [1], [0, 0, 1, 1], [], []>} : vector<32x16xf32>, vector<16x512xf32>, vector<32x512xf32> -> vector<32x512xf32>
    %215 = arith.addf %206, %214 : vector<32x512xf32>
    %c4_167 = arith.constant 4 : index
    %c0_168 = arith.constant 0 : index
    %c0_169 = arith.constant 0 : index
    %216 = vector.load %arg9[%c4_167, %c0_168, %c0_169] : memref<9x32x16xf32, #tpu.memory_space<vmem>>, vector<1x32x16xf32>
    %217 = vector.shape_cast %216 : vector<1x32x16xf32> to vector<32x16xf32>
    %cst_170 = arith.constant dense<0.000000e+00> : vector<32x512xf32>
    %218 = tpu.matmul %217, %178, %cst_170 {dimension_numbers = #tpu.dot_dimension_numbers<[1], [0], [0], [1], [0, 0, 1, 1], [], []>} : vector<32x16xf32>, vector<16x512xf32>, vector<32x512xf32> -> vector<32x512xf32>
    %219 = arith.addf %215, %218 : vector<32x512xf32>
    %c510_i32 = arith.constant 510 : i32
    %220 = tpu.dynamic_rotate %178 by %c510_i32 dim 1 : vector<16x512xf32>, i32 -> vector<16x512xf32>
    %c5_171 = arith.constant 5 : index
    %c0_172 = arith.constant 0 : index
    %c0_173 = arith.constant 0 : index
    %221 = vector.load %arg12[%c5_171, %c0_172, %c0_173] : memref<9x1x512xf32, #tpu.memory_space<vmem>>, vector<1x1x512xf32>
    %222 = vector.shape_cast %221 : vector<1x1x512xf32> to vector<1x512xf32>
    %223 = vector.broadcast %222 : vector<1x512xf32> to vector<16x512xf32>
    %224 = arith.mulf %220, %223 : vector<16x512xf32>
    %c5_174 = arith.constant 5 : index
    %c0_175 = arith.constant 0 : index
    %c0_176 = arith.constant 0 : index
    %225 = vector.load %arg9[%c5_174, %c0_175, %c0_176] : memref<9x32x16xf32, #tpu.memory_space<vmem>>, vector<1x32x16xf32>
    %226 = vector.shape_cast %225 : vector<1x32x16xf32> to vector<32x16xf32>
    %cst_177 = arith.constant dense<0.000000e+00> : vector<32x512xf32>
    %227 = tpu.matmul %226, %224, %cst_177 {dimension_numbers = #tpu.dot_dimension_numbers<[1], [0], [0], [1], [0, 0, 1, 1], [], []>} : vector<32x16xf32>, vector<16x512xf32>, vector<32x512xf32> -> vector<32x512xf32>
    %228 = arith.addf %219, %227 : vector<32x512xf32>
    %c482_i32 = arith.constant 482 : i32
    %229 = tpu.dynamic_rotate %178 by %c482_i32 dim 1 : vector<16x512xf32>, i32 -> vector<16x512xf32>
    %c6_178 = arith.constant 6 : index
    %c0_179 = arith.constant 0 : index
    %c0_180 = arith.constant 0 : index
    %230 = vector.load %arg12[%c6_178, %c0_179, %c0_180] : memref<9x1x512xf32, #tpu.memory_space<vmem>>, vector<1x1x512xf32>
    %231 = vector.shape_cast %230 : vector<1x1x512xf32> to vector<1x512xf32>
    %232 = vector.broadcast %231 : vector<1x512xf32> to vector<16x512xf32>
    %233 = arith.mulf %229, %232 : vector<16x512xf32>
    %c6_181 = arith.constant 6 : index
    %c0_182 = arith.constant 0 : index
    %c0_183 = arith.constant 0 : index
    %234 = vector.load %arg9[%c6_181, %c0_182, %c0_183] : memref<9x32x16xf32, #tpu.memory_space<vmem>>, vector<1x32x16xf32>
    %235 = vector.shape_cast %234 : vector<1x32x16xf32> to vector<32x16xf32>
    %cst_184 = arith.constant dense<0.000000e+00> : vector<32x512xf32>
    %236 = tpu.matmul %235, %233, %cst_184 {dimension_numbers = #tpu.dot_dimension_numbers<[1], [0], [0], [1], [0, 0, 1, 1], [], []>} : vector<32x16xf32>, vector<16x512xf32>, vector<32x512xf32> -> vector<32x512xf32>
    %237 = arith.addf %228, %236 : vector<32x512xf32>
    %c480_i32 = arith.constant 480 : i32
    %238 = tpu.dynamic_rotate %178 by %c480_i32 dim 1 : vector<16x512xf32>, i32 -> vector<16x512xf32>
    %c7_185 = arith.constant 7 : index
    %c0_186 = arith.constant 0 : index
    %c0_187 = arith.constant 0 : index
    %239 = vector.load %arg12[%c7_185, %c0_186, %c0_187] : memref<9x1x512xf32, #tpu.memory_space<vmem>>, vector<1x1x512xf32>
    %240 = vector.shape_cast %239 : vector<1x1x512xf32> to vector<1x512xf32>
    %241 = vector.broadcast %240 : vector<1x512xf32> to vector<16x512xf32>
    %242 = arith.mulf %238, %241 : vector<16x512xf32>
    %c7_188 = arith.constant 7 : index
    %c0_189 = arith.constant 0 : index
    %c0_190 = arith.constant 0 : index
    %243 = vector.load %arg9[%c7_188, %c0_189, %c0_190] : memref<9x32x16xf32, #tpu.memory_space<vmem>>, vector<1x32x16xf32>
    %244 = vector.shape_cast %243 : vector<1x32x16xf32> to vector<32x16xf32>
    %cst_191 = arith.constant dense<0.000000e+00> : vector<32x512xf32>
    %245 = tpu.matmul %244, %242, %cst_191 {dimension_numbers = #tpu.dot_dimension_numbers<[1], [0], [0], [1], [0, 0, 1, 1], [], []>} : vector<32x16xf32>, vector<16x512xf32>, vector<32x512xf32> -> vector<32x512xf32>
    %246 = arith.addf %237, %245 : vector<32x512xf32>
    %c478_i32 = arith.constant 478 : i32
    %247 = tpu.dynamic_rotate %178 by %c478_i32 dim 1 : vector<16x512xf32>, i32 -> vector<16x512xf32>
    %c8_192 = arith.constant 8 : index
    %c0_193 = arith.constant 0 : index
    %c0_194 = arith.constant 0 : index
    %248 = vector.load %arg12[%c8_192, %c0_193, %c0_194] : memref<9x1x512xf32, #tpu.memory_space<vmem>>, vector<1x1x512xf32>
    %249 = vector.shape_cast %248 : vector<1x1x512xf32> to vector<1x512xf32>
    %250 = vector.broadcast %249 : vector<1x512xf32> to vector<16x512xf32>
    %251 = arith.mulf %247, %250 : vector<16x512xf32>
    %c8_195 = arith.constant 8 : index
    %c0_196 = arith.constant 0 : index
    %c0_197 = arith.constant 0 : index
    %252 = vector.load %arg9[%c8_195, %c0_196, %c0_197] : memref<9x32x16xf32, #tpu.memory_space<vmem>>, vector<1x32x16xf32>
    %253 = vector.shape_cast %252 : vector<1x32x16xf32> to vector<32x16xf32>
    %cst_198 = arith.constant dense<0.000000e+00> : vector<32x512xf32>
    %254 = tpu.matmul %253, %251, %cst_198 {dimension_numbers = #tpu.dot_dimension_numbers<[1], [0], [0], [1], [0, 0, 1, 1], [], []>} : vector<32x16xf32>, vector<16x512xf32>, vector<32x512xf32> -> vector<32x512xf32>
    %255 = arith.addf %246, %254 : vector<32x512xf32>
    %c0_199 = arith.constant 0 : index
    %c0_200 = arith.constant 0 : index
    %256 = vector.load %arg10[%c0_199, %c0_200] : memref<32x1xf32, #tpu.memory_space<vmem>>, vector<32x1xf32>
    %257 = vector.broadcast %256 : vector<32x1xf32> to vector<32x512xf32>
    %258 = arith.addf %255, %257 : vector<32x512xf32>
    %cst_201 = arith.constant 0.000000e+00 : f32
    %259 = vector.broadcast %cst_201 : f32 to vector<32x512xf32>
    %260 = arith.maximumf %258, %259 : vector<32x512xf32>
    %261 = vector.extract_strided_slice %260 {offsets = [0, 0], sizes = [32, 256], strides = [1, 1]} : vector<32x512xf32> to vector<32x256xf32>
    %262 = vector.extract_strided_slice %260 {offsets = [0, 256], sizes = [32, 256], strides = [1, 1]} : vector<32x512xf32> to vector<32x256xf32>
    %263 = arith.subf %261, %262 : vector<32x256xf32>
    %264 = math.absf %263 : vector<32x256xf32>
    %c0_202 = arith.constant 0 : index
    %c0_203 = arith.constant 0 : index
    %265 = vector.load %arg13[%c0_202, %c0_203] : memref<1x256xf32, #tpu.memory_space<vmem>>, vector<1x256xf32>
    %266 = vector.broadcast %265 : vector<1x256xf32> to vector<32x256xf32>
    %267 = arith.mulf %264, %266 : vector<32x256xf32>
    %cst_204 = arith.constant dense<0.000000e+00> : vector<256xf32>
    %268 = vector.multi_reduction <add>, %267, %cst_204 [0] : vector<32x256xf32> to vector<256xf32>
    %269 = vector.shape_cast %268 : vector<256xf32> to vector<1x256xf32>
    %270 = vector.shape_cast %269 : vector<1x256xf32> to vector<1x1x256xf32>
    %c0_205 = arith.constant 0 : index
    %c0_206 = arith.constant 0 : index
    %c0_207 = arith.constant 0 : index
    %271 = vector.load %arg14[%c0_205, %c0_206, %c0_207] : memref<1x1x256xf32, #tpu.memory_space<vmem>>, vector<1x1x256xf32>
    tpu.vector_store %arg14[%c0_205, %c0_206, %c0_207], %270 {strides = array<i32>} : memref<1x1x256xf32, #tpu.memory_space<vmem>>, vector<1x1x256xf32>,
    return
  }
  func.func @transform_0(%arg0: i32) -> (i32, i32, i32) {
    %c0_i32 = arith.constant 0 : i32
    %c0_i32_0 = arith.constant 0 : i32
    %c0_i32_1 = arith.constant 0 : i32
    return %arg0, %c0_i32, %c0_i32_0 : i32, i32, i32
  }
  func.func @transform_1(%arg0: i32) -> (i32, i32, i32) {
    %c0_i32 = arith.constant 0 : i32
    %c0_i32_0 = arith.constant 0 : i32
    %c0_i32_1 = arith.constant 0 : i32
    return %arg0, %c0_i32, %c0_i32_0 : i32, i32, i32
  }
  func.func @transform_2(%arg0: i32) -> (i32, i32) {
    %c0_i32 = arith.constant 0 : i32
    %c0_i32_0 = arith.constant 0 : i32
    %c0_i32_1 = arith.constant 0 : i32
    return %c0_i32, %c0_i32_0 : i32, i32
  }
  func.func @transform_3(%arg0: i32) -> (i32, i32) {
    %c0_i32 = arith.constant 0 : i32
    %c0_i32_0 = arith.constant 0 : i32
    %c0_i32_1 = arith.constant 0 : i32
    return %c0_i32, %c0_i32_0 : i32, i32
  }
  func.func @transform_4(%arg0: i32) -> (i32, i32, i32) {
    %c0_i32 = arith.constant 0 : i32
    %c0_i32_0 = arith.constant 0 : i32
    %c0_i32_1 = arith.constant 0 : i32
    %c0_i32_2 = arith.constant 0 : i32
    return %c0_i32, %c0_i32_0, %c0_i32_1 : i32, i32, i32
  }
  func.func @transform_5(%arg0: i32) -> (i32, i32) {
    %c0_i32 = arith.constant 0 : i32
    %c0_i32_0 = arith.constant 0 : i32
    %c0_i32_1 = arith.constant 0 : i32
    return %c0_i32, %c0_i32_0 : i32, i32
  }
  func.func @transform_6(%arg0: i32) -> (i32, i32, i32) {
    %c0_i32 = arith.constant 0 : i32
    %c0_i32_0 = arith.constant 0 : i32
    %c0_i32_1 = arith.constant 0 : i32
    %c0_i32_2 = arith.constant 0 : i32
    return %c0_i32, %c0_i32_0, %c0_i32_1 : i32, i32, i32
  }
  func.func @transform_7(%arg0: i32) -> (i32, i32) {
    %c0_i32 = arith.constant 0 : i32
    %c0_i32_0 = arith.constant 0 : i32
    %c0_i32_1 = arith.constant 0 : i32
    return %c0_i32, %c0_i32_0 : i32, i32
  }
  func.func @transform_8(%arg0: i32) -> (i32, i32, i32) {
    %c0_i32 = arith.constant 0 : i32
    %c0_i32_0 = arith.constant 0 : i32
    %c0_i32_1 = arith.constant 0 : i32
    %c0_i32_2 = arith.constant 0 : i32
    return %c0_i32, %c0_i32_0, %c0_i32_1 : i32, i32, i32
  }
  func.func @transform_9(%arg0: i32) -> (i32, i32) {
    %c0_i32 = arith.constant 0 : i32
    %c0_i32_0 = arith.constant 0 : i32
    %c0_i32_1 = arith.constant 0 : i32
    return %c0_i32, %c0_i32_0 : i32, i32
  }
  func.func @transform_10(%arg0: i32) -> (i32, i32, i32) {
    %c0_i32 = arith.constant 0 : i32
    %c0_i32_0 = arith.constant 0 : i32
    %c0_i32_1 = arith.constant 0 : i32
    %c0_i32_2 = arith.constant 0 : i32
    return %c0_i32, %c0_i32_0, %c0_i32_1 : i32, i32, i32
  }
  func.func @transform_11(%arg0: i32) -> (i32, i32, i32) {
    %c0_i32 = arith.constant 0 : i32
    %c0_i32_0 = arith.constant 0 : i32
    %c0_i32_1 = arith.constant 0 : i32
    %c0_i32_2 = arith.constant 0 : i32
    return %c0_i32, %c0_i32_0, %c0_i32_1 : i32, i32, i32
  }
  func.func @transform_12(%arg0: i32) -> (i32, i32) {
    %c0_i32 = arith.constant 0 : i32
    %c0_i32_0 = arith.constant 0 : i32
    %c0_i32_1 = arith.constant 0 : i32
    return %c0_i32, %c0_i32_0 : i32, i32
  }
  func.func @transform_13(%arg0: i32) -> (i32, i32, i32) {
    %c0_i32 = arith.constant 0 : i32
    %c0_i32_0 = arith.constant 0 : i32
    %c0_i32_1 = arith.constant 0 : i32
    return %arg0, %c0_i32, %c0_i32_0 : i32, i32, i32
  }
}

</mosaic_0001>

<llo_original>
// kernel: content_loss.1
$region0: #{content_loss.1}
  #allocation0 [shape = 'u32[]', space=smem, size = 0x4, offset = 0x4, fixed_abs, tag = 'smem constant byte address 0x4 - core index']
  #allocation1 [shape = 'u32[144,128]{1,0:T(1,128)}', space=vmem, size = 0x12000, scoped, tag = 'internal scratch']
  %s0 = inlined_call_operand.vmem [shape: f32[2,3,256], index: 0, kind: input, shape index: {}]
  %s1 = inlined_call_operand.vmem [shape: f32[2,3,256], index: 1, kind: input, shape index: {}]
  %s2 = inlined_call_operand.vmem [shape: f32[3,1], index: 2, kind: input, shape index: {}]
  %s3 = inlined_call_operand.vmem [shape: f32[3,1], index: 3, kind: input, shape index: {}]
  %s4 = inlined_call_operand.vmem [shape: f32[9,16,3], index: 4, kind: input, shape index: {}]
  %s5 = inlined_call_operand.vmem [shape: f32[16,1], index: 5, kind: input, shape index: {}]
  %s6 = inlined_call_operand.vmem [shape: f32[9,16,16], index: 6, kind: input, shape index: {}]
  %s7 = inlined_call_operand.vmem [shape: f32[16,1], index: 7, kind: input, shape index: {}]
  %s8 = inlined_call_operand.vmem [shape: f32[9,32,16], index: 8, kind: input, shape index: {}]
  %s9 = inlined_call_operand.vmem [shape: f32[32,1], index: 9, kind: input, shape index: {}]
  %s10 = inlined_call_operand.vmem [shape: f32[9,1,512], index: 10, kind: input, shape index: {}]
  %s11 = inlined_call_operand.vmem [shape: f32[9,1,512], index: 11, kind: input, shape index: {}]
  %s12 = inlined_call_operand.vmem [shape: f32[1,256], index: 12, kind: input, shape index: {}]
  %s13 = inlined_call_operand.vmem [shape: f32[2,1,256], index: 13, kind: output, shape index: {}]
  %s14 = sld [smem:[#allocation0]]
  $region85: #{content_loss.1} parent=0
    _
  %s16 = ssub.s32 1, %s14
  %s17 = scalar_select 0, %s16, %s14
  loop: start=0, step=1, limit=4
  $region2: #{content_loss.1} parent=0 // loop_pre_header
    _
  $region3: #{content_loss.1} parent=0 // loop_header
    %s19 = sphi 0, %s23
    %p20 = scmp.ge.s32.totalorder %s19, 4
    %s29 = sphi 0, %s31
    %s32 = sphi 0, %s29
    %s33 = sphi 0, %s32
    %s49 = sphi 0, %s33
    %s55 = sphi 0, %s57
    %s58 = sphi 0, %s55
    %s59 = sphi 0, %s58
    %s75 = sphi 0, %s59
    %s79 = sphi 0, %s79
    %s81 = sphi 0, %s79
    %s82 = sphi 0, %s81
    %s96 = sphi 0, %s82
    %s100 = sphi 0, %s100
    %s102 = sphi 0, %s100
    %s103 = sphi 0, %s102
    %s117 = sphi 0, %s103
    %s121 = sphi 0, %s121
    %s123 = sphi 0, %s121
    %s124 = sphi 0, %s123
    %s138 = sphi 0, %s124
    %s142 = sphi 0, %s142
    %s144 = sphi 0, %s142
    %s145 = sphi 0, %s144
    %s159 = sphi 0, %s145
    %s163 = sphi 0, %s163
    %s165 = sphi 0, %s163
    %s166 = sphi 0, %s165
    %s180 = sphi 0, %s166
    %s184 = sphi 0, %s184
    %s186 = sphi 0, %s184
    %s187 = sphi 0, %s186
    %s201 = sphi 0, %s187
    %s205 = sphi 0, %s205
    %s207 = sphi 0, %s205
    %s208 = sphi 0, %s207
    %s222 = sphi 0, %s208
    %s226 = sphi 0, %s226
    %s228 = sphi 0, %s226
    %s229 = sphi 0, %s228
    %s243 = sphi 0, %s229
    %s247 = sphi 0, %s247
    %s249 = sphi 0, %s247
    %s250 = sphi 0, %s249
    %s264 = sphi 0, %s250
    %s268 = sphi 0, %s268
    %s270 = sphi 0, %s268
    %s271 = sphi 0, %s270
    %s285 = sphi 0, %s271
    %s289 = sphi 0, %s289
    %s291 = sphi 0, %s289
    %s292 = sphi 0, %s291
    %s306 = sphi 0, %s292
    %s312 = sphi 0, %s314
    %s315 = sphi 0, %s312
    %s316 = sphi 0, %s315
    %s332 = sphi 0, %s316
  $region4: #{content_loss.1} parent=0 // loop_header_branch
    %22 = sbr.rel (%p20) target = $region8
  $region5: #{content_loss.1} parent=0 // loop_body
    %s24 = ssub.s32 %s19, 1
    %s25 = ssub.s32 %s19, 2
    %s26 = sadd.s32 %s19, 1
    %s27 = ssub.s32 %s19, %s26
    %p28 = scmp.eq.s32.totalorder %s27, 0
    %s30 = sadd.s32 %s29, 1
    %s31 = scalar_select %p28, %s29, %s30
    %p34 = pneg %p28
    %p35 = scmp.eq.s32.totalorder %s19, 1
    %p36 = por %p34, %p35
    %p37 = scmp.ne.s32.totalorder %s29, %s32
    %p38 = scmp.eq.s32.totalorder %s19, 0
    %p39 = por %p37, %p38
    %p40 = scmp.ne.s32.totalorder %s29, %s32
    %p41 = scmp.eq.s32.totalorder %s24, 1
    %p42 = por %p40, %p41
    %p43 = scmp.ne.s32.totalorder %s32, %s33
    %p44 = scmp.eq.s32.totalorder %s24, 0
    %p45 = por %p43, %p44
    %p46 = scmp.ne.s32.totalorder %s32, %s33
    %p47 = scmp.eq.s32.totalorder %s25, 1
    %p48 = por %p46, %p47
    %p50 = scmp.ne.s32.totalorder %s33, %s49
    %p51 = scmp.eq.s32.totalorder %s25, 0
    %p52 = por %p50, %p51
    %s53 = ssub.s32 %s19, %s26
    %p54 = scmp.eq.s32.totalorder %s53, 0
    %s56 = sadd.s32 %s55, 1
    %s57 = scalar_select %p54, %s55, %s56
    %p60 = pneg %p54
    %p61 = scmp.eq.s32.totalorder %s19, 1
    %p62 = por %p60, %p61
    %p63 = scmp.ne.s32.totalorder %s55, %s58
    %p64 = scmp.eq.s32.totalorder %s19, 0
    %p65 = por %p63, %p64
    %p66 = scmp.ne.s32.totalorder %s55, %s58
    %p67 = scmp.eq.s32.totalorder %s24, 1
    %p68 = por %p66, %p67
    %p69 = scmp.ne.s32.totalorder %s58, %s59
    %p70 = scmp.eq.s32.totalorder %s24, 0
    %p71 = por %p69, %p70
    %p72 = scmp.ne.s32.totalorder %s58, %s59
    %p73 = scmp.eq.s32.totalorder %s25, 1
    %p74 = por %p72, %p73
    %p76 = scmp.ne.s32.totalorder %s59, %s75
    %p77 = scmp.eq.s32.totalorder %s25, 0
    %p78 = por %p76, %p77
    %s80 = sadd.s32 %s79, 1
    %p83 = scmp.eq.s32.totalorder %s19, 1
    %p84 = scmp.ne.s32.totalorder %s79, %s81
    %p85 = scmp.eq.s32.totalorder %s19, 0
    %p86 = por %p84, %p85
    %p87 = scmp.ne.s32.totalorder %s79, %s81
    %p88 = scmp.eq.s32.totalorder %s24, 1
    %p89 = por %p87, %p88
    %p90 = scmp.ne.s32.totalorder %s81, %s82
    %p91 = scmp.eq.s32.totalorder %s24, 0
    %p92 = por %p90, %p91
    %p93 = scmp.ne.s32.totalorder %s81, %s82
    %p94 = scmp.eq.s32.totalorder %s25, 1
    %p95 = por %p93, %p94
    %p97 = scmp.ne.s32.totalorder %s82, %s96
    %p98 = scmp.eq.s32.totalorder %s25, 0
    %p99 = por %p97, %p98
    %s101 = sadd.s32 %s100, 1
    %p104 = scmp.eq.s32.totalorder %s19, 1
    %p105 = scmp.ne.s32.totalorder %s100, %s102
    %p106 = scmp.eq.s32.totalorder %s19, 0
    %p107 = por %p105, %p106
    %p108 = scmp.ne.s32.totalorder %s100, %s102
    %p109 = scmp.eq.s32.totalorder %s24, 1
    %p110 = por %p108, %p109
    %p111 = scmp.ne.s32.totalorder %s102, %s103
    %p112 = scmp.eq.s32.totalorder %s24, 0
    %p113 = por %p111, %p112
    %p114 = scmp.ne.s32.totalorder %s102, %s103
    %p115 = scmp.eq.s32.totalorder %s25, 1
    %p116 = por %p114, %p115
    %p118 = scmp.ne.s32.totalorder %s103, %s117
    %p119 = scmp.eq.s32.totalorder %s25, 0
    %p120 = por %p118, %p119
    %s122 = sadd.s32 %s121, 1
    %p125 = scmp.eq.s32.totalorder %s19, 1
    %p126 = scmp.ne.s32.totalorder %s121, %s123
    %p127 = scmp.eq.s32.totalorder %s19, 0
    %p128 = por %p126, %p127
    %p129 = scmp.ne.s32.totalorder %s121, %s123
    %p130 = scmp.eq.s32.totalorder %s24, 1
    %p131 = por %p129, %p130
    %p132 = scmp.ne.s32.totalorder %s123, %s124
    %p133 = scmp.eq.s32.totalorder %s24, 0
    %p134 = por %p132, %p133
    %p135 = scmp.ne.s32.totalorder %s123, %s124
    %p136 = scmp.eq.s32.totalorder %s25, 1
    %p137 = por %p135, %p136
    %p139 = scmp.ne.s32.totalorder %s124, %s138
    %p140 = scmp.eq.s32.totalorder %s25, 0
    %p141 = por %p139, %p140
    %s143 = sadd.s32 %s142, 1
    %p146 = scmp.eq.s32.totalorder %s19, 1
    %p147 = scmp.ne.s32.totalorder %s142, %s144
    %p148 = scmp.eq.s32.totalorder %s19, 0
    %p149 = por %p147, %p148
    %p150 = scmp.ne.s32.totalorder %s142, %s144
    %p151 = scmp.eq.s32.totalorder %s24, 1
    %p152 = por %p150, %p151
    %p153 = scmp.ne.s32.totalorder %s144, %s145
    %p154 = scmp.eq.s32.totalorder %s24, 0
    %p155 = por %p153, %p154
    %p156 = scmp.ne.s32.totalorder %s144, %s145
    %p157 = scmp.eq.s32.totalorder %s25, 1
    %p158 = por %p156, %p157
    %p160 = scmp.ne.s32.totalorder %s145, %s159
    %p161 = scmp.eq.s32.totalorder %s25, 0
    %p162 = por %p160, %p161
    %s164 = sadd.s32 %s163, 1
    %p167 = scmp.eq.s32.totalorder %s19, 1
    %p168 = scmp.ne.s32.totalorder %s163, %s165
    %p169 = scmp.eq.s32.totalorder %s19, 0
    %p170 = por %p168, %p169
    %p171 = scmp.ne.s32.totalorder %s163, %s165
    %p172 = scmp.eq.s32.totalorder %s24, 1
    %p173 = por %p171, %p172
    %p174 = scmp.ne.s32.totalorder %s165, %s166
    %p175 = scmp.eq.s32.totalorder %s24, 0
    %p176 = por %p174, %p175
    %p177 = scmp.ne.s32.totalorder %s165, %s166
    %p178 = scmp.eq.s32.totalorder %s25, 1
    %p179 = por %p177, %p178
    %p181 = scmp.ne.s32.totalorder %s166, %s180
    %p182 = scmp.eq.s32.totalorder %s25, 0
    %p183 = por %p181, %p182
    %s185 = sadd.s32 %s184, 1
    %p188 = scmp.eq.s32.totalorder %s19, 1
    %p189 = scmp.ne.s32.totalorder %s184, %s186
    %p190 = scmp.eq.s32.totalorder %s19, 0
    %p191 = por %p189, %p190
    %p192 = scmp.ne.s32.totalorder %s184, %s186
    %p193 = scmp.eq.s32.totalorder %s24, 1
    %p194 = por %p192, %p193
    %p195 = scmp.ne.s32.totalorder %s186, %s187
    %p196 = scmp.eq.s32.totalorder %s24, 0
    %p197 = por %p195, %p196
    %p198 = scmp.ne.s32.totalorder %s186, %s187
    %p199 = scmp.eq.s32.totalorder %s25, 1
    %p200 = por %p198, %p199
    %p202 = scmp.ne.s32.totalorder %s187, %s201
    %p203 = scmp.eq.s32.totalorder %s25, 0
    %p204 = por %p202, %p203
    %s206 = sadd.s32 %s205, 1
    %p209 = scmp.eq.s32.totalorder %s19, 1
    %p210 = scmp.ne.s32.totalorder %s205, %s207
    %p211 = scmp.eq.s32.totalorder %s19, 0
    %p212 = por %p210, %p211
    %p213 = scmp.ne.s32.totalorder %s205, %s207
    %p214 = scmp.eq.s32.totalorder %s24, 1
    %p215 = por %p213, %p214
    %p216 = scmp.ne.s32.totalorder %s207, %s208
    %p217 = scmp.eq.s32.totalorder %s24, 0
    %p218 = por %p216, %p217
    %p219 = scmp.ne.s32.totalorder %s207, %s208
    %p220 = scmp.eq.s32.totalorder %s25, 1
    %p221 = por %p219, %p220
    %p223 = scmp.ne.s32.totalorder %s208, %s222
    %p224 = scmp.eq.s32.totalorder %s25, 0
    %p225 = por %p223, %p224
    %s227 = sadd.s32 %s226, 1
    %p230 = scmp.eq.s32.totalorder %s19, 1
    %p231 = scmp.ne.s32.totalorder %s226, %s228
    %p232 = scmp.eq.s32.totalorder %s19, 0
    %p233 = por %p231, %p232
    %p234 = scmp.ne.s32.totalorder %s226, %s228
    %p235 = scmp.eq.s32.totalorder %s24, 1
    %p236 = por %p234, %p235
    %p237 = scmp.ne.s32.totalorder %s228, %s229
    %p238 = scmp.eq.s32.totalorder %s24, 0
    %p239 = por %p237, %p238
    %p240 = scmp.ne.s32.totalorder %s228, %s229
    %p241 = scmp.eq.s32.totalorder %s25, 1
    %p242 = por %p240, %p241
    %p244 = scmp.ne.s32.totalorder %s229, %s243
    %p245 = scmp.eq.s32.totalorder %s25, 0
    %p246 = por %p244, %p245
    %s248 = sadd.s32 %s247, 1
    %p251 = scmp.eq.s32.totalorder %s19, 1
    %p252 = scmp.ne.s32.totalorder %s247, %s249
    %p253 = scmp.eq.s32.totalorder %s19, 0
    %p254 = por %p252, %p253
    %p255 = scmp.ne.s32.totalorder %s247, %s249
    %p256 = scmp.eq.s32.totalorder %s24, 1
    %p257 = por %p255, %p256
    %p258 = scmp.ne.s32.totalorder %s249, %s250
    %p259 = scmp.eq.s32.totalorder %s24, 0
    %p260 = por %p258, %p259
    %p261 = scmp.ne.s32.totalorder %s249, %s250
    %p262 = scmp.eq.s32.totalorder %s25, 1
    %p263 = por %p261, %p262
    %p265 = scmp.ne.s32.totalorder %s250, %s264
    %p266 = scmp.eq.s32.totalorder %s25, 0
    %p267 = por %p265, %p266
    %s269 = sadd.s32 %s268, 1
    %p272 = scmp.eq.s32.totalorder %s19, 1
    %p273 = scmp.ne.s32.totalorder %s268, %s270
    %p274 = scmp.eq.s32.totalorder %s19, 0
    %p275 = por %p273, %p274
    %p276 = scmp.ne.s32.totalorder %s268, %s270
    %p277 = scmp.eq.s32.totalorder %s24, 1
    %p278 = por %p276, %p277
    %p279 = scmp.ne.s32.totalorder %s270, %s271
    %p280 = scmp.eq.s32.totalorder %s24, 0
    %p281 = por %p279, %p280
    %p282 = scmp.ne.s32.totalorder %s270, %s271
    %p283 = scmp.eq.s32.totalorder %s25, 1
    %p284 = por %p282, %p283
    %p286 = scmp.ne.s32.totalorder %s271, %s285
    %p287 = scmp.eq.s32.totalorder %s25, 0
    %p288 = por %p286, %p287
    %s290 = sadd.s32 %s289, 1
    %p293 = scmp.eq.s32.totalorder %s19, 1
    %p294 = scmp.ne.s32.totalorder %s289, %s291
    %p295 = scmp.eq.s32.totalorder %s19, 0
    %p296 = por %p294, %p295
    %p297 = scmp.ne.s32.totalorder %s289, %s291
    %p298 = scmp.eq.s32.totalorder %s24, 1
    %p299 = por %p297, %p298
    %p300 = scmp.ne.s32.totalorder %s291, %s292
    %p301 = scmp.eq.s32.totalorder %s24, 0
    %p302 = por %p300, %p301
    %p303 = scmp.ne.s32.totalorder %s291, %s292
    %p304 = scmp.eq.s32.totalorder %s25, 1
    %p305 = por %p303, %p304
    %p307 = scmp.ne.s32.totalorder %s292, %s306
    %p308 = scmp.eq.s32.totalorder %s25, 0
    %p309 = por %p307, %p308
    %s310 = ssub.s32 %s19, %s26
    %p311 = scmp.eq.s32.totalorder %s310, 0
    %s313 = sadd.s32 %s312, 1
    %s314 = scalar_select %p311, %s312, %s313
    %p317 = pneg %p311
    %p318 = scmp.eq.s32.totalorder %s19, 1
    %p319 = por %p317, %p318
    %p320 = scmp.ne.s32.totalorder %s312, %s315
    %p321 = scmp.eq.s32.totalorder %s19, 0
    %p322 = por %p320, %p321
    %p323 = scmp.ne.s32.totalorder %s312, %s315
    %p324 = scmp.eq.s32.totalorder %s24, 1
    %p325 = por %p323, %p324
    %p326 = scmp.ne.s32.totalorder %s315, %s316
    %p327 = scmp.eq.s32.totalorder %s24, 0
    %p328 = por %p326, %p327
    %p329 = scmp.ne.s32.totalorder %s315, %s316
    %p330 = scmp.eq.s32.totalorder %s25, 1
    %p331 = por %p329, %p330
    %p333 = scmp.ne.s32.totalorder %s316, %s332
    %p334 = scmp.eq.s32.totalorder %s25, 0
    %p335 = por %p333, %p334
    %p336 = scmp.le.s32.totalorder 1, %s19
    %p337 = scmp.lt.s32.totalorder %s19, 3
    %p338 = pnand %p336, %p337
    %p339 = pneg %p338
    // Predicated region
    $region9: #{content_loss.1} parent=5 // pred_check
      _
    $region10: #{content_loss.1} parent=5 // pred_check_branch
      %341 = sbr.rel (%p338) target = $region12
    $region11: #{content_loss.1} parent=5 // pred_region
      %s342 = ssub.s32 %s19, 1
      // Predicated region
      $region13: #{content_loss.1} parent=11 // pred_check
        %p343 = pneg %p92
      $region14: #{content_loss.1} parent=11 // pred_check_branch
        %345 = sbr.rel (%p343) target = $region16
      $region15: #{content_loss.1} parent=11 // pred_region
        _
      $region16: #{content_loss.1} parent=11 // pred_fallthru
        _
      // Predicated region
      $region17: #{content_loss.1} parent=11 // pred_check
        %p346 = pneg %p113
      $region18: #{content_loss.1} parent=11 // pred_check_branch
        %348 = sbr.rel (%p346) target = $region20
      $region19: #{content_loss.1} parent=11 // pred_region
        _
      $region20: #{content_loss.1} parent=11 // pred_fallthru
        _
      // Predicated region
      $region21: #{content_loss.1} parent=11 // pred_check
        %p349 = pneg %p134
      $region22: #{content_loss.1} parent=11 // pred_check_branch
        %351 = sbr.rel (%p349) target = $region24
      $region23: #{content_loss.1} parent=11 // pred_region
        _
      $region24: #{content_loss.1} parent=11 // pred_fallthru
        _
      // Predicated region
      $region25: #{content_loss.1} parent=11 // pred_check
        %p352 = pneg %p155
      $region26: #{content_loss.1} parent=11 // pred_check_branch
        %354 = sbr.rel (%p352) target = $region28
      $region27: #{content_loss.1} parent=11 // pred_region
        _
      $region28: #{content_loss.1} parent=11 // pred_fallthru
        _
      // Predicated region
      $region29: #{content_loss.1} parent=11 // pred_check
        %p355 = pneg %p176
      $region30: #{content_loss.1} parent=11 // pred_check_branch
        %357 = sbr.rel (%p355) target = $region32
      $region31: #{content_loss.1} parent=11 // pred_region
        _
      $region32: #{content_loss.1} parent=11 // pred_fallthru
        _
      // Predicated region
      $region33: #{content_loss.1} parent=11 // pred_check
        %p358 = pneg %p197
      $region34: #{content_loss.1} parent=11 // pred_check_branch
        %360 = sbr.rel (%p358) target = $region36
      $region35: #{content_loss.1} parent=11 // pred_region
        _
      $region36: #{content_loss.1} parent=11 // pred_fallthru
        _
      // Predicated region
      $region37: #{content_loss.1} parent=11 // pred_check
        %p361 = pneg %p218
      $region38: #{content_loss.1} parent=11 // pred_check_branch
        %363 = sbr.rel (%p361) target = $region40
      $region39: #{content_loss.1} parent=11 // pred_region
        _
      $region40: #{content_loss.1} parent=11 // pred_fallthru
        _
      // Predicated region
      $region41: #{content_loss.1} parent=11 // pred_check
        %p364 = pneg %p239
      $region42: #{content_loss.1} parent=11 // pred_check_branch
        %366 = sbr.rel (%p364) target = $region44
      $region43: #{content_loss.1} parent=11 // pred_region
        _
      $region44: #{content_loss.1} parent=11 // pred_fallthru
        _
      // Predicated region
      $region45: #{content_loss.1} parent=11 // pred_check
        %p367 = pneg %p260
      $region46: #{content_loss.1} parent=11 // pred_check_branch
        %369 = sbr.rel (%p367) target = $region48
      $region47: #{content_loss.1} parent=11 // pred_region
        _
      $region48: #{content_loss.1} parent=11 // pred_fallthru
        _
      // Predicated region
      $region49: #{content_loss.1} parent=11 // pred_check
        %p370 = pneg %p281
      $region50: #{content_loss.1} parent=11 // pred_check_branch
        %372 = sbr.rel (%p370) target = $region52
      $region51: #{content_loss.1} parent=11 // pred_region
        _
      $region52: #{content_loss.1} parent=11 // pred_fallthru
        _
      // Predicated region
      $region53: #{content_loss.1} parent=11 // pred_check
        %p373 = pneg %p302
      $region54: #{content_loss.1} parent=11 // pred_check_branch
        %375 = sbr.rel (%p373) target = $region56
      $region55: #{content_loss.1} parent=11 // pred_region
        _
      $region56: #{content_loss.1} parent=11 // pred_fallthru
        _
    $region12: #{content_loss.1} parent=5 // pred_fallthru
      _
    %p376 = scmp.lt.s32.totalorder %s19, 2
    // Predicated region
    $region57: #{content_loss.1} parent=5 // pred_check
      %p377 = pneg %p376
    $region58: #{content_loss.1} parent=5 // pred_check_branch
      %379 = sbr.rel (%p377) target = $region60
    $region59: #{content_loss.1} parent=5 // pred_region
      // Predicated region
      $region61: #{content_loss.1} parent=59 // pred_check
        %p380 = pneg %p39
      $region62: #{content_loss.1} parent=59 // pred_check_branch
        %382 = sbr.rel (%p380) target = $region64
      $region63: #{content_loss.1} parent=59 // pred_region
        %p383 = scmp.lt.s32.totalorder %s19, 1
        %s384 = scalar_select %p383, %s19, 1
        %s385 = smul.addr %s384, 2
        %s386 = smul.addr %s385, 4
        %s387 = scalar_lea.vmem %s0, %s386
      $region64: #{content_loss.1} parent=59 // pred_fallthru
        _
      // Predicated region
      $region65: #{content_loss.1} parent=59 // pred_check
        %p388 = pneg %p65
      $region66: #{content_loss.1} parent=59 // pred_check_branch
        %390 = sbr.rel (%p388) target = $region68
      $region67: #{content_loss.1} parent=59 // pred_region
        %p391 = scmp.lt.s32.totalorder %s19, 1
        %s392 = scalar_select %p391, %s19, 1
        %s393 = smul.addr %s392, 2
        %s394 = smul.addr %s393, 4
        %s395 = scalar_lea.vmem %s1, %s394
      $region68: #{content_loss.1} parent=59 // pred_fallthru
        _
    $region60: #{content_loss.1} parent=5 // pred_fallthru
      _
    %p396 = scmp.le.s32.totalorder 1, %s19
    %p397 = scmp.lt.s32.totalorder %s19, 3
    %p398 = pnand %p396, %p397
    %p399 = pneg %p398
    // Predicated region
    $region69: #{content_loss.1} parent=5 // pred_check
      _
    $region70: #{content_loss.1} parent=5 // pred_check_branch
      %401 = sbr.rel (%p398) target = $region72
    $region71: #{content_loss.1} parent=5 // pred_region
      %s402 = ssub.s32 %s19, 1
      %p403 = scmp.lt.s32.totalorder %s24, 1
      %s404 = scalar_select %p403, %s24, 1
      %s405 = smul.addr %s404, 2
      %s406 = smul.addr %s405, 4
      %s407 = scalar_lea.vmem %s0, %s406
      %p408 = pneg %p45
      %p409 = pneg %p42
      %p410 = scmp.lt.s32.totalorder %s24, 1
      %s411 = scalar_select %p410, %s24, 1
      %s412 = smul.addr %s411, 2
      %s413 = smul.addr %s412, 4
      %s414 = scalar_lea.vmem %s1, %s413
      %p415 = pneg %p71
      %p416 = pneg %p68
      %p417 = pneg %p92
      %p418 = pneg %p89
      %p419 = pneg %p113
      %p420 = pneg %p110
      %p421 = pneg %p134
      %p422 = pneg %p131
      %p423 = pneg %p155
      %p424 = pneg %p152
      %p425 = pneg %p176
      %p426 = pneg %p173
      %p427 = pneg %p197
      %p428 = pneg %p194
      %p429 = pneg %p218
      %p430 = pneg %p215
      %p431 = pneg %p239
      %p432 = pneg %p236
      %p433 = pneg %p260
      %p434 = pneg %p257
      %p435 = pneg %p281
      %p436 = pneg %p278
      %p437 = pneg %p302
      %p438 = pneg %p299
      %p439 = pneg %p328
      %p440 = pneg %p325
      %p441 = scmp.lt.s32.totalorder %s24, 1
      %s442 = scalar_select %p441, %s24, 1
      %s443 = smul.addr %s442, 2
      %s444 = scalar_lea.vmem %s13, %s443
      %p445 = scmp.lt.s32.totalorder %s24, 1
      %s446 = scalar_select %p445, %s24, 1
      %s447 = smul.addr %s446, 2
      %s448 = smul.addr %s447, 4
      %s449 = scalar_lea.vmem %s0, %s448
      %p450 = scmp.lt.s32.totalorder %s24, 1
      %s451 = scalar_select %p450, %s24, 1
      %s452 = smul.addr %s451, 2
      %s453 = smul.addr %s452, 4
      %s454 = scalar_lea.vmem %s1, %s453
      %p455 = scmp.lt.s32.totalorder %s24, 1
      %s456 = scalar_select %p455, %s24, 1
      %s457 = smul.addr %s456, 2
      %s458 = scalar_lea.vmem %s13, %s457
      %v459 = vld [vmem:[%s449] sm:$0x77]
      %v460 = vld [vmem:[%s454] sm:$0x77]
      %v462 = vcombine.high %v459, %v459
      %v465 = vcombine.high %v460, %v460
      %v467 = vld [vmem:[%s2] sm:$0x7]
      %469 = vset.pattern.permute.xlu0 0
      %470 = vperm.xlu0 %469, %v467
      %v471 = vpop.permute.xlu0 %470
      %v473 = vmul.f32 %v459, %v471
      %v474 = vmul.f32 %v462, %v471
      %v475 = vmul.f32 %v460, %v471
      %v476 = vmul.f32 %v465, %v471
      %v477 = vld [vmem:[%s3] sm:$0x7]
      %479 = vset.pattern.permute.xlu0 0
      %480 = vperm.xlu0 %479, %v477
      %v481 = vpop.permute.xlu0 %480
      %v483 = vadd.f32 %v473, %v481
      %v484 = vadd.f32 %v474, %v481
      %v485 = vadd.f32 %v475, %v481
      %v486 = vadd.f32 %v476, %v481
      %487 = vrot.lane.b32.xlu0 %v483, 17
      %v488 = vpop.permute.xlu0 %487
      %489 = vrot.lane.b32.xlu0 %v484, 17
      %v490 = vpop.permute.xlu0 %489
      %491 = vrot.lane.b32.xlu0 %v485, 17
      %v492 = vpop.permute.xlu0 %491
      %493 = vrot.lane.b32.xlu0 %v486, 17
      %v494 = vpop.permute.xlu0 %493
      %v495 = vlaneseq
      %v496 = vand.u32 %v495, 127
      %vm497 = vcmp.lt.s32.totalorder %v496, 17
      %v498 = vsel %vm497, %v492, %v494
      %v499 = vsel %vm497, %v490, %v492
      %v500 = vsel %vm497, %v488, %v490
      %v501 = vsel %vm497, %v494, %v488
      %v502 = vld [vmem:[%s10] sm:$0xf]
      %v504 = vlaneseq
      %v505 = vshrl.u32 %v504, 7
      %v506 = vsub.s32 0, %v505
      %v507 = vrot.slane %v502, %v506
      %v508 = vlaneseq
      %v509 = vshrl.u32 %v508, 7
      %v510 = vsub.s32 1, %v509
      %v511 = vrot.slane %v502, %v510
      %v512 = vlaneseq
      %v513 = vshrl.u32 %v512, 7
      %v514 = vsub.s32 2, %v513
      %v515 = vrot.slane %v502, %v514
      %v516 = vlaneseq
      %v517 = vshrl.u32 %v516, 7
      %v518 = vsub.s32 3, %v517
      %v519 = vrot.slane %v502, %v518
      %v524 = vmul.f32 %v501, %v507
      %v525 = vmul.f32 %v500, %v511
      %v526 = vmul.f32 %v499, %v515
      %v527 = vmul.f32 %v498, %v519
      %v528 = vld [vmem:[%s4] sm:$0xff]
      %v529 = vld [vmem:[%s4 + $0x8] sm:$0xff]
      %530 = vrot.lane.b32.xlu0 %v483, 16
      %v531 = vpop.permute.xlu0 %530
      %532 = vrot.lane.b32.xlu0 %v484, 16
      %v533 = vpop.permute.xlu0 %532
      %534 = vrot.lane.b32.xlu0 %v485, 16
      %v535 = vpop.permute.xlu0 %534
      %536 = vrot.lane.b32.xlu0 %v486, 16
      %v537 = vpop.permute.xlu0 %536
      %vm538 = vcmp.lt.s32.totalorder %v496, 16
      %v539 = vsel %vm538, %v535, %v537
      %v540 = vsel %vm538, %v533, %v535
      %v541 = vsel %vm538, %v531, %v533
      %v542 = vsel %vm538, %v537, %v531
      %s543 = scalar_lea.vmem %s10, 4
      %v544 = vld [vmem:[%s543] sm:$0xf]
      %v546 = vlaneseq
      %v547 = vshrl.u32 %v546, 7
      %v548 = vsub.s32 0, %v547
      %v549 = vrot.slane %v544, %v548
      %v550 = vlaneseq
      %v551 = vshrl.u32 %v550, 7
      %v552 = vsub.s32 1, %v551
      %v553 = vrot.slane %v544, %v552
      %v554 = vlaneseq
      %v555 = vshrl.u32 %v554, 7
      %v556 = vsub.s32 2, %v555
      %v557 = vrot.slane %v544, %v556
      %v558 = vlaneseq
      %v559 = vshrl.u32 %v558, 7
      %v560 = vsub.s32 3, %v559
      %v561 = vrot.slane %v544, %v560
      %v566 = vmul.f32 %v542, %v549
      %v567 = vmul.f32 %v541, %v553
      %v568 = vmul.f32 %v540, %v557
      %v569 = vmul.f32 %v539, %v561
      %s570 = scalar_lea.vmem %s4, 16
      %v571 = vld [vmem:[%s570] sm:$0xff]
      %v572 = vld [vmem:[%s570 + $0x8] sm:$0xff]
      %vm573 = vcmask 23552
      %v575 = vsel %vm573, %v571, 0
      %v578 = vsel %vm573, %v572, 0
      %vm580 = vcmask 1042432
      %v582 = vsel %vm580, %v566, 0
      %v585 = vsel %vm580, %v567, 0
      %v588 = vsel %vm580, %v568, 0
      %v591 = vsel %vm580, %v569, 0
      %593 = vmatprep.subr.mxu0 %v585
      %594 = vmatpush1.msra.mxu0 %v582
      %595 = vmatprep.subr.mxu0 0.0
      %596 = vmatpush1.msra.mxu0 0.0
      %597 = vmatprep.subr.mxu0 0.0
      %598 = vmatpush1.msra.mxu0 0.0
      %599 = vmatprep.subr.mxu0 0.0
      %600 = vmatpush1.msra.mxu0 0.0
      %601 = vmatprep.subr.mxu0 0.0
      %602 = vmatpush1.msra.mxu0 0.0
      %603 = vmatprep.subr.mxu0 0.0
      %604 = vmatpush1.msra.mxu0 0.0
      %605 = vmatprep.subr.mxu0 0.0
      %606 = vmatpush1.msra.mxu0 0.0
      %607 = vmatprep.subr.mxu0 0.0
      %608 = vmatpush1.msra.mxu0 0.0
      %609 = vmatprep.subr.mxu0 0.0
      %610 = vmatpush1.msra.mxu0 0.0
      %611 = vmatprep.subr.mxu0 0.0
      %612 = vmatpush1.msra.mxu0 0.0
      %613 = vmatprep.subr.mxu0 0.0
      %614 = vmatpush1.msra.mxu0 0.0
      %615 = vmatprep.subr.mxu0 0.0
      %616 = vmatpush1.msra.mxu0 0.0
      %617 = vmatprep.subr.mxu0 0.0
      %618 = vmatpush1.msra.mxu0 0.0
      %619 = vmatprep.subr.mxu0 0.0
      %620 = vmatpush1.msra.mxu0 0.0
      %621 = vmatprep.subr.mxu0 0.0
      %622 = vmatpush1.msra.mxu0 0.0
      %623 = vmatprep.subr.mxu0 0.0
      %624 = vmatpush1.msra.mxu0 0.0
      %625 = vmatprep.subr.mxu0 0.0
      %626 = vmatpush1.msra.mxu0 0.0
      %627 = vmatprep.subr.mxu0 0.0
      %628 = vmatpush1.msra.mxu0 0.0
      %629 = vmatprep.subr.mxu0 0.0
      %630 = vmatpush1.msra.mxu0 0.0
      %631 = vmatprep.subr.mxu0 0.0
      %632 = vmatpush1.msra.mxu0 0.0
      %633 = vmatprep.subr.mxu0 0.0
      %634 = vmatpush1.msra.mxu0 0.0
      %635 = vmatprep.subr.mxu0 0.0
      %636 = vmatpush1.msra.mxu0 0.0
      %637 = vmatprep.subr.mxu0 0.0
      %638 = vmatpush1.msra.mxu0 0.0
      %639 = vmatprep.subr.mxu0 0.0
      %640 = vmatpush1.msra.mxu0 0.0
      %641 = vmatprep.subr.mxu0 0.0
      %642 = vmatpush1.msra.mxu0 0.0
      %643 = vmatprep.subr.mxu0 0.0
      %644 = vmatpush1.msra.mxu0 0.0
      %645 = vmatprep.subr.mxu0 0.0
      %646 = vmatpush1.msra.mxu0 0.0
      %647 = vmatprep.subr.mxu0 0.0
      %648 = vmatpush1.msra.mxu0 0.0
      %649 = vmatprep.subr.mxu0 0.0
      %650 = vmatpush1.msra.mxu0 0.0
      %651 = vmatprep.subr.mxu0 0.0
      %652 = vmatpush1.msra.mxu0 0.0
      %653 = vmatprep.subr.mxu0 0.0
      %654 = vmatpush1.msra.mxu0 0.0
      %655 = vmatprep.subr.mxu0 0.0
      %656 = vmatpush1.msra.mxu0 0.0
      %657 = vmatprep.mubr.f32.mxu0 0.0
      %658 = vmatmul.mubr.f32.gmra.mrb[0].mxu0 %v575
      %v659 = vpop.f32.mrb[0].mxu0
      %v660 = vadd.f32 0.0, %v659
      %v661 = vpop.f32.mrb[0].mxu0
      %v662 = vadd.f32 0.0, %v661
      %663 = vmatprep.mubr.f32.mxu0 0.0
      %664 = vmatmul.mubr.f32.gmra.mrb[0].mxu0 %v578
      %v665 = vpop.f32.mrb[0].mxu0
      %v666 = vadd.f32 0.0, %v665
      %v667 = vpop.f32.mrb[0].mxu0
      %v668 = vadd.f32 0.0, %v667
      %669 = vdwg.mxu0
      %670 = vmatprep.subr.mxu0 %v591
      %671 = vmatpush1.msra.mxu0 %v588
      %672 = vmatprep.subr.mxu0 0.0
      %673 = vmatpush1.msra.mxu0 0.0
      %674 = vmatprep.subr.mxu0 0.0
      %675 = vmatpush1.msra.mxu0 0.0
      %676 = vmatprep.subr.mxu0 0.0
      %677 = vmatpush1.msra.mxu0 0.0
      %678 = vmatprep.subr.mxu0 0.0
      %679 = vmatpush1.msra.mxu0 0.0
      %680 = vmatprep.subr.mxu0 0.0
      %681 = vmatpush1.msra.mxu0 0.0
      %682 = vmatprep.subr.mxu0 0.0
      %683 = vmatpush1.msra.mxu0 0.0
      %684 = vmatprep.subr.mxu0 0.0
      %685 = vmatpush1.msra.mxu0 0.0
      %686 = vmatprep.subr.mxu0 0.0
      %687 = vmatpush1.msra.mxu0 0.0
      %688 = vmatprep.subr.mxu0 0.0
      %689 = vmatpush1.msra.mxu0 0.0
      %690 = vmatprep.subr.mxu0 0.0
      %691 = vmatpush1.msra.mxu0 0.0
      %692 = vmatprep.subr.mxu0 0.0
      %693 = vmatpush1.msra.mxu0 0.0
      %694 = vmatprep.subr.mxu0 0.0
      %695 = vmatpush1.msra.mxu0 0.0
      %696 = vmatprep.subr.mxu0 0.0
      %697 = vmatpush1.msra.mxu0 0.0
      %698 = vmatprep.subr.mxu0 0.0
      %699 = vmatpush1.msra.mxu0 0.0
      %700 = vmatprep.subr.mxu0 0.0
      %701 = vmatpush1.msra.mxu0 0.0
      %702 = vmatprep.subr.mxu0 0.0
      %703 = vmatpush1.msra.mxu0 0.0
      %704 = vmatprep.subr.mxu0 0.0
      %705 = vmatpush1.msra.mxu0 0.0
      %706 = vmatprep.subr.mxu0 0.0
      %707 = vmatpush1.msra.mxu0 0.0
      %708 = vmatprep.subr.mxu0 0.0
      %709 = vmatpush1.msra.mxu0 0.0
      %710 = vmatprep.subr.mxu0 0.0
      %711 = vmatpush1.msra.mxu0 0.0
      %712 = vmatprep.subr.mxu0 0.0
      %713 = vmatpush1.msra.mxu0 0.0
      %714 = vmatprep.subr.mxu0 0.0
      %715 = vmatpush1.msra.mxu0 0.0
      %716 = vmatprep.subr.mxu0 0.0
      %717 = vmatpush1.msra.mxu0 0.0
      %718 = vmatprep.subr.mxu0 0.0
      %719 = vmatpush1.msra.mxu0 0.0
      %720 = vmatprep.subr.mxu0 0.0
      %721 = vmatpush1.msra.mxu0 0.0
      %722 = vmatprep.subr.mxu0 0.0
      %723 = vmatpush1.msra.mxu0 0.0
      %724 = vmatprep.subr.mxu0 0.0
      %725 = vmatpush1.msra.mxu0 0.0
      %726 = vmatprep.subr.mxu0 0.0
      %727 = vmatpush1.msra.mxu0 0.0
      %728 = vmatprep.subr.mxu0 0.0
      %729 = vmatpush1.msra.mxu0 0.0
      %730 = vmatprep.subr.mxu0 0.0
      %731 = vmatpush1.msra.mxu0 0.0
      %732 = vmatprep.subr.mxu0 0.0
      %733 = vmatpush1.msra.mxu0 0.0
      %734 = vmatprep.mubr.f32.mxu0 0.0
      %735 = vmatmul.mubr.f32.gmra.mrb[0].mxu0 %v575
      %v736 = vpop.f32.mrb[0].mxu0
      %v737 = vadd.f32 0.0, %v736
      %v738 = vpop.f32.mrb[0].mxu0
      %v739 = vadd.f32 0.0, %v738
      %740 = vmatprep.mubr.f32.mxu0 0.0
      %741 = vmatmul.mubr.f32.gmra.mrb[0].mxu0 %v578
      %v742 = vpop.f32.mrb[0].mxu0
      %v743 = vadd.f32 0.0, %v742
      %v744 = vpop.f32.mrb[0].mxu0
      %v745 = vadd.f32 0.0, %v744
      %746 = vdwg.mxu0
      %v748 = vsel %vm573, %v528, 0
      %v751 = vsel %vm573, %v529, 0
      %v754 = vsel %vm580, %v524, 0
      %v757 = vsel %vm580, %v525, 0
      %v760 = vsel %vm580, %v526, 0
      %v763 = vsel %vm580, %v527, 0
      %765 = vmatprep.subr.mxu0 %v757
      %766 = vmatpush1.msra.mxu0 %v754
      %767 = vmatprep.subr.mxu0 0.0
      %768 = vmatpush1.msra.mxu0 0.0
      %769 = vmatprep.subr.mxu0 0.0
      %770 = vmatpush1.msra.mxu0 0.0
      %771 = vmatprep.subr.mxu0 0.0
      %772 = vmatpush1.msra.mxu0 0.0
      %773 = vmatprep.subr.mxu0 0.0
      %774 = vmatpush1.msra.mxu0 0.0
      %775 = vmatprep.subr.mxu0 0.0
      %776 = vmatpush1.msra.mxu0 0.0
      %777 = vmatprep.subr.mxu0 0.0
      %778 = vmatpush1.msra.mxu0 0.0
      %779 = vmatprep.subr.mxu0 0.0
      %780 = vmatpush1.msra.mxu0 0.0
      %781 = vmatprep.subr.mxu0 0.0
      %782 = vmatpush1.msra.mxu0 0.0
      %783 = vmatprep.subr.mxu0 0.0
      %784 = vmatpush1.msra.mxu0 0.0
      %785 = vmatprep.subr.mxu0 0.0
      %786 = vmatpush1.msra.mxu0 0.0
      %787 = vmatprep.subr.mxu0 0.0
      %788 = vmatpush1.msra.mxu0 0.0
      %789 = vmatprep.subr.mxu0 0.0
      %790 = vmatpush1.msra.mxu0 0.0
      %791 = vmatprep.subr.mxu0 0.0
      %792 = vmatpush1.msra.mxu0 0.0
      %793 = vmatprep.subr.mxu0 0.0
      %794 = vmatpush1.msra.mxu0 0.0
      %795 = vmatprep.subr.mxu0 0.0
      %796 = vmatpush1.msra.mxu0 0.0
      %797 = vmatprep.subr.mxu0 0.0
      %798 = vmatpush1.msra.mxu0 0.0
      %799 = vmatprep.subr.mxu0 0.0
      %800 = vmatpush1.msra.mxu0 0.0
      %801 = vmatprep.subr.mxu0 0.0
      %802 = vmatpush1.msra.mxu0 0.0
      %803 = vmatprep.subr.mxu0 0.0
      %804 = vmatpush1.msra.mxu0 0.0
      %805 = vmatprep.subr.mxu0 0.0
      %806 = vmatpush1.msra.mxu0 0.0
      %807 = vmatprep.subr.mxu0 0.0
      %808 = vmatpush1.msra.mxu0 0.0
      %809 = vmatprep.subr.mxu0 0.0
      %810 = vmatpush1.msra.mxu0 0.0
      %811 = vmatprep.subr.mxu0 0.0
      %812 = vmatpush1.msra.mxu0 0.0
      %813 = vmatprep.subr.mxu0 0.0
      %814 = vmatpush1.msra.mxu0 0.0
      %815 = vmatprep.subr.mxu0 0.0
      %816 = vmatpush1.msra.mxu0 0.0
      %817 = vmatprep.subr.mxu0 0.0
      %818 = vmatpush1.msra.mxu0 0.0
      %819 = vmatprep.subr.mxu0 0.0
      %820 = vmatpush1.msra.mxu0 0.0
      %821 = vmatprep.subr.mxu0 0.0
      %822 = vmatpush1.msra.mxu0 0.0
      %823 = vmatprep.subr.mxu0 0.0
      %824 = vmatpush1.msra.mxu0 0.0
      %825 = vmatprep.subr.mxu0 0.0
      %826 = vmatpush1.msra.mxu0 0.0
      %827 = vmatprep.subr.mxu0 0.0
      %828 = vmatpush1.msra.mxu0 0.0
      %829 = vmatprep.mubr.f32.mxu0 0.0
      %830 = vmatmul.mubr.f32.gmra.mrb[0].mxu0 %v748
      %v831 = vpop.f32.mrb[0].mxu0
      %v832 = vadd.f32 %v660, %v831
      %v833 = vpop.f32.mrb[0].mxu0
      %v834 = vadd.f32 %v662, %v833
      %835 = vmatprep.mubr.f32.mxu0 0.0
      %836 = vmatmul.mubr.f32.gmra.mrb[0].mxu0 %v751
      %v837 = vpop.f32.mrb[0].mxu0
      %v838 = vadd.f32 %v666, %v837
      %v839 = vpop.f32.mrb[0].mxu0
      %v840 = vadd.f32 %v668, %v839
      %841 = vdwg.mxu0
      %842 = vmatprep.subr.mxu0 %v763
      %843 = vmatpush1.msra.mxu0 %v760
      %844 = vmatprep.subr.mxu0 0.0
      %845 = vmatpush1.msra.mxu0 0.0
      %846 = vmatprep.subr.mxu0 0.0
      %847 = vmatpush1.msra.mxu0 0.0
      %848 = vmatprep.subr.mxu0 0.0
      %849 = vmatpush1.msra.mxu0 0.0
      %850 = vmatprep.subr.mxu0 0.0
      %851 = vmatpush1.msra.mxu0 0.0
      %852 = vmatprep.subr.mxu0 0.0
      %853 = vmatpush1.msra.mxu0 0.0
      %854 = vmatprep.subr.mxu0 0.0
      %855 = vmatpush1.msra.mxu0 0.0
      %856 = vmatprep.subr.mxu0 0.0
      %857 = vmatpush1.msra.mxu0 0.0
      %858 = vmatprep.subr.mxu0 0.0
      %859 = vmatpush1.msra.mxu0 0.0
      %860 = vmatprep.subr.mxu0 0.0
      %861 = vmatpush1.msra.mxu0 0.0
      %862 = vmatprep.subr.mxu0 0.0
      %863 = vmatpush1.msra.mxu0 0.0
      %864 = vmatprep.subr.mxu0 0.0
      %865 = vmatpush1.msra.mxu0 0.0
      %866 = vmatprep.subr.mxu0 0.0
      %867 = vmatpush1.msra.mxu0 0.0
      %868 = vmatprep.subr.mxu0 0.0
      %869 = vmatpush1.msra.mxu0 0.0
      %870 = vmatprep.subr.mxu0 0.0
      %871 = vmatpush1.msra.mxu0 0.0
      %872 = vmatprep.subr.mxu0 0.0
      %873 = vmatpush1.msra.mxu0 0.0
      %874 = vmatprep.subr.mxu0 0.0
      %875 = vmatpush1.msra.mxu0 0.0
      %876 = vmatprep.subr.mxu0 0.0
      %877 = vmatpush1.msra.mxu0 0.0
      %878 = vmatprep.subr.mxu0 0.0
      %879 = vmatpush1.msra.mxu0 0.0
      %880 = vmatprep.subr.mxu0 0.0
      %881 = vmatpush1.msra.mxu0 0.0
      %882 = vmatprep.subr.mxu0 0.0
      %883 = vmatpush1.msra.mxu0 0.0
      %884 = vmatprep.subr.mxu0 0.0
      %885 = vmatpush1.msra.mxu0 0.0
      %886 = vmatprep.subr.mxu0 0.0
      %887 = vmatpush1.msra.mxu0 0.0
      %888 = vmatprep.subr.mxu0 0.0
      %889 = vmatpush1.msra.mxu0 0.0
      %890 = vmatprep.subr.mxu0 0.0
      %891 = vmatpush1.msra.mxu0 0.0
      %892 = vmatprep.subr.mxu0 0.0
      %893 = vmatpush1.msra.mxu0 0.0
      %894 = vmatprep.subr.mxu0 0.0
      %895 = vmatpush1.msra.mxu0 0.0
      %896 = vmatprep.subr.mxu0 0.0
      %897 = vmatpush1.msra.mxu0 0.0
      %898 = vmatprep.subr.mxu0 0.0
      %899 = vmatpush1.msra.mxu0 0.0
      %900 = vmatprep.subr.mxu0 0.0
      %901 = vmatpush1.msra.mxu0 0.0
      %902 = vmatprep.subr.mxu0 0.0
      %903 = vmatpush1.msra.mxu0 0.0
      %904 = vmatprep.subr.mxu0 0.0
      %905 = vmatpush1.msra.mxu0 0.0
      %906 = vmatprep.mubr.f32.mxu0 0.0
      %907 = vmatmul.mubr.f32.gmra.mrb[0].mxu0 %v748
      %v908 = vpop.f32.mrb[0].mxu0
      %v909 = vadd.f32 %v737, %v908
      %v910 = vpop.f32.mrb[0].mxu0
      %v911 = vadd.f32 %v739, %v910
      %912 = vmatprep.mubr.f32.mxu0 0.0
      %913 = vmatmul.mubr.f32.gmra.mrb[0].mxu0 %v751
      %v914 = vpop.f32.mrb[0].mxu0
      %v915 = vadd.f32 %v743, %v914
      %v916 = vpop.f32.mrb[0].mxu0
      %v917 = vadd.f32 %v745, %v916
      %918 = vdwg.mxu0
      %919 = vrot.lane.b32.xlu0 %v483, 15
      %v920 = vpop.permute.xlu0 %919
      %921 = vrot.lane.b32.xlu0 %v484, 15
      %v922 = vpop.permute.xlu0 %921
      %923 = vrot.lane.b32.xlu0 %v485, 15
      %v924 = vpop.permute.xlu0 %923
      %925 = vrot.lane.b32.xlu0 %v486, 15
      %v926 = vpop.permute.xlu0 %925
      %vm927 = vcmp.lt.s32.totalorder %v496, 15
      %v928 = vsel %vm927, %v924, %v926
      %v929 = vsel %vm927, %v922, %v924
      %v930 = vsel %vm927, %v920, %v922
      %v931 = vsel %vm927, %v926, %v920
      %s932 = scalar_lea.vmem %s10, 8
      %v933 = vld [vmem:[%s932] sm:$0xf]
      %v935 = vlaneseq
      %v936 = vshrl.u32 %v935, 7
      %v937 = vsub.s32 0, %v936
      %v938 = vrot.slane %v933, %v937
      %v939 = vlaneseq
      %v940 = vshrl.u32 %v939, 7
      %v941 = vsub.s32 1, %v940
      %v942 = vrot.slane %v933, %v941
      %v943 = vlaneseq
      %v944 = vshrl.u32 %v943, 7
      %v945 = vsub.s32 2, %v944
      %v946 = vrot.slane %v933, %v945
      %v947 = vlaneseq
      %v948 = vshrl.u32 %v947, 7
      %v949 = vsub.s32 3, %v948
      %v950 = vrot.slane %v933, %v949
      %v955 = vmul.f32 %v931, %v938
      %v956 = vmul.f32 %v930, %v942
      %v957 = vmul.f32 %v929, %v946
      %v958 = vmul.f32 %v928, %v950
      %s959 = scalar_lea.vmem %s4, 32
      %v960 = vld [vmem:[%s959] sm:$0xff]
      %v961 = vld [vmem:[%s959 + $0x8] sm:$0xff]
      %v963 = vsel %vm573, %v960, 0
      %v966 = vsel %vm573, %v961, 0
      %v969 = vsel %vm580, %v955, 0
      %v972 = vsel %vm580, %v956, 0
      %v975 = vsel %vm580, %v957, 0
      %v978 = vsel %vm580, %v958, 0
      %980 = vmatprep.subr.mxu0 %v972
      %981 = vmatpush1.msra.mxu0 %v969
      %982 = vmatprep.subr.mxu0 0.0
      %983 = vmatpush1.msra.mxu0 0.0
      %984 = vmatprep.subr.mxu0 0.0
      %985 = vmatpush1.msra.mxu0 0.0
      %986 = vmatprep.subr.mxu0 0.0
      %987 = vmatpush1.msra.mxu0 0.0
      %988 = vmatprep.subr.mxu0 0.0
      %989 = vmatpush1.msra.mxu0 0.0
      %990 = vmatprep.subr.mxu0 0.0
      %991 = vmatpush1.msra.mxu0 0.0
      %992 = vmatprep.subr.mxu0 0.0
      %993 = vmatpush1.msra.mxu0 0.0
      %994 = vmatprep.subr.mxu0 0.0
      %995 = vmatpush1.msra.mxu0 0.0
      %996 = vmatprep.subr.mxu0 0.0
      %997 = vmatpush1.msra.mxu0 0.0
      %998 = vmatprep.subr.mxu0 0.0
      %999 = vmatpush1.msra.mxu0 0.0
      %1000 = vmatprep.subr.mxu0 0.0
      %1001 = vmatpush1.msra.mxu0 0.0
      %1002 = vmatprep.subr.mxu0 0.0
      %1003 = vmatpush1.msra.mxu0 0.0
      %1004 = vmatprep.subr.mxu0 0.0
      %1005 = vmatpush1.msra.mxu0 0.0
      %1006 = vmatprep.subr.mxu0 0.0
      %1007 = vmatpush1.msra.mxu0 0.0
      %1008 = vmatprep.subr.mxu0 0.0
      %1009 = vmatpush1.msra.mxu0 0.0
      %1010 = vmatprep.subr.mxu0 0.0
      %1011 = vmatpush1.msra.mxu0 0.0
      %1012 = vmatprep.subr.mxu0 0.0
      %1013 = vmatpush1.msra.mxu0 0.0
      %1014 = vmatprep.subr.mxu0 0.0
      %1015 = vmatpush1.msra.mxu0 0.0
      %1016 = vmatprep.subr.mxu0 0.0
      %1017 = vmatpush1.msra.mxu0 0.0
      %1018 = vmatprep.subr.mxu0 0.0
      %1019 = vmatpush1.msra.mxu0 0.0
      %1020 = vmatprep.subr.mxu0 0.0
      %1021 = vmatpush1.msra.mxu0 0.0
      %1022 = vmatprep.subr.mxu0 0.0
      %1023 = vmatpush1.msra.mxu0 0.0
      %1024 = vmatprep.subr.mxu0 0.0
      %1025 = vmatpush1.msra.mxu0 0.0
      %1026 = vmatprep.subr.mxu0 0.0
      %1027 = vmatpush1.msra.mxu0 0.0
      %1028 = vmatprep.subr.mxu0 0.0
      %1029 = vmatpush1.msra.mxu0 0.0
      %1030 = vmatprep.subr.mxu0 0.0
      %1031 = vmatpush1.msra.mxu0 0.0
      %1032 = vmatprep.subr.mxu0 0.0
      %1033 = vmatpush1.msra.mxu0 0.0
      %1034 = vmatprep.subr.mxu0 0.0
      %1035 = vmatpush1.msra.mxu0 0.0
      %1036 = vmatprep.subr.mxu0 0.0
      %1037 = vmatpush1.msra.mxu0 0.0
      %1038 = vmatprep.subr.mxu0 0.0
      %1039 = vmatpush1.msra.mxu0 0.0
      %1040 = vmatprep.subr.mxu0 0.0
      %1041 = vmatpush1.msra.mxu0 0.0
      %1042 = vmatprep.subr.mxu0 0.0
      %1043 = vmatpush1.msra.mxu0 0.0
      %1044 = vmatprep.mubr.f32.mxu0 0.0
      %1045 = vmatmul.mubr.f32.gmra.mrb[0].mxu0 %v963
      %v1046 = vpop.f32.mrb[0].mxu0
      %v1047 = vadd.f32 0.0, %v1046
      %v1048 = vpop.f32.mrb[0].mxu0
      %v1049 = vadd.f32 0.0, %v1048
      %1050 = vmatprep.mubr.f32.mxu0 0.0
      %1051 = vmatmul.mubr.f32.gmra.mrb[0].mxu0 %v966
      %v1052 = vpop.f32.mrb[0].mxu0
      %v1053 = vadd.f32 0.0, %v1052
      %v1054 = vpop.f32.mrb[0].mxu0
      %v1055 = vadd.f32 0.0, %v1054
      %1056 = vdwg.mxu0
      %1057 = vmatprep.subr.mxu0 %v978
      %1058 = vmatpush1.msra.mxu0 %v975
      %1059 = vmatprep.subr.mxu0 0.0
      %1060 = vmatpush1.msra.mxu0 0.0
      %1061 = vmatprep.subr.mxu0 0.0
      %1062 = vmatpush1.msra.mxu0 0.0
      %1063 = vmatprep.subr.mxu0 0.0
      %1064 = vmatpush1.msra.mxu0 0.0
      %1065 = vmatprep.subr.mxu0 0.0
      %1066 = vmatpush1.msra.mxu0 0.0
      %1067 = vmatprep.subr.mxu0 0.0
      %1068 = vmatpush1.msra.mxu0 0.0
      %1069 = vmatprep.subr.mxu0 0.0
      %1070 = vmatpush1.msra.mxu0 0.0
      %1071 = vmatprep.subr.mxu0 0.0
      %1072 = vmatpush1.msra.mxu0 0.0
      %1073 = vmatprep.subr.mxu0 0.0
      %1074 = vmatpush1.msra.mxu0 0.0
      %1075 = vmatprep.subr.mxu0 0.0
      %1076 = vmatpush1.msra.mxu0 0.0
      %1077 = vmatprep.subr.mxu0 0.0
      %1078 = vmatpush1.msra.mxu0 0.0
      %1079 = vmatprep.subr.mxu0 0.0
      %1080 = vmatpush1.msra.mxu0 0.0
      %1081 = vmatprep.subr.mxu0 0.0
      %1082 = vmatpush1.msra.mxu0 0.0
      %1083 = vmatprep.subr.mxu0 0.0
      %1084 = vmatpush1.msra.mxu0 0.0
      %1085 = vmatprep.subr.mxu0 0.0
      %1086 = vmatpush1.msra.mxu0 0.0
      %1087 = vmatprep.subr.mxu0 0.0
      %1088 = vmatpush1.msra.mxu0 0.0
      %1089 = vmatprep.subr.mxu0 0.0
      %1090 = vmatpush1.msra.mxu0 0.0
      %1091 = vmatprep.subr.mxu0 0.0
      %1092 = vmatpush1.msra.mxu0 0.0
      %1093 = vmatprep.subr.mxu0 0.0
      %1094 = vmatpush1.msra.mxu0 0.0
      %1095 = vmatprep.subr.mxu0 0.0
      %1096 = vmatpush1.msra.mxu0 0.0
      %1097 = vmatprep.subr.mxu0 0.0
      %1098 = vmatpush1.msra.mxu0 0.0
      %1099 = vmatprep.subr.mxu0 0.0
      %1100 = vmatpush1.msra.mxu0 0.0
      %1101 = vmatprep.subr.mxu0 0.0
      %1102 = vmatpush1.msra.mxu0 0.0
      %1103 = vmatprep.subr.mxu0 0.0
      %1104 = vmatpush1.msra.mxu0 0.0
      %1105 = vmatprep.subr.mxu0 0.0
      %1106 = vmatpush1.msra.mxu0 0.0
      %1107 = vmatprep.subr.mxu0 0.0
      %1108 = vmatpush1.msra.mxu0 0.0
      %1109 = vmatprep.subr.mxu0 0.0
      %1110 = vmatpush1.msra.mxu0 0.0
      %1111 = vmatprep.subr.mxu0 0.0
      %1112 = vmatpush1.msra.mxu0 0.0
      %1113 = vmatprep.subr.mxu0 0.0
      %1114 = vmatpush1.msra.mxu0 0.0
      %1115 = vmatprep.subr.mxu0 0.0
      %1116 = vmatpush1.msra.mxu0 0.0
      %1117 = vmatprep.subr.mxu0 0.0
      %1118 = vmatpush1.msra.mxu0 0.0
      %1119 = vmatprep.subr.mxu0 0.0
      %1120 = vmatpush1.msra.mxu0 0.0
      %1121 = vmatprep.mubr.f32.mxu0 0.0
      %1122 = vmatmul.mubr.f32.gmra.mrb[0].mxu0 %v963
      %v1123 = vpop.f32.mrb[0].mxu0
      %v1124 = vadd.f32 0.0, %v1123
      %v1125 = vpop.f32.mrb[0].mxu0
      %v1126 = vadd.f32 0.0, %v1125
      %1127 = vmatprep.mubr.f32.mxu0 0.0
      %1128 = vmatmul.mubr.f32.gmra.mrb[0].mxu0 %v966
      %v1129 = vpop.f32.mrb[0].mxu0
      %v1130 = vadd.f32 0.0, %v1129
      %v1131 = vpop.f32.mrb[0].mxu0
      %v1132 = vadd.f32 0.0, %v1131
      %1133 = vdwg.mxu0
      %v1134 = vadd.f32 %v832, %v1047
      %v1135 = vadd.f32 %v834, %v1049
      %v1136 = vadd.f32 %v909, %v1124
      %v1137 = vadd.f32 %v911, %v1126
      %v1138 = vadd.f32 %v838, %v1053
      %v1139 = vadd.f32 %v840, %v1055
      %v1140 = vadd.f32 %v915, %v1130
      %v1141 = vadd.f32 %v917, %v1132
      %1142 = vrot.lane.b32.xlu0 %v483, 1
      %v1143 = vpop.permute.xlu0 %1142
      %1144 = vrot.lane.b32.xlu0 %v484, 1
      %v1145 = vpop.permute.xlu0 %1144
      %1146 = vrot.lane.b32.xlu0 %v485, 1
      %v1147 = vpop.permute.xlu0 %1146
      %1148 = vrot.lane.b32.xlu0 %v486, 1
      %v1149 = vpop.permute.xlu0 %1148
      %vm1150 = vcmp.lt.s32.totalorder %v496, 1
      %v1151 = vsel %vm1150, %v1147, %v1149
      %v1152 = vsel %vm1150, %v1145, %v1147
      %v1153 = vsel %vm1150, %v1143, %v1145
      %v1154 = vsel %vm1150, %v1149, %v1143
      %s1155 = scalar_lea.vmem %s10, 12
      %v1156 = vld [vmem:[%s1155] sm:$0xf]
      %v1158 = vlaneseq
      %v1159 = vshrl.u32 %v1158, 7
      %v1160 = vsub.s32 0, %v1159
      %v1161 = vrot.slane %v1156, %v1160
      %v1162 = vlaneseq
      %v1163 = vshrl.u32 %v1162, 7
      %v1164 = vsub.s32 1, %v1163
      %v1165 = vrot.slane %v1156, %v1164
      %v1166 = vlaneseq
      %v1167 = vshrl.u32 %v1166, 7
      %v1168 = vsub.s32 2, %v1167
      %v1169 = vrot.slane %v1156, %v1168
      %v1170 = vlaneseq
      %v1171 = vshrl.u32 %v1170, 7
      %v1172 = vsub.s32 3, %v1171
      %v1173 = vrot.slane %v1156, %v1172
      %v1178 = vmul.f32 %v1154, %v1161
      %v1179 = vmul.f32 %v1153, %v1165
      %v1180 = vmul.f32 %v1152, %v1169
      %v1181 = vmul.f32 %v1151, %v1173
      %s1182 = scalar_lea.vmem %s4, 48
      %v1183 = vld [vmem:[%s1182] sm:$0xff]
      %v1184 = vld [vmem:[%s1182 + $0x8] sm:$0xff]
      %v1186 = vsel %vm573, %v1183, 0
      %v1189 = vsel %vm573, %v1184, 0
      %v1192 = vsel %vm580, %v1178, 0
      %v1195 = vsel %vm580, %v1179, 0
      %v1198 = vsel %vm580, %v1180, 0
      %v1201 = vsel %vm580, %v1181, 0
      %1203 = vmatprep.subr.mxu0 %v1195
      %1204 = vmatpush1.msra.mxu0 %v1192
      %1205 = vmatprep.subr.mxu0 0.0
      %1206 = vmatpush1.msra.mxu0 0.0
      %1207 = vmatprep.subr.mxu0 0.0
      %1208 = vmatpush1.msra.mxu0 0.0
      %1209 = vmatprep.subr.mxu0 0.0
      %1210 = vmatpush1.msra.mxu0 0.0
      %1211 = vmatprep.subr.mxu0 0.0
      %1212 = vmatpush1.msra.mxu0 0.0
      %1213 = vmatprep.subr.mxu0 0.0
      %1214 = vmatpush1.msra.mxu0 0.0
      %1215 = vmatprep.subr.mxu0 0.0
      %1216 = vmatpush1.msra.mxu0 0.0
      %1217 = vmatprep.subr.mxu0 0.0
      %1218 = vmatpush1.msra.mxu0 0.0
      %1219 = vmatprep.subr.mxu0 0.0
      %1220 = vmatpush1.msra.mxu0 0.0
      %1221 = vmatprep.subr.mxu0 0.0
      %1222 = vmatpush1.msra.mxu0 0.0
      %1223 = vmatprep.subr.mxu0 0.0
      %1224 = vmatpush1.msra.mxu0 0.0
      %1225 = vmatprep.subr.mxu0 0.0
      %1226 = vmatpush1.msra.mxu0 0.0
      %1227 = vmatprep.subr.mxu0 0.0
      %1228 = vmatpush1.msra.mxu0 0.0
      %1229 = vmatprep.subr.mxu0 0.0
      %1230 = vmatpush1.msra.mxu0 0.0
      %1231 = vmatprep.subr.mxu0 0.0
      %1232 = vmatpush1.msra.mxu0 0.0
      %1233 = vmatprep.subr.mxu0 0.0
      %1234 = vmatpush1.msra.mxu0 0.0
      %1235 = vmatprep.subr.mxu0 0.0
      %1236 = vmatpush1.msra.mxu0 0.0
      %1237 = vmatprep.subr.mxu0 0.0
      %1238 = vmatpush1.msra.mxu0 0.0
      %1239 = vmatprep.subr.mxu0 0.0
      %1240 = vmatpush1.msra.mxu0 0.0
      %1241 = vmatprep.subr.mxu0 0.0
      %1242 = vmatpush1.msra.mxu0 0.0
      %1243 = vmatprep.subr.mxu0 0.0
      %1244 = vmatpush1.msra.mxu0 0.0
      %1245 = vmatprep.subr.mxu0 0.0
      %1246 = vmatpush1.msra.mxu0 0.0
      %1247 = vmatprep.subr.mxu0 0.0
      %1248 = vmatpush1.msra.mxu0 0.0
      %1249 = vmatprep.subr.mxu0 0.0
      %1250 = vmatpush1.msra.mxu0 0.0
      %1251 = vmatprep.subr.mxu0 0.0
      %1252 = vmatpush1.msra.mxu0 0.0
      %1253 = vmatprep.subr.mxu0 0.0
      %1254 = vmatpush1.msra.mxu0 0.0
      %1255 = vmatprep.subr.mxu0 0.0
      %1256 = vmatpush1.msra.mxu0 0.0
      %1257 = vmatprep.subr.mxu0 0.0
      %1258 = vmatpush1.msra.mxu0 0.0
      %1259 = vmatprep.subr.mxu0 0.0
      %1260 = vmatpush1.msra.mxu0 0.0
      %1261 = vmatprep.subr.mxu0 0.0
      %1262 = vmatpush1.msra.mxu0 0.0
      %1263 = vmatprep.subr.mxu0 0.0
      %1264 = vmatpush1.msra.mxu0 0.0
      %1265 = vmatprep.subr.mxu0 0.0
      %1266 = vmatpush1.msra.mxu0 0.0
      %1267 = vmatprep.mubr.f32.mxu0 0.0
      %1268 = vmatmul.mubr.f32.gmra.mrb[0].mxu0 %v1186
      %v1269 = vpop.f32.mrb[0].mxu0
      %v1270 = vadd.f32 0.0, %v1269
      %v1271 = vpop.f32.mrb[0].mxu0
      %v1272 = vadd.f32 0.0, %v1271
      %1273 = vmatprep.mubr.f32.mxu0 0.0
      %1274 = vmatmul.mubr.f32.gmra.mrb[0].mxu0 %v1189
      %v1275 = vpop.f32.mrb[0].mxu0
      %v1276 = vadd.f32 0.0, %v1275
      %v1277 = vpop.f32.mrb[0].mxu0
      %v1278 = vadd.f32 0.0, %v1277
      %1279 = vdwg.mxu0
      %1280 = vmatprep.subr.mxu0 %v1201
      %1281 = vmatpush1.msra.mxu0 %v1198
      %1282 = vmatprep.subr.mxu0 0.0
      %1283 = vmatpush1.msra.mxu0 0.0
      %1284 = vmatprep.subr.mxu0 0.0
      %1285 = vmatpush1.msra.mxu0 0.0
      %1286 = vmatprep.subr.mxu0 0.0
      %1287 = vmatpush1.msra.mxu0 0.0
      %1288 = vmatprep.subr.mxu0 0.0
      %1289 = vmatpush1.msra.mxu0 0.0
      %1290 = vmatprep.subr.mxu0 0.0
      %1291 = vmatpush1.msra.mxu0 0.0
      %1292 = vmatprep.subr.mxu0 0.0
      %1293 = vmatpush1.msra.mxu0 0.0
      %1294 = vmatprep.subr.mxu0 0.0
      %1295 = vmatpush1.msra.mxu0 0.0
      %1296 = vmatprep.subr.mxu0 0.0
      %1297 = vmatpush1.msra.mxu0 0.0
      %1298 = vmatprep.subr.mxu0 0.0
      %1299 = vmatpush1.msra.mxu0 0.0
      %1300 = vmatprep.subr.mxu0 0.0
      %1301 = vmatpush1.msra.mxu0 0.0
      %1302 = vmatprep.subr.mxu0 0.0
      %1303 = vmatpush1.msra.mxu0 0.0
      %1304 = vmatprep.subr.mxu0 0.0
      %1305 = vmatpush1.msra.mxu0 0.0
      %1306 = vmatprep.subr.mxu0 0.0
      %1307 = vmatpush1.msra.mxu0 0.0
      %1308 = vmatprep.subr.mxu0 0.0
      %1309 = vmatpush1.msra.mxu0 0.0
      %1310 = vmatprep.subr.mxu0 0.0
      %1311 = vmatpush1.msra.mxu0 0.0
      %1312 = vmatprep.subr.mxu0 0.0
      %1313 = vmatpush1.msra.mxu0 0.0
      %1314 = vmatprep.subr.mxu0 0.0
      %1315 = vmatpush1.msra.mxu0 0.0
      %1316 = vmatprep.subr.mxu0 0.0
      %1317 = vmatpush1.msra.mxu0 0.0
      %1318 = vmatprep.subr.mxu0 0.0
      %1319 = vmatpush1.msra.mxu0 0.0
      %1320 = vmatprep.subr.mxu0 0.0
      %1321 = vmatpush1.msra.mxu0 0.0
      %1322 = vmatprep.subr.mxu0 0.0
      %1323 = vmatpush1.msra.mxu0 0.0
      %1324 = vmatprep.subr.mxu0 0.0
      %1325 = vmatpush1.msra.mxu0 0.0
      %1326 = vmatprep.subr.mxu0 0.0
      %1327 = vmatpush1.msra.mxu0 0.0
      %1328 = vmatprep.subr.mxu0 0.0
      %1329 = vmatpush1.msra.mxu0 0.0
      %1330 = vmatprep.subr.mxu0 0.0
      %1331 = vmatpush1.msra.mxu0 0.0
      %1332 = vmatprep.subr.mxu0 0.0
      %1333 = vmatpush1.msra.mxu0 0.0
      %1334 = vmatprep.subr.mxu0 0.0
      %1335 = vmatpush1.msra.mxu0 0.0
      %1336 = vmatprep.subr.mxu0 0.0
      %1337 = vmatpush1.msra.mxu0 0.0
      %1338 = vmatprep.subr.mxu0 0.0
      %1339 = vmatpush1.msra.mxu0 0.0
      %1340 = vmatprep.subr.mxu0 0.0
      %1341 = vmatpush1.msra.mxu0 0.0
      %1342 = vmatprep.subr.mxu0 0.0
      %1343 = vmatpush1.msra.mxu0 0.0
      %1344 = vmatprep.mubr.f32.mxu0 0.0
      %1345 = vmatmul.mubr.f32.gmra.mrb[0].mxu0 %v1186
      %v1346 = vpop.f32.mrb[0].mxu0
      %v1347 = vadd.f32 0.0, %v1346
      %v1348 = vpop.f32.mrb[0].mxu0
      %v1349 = vadd.f32 0.0, %v1348
      %1350 = vmatprep.mubr.f32.mxu0 0.0
      %1351 = vmatmul.mubr.f32.gmra.mrb[0].mxu0 %v1189
      %v1352 = vpop.f32.mrb[0].mxu0
      %v1353 = vadd.f32 0.0, %v1352
      %v1354 = vpop.f32.mrb[0].mxu0
      %v1355 = vadd.f32 0.0, %v1354
      %1356 = vdwg.mxu0
      %v1357 = vadd.f32 %v1134, %v1270
      %v1358 = vadd.f32 %v1135, %v1272
      %v1359 = vadd.f32 %v1136, %v1347
      %v1360 = vadd.f32 %v1137, %v1349
      %v1361 = vadd.f32 %v1138, %v1276
      %v1362 = vadd.f32 %v1139, %v1278
      %v1363 = vadd.f32 %v1140, %v1353
      %v1364 = vadd.f32 %v1141, %v1355
      %s1365 = scalar_lea.vmem %s4, 64
      %v1366 = vld [vmem:[%s1365] sm:$0xff]
      %v1367 = vld [vmem:[%s1365 + $0x8] sm:$0xff]
      %v1369 = vsel %vm573, %v1366, 0
      %v1372 = vsel %vm573, %v1367, 0
      %v1375 = vsel %vm580, %v483, 0
      %v1378 = vsel %vm580, %v484, 0
      %v1381 = vsel %vm580, %v485, 0
      %v1384 = vsel %vm580, %v486, 0
      %1386 = vmatprep.subr.mxu0 %v1378
      %1387 = vmatpush1.msra.mxu0 %v1375
      %1388 = vmatprep.subr.mxu0 0.0
      %1389 = vmatpush1.msra.mxu0 0.0
      %1390 = vmatprep.subr.mxu0 0.0
      %1391 = vmatpush1.msra.mxu0 0.0
      %1392 = vmatprep.subr.mxu0 0.0
      %1393 = vmatpush1.msra.mxu0 0.0
      %1394 = vmatprep.subr.mxu0 0.0
      %1395 = vmatpush1.msra.mxu0 0.0
      %1396 = vmatprep.subr.mxu0 0.0
      %1397 = vmatpush1.msra.mxu0 0.0
      %1398 = vmatprep.subr.mxu0 0.0
      %1399 = vmatpush1.msra.mxu0 0.0
      %1400 = vmatprep.subr.mxu0 0.0
      %1401 = vmatpush1.msra.mxu0 0.0
      %1402 = vmatprep.subr.mxu0 0.0
      %1403 = vmatpush1.msra.mxu0 0.0
      %1404 = vmatprep.subr.mxu0 0.0
      %1405 = vmatpush1.msra.mxu0 0.0
      %1406 = vmatprep.subr.mxu0 0.0
      %1407 = vmatpush1.msra.mxu0 0.0
      %1408 = vmatprep.subr.mxu0 0.0
      %1409 = vmatpush1.msra.mxu0 0.0
      %1410 = vmatprep.subr.mxu0 0.0
      %1411 = vmatpush1.msra.mxu0 0.0
      %1412 = vmatprep.subr.mxu0 0.0
      %1413 = vmatpush1.msra.mxu0 0.0
      %1414 = vmatprep.subr.mxu0 0.0
      %1415 = vmatpush1.msra.mxu0 0.0
      %1416 = vmatprep.subr.mxu0 0.0
      %1417 = vmatpush1.msra.mxu0 0.0
      %1418 = vmatprep.subr.mxu0 0.0
      %1419 = vmatpush1.msra.mxu0 0.0
      %1420 = vmatprep.subr.mxu0 0.0
      %1421 = vmatpush1.msra.mxu0 0.0
      %1422 = vmatprep.subr.mxu0 0.0
      %1423 = vmatpush1.msra.mxu0 0.0
      %1424 = vmatprep.subr.mxu0 0.0
      %1425 = vmatpush1.msra.mxu0 0.0
      %1426 = vmatprep.subr.mxu0 0.0
      %1427 = vmatpush1.msra.mxu0 0.0
      %1428 = vmatprep.subr.mxu0 0.0
      %1429 = vmatpush1.msra.mxu0 0.0
      %1430 = vmatprep.subr.mxu0 0.0
      %1431 = vmatpush1.msra.mxu0 0.0
      %1432 = vmatprep.subr.mxu0 0.0
      %1433 = vmatpush1.msra.mxu0 0.0
      %1434 = vmatprep.subr.mxu0 0.0
      %1435 = vmatpush1.msra.mxu0 0.0
      %1436 = vmatprep.subr.mxu0 0.0
      %1437 = vmatpush1.msra.mxu0 0.0
      %1438 = vmatprep.subr.mxu0 0.0
      %1439 = vmatpush1.msra.mxu0 0.0
      %1440 = vmatprep.subr.mxu0 0.0
      %1441 = vmatpush1.msra.mxu0 0.0
      %1442 = vmatprep.subr.mxu0 0.0
      %1443 = vmatpush1.msra.mxu0 0.0
      %1444 = vmatprep.subr.mxu0 0.0
      %1445 = vmatpush1.msra.mxu0 0.0
      %1446 = vmatprep.subr.mxu0 0.0
      %1447 = vmatpush1.msra.mxu0 0.0
      %1448 = vmatprep.subr.mxu0 0.0
      %1449 = vmatpush1.msra.mxu0 0.0
      %1450 = vmatprep.mubr.f32.mxu0 0.0
      %1451 = vmatmul.mubr.f32.gmra.mrb[0].mxu0 %v1369
      %v1452 = vpop.f32.mrb[0].mxu0
      %v1453 = vadd.f32 0.0, %v1452
      %v1454 = vpop.f32.mrb[0].mxu0
      %v1455 = vadd.f32 0.0, %v1454
      %1456 = vmatprep.mubr.f32.mxu0 0.0
      %1457 = vmatmul.mubr.f32.gmra.mrb[0].mxu0 %v1372
      %v1458 = vpop.f32.mrb[0].mxu0
      %v1459 = vadd.f32 0.0, %v1458
      %v1460 = vpop.f32.mrb[0].mxu0
      %v1461 = vadd.f32 0.0, %v1460
      %1462 = vdwg.mxu0
      %1463 = vmatprep.subr.mxu0 %v1384
      %1464 = vmatpush1.msra.mxu0 %v1381
      %1465 = vmatprep.subr.mxu0 0.0
      %1466 = vmatpush1.msra.mxu0 0.0
      %1467 = vmatprep.subr.mxu0 0.0
      %1468 = vmatpush1.msra.mxu0 0.0
      %1469 = vmatprep.subr.mxu0 0.0
      %1470 = vmatpush1.msra.mxu0 0.0
      %1471 = vmatprep.subr.mxu0 0.0
      %1472 = vmatpush1.msra.mxu0 0.0
      %1473 = vmatprep.subr.mxu0 0.0
      %1474 = vmatpush1.msra.mxu0 0.0
      %1475 = vmatprep.subr.mxu0 0.0
      %1476 = vmatpush1.msra.mxu0 0.0
      %1477 = vmatprep.subr.mxu0 0.0
      %1478 = vmatpush1.msra.mxu0 0.0
      %1479 = vmatprep.subr.mxu0 0.0
      %1480 = vmatpush1.msra.mxu0 0.0
      %1481 = vmatprep.subr.mxu0 0.0
      %1482 = vmatpush1.msra.mxu0 0.0
      %1483 = vmatprep.subr.mxu0 0.0
      %1484 = vmatpush1.msra.mxu0 0.0
      %1485 = vmatprep.subr.mxu0 0.0
      %1486 = vmatpush1.msra.mxu0 0.0
      %1487 = vmatprep.subr.mxu0 0.0
      %1488 = vmatpush1.msra.mxu0 0.0
      %1489 = vmatprep.subr.mxu0 0.0
      %1490 = vmatpush1.msra.mxu0 0.0
      %1491 = vmatprep.subr.mxu0 0.0
      %1492 = vmatpush1.msra.mxu0 0.0
      %1493 = vmatprep.subr.mxu0 0.0
      %1494 = vmatpush1.msra.mxu0 0.0
      %1495 = vmatprep.subr.mxu0 0.0
      %1496 = vmatpush1.msra.mxu0 0.0
      %1497 = vmatprep.subr.mxu0 0.0
      %1498 = vmatpush1.msra.mxu0 0.0
      %1499 = vmatprep.subr.mxu0 0.0
      %1500 = vmatpush1.msra.mxu0 0.0
      %1501 = vmatprep.subr.mxu0 0.0
      %1502 = vmatpush1.msra.mxu0 0.0
      %1503 = vmatprep.subr.mxu0 0.0
      %1504 = vmatpush1.msra.mxu0 0.0
      %1505 = vmatprep.subr.mxu0 0.0
      %1506 = vmatpush1.msra.mxu0 0.0
      %1507 = vmatprep.subr.mxu0 0.0
      %1508 = vmatpush1.msra.mxu0 0.0
      %1509 = vmatprep.subr.mxu0 0.0
      %1510 = vmatpush1.msra.mxu0 0.0
      %1511 = vmatprep.subr.mxu0 0.0
      %1512 = vmatpush1.msra.mxu0 0.0
      %1513 = vmatprep.subr.mxu0 0.0
      %1514 = vmatpush1.msra.mxu0 0.0
      %1515 = vmatprep.subr.mxu0 0.0
      %1516 = vmatpush1.msra.mxu0 0.0
      %1517 = vmatprep.subr.mxu0 0.0
      %1518 = vmatpush1.msra.mxu0 0.0
      %1519 = vmatprep.subr.mxu0 0.0
      %1520 = vmatpush1.msra.mxu0 0.0
      %1521 = vmatprep.subr.mxu0 0.0
      %1522 = vmatpush1.msra.mxu0 0.0
      %1523 = vmatprep.subr.mxu0 0.0
      %1524 = vmatpush1.msra.mxu0 0.0
      %1525 = vmatprep.subr.mxu0 0.0
      %1526 = vmatpush1.msra.mxu0 0.0
      %1527 = vmatprep.mubr.f32.mxu0 0.0
      %1528 = vmatmul.mubr.f32.gmra.mrb[0].mxu0 %v1369
      %v1529 = vpop.f32.mrb[0].mxu0
      %v1530 = vadd.f32 0.0, %v1529
      %v1531 = vpop.f32.mrb[0].mxu0
      %v1532 = vadd.f32 0.0, %v1531
      %1533 = vmatprep.mubr.f32.mxu0 0.0
      %1534 = vmatmul.mubr.f32.gmra.mrb[0].mxu0 %v1372
      %v1535 = vpop.f32.mrb[0].mxu0
      %v1536 = vadd.f32 0.0, %v1535
      %v1537 = vpop.f32.mrb[0].mxu0
      %v1538 = vadd.f32 0.0, %v1537
      %1539 = vdwg.mxu0
      %v1540 = vadd.f32 %v1357, %v1453
      %v1541 = vadd.f32 %v1358, %v1455
      %v1542 = vadd.f32 %v1359, %v1530
      %v1543 = vadd.f32 %v1360, %v1532
      %v1544 = vadd.f32 %v1361, %v1459
      %v1545 = vadd.f32 %v1362, %v1461
      %v1546 = vadd.f32 %v1363, %v1536
      %v1547 = vadd.f32 %v1364, %v1538
      %1548 = vrot.lane.b32.xlu0 %v483, 127
      %v1549 = vpop.permute.xlu0 %1548
      %1550 = vrot.lane.b32.xlu0 %v484, 127
      %v1551 = vpop.permute.xlu0 %1550
      %1552 = vrot.lane.b32.xlu0 %v485, 127
      %v1553 = vpop.permute.xlu0 %1552
      %1554 = vrot.lane.b32.xlu0 %v486, 127
      %v1555 = vpop.permute.xlu0 %1554
      %vm1556 = vcmp.lt.s32.totalorder %v496, 127
      %v1557 = vsel %vm1556, %v1553, %v1555
      %v1558 = vsel %vm1556, %v1551, %v1553
      %v1559 = vsel %vm1556, %v1549, %v1551
      %v1560 = vsel %vm1556, %v1555, %v1549
      %s1561 = scalar_lea.vmem %s10, 20
      %v1562 = vld [vmem:[%s1561] sm:$0xf]
      %v1564 = vlaneseq
      %v1565 = vshrl.u32 %v1564, 7
      %v1566 = vsub.s32 0, %v1565
      %v1567 = vrot.slane %v1562, %v1566
      %v1568 = vlaneseq
      %v1569 = vshrl.u32 %v1568, 7
      %v1570 = vsub.s32 1, %v1569
      %v1571 = vrot.slane %v1562, %v1570
      %v1572 = vlaneseq
      %v1573 = vshrl.u32 %v1572, 7
      %v1574 = vsub.s32 2, %v1573
      %v1575 = vrot.slane %v1562, %v1574
      %v1576 = vlaneseq
      %v1577 = vshrl.u32 %v1576, 7
      %v1578 = vsub.s32 3, %v1577
      %v1579 = vrot.slane %v1562, %v1578
      %v1584 = vmul.f32 %v1559, %v1567
      %v1585 = vmul.f32 %v1558, %v1571
      %v1586 = vmul.f32 %v1557, %v1575
      %v1587 = vmul.f32 %v1560, %v1579
      %s1588 = scalar_lea.vmem %s4, 80
      %v1589 = vld [vmem:[%s1588] sm:$0xff]
      %v1590 = vld [vmem:[%s1588 + $0x8] sm:$0xff]
      %v1592 = vsel %vm573, %v1589, 0
      %v1595 = vsel %vm573, %v1590, 0
      %v1598 = vsel %vm580, %v1584, 0
      %v1601 = vsel %vm580, %v1585, 0
      %v1604 = vsel %vm580, %v1586, 0
      %v1607 = vsel %vm580, %v1587, 0
      %1609 = vmatprep.subr.mxu0 %v1601
      %1610 = vmatpush1.msra.mxu0 %v1598
      %1611 = vmatprep.subr.mxu0 0.0
      %1612 = vmatpush1.msra.mxu0 0.0
      %1613 = vmatprep.subr.mxu0 0.0
      %1614 = vmatpush1.msra.mxu0 0.0
      %1615 = vmatprep.subr.mxu0 0.0
      %1616 = vmatpush1.msra.mxu0 0.0
      %1617 = vmatprep.subr.mxu0 0.0
      %1618 = vmatpush1.msra.mxu0 0.0
      %1619 = vmatprep.subr.mxu0 0.0
      %1620 = vmatpush1.msra.mxu0 0.0
      %1621 = vmatprep.subr.mxu0 0.0
      %1622 = vmatpush1.msra.mxu0 0.0
      %1623 = vmatprep.subr.mxu0 0.0
      %1624 = vmatpush1.msra.mxu0 0.0
      %1625 = vmatprep.subr.mxu0 0.0
      %1626 = vmatpush1.msra.mxu0 0.0
      %1627 = vmatprep.subr.mxu0 0.0
      %1628 = vmatpush1.msra.mxu0 0.0
      %1629 = vmatprep.subr.mxu0 0.0
      %1630 = vmatpush1.msra.mxu0 0.0
      %1631 = vmatprep.subr.mxu0 0.0
      %1632 = vmatpush1.msra.mxu0 0.0
      %1633 = vmatprep.subr.mxu0 0.0
      %1634 = vmatpush1.msra.mxu0 0.0
      %1635 = vmatprep.subr.mxu0 0.0
      %1636 = vmatpush1.msra.mxu0 0.0
      %1637 = vmatprep.subr.mxu0 0.0
      %1638 = vmatpush1.msra.mxu0 0.0
      %1639 = vmatprep.subr.mxu0 0.0
      %1640 = vmatpush1.msra.mxu0 0.0
      %1641 = vmatprep.subr.mxu0 0.0
      %1642 = vmatpush1.msra.mxu0 0.0
      %1643 = vmatprep.subr.mxu0 0.0
      %1644 = vmatpush1.msra.mxu0 0.0
      %1645 = vmatprep.subr.mxu0 0.0
      %1646 = vmatpush1.msra.mxu0 0.0
      %1647 = vmatprep.subr.mxu0 0.0
      %1648 = vmatpush1.msra.mxu0 0.0
      %1649 = vmatprep.subr.mxu0 0.0
      %1650 = vmatpush1.msra.mxu0 0.0
      %1651 = vmatprep.subr.mxu0 0.0
      %1652 = vmatpush1.msra.mxu0 0.0
      %1653 = vmatprep.subr.mxu0 0.0
      %1654 = vmatpush1.msra.mxu0 0.0
      %1655 = vmatprep.subr.mxu0 0.0
      %1656 = vmatpush1.msra.mxu0 0.0
      %1657 = vmatprep.subr.mxu0 0.0
      %1658 = vmatpush1.msra.mxu0 0.0
      %1659 = vmatprep.subr.mxu0 0.0
      %1660 = vmatpush1.msra.mxu0 0.0
      %1661 = vmatprep.subr.mxu0 0.0
      %1662 = vmatpush1.msra.mxu0 0.0
      %1663 = vmatprep.subr.mxu0 0.0
      %1664 = vmatpush1.msra.mxu0 0.0
      %1665 = vmatprep.subr.mxu0 0.0
      %1666 = vmatpush1.msra.mxu0 0.0
      %1667 = vmatprep.subr.mxu0 0.0
      %1668 = vmatpush1.msra.mxu0 0.0
      %1669 = vmatprep.subr.mxu0 0.0
      %1670 = vmatpush1.msra.mxu0 0.0
      %1671 = vmatprep.subr.mxu0 0.0
      %1672 = vmatpush1.msra.mxu0 0.0
      %1673 = vmatprep.mubr.f32.mxu0 0.0
      %1674 = vmatmul.mubr.f32.gmra.mrb[0].mxu0 %v1592
      %v1675 = vpop.f32.mrb[0].mxu0
      %v1676 = vadd.f32 0.0, %v1675
      %v1677 = vpop.f32.mrb[0].mxu0
      %v1678 = vadd.f32 0.0, %v1677
      %1679 = vmatprep.mubr.f32.mxu0 0.0
      %1680 = vmatmul.mubr.f32.gmra.mrb[0].mxu0 %v1595
      %v1681 = vpop.f32.mrb[0].mxu0
      %v1682 = vadd.f32 0.0, %v1681
      %v1683 = vpop.f32.mrb[0].mxu0
      %v1684 = vadd.f32 0.0, %v1683
      %1685 = vdwg.mxu0
      %1686 = vmatprep.subr.mxu0 %v1607
      %1687 = vmatpush1.msra.mxu0 %v1604
      %1688 = vmatprep.subr.mxu0 0.0
      %1689 = vmatpush1.msra.mxu0 0.0
      %1690 = vmatprep.subr.mxu0 0.0
      %1691 = vmatpush1.msra.mxu0 0.0
      %1692 = vmatprep.subr.mxu0 0.0
      %1693 = vmatpush1.msra.mxu0 0.0
      %1694 = vmatprep.subr.mxu0 0.0
      %1695 = vmatpush1.msra.mxu0 0.0
      %1696 = vmatprep.subr.mxu0 0.0
      %1697 = vmatpush1.msra.mxu0 0.0
      %1698 = vmatprep.subr.mxu0 0.0
      %1699 = vmatpush1.msra.mxu0 0.0
      %1700 = vmatprep.subr.mxu0 0.0
      %1701 = vmatpush1.msra.mxu0 0.0
      %1702 = vmatprep.subr.mxu0 0.0
      %1703 = vmatpush1.msra.mxu0 0.0
      %1704 = vmatprep.subr.mxu0 0.0
      %1705 = vmatpush1.msra.mxu0 0.0
      %1706 = vmatprep.subr.mxu0 0.0
      %1707 = vmatpush1.msra.mxu0 0.0
      %1708 = vmatprep.subr.mxu0 0.0
      %1709 = vmatpush1.msra.mxu0 0.0
      %1710 = vmatprep.subr.mxu0 0.0
      %1711 = vmatpush1.msra.mxu0 0.0
      %1712 = vmatprep.subr.mxu0 0.0
      %1713 = vmatpush1.msra.mxu0 0.0
      %1714 = vmatprep.subr.mxu0 0.0
      %1715 = vmatpush1.msra.mxu0 0.0
      %1716 = vmatprep.subr.mxu0 0.0
      %1717 = vmatpush1.msra.mxu0 0.0
      %1718 = vmatprep.subr.mxu0 0.0
      %1719 = vmatpush1.msra.mxu0 0.0
      %1720 = vmatprep.subr.mxu0 0.0
      %1721 = vmatpush1.msra.mxu0 0.0
      %1722 = vmatprep.subr.mxu0 0.0
      %1723 = vmatpush1.msra.mxu0 0.0
      %1724 = vmatprep.subr.mxu0 0.0
      %1725 = vmatpush1.msra.mxu0 0.0
      %1726 = vmatprep.subr.mxu0 0.0
      %1727 = vmatpush1.msra.mxu0 0.0
      %1728 = vmatprep.subr.mxu0 0.0
      %1729 = vmatpush1.msra.mxu0 0.0
      %1730 = vmatprep.subr.mxu0 0.0
      %1731 = vmatpush1.msra.mxu0 0.0
      %1732 = vmatprep.subr.mxu0 0.0
      %1733 = vmatpush1.msra.mxu0 0.0
      %1734 = vmatprep.subr.mxu0 0.0
      %1735 = vmatpush1.msra.mxu0 0.0
      %1736 = vmatprep.subr.mxu0 0.0
      %1737 = vmatpush1.msra.mxu0 0.0
      %1738 = vmatprep.subr.mxu0 0.0
      %1739 = vmatpush1.msra.mxu0 0.0
      %1740 = vmatprep.subr.mxu0 0.0
      %1741 = vmatpush1.msra.mxu0 0.0
      %1742 = vmatprep.subr.mxu0 0.0
      %1743 = vmatpush1.msra.mxu0 0.0
      %1744 = vmatprep.subr.mxu0 0.0
      %1745 = vmatpush1.msra.mxu0 0.0
      %1746 = vmatprep.subr.mxu0 0.0
      %1747 = vmatpush1.msra.mxu0 0.0
      %1748 = vmatprep.subr.mxu0 0.0
      %1749 = vmatpush1.msra.mxu0 0.0
      %1750 = vmatprep.mubr.f32.mxu0 0.0
      %1751 = vmatmul.mubr.f32.gmra.mrb[0].mxu0 %v1592
      %v1752 = vpop.f32.mrb[0].mxu0
      %v1753 = vadd.f32 0.0, %v1752
      %v1754 = vpop.f32.mrb[0].mxu0
      %v1755 = vadd.f32 0.0, %v1754
      %1756 = vmatprep.mubr.f32.mxu0 0.0
      %1757 = vmatmul.mubr.f32.gmra.mrb[0].mxu0 %v1595
      %v1758 = vpop.f32.mrb[0].mxu0
      %v1759 = vadd.f32 0.0, %v1758
      %v1760 = vpop.f32.mrb[0].mxu0
      %v1761 = vadd.f32 0.0, %v1760
      %1762 = vdwg.mxu0
      %v1763 = vadd.f32 %v1540, %v1676
      %v1764 = vadd.f32 %v1541, %v1678
      %v1765 = vadd.f32 %v1542, %v1753
      %v1766 = vadd.f32 %v1543, %v1755
      %v1767 = vadd.f32 %v1544, %v1682
      %v1768 = vadd.f32 %v1545, %v1684
      %v1769 = vadd.f32 %v1546, %v1759
      %v1770 = vadd.f32 %v1547, %v1761
      %1771 = vrot.lane.b32.xlu0 %v483, 113
      %v1772 = vpop.permute.xlu0 %1771
      %1773 = vrot.lane.b32.xlu0 %v484, 113
      %v1774 = vpop.permute.xlu0 %1773
      %1775 = vrot.lane.b32.xlu0 %v485, 113
      %v1776 = vpop.permute.xlu0 %1775
      %1777 = vrot.lane.b32.xlu0 %v486, 113
      %v1778 = vpop.permute.xlu0 %1777
      %vm1779 = vcmp.lt.s32.totalorder %v496, 113
      %v1780 = vsel %vm1779, %v1776, %v1778
      %v1781 = vsel %vm1779, %v1774, %v1776
      %v1782 = vsel %vm1779, %v1772, %v1774
      %v1783 = vsel %vm1779, %v1778, %v1772
      %s1784 = scalar_lea.vmem %s10, 24
      %v1785 = vld [vmem:[%s1784] sm:$0xf]
      %v1787 = vlaneseq
      %v1788 = vshrl.u32 %v1787, 7
      %v1789 = vsub.s32 0, %v1788
      %v1790 = vrot.slane %v1785, %v1789
      %v1791 = vlaneseq
      %v1792 = vshrl.u32 %v1791, 7
      %v1793 = vsub.s32 1, %v1792
      %v1794 = vrot.slane %v1785, %v1793
      %v1795 = vlaneseq
      %v1796 = vshrl.u32 %v1795, 7
      %v1797 = vsub.s32 2, %v1796
      %v1798 = vrot.slane %v1785, %v1797
      %v1799 = vlaneseq
      %v1800 = vshrl.u32 %v1799, 7
      %v1801 = vsub.s32 3, %v1800
      %v1802 = vrot.slane %v1785, %v1801
      %v1807 = vmul.f32 %v1782, %v1790
      %v1808 = vmul.f32 %v1781, %v1794
      %v1809 = vmul.f32 %v1780, %v1798
      %v1810 = vmul.f32 %v1783, %v1802
      %s1811 = scalar_lea.vmem %s4, 96
      %v1812 = vld [vmem:[%s1811] sm:$0xff]
      %v1813 = vld [vmem:[%s1811 + $0x8] sm:$0xff]
      %v1815 = vsel %vm573, %v1812, 0
      %v1818 = vsel %vm573, %v1813, 0
      %v1821 = vsel %vm580, %v1807, 0
      %v1824 = vsel %vm580, %v1808, 0
      %v1827 = vsel %vm580, %v1809, 0
      %v1830 = vsel %vm580, %v1810, 0
      %1832 = vmatprep.subr.mxu0 %v1824
      %1833 = vmatpush1.msra.mxu0 %v1821
      %1834 = vmatprep.subr.mxu0 0.0
      %1835 = vmatpush1.msra.mxu0 0.0
      %1836 = vmatprep.subr.mxu0 0.0
      %1837 = vmatpush1.msra.mxu0 0.0
      %1838 = vmatprep.subr.mxu0 0.0
      %1839 = vmatpush1.msra.mxu0 0.0
      %1840 = vmatprep.subr.mxu0 0.0
      %1841 = vmatpush1.msra.mxu0 0.0
      %1842 = vmatprep.subr.mxu0 0.0
      %1843 = vmatpush1.msra.mxu0 0.0
      %1844 = vmatprep.subr.mxu0 0.0
      %1845 = vmatpush1.msra.mxu0 0.0
      %1846 = vmatprep.subr.mxu0 0.0
      %1847 = vmatpush1.msra.mxu0 0.0
      %1848 = vmatprep.subr.mxu0 0.0
      %1849 = vmatpush1.msra.mxu0 0.0
      %1850 = vmatprep.subr.mxu0 0.0
      %1851 = vmatpush1.msra.mxu0 0.0
      %1852 = vmatprep.subr.mxu0 0.0
      %1853 = vmatpush1.msra.mxu0 0.0
      %1854 = vmatprep.subr.mxu0 0.0
      %1855 = vmatpush1.msra.mxu0 0.0
      %1856 = vmatprep.subr.mxu0 0.0
      %1857 = vmatpush1.msra.mxu0 0.0
      %1858 = vmatprep.subr.mxu0 0.0
      %1859 = vmatpush1.msra.mxu0 0.0
      %1860 = vmatprep.subr.mxu0 0.0
      %1861 = vmatpush1.msra.mxu0 0.0
      %1862 = vmatprep.subr.mxu0 0.0
      %1863 = vmatpush1.msra.mxu0 0.0
      %1864 = vmatprep.subr.mxu0 0.0
      %1865 = vmatpush1.msra.mxu0 0.0
      %1866 = vmatprep.subr.mxu0 0.0
      %1867 = vmatpush1.msra.mxu0 0.0
      %1868 = vmatprep.subr.mxu0 0.0
      %1869 = vmatpush1.msra.mxu0 0.0
      %1870 = vmatprep.subr.mxu0 0.0
      %1871 = vmatpush1.msra.mxu0 0.0
      %1872 = vmatprep.subr.mxu0 0.0
      %1873 = vmatpush1.msra.mxu0 0.0
      %1874 = vmatprep.subr.mxu0 0.0
      %1875 = vmatpush1.msra.mxu0 0.0
      %1876 = vmatprep.subr.mxu0 0.0
      %1877 = vmatpush1.msra.mxu0 0.0
      %1878 = vmatprep.subr.mxu0 0.0
      %1879 = vmatpush1.msra.mxu0 0.0
      %1880 = vmatprep.subr.mxu0 0.0
      %1881 = vmatpush1.msra.mxu0 0.0
      %1882 = vmatprep.subr.mxu0 0.0
      %1883 = vmatpush1.msra.mxu0 0.0
      %1884 = vmatprep.subr.mxu0 0.0
      %1885 = vmatpush1.msra.mxu0 0.0
      %1886 = vmatprep.subr.mxu0 0.0
      %1887 = vmatpush1.msra.mxu0 0.0
      %1888 = vmatprep.subr.mxu0 0.0
      %1889 = vmatpush1.msra.mxu0 0.0
      %1890 = vmatprep.subr.mxu0 0.0
      %1891 = vmatpush1.msra.mxu0 0.0
      %1892 = vmatprep.subr.mxu0 0.0
      %1893 = vmatpush1.msra.mxu0 0.0
      %1894 = vmatprep.subr.mxu0 0.0
      %1895 = vmatpush1.msra.mxu0 0.0
      %1896 = vmatprep.mubr.f32.mxu0 0.0
      %1897 = vmatmul.mubr.f32.gmra.mrb[0].mxu0 %v1815
      %v1898 = vpop.f32.mrb[0].mxu0
      %v1899 = vadd.f32 0.0, %v1898
      %v1900 = vpop.f32.mrb[0].mxu0
      %v1901 = vadd.f32 0.0, %v1900
      %1902 = vmatprep.mubr.f32.mxu0 0.0
      %1903 = vmatmul.mubr.f32.gmra.mrb[0].mxu0 %v1818
      %v1904 = vpop.f32.mrb[0].mxu0
      %v1905 = vadd.f32 0.0, %v1904
      %v1906 = vpop.f32.mrb[0].mxu0
      %v1907 = vadd.f32 0.0, %v1906
      %1908 = vdwg.mxu0
      %1909 = vmatprep.subr.mxu0 %v1830
      %1910 = vmatpush1.msra.mxu0 %v1827
      %1911 = vmatprep.subr.mxu0 0.0
      %1912 = vmatpush1.msra.mxu0 0.0
      %1913 = vmatprep.subr.mxu0 0.0
      %1914 = vmatpush1.msra.mxu0 0.0
      %1915 = vmatprep.subr.mxu0 0.0
      %1916 = vmatpush1.msra.mxu0 0.0
      %1917 = vmatprep.subr.mxu0 0.0
      %1918 = vmatpush1.msra.mxu0 0.0
      %1919 = vmatprep.subr.mxu0 0.0
      %1920 = vmatpush1.msra.mxu0 0.0
      %1921 = vmatprep.subr.mxu0 0.0
      %1922 = vmatpush1.msra.mxu0 0.0
      %1923 = vmatprep.subr.mxu0 0.0
      %1924 = vmatpush1.msra.mxu0 0.0
      %1925 = vmatprep.subr.mxu0 0.0
      %1926 = vmatpush1.msra.mxu0 0.0
      %1927 = vmatprep.subr.mxu0 0.0
      %1928 = vmatpush1.msra.mxu0 0.0
      %1929 = vmatprep.subr.mxu0 0.0
      %1930 = vmatpush1.msra.mxu0 0.0
      %1931 = vmatprep.subr.mxu0 0.0
      %1932 = vmatpush1.msra.mxu0 0.0
      %1933 = vmatprep.subr.mxu0 0.0
      %1934 = vmatpush1.msra.mxu0 0.0
      %1935 = vmatprep.subr.mxu0 0.0
      %1936 = vmatpush1.msra.mxu0 0.0
      %1937 = vmatprep.subr.mxu0 0.0
      %1938 = vmatpush1.msra.mxu0 0.0
      %1939 = vmatprep.subr.mxu0 0.0
      %1940 = vmatpush1.msra.mxu0 0.0
      %1941 = vmatprep.subr.mxu0 0.0
      %1942 = vmatpush1.msra.mxu0 0.0
      %1943 = vmatprep.subr.mxu0 0.0
      %1944 = vmatpush1.msra.mxu0 0.0
      %1945 = vmatprep.subr.mxu0 0.0
      %1946 = vmatpush1.msra.mxu0 0.0
      %1947 = vmatprep.subr.mxu0 0.0
      %1948 = vmatpush1.msra.mxu0 0.0
      %1949 = vmatprep.subr.mxu0 0.0
      %1950 = vmatpush1.msra.mxu0 0.0
      %1951 = vmatprep.subr.mxu0 0.0
      %1952 = vmatpush1.msra.mxu0 0.0
      %1953 = vmatprep.subr.mxu0 0.0
      %1954 = vmatpush1.msra.mxu0 0.0
      %1955 = vmatprep.subr.mxu0 0.0
      %1956 = vmatpush1.msra.mxu0 0.0
      %1957 = vmatprep.subr.mxu0 0.0
      %1958 = vmatpush1.msra.mxu0 0.0
      %1959 = vmatprep.subr.mxu0 0.0
      %1960 = vmatpush1.msra.mxu0 0.0
      %1961 = vmatprep.subr.mxu0 0.0
      %1962 = vmatpush1.msra.mxu0 0.0
      %1963 = vmatprep.subr.mxu0 0.0
      %1964 = vmatpush1.msra.mxu0 0.0
      %1965 = vmatprep.subr.mxu0 0.0
      %1966 = vmatpush1.msra.mxu0 0.0
      %1967 = vmatprep.subr.mxu0 0.0
      %1968 = vmatpush1.msra.mxu0 0.0
      %1969 = vmatprep.subr.mxu0 0.0
      %1970 = vmatpush1.msra.mxu0 0.0
      %1971 = vmatprep.subr.mxu0 0.0
      %1972 = vmatpush1.msra.mxu0 0.0
      %1973 = vmatprep.mubr.f32.mxu0 0.0
      %1974 = vmatmul.mubr.f32.gmra.mrb[0].mxu0 %v1815
      %v1975 = vpop.f32.mrb[0].mxu0
      %v1976 = vadd.f32 0.0, %v1975
      %v1977 = vpop.f32.mrb[0].mxu0
      %v1978 = vadd.f32 0.0, %v1977
      %1979 = vmatprep.mubr.f32.mxu0 0.0
      %1980 = vmatmul.mubr.f32.gmra.mrb[0].mxu0 %v1818
      %v1981 = vpop.f32.mrb[0].mxu0
      %v1982 = vadd.f32 0.0, %v1981
      %v1983 = vpop.f32.mrb[0].mxu0
      %v1984 = vadd.f32 0.0, %v1983
      %1985 = vdwg.mxu0
      %v1986 = vadd.f32 %v1763, %v1899
      %v1987 = vadd.f32 %v1764, %v1901
      %v1988 = vadd.f32 %v1765, %v1976
      %v1989 = vadd.f32 %v1766, %v1978
      %v1990 = vadd.f32 %v1767, %v1905
      %v1991 = vadd.f32 %v1768, %v1907
      %v1992 = vadd.f32 %v1769, %v1982
      %v1993 = vadd.f32 %v1770, %v1984
      %1994 = vrot.lane.b32.xlu0 %v483, 112
      %v1995 = vpop.permute.xlu0 %1994
      %1996 = vrot.lane.b32.xlu0 %v484, 112
      %v1997 = vpop.permute.xlu0 %1996
      %1998 = vrot.lane.b32.xlu0 %v485, 112
      %v1999 = vpop.permute.xlu0 %1998
      %2000 = vrot.lane.b32.xlu0 %v486, 112
      %v2001 = vpop.permute.xlu0 %2000
      %vm2002 = vcmp.lt.s32.totalorder %v496, 112
      %v2003 = vsel %vm2002, %v1999, %v2001
      %v2004 = vsel %vm2002, %v1997, %v1999
      %v2005 = vsel %vm2002, %v1995, %v1997
      %v2006 = vsel %vm2002, %v2001, %v1995
      %s2007 = scalar_lea.vmem %s10, 28
      %v2008 = vld [vmem:[%s2007] sm:$0xf]
      %v2010 = vlaneseq
      %v2011 = vshrl.u32 %v2010, 7
      %v2012 = vsub.s32 0, %v2011
      %v2013 = vrot.slane %v2008, %v2012
      %v2014 = vlaneseq
      %v2015 = vshrl.u32 %v2014, 7
      %v2016 = vsub.s32 1, %v2015
      %v2017 = vrot.slane %v2008, %v2016
      %v2018 = vlaneseq
      %v2019 = vshrl.u32 %v2018, 7
      %v2020 = vsub.s32 2, %v2019
      %v2021 = vrot.slane %v2008, %v2020
      %v2022 = vlaneseq
      %v2023 = vshrl.u32 %v2022, 7
      %v2024 = vsub.s32 3, %v2023
      %v2025 = vrot.slane %v2008, %v2024
      %v2030 = vmul.f32 %v2005, %v2013
      %v2031 = vmul.f32 %v2004, %v2017
      %v2032 = vmul.f32 %v2003, %v2021
      %v2033 = vmul.f32 %v2006, %v2025
      %s2034 = scalar_lea.vmem %s4, 112
      %v2035 = vld [vmem:[%s2034] sm:$0xff]
      %v2036 = vld [vmem:[%s2034 + $0x8] sm:$0xff]
      %v2038 = vsel %vm573, %v2035, 0
      %v2041 = vsel %vm573, %v2036, 0
      %v2044 = vsel %vm580, %v2030, 0
      %v2047 = vsel %vm580, %v2031, 0
      %v2050 = vsel %vm580, %v2032, 0
      %v2053 = vsel %vm580, %v2033, 0
      %2055 = vmatprep.subr.mxu0 %v2047
      %2056 = vmatpush1.msra.mxu0 %v2044
      %2057 = vmatprep.subr.mxu0 0.0
      %2058 = vmatpush1.msra.mxu0 0.0
      %2059 = vmatprep.subr.mxu0 0.0
      %2060 = vmatpush1.msra.mxu0 0.0
      %2061 = vmatprep.subr.mxu0 0.0
      %2062 = vmatpush1.msra.mxu0 0.0
      %2063 = vmatprep.subr.mxu0 0.0
      %2064 = vmatpush1.msra.mxu0 0.0
      %2065 = vmatprep.subr.mxu0 0.0
      %2066 = vmatpush1.msra.mxu0 0.0
      %2067 = vmatprep.subr.mxu0 0.0
      %2068 = vmatpush1.msra.mxu0 0.0
      %2069 = vmatprep.subr.mxu0 0.0
      %2070 = vmatpush1.msra.mxu0 0.0
      %2071 = vmatprep.subr.mxu0 0.0
      %2072 = vmatpush1.msra.mxu0 0.0
      %2073 = vmatprep.subr.mxu0 0.0
      %2074 = vmatpush1.msra.mxu0 0.0
      %2075 = vmatprep.subr.mxu0 0.0
      %2076 = vmatpush1.msra.mxu0 0.0
      %2077 = vmatprep.subr.mxu0 0.0
      %2078 = vmatpush1.msra.mxu0 0.0
      %2079 = vmatprep.subr.mxu0 0.0
      %2080 = vmatpush1.msra.mxu0 0.0
      %2081 = vmatprep.subr.mxu0 0.0
      %2082 = vmatpush1.msra.mxu0 0.0
      %2083 = vmatprep.subr.mxu0 0.0
      %2084 = vmatpush1.msra.mxu0 0.0
      %2085 = vmatprep.subr.mxu0 0.0
      %2086 = vmatpush1.msra.mxu0 0.0
      %2087 = vmatprep.subr.mxu0 0.0
      %2088 = vmatpush1.msra.mxu0 0.0
      %2089 = vmatprep.subr.mxu0 0.0
      %2090 = vmatpush1.msra.mxu0 0.0
      %2091 = vmatprep.subr.mxu0 0.0
      %2092 = vmatpush1.msra.mxu0 0.0
      %2093 = vmatprep.subr.mxu0 0.0
      %2094 = vmatpush1.msra.mxu0 0.0
      %2095 = vmatprep.subr.mxu0 0.0
      %2096 = vmatpush1.msra.mxu0 0.0
      %2097 = vmatprep.subr.mxu0 0.0
      %2098 = vmatpush1.msra.mxu0 0.0
      %2099 = vmatprep.subr.mxu0 0.0
      %2100 = vmatpush1.msra.mxu0 0.0
      %2101 = vmatprep.subr.mxu0 0.0
      %2102 = vmatpush1.msra.mxu0 0.0
      %2103 = vmatprep.subr.mxu0 0.0
      %2104 = vmatpush1.msra.mxu0 0.0
      %2105 = vmatprep.subr.mxu0 0.0
      %2106 = vmatpush1.msra.mxu0 0.0
      %2107 = vmatprep.subr.mxu0 0.0
      %2108 = vmatpush1.msra.mxu0 0.0
      %2109 = vmatprep.subr.mxu0 0.0
      %2110 = vmatpush1.msra.mxu0 0.0
      %2111 = vmatprep.subr.mxu0 0.0
      %2112 = vmatpush1.msra.mxu0 0.0
      %2113 = vmatprep.subr.mxu0 0.0
      %2114 = vmatpush1.msra.mxu0 0.0
      %2115 = vmatprep.subr.mxu0 0.0
      %2116 = vmatpush1.msra.mxu0 0.0
      %2117 = vmatprep.subr.mxu0 0.0
      %2118 = vmatpush1.msra.mxu0 0.0
      %2119 = vmatprep.mubr.f32.mxu0 0.0
      %2120 = vmatmul.mubr.f32.gmra.mrb[0].mxu0 %v2038
      %v2121 = vpop.f32.mrb[0].mxu0
      %v2122 = vadd.f32 0.0, %v2121
      %v2123 = vpop.f32.mrb[0].mxu0
      %v2124 = vadd.f32 0.0, %v2123
      %2125 = vmatprep.mubr.f32.mxu0 0.0
      %2126 = vmatmul.mubr.f32.gmra.mrb[0].mxu0 %v2041
      %v2127 = vpop.f32.mrb[0].mxu0
      %v2128 = vadd.f32 0.0, %v2127
      %v2129 = vpop.f32.mrb[0].mxu0
      %v2130 = vadd.f32 0.0, %v2129
      %2131 = vdwg.mxu0
      %2132 = vmatprep.subr.mxu0 %v2053
      %2133 = vmatpush1.msra.mxu0 %v2050
      %2134 = vmatprep.subr.mxu0 0.0
      %2135 = vmatpush1.msra.mxu0 0.0
      %2136 = vmatprep.subr.mxu0 0.0
      %2137 = vmatpush1.msra.mxu0 0.0
      %2138 = vmatprep.subr.mxu0 0.0
      %2139 = vmatpush1.msra.mxu0 0.0
      %2140 = vmatprep.subr.mxu0 0.0
      %2141 = vmatpush1.msra.mxu0 0.0
      %2142 = vmatprep.subr.mxu0 0.0
      %2143 = vmatpush1.msra.mxu0 0.0
      %2144 = vmatprep.subr.mxu0 0.0
      %2145 = vmatpush1.msra.mxu0 0.0
      %2146 = vmatprep.subr.mxu0 0.0
      %2147 = vmatpush1.msra.mxu0 0.0
      %2148 = vmatprep.subr.mxu0 0.0
      %2149 = vmatpush1.msra.mxu0 0.0
      %2150 = vmatprep.subr.mxu0 0.0
      %2151 = vmatpush1.msra.mxu0 0.0
      %2152 = vmatprep.subr.mxu0 0.0
      %2153 = vmatpush1.msra.mxu0 0.0
      %2154 = vmatprep.subr.mxu0 0.0
      %2155 = vmatpush1.msra.mxu0 0.0
      %2156 = vmatprep.subr.mxu0 0.0
      %2157 = vmatpush1.msra.mxu0 0.0
      %2158 = vmatprep.subr.mxu0 0.0
      %2159 = vmatpush1.msra.mxu0 0.0
      %2160 = vmatprep.subr.mxu0 0.0
      %2161 = vmatpush1.msra.mxu0 0.0
      %2162 = vmatprep.subr.mxu0 0.0
      %2163 = vmatpush1.msra.mxu0 0.0
      %2164 = vmatprep.subr.mxu0 0.0
      %2165 = vmatpush1.msra.mxu0 0.0
      %2166 = vmatprep.subr.mxu0 0.0
      %2167 = vmatpush1.msra.mxu0 0.0
      %2168 = vmatprep.subr.mxu0 0.0
      %2169 = vmatpush1.msra.mxu0 0.0
      %2170 = vmatprep.subr.mxu0 0.0
      %2171 = vmatpush1.msra.mxu0 0.0
      %2172 = vmatprep.subr.mxu0 0.0
      %2173 = vmatpush1.msra.mxu0 0.0
      %2174 = vmatprep.subr.mxu0 0.0
      %2175 = vmatpush1.msra.mxu0 0.0
      %2176 = vmatprep.subr.mxu0 0.0
      %2177 = vmatpush1.msra.mxu0 0.0
      %2178 = vmatprep.subr.mxu0 0.0
      %2179 = vmatpush1.msra.mxu0 0.0
      %2180 = vmatprep.subr.mxu0 0.0
      %2181 = vmatpush1.msra.mxu0 0.0
      %2182 = vmatprep.subr.mxu0 0.0
      %2183 = vmatpush1.msra.mxu0 0.0
      %2184 = vmatprep.subr.mxu0 0.0
      %2185 = vmatpush1.msra.mxu0 0.0
      %2186 = vmatprep.subr.mxu0 0.0
      %2187 = vmatpush1.msra.mxu0 0.0
      %2188 = vmatprep.subr.mxu0 0.0
      %2189 = vmatpush1.msra.mxu0 0.0
      %2190 = vmatprep.subr.mxu0 0.0
      %2191 = vmatpush1.msra.mxu0 0.0
      %2192 = vmatprep.subr.mxu0 0.0
      %2193 = vmatpush1.msra.mxu0 0.0
      %2194 = vmatprep.subr.mxu0 0.0
      %2195 = vmatpush1.msra.mxu0 0.0
      %2196 = vmatprep.mubr.f32.mxu0 0.0
      %2197 = vmatmul.mubr.f32.gmra.mrb[0].mxu0 %v2038
      %v2198 = vpop.f32.mrb[0].mxu0
      %v2199 = vadd.f32 0.0, %v2198
      %v2200 = vpop.f32.mrb[0].mxu0
      %v2201 = vadd.f32 0.0, %v2200
      %2202 = vmatprep.mubr.f32.mxu0 0.0
      %2203 = vmatmul.mubr.f32.gmra.mrb[0].mxu0 %v2041
      %v2204 = vpop.f32.mrb[0].mxu0
      %v2205 = vadd.f32 0.0, %v2204
      %v2206 = vpop.f32.mrb[0].mxu0
      %v2207 = vadd.f32 0.0, %v2206
      %2208 = vdwg.mxu0
      %v2209 = vadd.f32 %v1986, %v2122
      %v2210 = vadd.f32 %v1987, %v2124
      %v2211 = vadd.f32 %v1988, %v2199
      %v2212 = vadd.f32 %v1989, %v2201
      %v2213 = vadd.f32 %v1990, %v2128
      %v2214 = vadd.f32 %v1991, %v2130
      %v2215 = vadd.f32 %v1992, %v2205
      %v2216 = vadd.f32 %v1993, %v2207
      %2217 = vrot.lane.b32.xlu0 %v483, 111
      %v2218 = vpop.permute.xlu0 %2217
      %2219 = vrot.lane.b32.xlu0 %v484, 111
      %v2220 = vpop.permute.xlu0 %2219
      %2221 = vrot.lane.b32.xlu0 %v485, 111
      %v2222 = vpop.permute.xlu0 %2221
      %2223 = vrot.lane.b32.xlu0 %v486, 111
      %v2224 = vpop.permute.xlu0 %2223
      %vm2225 = vcmp.lt.s32.totalorder %v496, 111
      %v2226 = vsel %vm2225, %v2222, %v2224
      %v2227 = vsel %vm2225, %v2220, %v2222
      %v2228 = vsel %vm2225, %v2218, %v2220
      %v2229 = vsel %vm2225, %v2224, %v2218
      %s2230 = scalar_lea.vmem %s10, 32
      %v2231 = vld [vmem:[%s2230] sm:$0xf]
      %v2233 = vlaneseq
      %v2234 = vshrl.u32 %v2233, 7
      %v2235 = vsub.s32 0, %v2234
      %v2236 = vrot.slane %v2231, %v2235
      %v2237 = vlaneseq
      %v2238 = vshrl.u32 %v2237, 7
      %v2239 = vsub.s32 1, %v2238
      %v2240 = vrot.slane %v2231, %v2239
      %v2241 = vlaneseq
      %v2242 = vshrl.u32 %v2241, 7
      %v2243 = vsub.s32 2, %v2242
      %v2244 = vrot.slane %v2231, %v2243
      %v2245 = vlaneseq
      %v2246 = vshrl.u32 %v2245, 7
      %v2247 = vsub.s32 3, %v2246
      %v2248 = vrot.slane %v2231, %v2247
      %v2253 = vmul.f32 %v2228, %v2236
      %v2254 = vmul.f32 %v2227, %v2240
      %v2255 = vmul.f32 %v2226, %v2244
      %v2256 = vmul.f32 %v2229, %v2248
      %s2257 = scalar_lea.vmem %s4, 128
      %v2258 = vld [vmem:[%s2257] sm:$0xff]
      %v2259 = vld [vmem:[%s2257 + $0x8] sm:$0xff]
      %v2261 = vsel %vm573, %v2258, 0
      %v2264 = vsel %vm573, %v2259, 0
      %v2267 = vsel %vm580, %v2253, 0
      %v2270 = vsel %vm580, %v2254, 0
      %v2273 = vsel %vm580, %v2255, 0
      %v2276 = vsel %vm580, %v2256, 0
      %2278 = vmatprep.subr.mxu0 %v2270
      %2279 = vmatpush1.msra.mxu0 %v2267
      %2280 = vmatprep.subr.mxu0 0.0
      %2281 = vmatpush1.msra.mxu0 0.0
      %2282 = vmatprep.subr.mxu0 0.0
      %2283 = vmatpush1.msra.mxu0 0.0
      %2284 = vmatprep.subr.mxu0 0.0
      %2285 = vmatpush1.msra.mxu0 0.0
      %2286 = vmatprep.subr.mxu0 0.0
      %2287 = vmatpush1.msra.mxu0 0.0
      %2288 = vmatprep.subr.mxu0 0.0
      %2289 = vmatpush1.msra.mxu0 0.0
      %2290 = vmatprep.subr.mxu0 0.0
      %2291 = vmatpush1.msra.mxu0 0.0
      %2292 = vmatprep.subr.mxu0 0.0
      %2293 = vmatpush1.msra.mxu0 0.0
      %2294 = vmatprep.subr.mxu0 0.0
      %2295 = vmatpush1.msra.mxu0 0.0
      %2296 = vmatprep.subr.mxu0 0.0
      %2297 = vmatpush1.msra.mxu0 0.0
      %2298 = vmatprep.subr.mxu0 0.0
      %2299 = vmatpush1.msra.mxu0 0.0
      %2300 = vmatprep.subr.mxu0 0.0
      %2301 = vmatpush1.msra.mxu0 0.0
      %2302 = vmatprep.subr.mxu0 0.0
      %2303 = vmatpush1.msra.mxu0 0.0
      %2304 = vmatprep.subr.mxu0 0.0
      %2305 = vmatpush1.msra.mxu0 0.0
      %2306 = vmatprep.subr.mxu0 0.0
      %2307 = vmatpush1.msra.mxu0 0.0
      %2308 = vmatprep.subr.mxu0 0.0
      %2309 = vmatpush1.msra.mxu0 0.0
      %2310 = vmatprep.subr.mxu0 0.0
      %2311 = vmatpush1.msra.mxu0 0.0
      %2312 = vmatprep.subr.mxu0 0.0
      %2313 = vmatpush1.msra.mxu0 0.0
      %2314 = vmatprep.subr.mxu0 0.0
      %2315 = vmatpush1.msra.mxu0 0.0
      %2316 = vmatprep.subr.mxu0 0.0
      %2317 = vmatpush1.msra.mxu0 0.0
      %2318 = vmatprep.subr.mxu0 0.0
      %2319 = vmatpush1.msra.mxu0 0.0
      %2320 = vmatprep.subr.mxu0 0.0
      %2321 = vmatpush1.msra.mxu0 0.0
      %2322 = vmatprep.subr.mxu0 0.0
      %2323 = vmatpush1.msra.mxu0 0.0
      %2324 = vmatprep.subr.mxu0 0.0
      %2325 = vmatpush1.msra.mxu0 0.0
      %2326 = vmatprep.subr.mxu0 0.0
      %2327 = vmatpush1.msra.mxu0 0.0
      %2328 = vmatprep.subr.mxu0 0.0
      %2329 = vmatpush1.msra.mxu0 0.0
      %2330 = vmatprep.subr.mxu0 0.0
      %2331 = vmatpush1.msra.mxu0 0.0
      %2332 = vmatprep.subr.mxu0 0.0
      %2333 = vmatpush1.msra.mxu0 0.0
      %2334 = vmatprep.subr.mxu0 0.0
      %2335 = vmatpush1.msra.mxu0 0.0
      %2336 = vmatprep.subr.mxu0 0.0
      %2337 = vmatpush1.msra.mxu0 0.0
      %2338 = vmatprep.subr.mxu0 0.0
      %2339 = vmatpush1.msra.mxu0 0.0
      %2340 = vmatprep.subr.mxu0 0.0
      %2341 = vmatpush1.msra.mxu0 0.0
      %2342 = vmatprep.mubr.f32.mxu0 0.0
      %2343 = vmatmul.mubr.f32.gmra.mrb[0].mxu0 %v2261
      %v2344 = vpop.f32.mrb[0].mxu0
      %v2345 = vadd.f32 0.0, %v2344
      %v2346 = vpop.f32.mrb[0].mxu0
      %v2347 = vadd.f32 0.0, %v2346
      %2348 = vmatprep.mubr.f32.mxu0 0.0
      %2349 = vmatmul.mubr.f32.gmra.mrb[0].mxu0 %v2264
      %v2350 = vpop.f32.mrb[0].mxu0
      %v2351 = vadd.f32 0.0, %v2350
      %v2352 = vpop.f32.mrb[0].mxu0
      %v2353 = vadd.f32 0.0, %v2352
      %2354 = vdwg.mxu0
      %2355 = vmatprep.subr.mxu0 %v2276
      %2356 = vmatpush1.msra.mxu0 %v2273
      %2357 = vmatprep.subr.mxu0 0.0
      %2358 = vmatpush1.msra.mxu0 0.0
      %2359 = vmatprep.subr.mxu0 0.0
      %2360 = vmatpush1.msra.mxu0 0.0
      %2361 = vmatprep.subr.mxu0 0.0
      %2362 = vmatpush1.msra.mxu0 0.0
      %2363 = vmatprep.subr.mxu0 0.0
      %2364 = vmatpush1.msra.mxu0 0.0
      %2365 = vmatprep.subr.mxu0 0.0
      %2366 = vmatpush1.msra.mxu0 0.0
      %2367 = vmatprep.subr.mxu0 0.0
      %2368 = vmatpush1.msra.mxu0 0.0
      %2369 = vmatprep.subr.mxu0 0.0
      %2370 = vmatpush1.msra.mxu0 0.0
      %2371 = vmatprep.subr.mxu0 0.0
      %2372 = vmatpush1.msra.mxu0 0.0
      %2373 = vmatprep.subr.mxu0 0.0
      %2374 = vmatpush1.msra.mxu0 0.0
      %2375 = vmatprep.subr.mxu0 0.0
      %2376 = vmatpush1.msra.mxu0 0.0
      %2377 = vmatprep.subr.mxu0 0.0
      %2378 = vmatpush1.msra.mxu0 0.0
      %2379 = vmatprep.subr.mxu0 0.0
      %2380 = vmatpush1.msra.mxu0 0.0
      %2381 = vmatprep.subr.mxu0 0.0
      %2382 = vmatpush1.msra.mxu0 0.0
      %2383 = vmatprep.subr.mxu0 0.0
      %2384 = vmatpush1.msra.mxu0 0.0
      %2385 = vmatprep.subr.mxu0 0.0
      %2386 = vmatpush1.msra.mxu0 0.0
      %2387 = vmatprep.subr.mxu0 0.0
      %2388 = vmatpush1.msra.mxu0 0.0
      %2389 = vmatprep.subr.mxu0 0.0
      %2390 = vmatpush1.msra.mxu0 0.0
      %2391 = vmatprep.subr.mxu0 0.0
      %2392 = vmatpush1.msra.mxu0 0.0
      %2393 = vmatprep.subr.mxu0 0.0
      %2394 = vmatpush1.msra.mxu0 0.0
      %2395 = vmatprep.subr.mxu0 0.0
      %2396 = vmatpush1.msra.mxu0 0.0
      %2397 = vmatprep.subr.mxu0 0.0
      %2398 = vmatpush1.msra.mxu0 0.0
      %2399 = vmatprep.subr.mxu0 0.0
      %2400 = vmatpush1.msra.mxu0 0.0
      %2401 = vmatprep.subr.mxu0 0.0
      %2402 = vmatpush1.msra.mxu0 0.0
      %2403 = vmatprep.subr.mxu0 0.0
      %2404 = vmatpush1.msra.mxu0 0.0
      %2405 = vmatprep.subr.mxu0 0.0
      %2406 = vmatpush1.msra.mxu0 0.0
      %2407 = vmatprep.subr.mxu0 0.0
      %2408 = vmatpush1.msra.mxu0 0.0
      %2409 = vmatprep.subr.mxu0 0.0
      %2410 = vmatpush1.msra.mxu0 0.0
      %2411 = vmatprep.subr.mxu0 0.0
      %2412 = vmatpush1.msra.mxu0 0.0
      %2413 = vmatprep.subr.mxu0 0.0
      %2414 = vmatpush1.msra.mxu0 0.0
      %2415 = vmatprep.subr.mxu0 0.0
      %2416 = vmatpush1.msra.mxu0 0.0
      %2417 = vmatprep.subr.mxu0 0.0
      %2418 = vmatpush1.msra.mxu0 0.0
      %2419 = vmatprep.mubr.f32.mxu0 0.0
      %2420 = vmatmul.mubr.f32.gmra.mrb[0].mxu0 %v2261
      %v2421 = vpop.f32.mrb[0].mxu0
      %v2422 = vadd.f32 0.0, %v2421
      %v2423 = vpop.f32.mrb[0].mxu0
      %v2424 = vadd.f32 0.0, %v2423
      %2425 = vmatprep.mubr.f32.mxu0 0.0
      %2426 = vmatmul.mubr.f32.gmra.mrb[0].mxu0 %v2264
      %v2427 = vpop.f32.mrb[0].mxu0
      %v2428 = vadd.f32 0.0, %v2427
      %v2429 = vpop.f32.mrb[0].mxu0
      %v2430 = vadd.f32 0.0, %v2429
      %2431 = vdwg.mxu0
      %v2432 = vadd.f32 %v2209, %v2345
      %v2433 = vadd.f32 %v2210, %v2347
      %v2434 = vadd.f32 %v2211, %v2422
      %v2435 = vadd.f32 %v2212, %v2424
      %v2436 = vadd.f32 %v2213, %v2351
      %v2437 = vadd.f32 %v2214, %v2353
      %v2438 = vadd.f32 %v2215, %v2428
      %v2439 = vadd.f32 %v2216, %v2430
      %v2440 = vld [vmem:[%s5] sm:$0xff]
      %v2441 = vld [vmem:[%s5 + $0x8] sm:$0xff]
      %2443 = vset.pattern.permute.xlu0 0
      %2444 = vperm.xlu0 %2443, %v2440
      %v2445 = vpop.permute.xlu0 %2444
      %2448 = vset.pattern.permute.xlu0 0
      %2449 = vperm.xlu0 %2448, %v2441
      %v2450 = vpop.permute.xlu0 %2449
      %v2452 = vadd.f32 %v2432, %v2445
      %v2453 = vadd.f32 %v2433, %v2445
      %v2454 = vadd.f32 %v2434, %v2445
      %v2455 = vadd.f32 %v2435, %v2445
      %v2456 = vadd.f32 %v2436, %v2450
      %v2457 = vadd.f32 %v2437, %v2450
      %v2458 = vadd.f32 %v2438, %v2450
      %v2459 = vadd.f32 %v2439, %v2450
      %v2460 = vmax.f32 %v2452, 0.0
      %v2461 = vmax.f32 %v2453, 0.0
      %v2462 = vmax.f32 %v2454, 0.0
      %v2463 = vmax.f32 %v2455, 0.0
      %v2464 = vmax.f32 %v2456, 0.0
      %v2465 = vmax.f32 %v2457, 0.0
      %v2466 = vmax.f32 %v2458, 0.0
      %v2467 = vmax.f32 %v2459, 0.0
      %2468 = vrot.lane.b32.xlu0 %v2460, 17
      %v2469 = vpop.permute.xlu0 %2468
      %2470 = vrot.lane.b32.xlu0 %v2464, 17
      %v2471 = vpop.permute.xlu0 %2470
      %2472 = vrot.lane.b32.xlu0 %v2461, 17
      %v2473 = vpop.permute.xlu0 %2472
      %2474 = vrot.lane.b32.xlu0 %v2465, 17
      %v2475 = vpop.permute.xlu0 %2474
      %2476 = vrot.lane.b32.xlu0 %v2462, 17
      %v2477 = vpop.permute.xlu0 %2476
      %2478 = vrot.lane.b32.xlu0 %v2466, 17
      %v2479 = vpop.permute.xlu0 %2478
      %2480 = vrot.lane.b32.xlu0 %v2463, 17
      %v2481 = vpop.permute.xlu0 %2480
      %2482 = vrot.lane.b32.xlu0 %v2467, 17
      %v2483 = vpop.permute.xlu0 %2482
      %v2484 = vsel %vm497, %v2477, %v2481
      %v2485 = vsel %vm497, %v2479, %v2483
      %v2486 = vsel %vm497, %v2473, %v2477
      %v2487 = vsel %vm497, %v2475, %v2479
      %v2488 = vsel %vm497, %v2469, %v2473
      %v2489 = vsel %vm497, %v2471, %v2475
      %v2490 = vsel %vm497, %v2481, %v2469
      %v2491 = vsel %vm497, %v2483, %v2471
      %v2492 = vmul.f32 %v2490, %v507
      %v2493 = vmul.f32 %v2488, %v511
      %v2494 = vmul.f32 %v2486, %v515
      %v2495 = vmul.f32 %v2484, %v519
      %v2496 = vmul.f32 %v2491, %v507
      %v2497 = vmul.f32 %v2489, %v511
      %v2498 = vmul.f32 %v2487, %v515
      %v2499 = vmul.f32 %v2485, %v519
      %v2500 = vld [vmem:[%s6] sm:$0xff]
      %v2501 = vld [vmem:[%s6 + $0x8] sm:$0xff]
      %2502 = vrot.lane.b32.xlu0 %v2460, 16
      %v2503 = vpop.permute.xlu0 %2502
      %2504 = vrot.lane.b32.xlu0 %v2464, 16
      %v2505 = vpop.permute.xlu0 %2504
      %2506 = vrot.lane.b32.xlu0 %v2461, 16
      %v2507 = vpop.permute.xlu0 %2506
      %2508 = vrot.lane.b32.xlu0 %v2465, 16
      %v2509 = vpop.permute.xlu0 %2508
      %2510 = vrot.lane.b32.xlu0 %v2462, 16
      %v2511 = vpop.permute.xlu0 %2510
      %2512 = vrot.lane.b32.xlu0 %v2466, 16
      %v2513 = vpop.permute.xlu0 %2512
      %2514 = vrot.lane.b32.xlu0 %v2463, 16
      %v2515 = vpop.permute.xlu0 %2514
      %2516 = vrot.lane.b32.xlu0 %v2467, 16
      %v2517 = vpop.permute.xlu0 %2516
      %v2518 = vsel %vm538, %v2511, %v2515
      %v2519 = vsel %vm538, %v2513, %v2517
      %v2520 = vsel %vm538, %v2507, %v2511
      %v2521 = vsel %vm538, %v2509, %v2513
      %v2522 = vsel %vm538, %v2503, %v2507
      %v2523 = vsel %vm538, %v2505, %v2509
      %v2524 = vsel %vm538, %v2515, %v2503
      %v2525 = vsel %vm538, %v2517, %v2505
      %v2526 = vmul.f32 %v2524, %v549
      %v2527 = vmul.f32 %v2522, %v553
      %v2528 = vmul.f32 %v2520, %v557
      %v2529 = vmul.f32 %v2518, %v561
      %v2530 = vmul.f32 %v2525, %v549
      %v2531 = vmul.f32 %v2523, %v553
      %v2532 = vmul.f32 %v2521, %v557
      %v2533 = vmul.f32 %v2519, %v561
      %s2534 = scalar_lea.vmem %s6, 16
      %v2535 = vld [vmem:[%s2534] sm:$0xff]
      %v2536 = vld [vmem:[%s2534 + $0x8] sm:$0xff]
      %vm2537 = vcmask 130048
      %v2539 = vsel %vm2537, %v2535, 0
      %v2542 = vsel %vm2537, %v2536, 0
      %2544 = vmatprep.subr.mxu0 %v2527
      %2545 = vmatpush1.msra.mxu0 %v2526
      %2546 = vmatprep.subr.mxu0 %v2531
      %2547 = vmatpush1.msra.mxu0 %v2530
      %2548 = vmatprep.subr.mxu0 0.0
      %2549 = vmatpush1.msra.mxu0 0.0
      %2550 = vmatprep.subr.mxu0 0.0
      %2551 = vmatpush1.msra.mxu0 0.0
      %2552 = vmatprep.subr.mxu0 0.0
      %2553 = vmatpush1.msra.mxu0 0.0
      %2554 = vmatprep.subr.mxu0 0.0
      %2555 = vmatpush1.msra.mxu0 0.0
      %2556 = vmatprep.subr.mxu0 0.0
      %2557 = vmatpush1.msra.mxu0 0.0
      %2558 = vmatprep.subr.mxu0 0.0
      %2559 = vmatpush1.msra.mxu0 0.0
      %2560 = vmatprep.subr.mxu0 0.0
      %2561 = vmatpush1.msra.mxu0 0.0
      %2562 = vmatprep.subr.mxu0 0.0
      %2563 = vmatpush1.msra.mxu0 0.0
      %2564 = vmatprep.subr.mxu0 0.0
      %2565 = vmatpush1.msra.mxu0 0.0
      %2566 = vmatprep.subr.mxu0 0.0
      %2567 = vmatpush1.msra.mxu0 0.0
      %2568 = vmatprep.subr.mxu0 0.0
      %2569 = vmatpush1.msra.mxu0 0.0
      %2570 = vmatprep.subr.mxu0 0.0
      %2571 = vmatpush1.msra.mxu0 0.0
      %2572 = vmatprep.subr.mxu0 0.0
      %2573 = vmatpush1.msra.mxu0 0.0
      %2574 = vmatprep.subr.mxu0 0.0
      %2575 = vmatpush1.msra.mxu0 0.0
      %2576 = vmatprep.subr.mxu0 0.0
      %2577 = vmatpush1.msra.mxu0 0.0
      %2578 = vmatprep.subr.mxu0 0.0
      %2579 = vmatpush1.msra.mxu0 0.0
      %2580 = vmatprep.subr.mxu0 0.0
      %2581 = vmatpush1.msra.mxu0 0.0
      %2582 = vmatprep.subr.mxu0 0.0
      %2583 = vmatpush1.msra.mxu0 0.0
      %2584 = vmatprep.subr.mxu0 0.0
      %2585 = vmatpush1.msra.mxu0 0.0
      %2586 = vmatprep.subr.mxu0 0.0
      %2587 = vmatpush1.msra.mxu0 0.0
      %2588 = vmatprep.subr.mxu0 0.0
      %2589 = vmatpush1.msra.mxu0 0.0
      %2590 = vmatprep.subr.mxu0 0.0
      %2591 = vmatpush1.msra.mxu0 0.0
      %2592 = vmatprep.subr.mxu0 0.0
      %2593 = vmatpush1.msra.mxu0 0.0
      %2594 = vmatprep.subr.mxu0 0.0
      %2595 = vmatpush1.msra.mxu0 0.0
      %2596 = vmatprep.subr.mxu0 0.0
      %2597 = vmatpush1.msra.mxu0 0.0
      %2598 = vmatprep.subr.mxu0 0.0
      %2599 = vmatpush1.msra.mxu0 0.0
      %2600 = vmatprep.subr.mxu0 0.0
      %2601 = vmatpush1.msra.mxu0 0.0
      %2602 = vmatprep.subr.mxu0 0.0
      %2603 = vmatpush1.msra.mxu0 0.0
      %2604 = vmatprep.subr.mxu0 0.0
      %2605 = vmatpush1.msra.mxu0 0.0
      %2606 = vmatprep.subr.mxu0 0.0
      %2607 = vmatpush1.msra.mxu0 0.0
      %2608 = vmatprep.mubr.f32.mxu0 0.0
      %2609 = vmatmul.mubr.f32.gmra.mrb[0].mxu0 %v2539
      %v2610 = vpop.f32.mrb[0].mxu0
      %v2611 = vadd.f32 0.0, %v2610
      %v2612 = vpop.f32.mrb[0].mxu0
      %v2613 = vadd.f32 0.0, %v2612
      %2614 = vmatprep.mubr.f32.mxu0 0.0
      %2615 = vmatmul.mubr.f32.gmra.mrb[0].mxu0 %v2542
      %v2616 = vpop.f32.mrb[0].mxu0
      %v2617 = vadd.f32 0.0, %v2616
      %v2618 = vpop.f32.mrb[0].mxu0
      %v2619 = vadd.f32 0.0, %v2618
      %2620 = vdwg.mxu0
      %2621 = vmatprep.subr.mxu0 %v2529
      %2622 = vmatpush1.msra.mxu0 %v2528
      %2623 = vmatprep.subr.mxu0 %v2533
      %2624 = vmatpush1.msra.mxu0 %v2532
      %2625 = vmatprep.subr.mxu0 0.0
      %2626 = vmatpush1.msra.mxu0 0.0
      %2627 = vmatprep.subr.mxu0 0.0
      %2628 = vmatpush1.msra.mxu0 0.0
      %2629 = vmatprep.subr.mxu0 0.0
      %2630 = vmatpush1.msra.mxu0 0.0
      %2631 = vmatprep.subr.mxu0 0.0
      %2632 = vmatpush1.msra.mxu0 0.0
      %2633 = vmatprep.subr.mxu0 0.0
      %2634 = vmatpush1.msra.mxu0 0.0
      %2635 = vmatprep.subr.mxu0 0.0
      %2636 = vmatpush1.msra.mxu0 0.0
      %2637 = vmatprep.subr.mxu0 0.0
      %2638 = vmatpush1.msra.mxu0 0.0
      %2639 = vmatprep.subr.mxu0 0.0
      %2640 = vmatpush1.msra.mxu0 0.0
      %2641 = vmatprep.subr.mxu0 0.0
      %2642 = vmatpush1.msra.mxu0 0.0
      %2643 = vmatprep.subr.mxu0 0.0
      %2644 = vmatpush1.msra.mxu0 0.0
      %2645 = vmatprep.subr.mxu0 0.0
      %2646 = vmatpush1.msra.mxu0 0.0
      %2647 = vmatprep.subr.mxu0 0.0
      %2648 = vmatpush1.msra.mxu0 0.0
      %2649 = vmatprep.subr.mxu0 0.0
      %2650 = vmatpush1.msra.mxu0 0.0
      %2651 = vmatprep.subr.mxu0 0.0
      %2652 = vmatpush1.msra.mxu0 0.0
      %2653 = vmatprep.subr.mxu0 0.0
      %2654 = vmatpush1.msra.mxu0 0.0
      %2655 = vmatprep.subr.mxu0 0.0
      %2656 = vmatpush1.msra.mxu0 0.0
      %2657 = vmatprep.subr.mxu0 0.0
      %2658 = vmatpush1.msra.mxu0 0.0
      %2659 = vmatprep.subr.mxu0 0.0
      %2660 = vmatpush1.msra.mxu0 0.0
      %2661 = vmatprep.subr.mxu0 0.0
      %2662 = vmatpush1.msra.mxu0 0.0
      %2663 = vmatprep.subr.mxu0 0.0
      %2664 = vmatpush1.msra.mxu0 0.0
      %2665 = vmatprep.subr.mxu0 0.0
      %2666 = vmatpush1.msra.mxu0 0.0
      %2667 = vmatprep.subr.mxu0 0.0
      %2668 = vmatpush1.msra.mxu0 0.0
      %2669 = vmatprep.subr.mxu0 0.0
      %2670 = vmatpush1.msra.mxu0 0.0
      %2671 = vmatprep.subr.mxu0 0.0
      %2672 = vmatpush1.msra.mxu0 0.0
      %2673 = vmatprep.subr.mxu0 0.0
      %2674 = vmatpush1.msra.mxu0 0.0
      %2675 = vmatprep.subr.mxu0 0.0
      %2676 = vmatpush1.msra.mxu0 0.0
      %2677 = vmatprep.subr.mxu0 0.0
      %2678 = vmatpush1.msra.mxu0 0.0
      %2679 = vmatprep.subr.mxu0 0.0
      %2680 = vmatpush1.msra.mxu0 0.0
      %2681 = vmatprep.subr.mxu0 0.0
      %2682 = vmatpush1.msra.mxu0 0.0
      %2683 = vmatprep.subr.mxu0 0.0
      %2684 = vmatpush1.msra.mxu0 0.0
      %2685 = vmatprep.mubr.f32.mxu0 0.0
      %2686 = vmatmul.mubr.f32.gmra.mrb[0].mxu0 %v2539
      %v2687 = vpop.f32.mrb[0].mxu0
      %v2688 = vadd.f32 0.0, %v2687
      %v2689 = vpop.f32.mrb[0].mxu0
      %v2690 = vadd.f32 0.0, %v2689
      %2691 = vmatprep.mubr.f32.mxu0 0.0
      %2692 = vmatmul.mubr.f32.gmra.mrb[0].mxu0 %v2542
      %v2693 = vpop.f32.mrb[0].mxu0
      %v2694 = vadd.f32 0.0, %v2693
      %v2695 = vpop.f32.mrb[0].mxu0
      %v2696 = vadd.f32 0.0, %v2695
      %2697 = vdwg.mxu0
      %v2699 = vsel %vm2537, %v2500, 0
      %v2702 = vsel %vm2537, %v2501, 0
      %2704 = vmatprep.subr.mxu0 %v2493
      %2705 = vmatpush1.msra.mxu0 %v2492
      %2706 = vmatprep.subr.mxu0 %v2497
      %2707 = vmatpush1.msra.mxu0 %v2496
      %2708 = vmatprep.subr.mxu0 0.0
      %2709 = vmatpush1.msra.mxu0 0.0
      %2710 = vmatprep.subr.mxu0 0.0
      %2711 = vmatpush1.msra.mxu0 0.0
      %2712 = vmatprep.subr.mxu0 0.0
      %2713 = vmatpush1.msra.mxu0 0.0
      %2714 = vmatprep.subr.mxu0 0.0
      %2715 = vmatpush1.msra.mxu0 0.0
      %2716 = vmatprep.subr.mxu0 0.0
      %2717 = vmatpush1.msra.mxu0 0.0
      %2718 = vmatprep.subr.mxu0 0.0
      %2719 = vmatpush1.msra.mxu0 0.0
      %2720 = vmatprep.subr.mxu0 0.0
      %2721 = vmatpush1.msra.mxu0 0.0
      %2722 = vmatprep.subr.mxu0 0.0
      %2723 = vmatpush1.msra.mxu0 0.0
      %2724 = vmatprep.subr.mxu0 0.0
      %2725 = vmatpush1.msra.mxu0 0.0
      %2726 = vmatprep.subr.mxu0 0.0
      %2727 = vmatpush1.msra.mxu0 0.0
      %2728 = vmatprep.subr.mxu0 0.0
      %2729 = vmatpush1.msra.mxu0 0.0
      %2730 = vmatprep.subr.mxu0 0.0
      %2731 = vmatpush1.msra.mxu0 0.0
      %2732 = vmatprep.subr.mxu0 0.0
      %2733 = vmatpush1.msra.mxu0 0.0
      %2734 = vmatprep.subr.mxu0 0.0
      %2735 = vmatpush1.msra.mxu0 0.0
      %2736 = vmatprep.subr.mxu0 0.0
      %2737 = vmatpush1.msra.mxu0 0.0
      %2738 = vmatprep.subr.mxu0 0.0
      %2739 = vmatpush1.msra.mxu0 0.0
      %2740 = vmatprep.subr.mxu0 0.0
      %2741 = vmatpush1.msra.mxu0 0.0
      %2742 = vmatprep.subr.mxu0 0.0
      %2743 = vmatpush1.msra.mxu0 0.0
      %2744 = vmatprep.subr.mxu0 0.0
      %2745 = vmatpush1.msra.mxu0 0.0
      %2746 = vmatprep.subr.mxu0 0.0
      %2747 = vmatpush1.msra.mxu0 0.0
      %2748 = vmatprep.subr.mxu0 0.0
      %2749 = vmatpush1.msra.mxu0 0.0
      %2750 = vmatprep.subr.mxu0 0.0
      %2751 = vmatpush1.msra.mxu0 0.0
      %2752 = vmatprep.subr.mxu0 0.0
      %2753 = vmatpush1.msra.mxu0 0.0
      %2754 = vmatprep.subr.mxu0 0.0
      %2755 = vmatpush1.msra.mxu0 0.0
      %2756 = vmatprep.subr.mxu0 0.0
      %2757 = vmatpush1.msra.mxu0 0.0
      %2758 = vmatprep.subr.mxu0 0.0
      %2759 = vmatpush1.msra.mxu0 0.0
      %2760 = vmatprep.subr.mxu0 0.0
      %2761 = vmatpush1.msra.mxu0 0.0
      %2762 = vmatprep.subr.mxu0 0.0
      %2763 = vmatpush1.msra.mxu0 0.0
      %2764 = vmatprep.subr.mxu0 0.0
      %2765 = vmatpush1.msra.mxu0 0.0
      %2766 = vmatprep.subr.mxu0 0.0
      %2767 = vmatpush1.msra.mxu0 0.0
      %2768 = vmatprep.mubr.f32.mxu0 0.0
      %2769 = vmatmul.mubr.f32.gmra.mrb[0].mxu0 %v2699
      %v2770 = vpop.f32.mrb[0].mxu0
      %v2771 = vadd.f32 %v2611, %v2770
      %v2772 = vpop.f32.mrb[0].mxu0
      %v2773 = vadd.f32 %v2613, %v2772
      %2774 = vmatprep.mubr.f32.mxu0 0.0
      %2775 = vmatmul.mubr.f32.gmra.mrb[0].mxu0 %v2702
      %v2776 = vpop.f32.mrb[0].mxu0
      %v2777 = vadd.f32 %v2617, %v2776
      %v2778 = vpop.f32.mrb[0].mxu0
      %v2779 = vadd.f32 %v2619, %v2778
      %2780 = vdwg.mxu0
      %2781 = vmatprep.subr.mxu0 %v2495
      %2782 = vmatpush1.msra.mxu0 %v2494
      %2783 = vmatprep.subr.mxu0 %v2499
      %2784 = vmatpush1.msra.mxu0 %v2498
      %2785 = vmatprep.subr.mxu0 0.0
      %2786 = vmatpush1.msra.mxu0 0.0
      %2787 = vmatprep.subr.mxu0 0.0
      %2788 = vmatpush1.msra.mxu0 0.0
      %2789 = vmatprep.subr.mxu0 0.0
      %2790 = vmatpush1.msra.mxu0 0.0
      %2791 = vmatprep.subr.mxu0 0.0
      %2792 = vmatpush1.msra.mxu0 0.0
      %2793 = vmatprep.subr.mxu0 0.0
      %2794 = vmatpush1.msra.mxu0 0.0
      %2795 = vmatprep.subr.mxu0 0.0
      %2796 = vmatpush1.msra.mxu0 0.0
      %2797 = vmatprep.subr.mxu0 0.0
      %2798 = vmatpush1.msra.mxu0 0.0
      %2799 = vmatprep.subr.mxu0 0.0
      %2800 = vmatpush1.msra.mxu0 0.0
      %2801 = vmatprep.subr.mxu0 0.0
      %2802 = vmatpush1.msra.mxu0 0.0
      %2803 = vmatprep.subr.mxu0 0.0
      %2804 = vmatpush1.msra.mxu0 0.0
      %2805 = vmatprep.subr.mxu0 0.0
      %2806 = vmatpush1.msra.mxu0 0.0
      %2807 = vmatprep.subr.mxu0 0.0
      %2808 = vmatpush1.msra.mxu0 0.0
      %2809 = vmatprep.subr.mxu0 0.0
      %2810 = vmatpush1.msra.mxu0 0.0
      %2811 = vmatprep.subr.mxu0 0.0
      %2812 = vmatpush1.msra.mxu0 0.0
      %2813 = vmatprep.subr.mxu0 0.0
      %2814 = vmatpush1.msra.mxu0 0.0
      %2815 = vmatprep.subr.mxu0 0.0
      %2816 = vmatpush1.msra.mxu0 0.0
      %2817 = vmatprep.subr.mxu0 0.0
      %2818 = vmatpush1.msra.mxu0 0.0
      %2819 = vmatprep.subr.mxu0 0.0
      %2820 = vmatpush1.msra.mxu0 0.0
      %2821 = vmatprep.subr.mxu0 0.0
      %2822 = vmatpush1.msra.mxu0 0.0
      %2823 = vmatprep.subr.mxu0 0.0
      %2824 = vmatpush1.msra.mxu0 0.0
      %2825 = vmatprep.subr.mxu0 0.0
      %2826 = vmatpush1.msra.mxu0 0.0
      %2827 = vmatprep.subr.mxu0 0.0
      %2828 = vmatpush1.msra.mxu0 0.0
      %2829 = vmatprep.subr.mxu0 0.0
      %2830 = vmatpush1.msra.mxu0 0.0
      %2831 = vmatprep.subr.mxu0 0.0
      %2832 = vmatpush1.msra.mxu0 0.0
      %2833 = vmatprep.subr.mxu0 0.0
      %2834 = vmatpush1.msra.mxu0 0.0
      %2835 = vmatprep.subr.mxu0 0.0
      %2836 = vmatpush1.msra.mxu0 0.0
      %2837 = vmatprep.subr.mxu0 0.0
      %2838 = vmatpush1.msra.mxu0 0.0
      %2839 = vmatprep.subr.mxu0 0.0
      %2840 = vmatpush1.msra.mxu0 0.0
      %2841 = vmatprep.subr.mxu0 0.0
      %2842 = vmatpush1.msra.mxu0 0.0
      %2843 = vmatprep.subr.mxu0 0.0
      %2844 = vmatpush1.msra.mxu0 0.0
      %2845 = vmatprep.mubr.f32.mxu0 0.0
      %2846 = vmatmul.mubr.f32.gmra.mrb[0].mxu0 %v2699
      %v2847 = vpop.f32.mrb[0].mxu0
      %v2848 = vadd.f32 %v2688, %v2847
      %v2849 = vpop.f32.mrb[0].mxu0
      %v2850 = vadd.f32 %v2690, %v2849
      %2851 = vmatprep.mubr.f32.mxu0 0.0
      %2852 = vmatmul.mubr.f32.gmra.mrb[0].mxu0 %v2702
      %v2853 = vpop.f32.mrb[0].mxu0
      %v2854 = vadd.f32 %v2694, %v2853
      %v2855 = vpop.f32.mrb[0].mxu0
      %v2856 = vadd.f32 %v2696, %v2855
      %2857 = vdwg.mxu0
      %2858 = vrot.lane.b32.xlu0 %v2460, 15
      %v2859 = vpop.permute.xlu0 %2858
      %2860 = vrot.lane.b32.xlu0 %v2464, 15
      %v2861 = vpop.permute.xlu0 %2860
      %2862 = vrot.lane.b32.xlu0 %v2461, 15
      %v2863 = vpop.permute.xlu0 %2862
      %2864 = vrot.lane.b32.xlu0 %v2465, 15
      %v2865 = vpop.permute.xlu0 %2864
      %2866 = vrot.lane.b32.xlu0 %v2462, 15
      %v2867 = vpop.permute.xlu0 %2866
      %2868 = vrot.lane.b32.xlu0 %v2466, 15
      %v2869 = vpop.permute.xlu0 %2868
      %2870 = vrot.lane.b32.xlu0 %v2463, 15
      %v2871 = vpop.permute.xlu0 %2870
      %2872 = vrot.lane.b32.xlu0 %v2467, 15
      %v2873 = vpop.permute.xlu0 %2872
      %v2874 = vsel %vm927, %v2867, %v2871
      %v2875 = vsel %vm927, %v2869, %v2873
      %v2876 = vsel %vm927, %v2863, %v2867
      %v2877 = vsel %vm927, %v2865, %v2869
      %v2878 = vsel %vm927, %v2859, %v2863
      %v2879 = vsel %vm927, %v2861, %v2865
      %v2880 = vsel %vm927, %v2871, %v2859
      %v2881 = vsel %vm927, %v2873, %v2861
      %v2882 = vmul.f32 %v2880, %v938
      %v2883 = vmul.f32 %v2878, %v942
      %v2884 = vmul.f32 %v2876, %v946
      %v2885 = vmul.f32 %v2874, %v950
      %v2886 = vmul.f32 %v2881, %v938
      %v2887 = vmul.f32 %v2879, %v942
      %v2888 = vmul.f32 %v2877, %v946
      %v2889 = vmul.f32 %v2875, %v950
      %s2890 = scalar_lea.vmem %s6, 32
      %v2891 = vld [vmem:[%s2890] sm:$0xff]
      %v2892 = vld [vmem:[%s2890 + $0x8] sm:$0xff]
      %v2894 = vsel %vm2537, %v2891, 0
      %v2897 = vsel %vm2537, %v2892, 0
      %2899 = vmatprep.subr.mxu0 %v2883
      %2900 = vmatpush1.msra.mxu0 %v2882
      %2901 = vmatprep.subr.mxu0 %v2887
      %2902 = vmatpush1.msra.mxu0 %v2886
      %2903 = vmatprep.subr.mxu0 0.0
      %2904 = vmatpush1.msra.mxu0 0.0
      %2905 = vmatprep.subr.mxu0 0.0
      %2906 = vmatpush1.msra.mxu0 0.0
      %2907 = vmatprep.subr.mxu0 0.0
      %2908 = vmatpush1.msra.mxu0 0.0
      %2909 = vmatprep.subr.mxu0 0.0
      %2910 = vmatpush1.msra.mxu0 0.0
      %2911 = vmatprep.subr.mxu0 0.0
      %2912 = vmatpush1.msra.mxu0 0.0
      %2913 = vmatprep.subr.mxu0 0.0
      %2914 = vmatpush1.msra.mxu0 0.0
      %2915 = vmatprep.subr.mxu0 0.0
      %2916 = vmatpush1.msra.mxu0 0.0
      %2917 = vmatprep.subr.mxu0 0.0
      %2918 = vmatpush1.msra.mxu0 0.0
      %2919 = vmatprep.subr.mxu0 0.0
      %2920 = vmatpush1.msra.mxu0 0.0
      %2921 = vmatprep.subr.mxu0 0.0
      %2922 = vmatpush1.msra.mxu0 0.0
      %2923 = vmatprep.subr.mxu0 0.0
      %2924 = vmatpush1.msra.mxu0 0.0
      %2925 = vmatprep.subr.mxu0 0.0
      %2926 = vmatpush1.msra.mxu0 0.0
      %2927 = vmatprep.subr.mxu0 0.0
      %2928 = vmatpush1.msra.mxu0 0.0
      %2929 = vmatprep.subr.mxu0 0.0
      %2930 = vmatpush1.msra.mxu0 0.0
      %2931 = vmatprep.subr.mxu0 0.0
      %2932 = vmatpush1.msra.mxu0 0.0
      %2933 = vmatprep.subr.mxu0 0.0
      %2934 = vmatpush1.msra.mxu0 0.0
      %2935 = vmatprep.subr.mxu0 0.0
      %2936 = vmatpush1.msra.mxu0 0.0
      %2937 = vmatprep.subr.mxu0 0.0
      %2938 = vmatpush1.msra.mxu0 0.0
      %2939 = vmatprep.subr.mxu0 0.0
      %2940 = vmatpush1.msra.mxu0 0.0
      %2941 = vmatprep.subr.mxu0 0.0
      %2942 = vmatpush1.msra.mxu0 0.0
      %2943 = vmatprep.subr.mxu0 0.0
      %2944 = vmatpush1.msra.mxu0 0.0
      %2945 = vmatprep.subr.mxu0 0.0
      %2946 = vmatpush1.msra.mxu0 0.0
      %2947 = vmatprep.subr.mxu0 0.0
      %2948 = vmatpush1.msra.mxu0 0.0
      %2949 = vmatprep.subr.mxu0 0.0
      %2950 = vmatpush1.msra.mxu0 0.0
      %2951 = vmatprep.subr.mxu0 0.0
      %2952 = vmatpush1.msra.mxu0 0.0
      %2953 = vmatprep.subr.mxu0 0.0
      %2954 = vmatpush1.msra.mxu0 0.0
      %2955 = vmatprep.subr.mxu0 0.0
      %2956 = vmatpush1.msra.mxu0 0.0
      %2957 = vmatprep.subr.mxu0 0.0
      %2958 = vmatpush1.msra.mxu0 0.0
      %2959 = vmatprep.subr.mxu0 0.0
      %2960 = vmatpush1.msra.mxu0 0.0
      %2961 = vmatprep.subr.mxu0 0.0
      %2962 = vmatpush1.msra.mxu0 0.0
      %2963 = vmatprep.mubr.f32.mxu0 0.0
      %2964 = vmatmul.mubr.f32.gmra.mrb[0].mxu0 %v2894
      %v2965 = vpop.f32.mrb[0].mxu0
      %v2966 = vadd.f32 0.0, %v2965
      %v2967 = vpop.f32.mrb[0].mxu0
      %v2968 = vadd.f32 0.0, %v2967
      %2969 = vmatprep.mubr.f32.mxu0 0.0
      %2970 = vmatmul.mubr.f32.gmra.mrb[0].mxu0 %v2897
      %v2971 = vpop.f32.mrb[0].mxu0
      %v2972 = vadd.f32 0.0, %v2971
      %v2973 = vpop.f32.mrb[0].mxu0
      %v2974 = vadd.f32 0.0, %v2973
      %2975 = vdwg.mxu0
      %2976 = vmatprep.subr.mxu0 %v2885
      %2977 = vmatpush1.msra.mxu0 %v2884
      %2978 = vmatprep.subr.mxu0 %v2889
      %2979 = vmatpush1.msra.mxu0 %v2888
      %2980 = vmatprep.subr.mxu0 0.0
      %2981 = vmatpush1.msra.mxu0 0.0
      %2982 = vmatprep.subr.mxu0 0.0
      %2983 = vmatpush1.msra.mxu0 0.0
      %2984 = vmatprep.subr.mxu0 0.0
      %2985 = vmatpush1.msra.mxu0 0.0
      %2986 = vmatprep.subr.mxu0 0.0
      %2987 = vmatpush1.msra.mxu0 0.0
      %2988 = vmatprep.subr.mxu0 0.0
      %2989 = vmatpush1.msra.mxu0 0.0
      %2990 = vmatprep.subr.mxu0 0.0
      %2991 = vmatpush1.msra.mxu0 0.0
      %2992 = vmatprep.subr.mxu0 0.0
      %2993 = vmatpush1.msra.mxu0 0.0
      %2994 = vmatprep.subr.mxu0 0.0
      %2995 = vmatpush1.msra.mxu0 0.0
      %2996 = vmatprep.subr.mxu0 0.0
      %2997 = vmatpush1.msra.mxu0 0.0
      %2998 = vmatprep.subr.mxu0 0.0
      %2999 = vmatpush1.msra.mxu0 0.0
      %3000 = vmatprep.subr.mxu0 0.0
      %3001 = vmatpush1.msra.mxu0 0.0
      %3002 = vmatprep.subr.mxu0 0.0
      %3003 = vmatpush1.msra.mxu0 0.0
      %3004 = vmatprep.subr.mxu0 0.0
      %3005 = vmatpush1.msra.mxu0 0.0
      %3006 = vmatprep.subr.mxu0 0.0
      %3007 = vmatpush1.msra.mxu0 0.0
      %3008 = vmatprep.subr.mxu0 0.0
      %3009 = vmatpush1.msra.mxu0 0.0
      %3010 = vmatprep.subr.mxu0 0.0
      %3011 = vmatpush1.msra.mxu0 0.0
      %3012 = vmatprep.subr.mxu0 0.0
      %3013 = vmatpush1.msra.mxu0 0.0
      %3014 = vmatprep.subr.mxu0 0.0
      %3015 = vmatpush1.msra.mxu0 0.0
      %3016 = vmatprep.subr.mxu0 0.0
      %3017 = vmatpush1.msra.mxu0 0.0
      %3018 = vmatprep.subr.mxu0 0.0
      %3019 = vmatpush1.msra.mxu0 0.0
      %3020 = vmatprep.subr.mxu0 0.0
      %3021 = vmatpush1.msra.mxu0 0.0
      %3022 = vmatprep.subr.mxu0 0.0
      %3023 = vmatpush1.msra.mxu0 0.0
      %3024 = vmatprep.subr.mxu0 0.0
      %3025 = vmatpush1.msra.mxu0 0.0
      %3026 = vmatprep.subr.mxu0 0.0
      %3027 = vmatpush1.msra.mxu0 0.0
      %3028 = vmatprep.subr.mxu0 0.0
      %3029 = vmatpush1.msra.mxu0 0.0
      %3030 = vmatprep.subr.mxu0 0.0
      %3031 = vmatpush1.msra.mxu0 0.0
      %3032 = vmatprep.subr.mxu0 0.0
      %3033 = vmatpush1.msra.mxu0 0.0
      %3034 = vmatprep.subr.mxu0 0.0
      %3035 = vmatpush1.msra.mxu0 0.0
      %3036 = vmatprep.subr.mxu0 0.0
      %3037 = vmatpush1.msra.mxu0 0.0
      %3038 = vmatprep.subr.mxu0 0.0
      %3039 = vmatpush1.msra.mxu0 0.0
      %3040 = vmatprep.mubr.f32.mxu0 0.0
      %3041 = vmatmul.mubr.f32.gmra.mrb[0].mxu0 %v2894
      %v3042 = vpop.f32.mrb[0].mxu0
      %v3043 = vadd.f32 0.0, %v3042
      %v3044 = vpop.f32.mrb[0].mxu0
      %v3045 = vadd.f32 0.0, %v3044
      %3046 = vmatprep.mubr.f32.mxu0 0.0
      %3047 = vmatmul.mubr.f32.gmra.mrb[0].mxu0 %v2897
      %v3048 = vpop.f32.mrb[0].mxu0
      %v3049 = vadd.f32 0.0, %v3048
      %v3050 = vpop.f32.mrb[0].mxu0
      %v3051 = vadd.f32 0.0, %v3050
      %3052 = vdwg.mxu0
      %v3053 = vadd.f32 %v2771, %v2966
      %v3054 = vadd.f32 %v2773, %v2968
      %v3055 = vadd.f32 %v2848, %v3043
      %v3056 = vadd.f32 %v2850, %v3045
      %v3057 = vadd.f32 %v2777, %v2972
      %v3058 = vadd.f32 %v2779, %v2974
      %v3059 = vadd.f32 %v2854, %v3049
      %v3060 = vadd.f32 %v2856, %v3051
      %3061 = vrot.lane.b32.xlu0 %v2460, 1
      %v3062 = vpop.permute.xlu0 %3061
      %3063 = vrot.lane.b32.xlu0 %v2464, 1
      %v3064 = vpop.permute.xlu0 %3063
      %3065 = vrot.lane.b32.xlu0 %v2461, 1
      %v3066 = vpop.permute.xlu0 %3065
      %3067 = vrot.lane.b32.xlu0 %v2465, 1
      %v3068 = vpop.permute.xlu0 %3067
      %3069 = vrot.lane.b32.xlu0 %v2462, 1
      %v3070 = vpop.permute.xlu0 %3069
      %3071 = vrot.lane.b32.xlu0 %v2466, 1
      %v3072 = vpop.permute.xlu0 %3071
      %3073 = vrot.lane.b32.xlu0 %v2463, 1
      %v3074 = vpop.permute.xlu0 %3073
      %3075 = vrot.lane.b32.xlu0 %v2467, 1
      %v3076 = vpop.permute.xlu0 %3075
      %v3077 = vsel %vm1150, %v3070, %v3074
      %v3078 = vsel %vm1150, %v3072, %v3076
      %v3079 = vsel %vm1150, %v3066, %v3070
      %v3080 = vsel %vm1150, %v3068, %v3072
      %v3081 = vsel %vm1150, %v3062, %v3066
      %v3082 = vsel %vm1150, %v3064, %v3068
      %v3083 = vsel %vm1150, %v3074, %v3062
      %v3084 = vsel %vm1150, %v3076, %v3064
      %v3085 = vmul.f32 %v3083, %v1161
      %v3086 = vmul.f32 %v3081, %v1165
      %v3087 = vmul.f32 %v3079, %v1169
      %v3088 = vmul.f32 %v3077, %v1173
      %v3089 = vmul.f32 %v3084, %v1161
      %v3090 = vmul.f32 %v3082, %v1165
      %v3091 = vmul.f32 %v3080, %v1169
      %v3092 = vmul.f32 %v3078, %v1173
      %s3093 = scalar_lea.vmem %s6, 48
      %v3094 = vld [vmem:[%s3093] sm:$0xff]
      %v3095 = vld [vmem:[%s3093 + $0x8] sm:$0xff]
      %v3097 = vsel %vm2537, %v3094, 0
      %v3100 = vsel %vm2537, %v3095, 0
      %3102 = vmatprep.subr.mxu0 %v3086
      %3103 = vmatpush1.msra.mxu0 %v3085
      %3104 = vmatprep.subr.mxu0 %v3090
      %3105 = vmatpush1.msra.mxu0 %v3089
      %3106 = vmatprep.subr.mxu0 0.0
      %3107 = vmatpush1.msra.mxu0 0.0
      %3108 = vmatprep.subr.mxu0 0.0
      %3109 = vmatpush1.msra.mxu0 0.0
      %3110 = vmatprep.subr.mxu0 0.0
      %3111 = vmatpush1.msra.mxu0 0.0
      %3112 = vmatprep.subr.mxu0 0.0
      %3113 = vmatpush1.msra.mxu0 0.0
      %3114 = vmatprep.subr.mxu0 0.0
      %3115 = vmatpush1.msra.mxu0 0.0
      %3116 = vmatprep.subr.mxu0 0.0
      %3117 = vmatpush1.msra.mxu0 0.0
      %3118 = vmatprep.subr.mxu0 0.0
      %3119 = vmatpush1.msra.mxu0 0.0
      %3120 = vmatprep.subr.mxu0 0.0
      %3121 = vmatpush1.msra.mxu0 0.0
      %3122 = vmatprep.subr.mxu0 0.0
      %3123 = vmatpush1.msra.mxu0 0.0
      %3124 = vmatprep.subr.mxu0 0.0
      %3125 = vmatpush1.msra.mxu0 0.0
      %3126 = vmatprep.subr.mxu0 0.0
      %3127 = vmatpush1.msra.mxu0 0.0
      %3128 = vmatprep.subr.mxu0 0.0
      %3129 = vmatpush1.msra.mxu0 0.0
      %3130 = vmatprep.subr.mxu0 0.0
      %3131 = vmatpush1.msra.mxu0 0.0
      %3132 = vmatprep.subr.mxu0 0.0
      %3133 = vmatpush1.msra.mxu0 0.0
      %3134 = vmatprep.subr.mxu0 0.0
      %3135 = vmatpush1.msra.mxu0 0.0
      %3136 = vmatprep.subr.mxu0 0.0
      %3137 = vmatpush1.msra.mxu0 0.0
      %3138 = vmatprep.subr.mxu0 0.0
      %3139 = vmatpush1.msra.mxu0 0.0
      %3140 = vmatprep.subr.mxu0 0.0
      %3141 = vmatpush1.msra.mxu0 0.0
      %3142 = vmatprep.subr.mxu0 0.0
      %3143 = vmatpush1.msra.mxu0 0.0
      %3144 = vmatprep.subr.mxu0 0.0
      %3145 = vmatpush1.msra.mxu0 0.0
      %3146 = vmatprep.subr.mxu0 0.0
      %3147 = vmatpush1.msra.mxu0 0.0
      %3148 = vmatprep.subr.mxu0 0.0
      %3149 = vmatpush1.msra.mxu0 0.0
      %3150 = vmatprep.subr.mxu0 0.0
      %3151 = vmatpush1.msra.mxu0 0.0
      %3152 = vmatprep.subr.mxu0 0.0
      %3153 = vmatpush1.msra.mxu0 0.0
      %3154 = vmatprep.subr.mxu0 0.0
      %3155 = vmatpush1.msra.mxu0 0.0
      %3156 = vmatprep.subr.mxu0 0.0
      %3157 = vmatpush1.msra.mxu0 0.0
      %3158 = vmatprep.subr.mxu0 0.0
      %3159 = vmatpush1.msra.mxu0 0.0
      %3160 = vmatprep.subr.mxu0 0.0
      %3161 = vmatpush1.msra.mxu0 0.0
      %3162 = vmatprep.subr.mxu0 0.0
      %3163 = vmatpush1.msra.mxu0 0.0
      %3164 = vmatprep.subr.mxu0 0.0
      %3165 = vmatpush1.msra.mxu0 0.0
      %3166 = vmatprep.mubr.f32.mxu0 0.0
      %3167 = vmatmul.mubr.f32.gmra.mrb[0].mxu0 %v3097
      %v3168 = vpop.f32.mrb[0].mxu0
      %v3169 = vadd.f32 0.0, %v3168
      %v3170 = vpop.f32.mrb[0].mxu0
      %v3171 = vadd.f32 0.0, %v3170
      %3172 = vmatprep.mubr.f32.mxu0 0.0
      %3173 = vmatmul.mubr.f32.gmra.mrb[0].mxu0 %v3100
      %v3174 = vpop.f32.mrb[0].mxu0
      %v3175 = vadd.f32 0.0, %v3174
      %v3176 = vpop.f32.mrb[0].mxu0
      %v3177 = vadd.f32 0.0, %v3176
      %3178 = vdwg.mxu0
      %3179 = vmatprep.subr.mxu0 %v3088
      %3180 = vmatpush1.msra.mxu0 %v3087
      %3181 = vmatprep.subr.mxu0 %v3092
      %3182 = vmatpush1.msra.mxu0 %v3091
      %3183 = vmatprep.subr.mxu0 0.0
      %3184 = vmatpush1.msra.mxu0 0.0
      %3185 = vmatprep.subr.mxu0 0.0
      %3186 = vmatpush1.msra.mxu0 0.0
      %3187 = vmatprep.subr.mxu0 0.0
      %3188 = vmatpush1.msra.mxu0 0.0
      %3189 = vmatprep.subr.mxu0 0.0
      %3190 = vmatpush1.msra.mxu0 0.0
      %3191 = vmatprep.subr.mxu0 0.0
      %3192 = vmatpush1.msra.mxu0 0.0
      %3193 = vmatprep.subr.mxu0 0.0
      %3194 = vmatpush1.msra.mxu0 0.0
      %3195 = vmatprep.subr.mxu0 0.0
      %3196 = vmatpush1.msra.mxu0 0.0
      %3197 = vmatprep.subr.mxu0 0.0
      %3198 = vmatpush1.msra.mxu0 0.0
      %3199 = vmatprep.subr.mxu0 0.0
      %3200 = vmatpush1.msra.mxu0 0.0
      %3201 = vmatprep.subr.mxu0 0.0
      %3202 = vmatpush1.msra.mxu0 0.0
      %3203 = vmatprep.subr.mxu0 0.0
      %3204 = vmatpush1.msra.mxu0 0.0
      %3205 = vmatprep.subr.mxu0 0.0
      %3206 = vmatpush1.msra.mxu0 0.0
      %3207 = vmatprep.subr.mxu0 0.0
      %3208 = vmatpush1.msra.mxu0 0.0
      %3209 = vmatprep.subr.mxu0 0.0
      %3210 = vmatpush1.msra.mxu0 0.0
      %3211 = vmatprep.subr.mxu0 0.0
      %3212 = vmatpush1.msra.mxu0 0.0
      %3213 = vmatprep.subr.mxu0 0.0
      %3214 = vmatpush1.msra.mxu0 0.0
      %3215 = vmatprep.subr.mxu0 0.0
      %3216 = vmatpush1.msra.mxu0 0.0
      %3217 = vmatprep.subr.mxu0 0.0
      %3218 = vmatpush1.msra.mxu0 0.0
      %3219 = vmatprep.subr.mxu0 0.0
      %3220 = vmatpush1.msra.mxu0 0.0
      %3221 = vmatprep.subr.mxu0 0.0
      %3222 = vmatpush1.msra.mxu0 0.0
      %3223 = vmatprep.subr.mxu0 0.0
      %3224 = vmatpush1.msra.mxu0 0.0
      %3225 = vmatprep.subr.mxu0 0.0
      %3226 = vmatpush1.msra.mxu0 0.0
      %3227 = vmatprep.subr.mxu0 0.0
      %3228 = vmatpush1.msra.mxu0 0.0
      %3229 = vmatprep.subr.mxu0 0.0
      %3230 = vmatpush1.msra.mxu0 0.0
      %3231 = vmatprep.subr.mxu0 0.0
      %3232 = vmatpush1.msra.mxu0 0.0
      %3233 = vmatprep.subr.mxu0 0.0
      %3234 = vmatpush1.msra.mxu0 0.0
      %3235 = vmatprep.subr.mxu0 0.0
      %3236 = vmatpush1.msra.mxu0 0.0
      %3237 = vmatprep.subr.mxu0 0.0
      %3238 = vmatpush1.msra.mxu0 0.0
      %3239 = vmatprep.subr.mxu0 0.0
      %3240 = vmatpush1.msra.mxu0 0.0
      %3241 = vmatprep.subr.mxu0 0.0
      %3242 = vmatpush1.msra.mxu0 0.0
      %3243 = vmatprep.mubr.f32.mxu0 0.0
      %3244 = vmatmul.mubr.f32.gmra.mrb[0].mxu0 %v3097
      %v3245 = vpop.f32.mrb[0].mxu0
      %v3246 = vadd.f32 0.0, %v3245
      %v3247 = vpop.f32.mrb[0].mxu0
      %v3248 = vadd.f32 0.0, %v3247
      %3249 = vmatprep.mubr.f32.mxu0 0.0
      %3250 = vmatmul.mubr.f32.gmra.mrb[0].mxu0 %v3100
      %v3251 = vpop.f32.mrb[0].mxu0
      %v3252 = vadd.f32 0.0, %v3251
      %v3253 = vpop.f32.mrb[0].mxu0
      %v3254 = vadd.f32 0.0, %v3253
      %3255 = vdwg.mxu0
      %v3256 = vadd.f32 %v3053, %v3169
      %v3257 = vadd.f32 %v3054, %v3171
      %v3258 = vadd.f32 %v3055, %v3246
      %v3259 = vadd.f32 %v3056, %v3248
      %v3260 = vadd.f32 %v3057, %v3175
      %v3261 = vadd.f32 %v3058, %v3177
      %v3262 = vadd.f32 %v3059, %v3252
      %v3263 = vadd.f32 %v3060, %v3254
      %s3264 = scalar_lea.vmem %s6, 64
      %v3265 = vld [vmem:[%s3264] sm:$0xff]
      %v3266 = vld [vmem:[%s3264 + $0x8] sm:$0xff]
      %v3268 = vsel %vm2537, %v3265, 0
      %v3271 = vsel %vm2537, %v3266, 0
      %3273 = vmatprep.subr.mxu0 %v2461
      %3274 = vmatpush1.msra.mxu0 %v2460
      %3275 = vmatprep.subr.mxu0 %v2465
      %3276 = vmatpush1.msra.mxu0 %v2464
      %3277 = vmatprep.subr.mxu0 0.0
      %3278 = vmatpush1.msra.mxu0 0.0
      %3279 = vmatprep.subr.mxu0 0.0
      %3280 = vmatpush1.msra.mxu0 0.0
      %3281 = vmatprep.subr.mxu0 0.0
      %3282 = vmatpush1.msra.mxu0 0.0
      %3283 = vmatprep.subr.mxu0 0.0
      %3284 = vmatpush1.msra.mxu0 0.0
      %3285 = vmatprep.subr.mxu0 0.0
      %3286 = vmatpush1.msra.mxu0 0.0
      %3287 = vmatprep.subr.mxu0 0.0
      %3288 = vmatpush1.msra.mxu0 0.0
      %3289 = vmatprep.subr.mxu0 0.0
      %3290 = vmatpush1.msra.mxu0 0.0
      %3291 = vmatprep.subr.mxu0 0.0
      %3292 = vmatpush1.msra.mxu0 0.0
      %3293 = vmatprep.subr.mxu0 0.0
      %3294 = vmatpush1.msra.mxu0 0.0
      %3295 = vmatprep.subr.mxu0 0.0
      %3296 = vmatpush1.msra.mxu0 0.0
      %3297 = vmatprep.subr.mxu0 0.0
      %3298 = vmatpush1.msra.mxu0 0.0
      %3299 = vmatprep.subr.mxu0 0.0
      %3300 = vmatpush1.msra.mxu0 0.0
      %3301 = vmatprep.subr.mxu0 0.0
      %3302 = vmatpush1.msra.mxu0 0.0
      %3303 = vmatprep.subr.mxu0 0.0
      %3304 = vmatpush1.msra.mxu0 0.0
      %3305 = vmatprep.subr.mxu0 0.0
      %3306 = vmatpush1.msra.mxu0 0.0
      %3307 = vmatprep.subr.mxu0 0.0
      %3308 = vmatpush1.msra.mxu0 0.0
      %3309 = vmatprep.subr.mxu0 0.0
      %3310 = vmatpush1.msra.mxu0 0.0
      %3311 = vmatprep.subr.mxu0 0.0
      %3312 = vmatpush1.msra.mxu0 0.0
      %3313 = vmatprep.subr.mxu0 0.0
      %3314 = vmatpush1.msra.mxu0 0.0
      %3315 = vmatprep.subr.mxu0 0.0
      %3316 = vmatpush1.msra.mxu0 0.0
      %3317 = vmatprep.subr.mxu0 0.0
      %3318 = vmatpush1.msra.mxu0 0.0
      %3319 = vmatprep.subr.mxu0 0.0
      %3320 = vmatpush1.msra.mxu0 0.0
      %3321 = vmatprep.subr.mxu0 0.0
      %3322 = vmatpush1.msra.mxu0 0.0
      %3323 = vmatprep.subr.mxu0 0.0
      %3324 = vmatpush1.msra.mxu0 0.0
      %3325 = vmatprep.subr.mxu0 0.0
      %3326 = vmatpush1.msra.mxu0 0.0
      %3327 = vmatprep.subr.mxu0 0.0
      %3328 = vmatpush1.msra.mxu0 0.0
      %3329 = vmatprep.subr.mxu0 0.0
      %3330 = vmatpush1.msra.mxu0 0.0
      %3331 = vmatprep.subr.mxu0 0.0
      %3332 = vmatpush1.msra.mxu0 0.0
      %3333 = vmatprep.subr.mxu0 0.0
      %3334 = vmatpush1.msra.mxu0 0.0
      %3335 = vmatprep.subr.mxu0 0.0
      %3336 = vmatpush1.msra.mxu0 0.0
      %3337 = vmatprep.mubr.f32.mxu0 0.0
      %3338 = vmatmul.mubr.f32.gmra.mrb[0].mxu0 %v3268
      %v3339 = vpop.f32.mrb[0].mxu0
      %v3340 = vadd.f32 0.0, %v3339
      %v3341 = vpop.f32.mrb[0].mxu0
      %v3342 = vadd.f32 0.0, %v3341
      %3343 = vmatprep.mubr.f32.mxu0 0.0
      %3344 = vmatmul.mubr.f32.gmra.mrb[0].mxu0 %v3271
      %v3345 = vpop.f32.mrb[0].mxu0
      %v3346 = vadd.f32 0.0, %v3345
      %v3347 = vpop.f32.mrb[0].mxu0
      %v3348 = vadd.f32 0.0, %v3347
      %3349 = vdwg.mxu0
      %3350 = vmatprep.subr.mxu0 %v2463
      %3351 = vmatpush1.msra.mxu0 %v2462
      %3352 = vmatprep.subr.mxu0 %v2467
      %3353 = vmatpush1.msra.mxu0 %v2466
      %3354 = vmatprep.subr.mxu0 0.0
      %3355 = vmatpush1.msra.mxu0 0.0
      %3356 = vmatprep.subr.mxu0 0.0
      %3357 = vmatpush1.msra.mxu0 0.0
      %3358 = vmatprep.subr.mxu0 0.0
      %3359 = vmatpush1.msra.mxu0 0.0
      %3360 = vmatprep.subr.mxu0 0.0
      %3361 = vmatpush1.msra.mxu0 0.0
      %3362 = vmatprep.subr.mxu0 0.0
      %3363 = vmatpush1.msra.mxu0 0.0
      %3364 = vmatprep.subr.mxu0 0.0
      %3365 = vmatpush1.msra.mxu0 0.0
      %3366 = vmatprep.subr.mxu0 0.0
      %3367 = vmatpush1.msra.mxu0 0.0
      %3368 = vmatprep.subr.mxu0 0.0
      %3369 = vmatpush1.msra.mxu0 0.0
      %3370 = vmatprep.subr.mxu0 0.0
      %3371 = vmatpush1.msra.mxu0 0.0
      %3372 = vmatprep.subr.mxu0 0.0
      %3373 = vmatpush1.msra.mxu0 0.0
      %3374 = vmatprep.subr.mxu0 0.0
      %3375 = vmatpush1.msra.mxu0 0.0
      %3376 = vmatprep.subr.mxu0 0.0
      %3377 = vmatpush1.msra.mxu0 0.0
      %3378 = vmatprep.subr.mxu0 0.0
      %3379 = vmatpush1.msra.mxu0 0.0
      %3380 = vmatprep.subr.mxu0 0.0
      %3381 = vmatpush1.msra.mxu0 0.0
      %3382 = vmatprep.subr.mxu0 0.0
      %3383 = vmatpush1.msra.mxu0 0.0
      %3384 = vmatprep.subr.mxu0 0.0
      %3385 = vmatpush1.msra.mxu0 0.0
      %3386 = vmatprep.subr.mxu0 0.0
      %3387 = vmatpush1.msra.mxu0 0.0
      %3388 = vmatprep.subr.mxu0 0.0
      %3389 = vmatpush1.msra.mxu0 0.0
      %3390 = vmatprep.subr.mxu0 0.0
      %3391 = vmatpush1.msra.mxu0 0.0
      %3392 = vmatprep.subr.mxu0 0.0
      %3393 = vmatpush1.msra.mxu0 0.0
      %3394 = vmatprep.subr.mxu0 0.0
      %3395 = vmatpush1.msra.mxu0 0.0
      %3396 = vmatprep.subr.mxu0 0.0
      %3397 = vmatpush1.msra.mxu0 0.0
      %3398 = vmatprep.subr.mxu0 0.0
      %3399 = vmatpush1.msra.mxu0 0.0
      %3400 = vmatprep.subr.mxu0 0.0
      %3401 = vmatpush1.msra.mxu0 0.0
      %3402 = vmatprep.subr.mxu0 0.0
      %3403 = vmatpush1.msra.mxu0 0.0
      %3404 = vmatprep.subr.mxu0 0.0
      %3405 = vmatpush1.msra.mxu0 0.0
      %3406 = vmatprep.subr.mxu0 0.0
      %3407 = vmatpush1.msra.mxu0 0.0
      %3408 = vmatprep.subr.mxu0 0.0
      %3409 = vmatpush1.msra.mxu0 0.0
      %3410 = vmatprep.subr.mxu0 0.0
      %3411 = vmatpush1.msra.mxu0 0.0
      %3412 = vmatprep.subr.mxu0 0.0
      %3413 = vmatpush1.msra.mxu0 0.0
      %3414 = vmatprep.mubr.f32.mxu0 0.0
      %3415 = vmatmul.mubr.f32.gmra.mrb[0].mxu0 %v3268
      %v3416 = vpop.f32.mrb[0].mxu0
      %v3417 = vadd.f32 0.0, %v3416
      %v3418 = vpop.f32.mrb[0].mxu0
      %v3419 = vadd.f32 0.0, %v3418
      %3420 = vmatprep.mubr.f32.mxu0 0.0
      %3421 = vmatmul.mubr.f32.gmra.mrb[0].mxu0 %v3271
      %v3422 = vpop.f32.mrb[0].mxu0
      %v3423 = vadd.f32 0.0, %v3422
      %v3424 = vpop.f32.mrb[0].mxu0
      %v3425 = vadd.f32 0.0, %v3424
      %3426 = vdwg.mxu0
      %v3427 = vadd.f32 %v3256, %v3340
      %v3428 = vadd.f32 %v3257, %v3342
      %v3429 = vadd.f32 %v3258, %v3417
      %v3430 = vadd.f32 %v3259, %v3419
      %v3431 = vadd.f32 %v3260, %v3346
      %v3432 = vadd.f32 %v3261, %v3348
      %v3433 = vadd.f32 %v3262, %v3423
      %v3434 = vadd.f32 %v3263, %v3425
      %3435 = vrot.lane.b32.xlu0 %v2460, 127
      %v3436 = vpop.permute.xlu0 %3435
      %3437 = vrot.lane.b32.xlu0 %v2464, 127
      %v3438 = vpop.permute.xlu0 %3437
      %3439 = vrot.lane.b32.xlu0 %v2461, 127
      %v3440 = vpop.permute.xlu0 %3439
      %3441 = vrot.lane.b32.xlu0 %v2465, 127
      %v3442 = vpop.permute.xlu0 %3441
      %3443 = vrot.lane.b32.xlu0 %v2462, 127
      %v3444 = vpop.permute.xlu0 %3443
      %3445 = vrot.lane.b32.xlu0 %v2466, 127
      %v3446 = vpop.permute.xlu0 %3445
      %3447 = vrot.lane.b32.xlu0 %v2463, 127
      %v3448 = vpop.permute.xlu0 %3447
      %3449 = vrot.lane.b32.xlu0 %v2467, 127
      %v3450 = vpop.permute.xlu0 %3449
      %v3451 = vsel %vm1556, %v3444, %v3448
      %v3452 = vsel %vm1556, %v3446, %v3450
      %v3453 = vsel %vm1556, %v3440, %v3444
      %v3454 = vsel %vm1556, %v3442, %v3446
      %v3455 = vsel %vm1556, %v3436, %v3440
      %v3456 = vsel %vm1556, %v3438, %v3442
      %v3457 = vsel %vm1556, %v3448, %v3436
      %v3458 = vsel %vm1556, %v3450, %v3438
      %v3459 = vmul.f32 %v3455, %v1567
      %v3460 = vmul.f32 %v3453, %v1571
      %v3461 = vmul.f32 %v3451, %v1575
      %v3462 = vmul.f32 %v3457, %v1579
      %v3463 = vmul.f32 %v3456, %v1567
      %v3464 = vmul.f32 %v3454, %v1571
      %v3465 = vmul.f32 %v3452, %v1575
      %v3466 = vmul.f32 %v3458, %v1579
      %s3467 = scalar_lea.vmem %s6, 80
      %v3468 = vld [vmem:[%s3467] sm:$0xff]
      %v3469 = vld [vmem:[%s3467 + $0x8] sm:$0xff]
      %v3471 = vsel %vm2537, %v3468, 0
      %v3474 = vsel %vm2537, %v3469, 0
      %3476 = vmatprep.subr.mxu0 %v3460
      %3477 = vmatpush1.msra.mxu0 %v3459
      %3478 = vmatprep.subr.mxu0 %v3464
      %3479 = vmatpush1.msra.mxu0 %v3463
      %3480 = vmatprep.subr.mxu0 0.0
      %3481 = vmatpush1.msra.mxu0 0.0
      %3482 = vmatprep.subr.mxu0 0.0
      %3483 = vmatpush1.msra.mxu0 0.0
      %3484 = vmatprep.subr.mxu0 0.0
      %3485 = vmatpush1.msra.mxu0 0.0
      %3486 = vmatprep.subr.mxu0 0.0
      %3487 = vmatpush1.msra.mxu0 0.0
      %3488 = vmatprep.subr.mxu0 0.0
      %3489 = vmatpush1.msra.mxu0 0.0
      %3490 = vmatprep.subr.mxu0 0.0
      %3491 = vmatpush1.msra.mxu0 0.0
      %3492 = vmatprep.subr.mxu0 0.0
      %3493 = vmatpush1.msra.mxu0 0.0
      %3494 = vmatprep.subr.mxu0 0.0
      %3495 = vmatpush1.msra.mxu0 0.0
      %3496 = vmatprep.subr.mxu0 0.0
      %3497 = vmatpush1.msra.mxu0 0.0
      %3498 = vmatprep.subr.mxu0 0.0
      %3499 = vmatpush1.msra.mxu0 0.0
      %3500 = vmatprep.subr.mxu0 0.0
      %3501 = vmatpush1.msra.mxu0 0.0
      %3502 = vmatprep.subr.mxu0 0.0
      %3503 = vmatpush1.msra.mxu0 0.0
      %3504 = vmatprep.subr.mxu0 0.0
      %3505 = vmatpush1.msra.mxu0 0.0
      %3506 = vmatprep.subr.mxu0 0.0
      %3507 = vmatpush1.msra.mxu0 0.0
      %3508 = vmatprep.subr.mxu0 0.0
      %3509 = vmatpush1.msra.mxu0 0.0
      %3510 = vmatprep.subr.mxu0 0.0
      %3511 = vmatpush1.msra.mxu0 0.0
      %3512 = vmatprep.subr.mxu0 0.0
      %3513 = vmatpush1.msra.mxu0 0.0
      %3514 = vmatprep.subr.mxu0 0.0
      %3515 = vmatpush1.msra.mxu0 0.0
      %3516 = vmatprep.subr.mxu0 0.0
      %3517 = vmatpush1.msra.mxu0 0.0
      %3518 = vmatprep.subr.mxu0 0.0
      %3519 = vmatpush1.msra.mxu0 0.0
      %3520 = vmatprep.subr.mxu0 0.0
      %3521 = vmatpush1.msra.mxu0 0.0
      %3522 = vmatprep.subr.mxu0 0.0
      %3523 = vmatpush1.msra.mxu0 0.0
      %3524 = vmatprep.subr.mxu0 0.0
      %3525 = vmatpush1.msra.mxu0 0.0
      %3526 = vmatprep.subr.mxu0 0.0
      %3527 = vmatpush1.msra.mxu0 0.0
      %3528 = vmatprep.subr.mxu0 0.0
      %3529 = vmatpush1.msra.mxu0 0.0
      %3530 = vmatprep.subr.mxu0 0.0
      %3531 = vmatpush1.msra.mxu0 0.0
      %3532 = vmatprep.subr.mxu0 0.0
      %3533 = vmatpush1.msra.mxu0 0.0
      %3534 = vmatprep.subr.mxu0 0.0
      %3535 = vmatpush1.msra.mxu0 0.0
      %3536 = vmatprep.subr.mxu0 0.0
      %3537 = vmatpush1.msra.mxu0 0.0
      %3538 = vmatprep.subr.mxu0 0.0
      %3539 = vmatpush1.msra.mxu0 0.0
      %3540 = vmatprep.mubr.f32.mxu0 0.0
      %3541 = vmatmul.mubr.f32.gmra.mrb[0].mxu0 %v3471
      %v3542 = vpop.f32.mrb[0].mxu0
      %v3543 = vadd.f32 0.0, %v3542
      %v3544 = vpop.f32.mrb[0].mxu0
      %v3545 = vadd.f32 0.0, %v3544
      %3546 = vmatprep.mubr.f32.mxu0 0.0
      %3547 = vmatmul.mubr.f32.gmra.mrb[0].mxu0 %v3474
      %v3548 = vpop.f32.mrb[0].mxu0
      %v3549 = vadd.f32 0.0, %v3548
      %v3550 = vpop.f32.mrb[0].mxu0
      %v3551 = vadd.f32 0.0, %v3550
      %3552 = vdwg.mxu0
      %3553 = vmatprep.subr.mxu0 %v3462
      %3554 = vmatpush1.msra.mxu0 %v3461
      %3555 = vmatprep.subr.mxu0 %v3466
      %3556 = vmatpush1.msra.mxu0 %v3465
      %3557 = vmatprep.subr.mxu0 0.0
      %3558 = vmatpush1.msra.mxu0 0.0
      %3559 = vmatprep.subr.mxu0 0.0
      %3560 = vmatpush1.msra.mxu0 0.0
      %3561 = vmatprep.subr.mxu0 0.0
      %3562 = vmatpush1.msra.mxu0 0.0
      %3563 = vmatprep.subr.mxu0 0.0
      %3564 = vmatpush1.msra.mxu0 0.0
      %3565 = vmatprep.subr.mxu0 0.0
      %3566 = vmatpush1.msra.mxu0 0.0
      %3567 = vmatprep.subr.mxu0 0.0
      %3568 = vmatpush1.msra.mxu0 0.0
      %3569 = vmatprep.subr.mxu0 0.0
      %3570 = vmatpush1.msra.mxu0 0.0
      %3571 = vmatprep.subr.mxu0 0.0
      %3572 = vmatpush1.msra.mxu0 0.0
      %3573 = vmatprep.subr.mxu0 0.0
      %3574 = vmatpush1.msra.mxu0 0.0
      %3575 = vmatprep.subr.mxu0 0.0
      %3576 = vmatpush1.msra.mxu0 0.0
      %3577 = vmatprep.subr.mxu0 0.0
      %3578 = vmatpush1.msra.mxu0 0.0
      %3579 = vmatprep.subr.mxu0 0.0
      %3580 = vmatpush1.msra.mxu0 0.0
      %3581 = vmatprep.subr.mxu0 0.0
      %3582 = vmatpush1.msra.mxu0 0.0
      %3583 = vmatprep.subr.mxu0 0.0
      %3584 = vmatpush1.msra.mxu0 0.0
      %3585 = vmatprep.subr.mxu0 0.0
      %3586 = vmatpush1.msra.mxu0 0.0
      %3587 = vmatprep.subr.mxu0 0.0
      %3588 = vmatpush1.msra.mxu0 0.0
      %3589 = vmatprep.subr.mxu0 0.0
      %3590 = vmatpush1.msra.mxu0 0.0
      %3591 = vmatprep.subr.mxu0 0.0
      %3592 = vmatpush1.msra.mxu0 0.0
      %3593 = vmatprep.subr.mxu0 0.0
      %3594 = vmatpush1.msra.mxu0 0.0
      %3595 = vmatprep.subr.mxu0 0.0
      %3596 = vmatpush1.msra.mxu0 0.0
      %3597 = vmatprep.subr.mxu0 0.0
      %3598 = vmatpush1.msra.mxu0 0.0
      %3599 = vmatprep.subr.mxu0 0.0
      %3600 = vmatpush1.msra.mxu0 0.0
      %3601 = vmatprep.subr.mxu0 0.0
      %3602 = vmatpush1.msra.mxu0 0.0
      %3603 = vmatprep.subr.mxu0 0.0
      %3604 = vmatpush1.msra.mxu0 0.0
      %3605 = vmatprep.subr.mxu0 0.0
      %3606 = vmatpush1.msra.mxu0 0.0
      %3607 = vmatprep.subr.mxu0 0.0
      %3608 = vmatpush1.msra.mxu0 0.0
      %3609 = vmatprep.subr.mxu0 0.0
      %3610 = vmatpush1.msra.mxu0 0.0
      %3611 = vmatprep.subr.mxu0 0.0
      %3612 = vmatpush1.msra.mxu0 0.0
      %3613 = vmatprep.subr.mxu0 0.0
      %3614 = vmatpush1.msra.mxu0 0.0
      %3615 = vmatprep.subr.mxu0 0.0
      %3616 = vmatpush1.msra.mxu0 0.0
      %3617 = vmatprep.mubr.f32.mxu0 0.0
      %3618 = vmatmul.mubr.f32.gmra.mrb[0].mxu0 %v3471
      %v3619 = vpop.f32.mrb[0].mxu0
      %v3620 = vadd.f32 0.0, %v3619
      %v3621 = vpop.f32.mrb[0].mxu0
      %v3622 = vadd.f32 0.0, %v3621
      %3623 = vmatprep.mubr.f32.mxu0 0.0
      %3624 = vmatmul.mubr.f32.gmra.mrb[0].mxu0 %v3474
      %v3625 = vpop.f32.mrb[0].mxu0
      %v3626 = vadd.f32 0.0, %v3625
      %v3627 = vpop.f32.mrb[0].mxu0
      %v3628 = vadd.f32 0.0, %v3627
      %3629 = vdwg.mxu0
      %v3630 = vadd.f32 %v3427, %v3543
      %v3631 = vadd.f32 %v3428, %v3545
      %v3632 = vadd.f32 %v3429, %v3620
      %v3633 = vadd.f32 %v3430, %v3622
      %v3634 = vadd.f32 %v3431, %v3549
      %v3635 = vadd.f32 %v3432, %v3551
      %v3636 = vadd.f32 %v3433, %v3626
      %v3637 = vadd.f32 %v3434, %v3628
      %3638 = vrot.lane.b32.xlu0 %v2460, 113
      %v3639 = vpop.permute.xlu0 %3638
      %3640 = vrot.lane.b32.xlu0 %v2464, 113
      %v3641 = vpop.permute.xlu0 %3640
      %3642 = vrot.lane.b32.xlu0 %v2461, 113
      %v3643 = vpop.permute.xlu0 %3642
      %3644 = vrot.lane.b32.xlu0 %v2465, 113
      %v3645 = vpop.permute.xlu0 %3644
      %3646 = vrot.lane.b32.xlu0 %v2462, 113
      %v3647 = vpop.permute.xlu0 %3646
      %3648 = vrot.lane.b32.xlu0 %v2466, 113
      %v3649 = vpop.permute.xlu0 %3648
      %3650 = vrot.lane.b32.xlu0 %v2463, 113
      %v3651 = vpop.permute.xlu0 %3650
      %3652 = vrot.lane.b32.xlu0 %v2467, 113
      %v3653 = vpop.permute.xlu0 %3652
      %v3654 = vsel %vm1779, %v3647, %v3651
      %v3655 = vsel %vm1779, %v3649, %v3653
      %v3656 = vsel %vm1779, %v3643, %v3647
      %v3657 = vsel %vm1779, %v3645, %v3649
      %v3658 = vsel %vm1779, %v3639, %v3643
      %v3659 = vsel %vm1779, %v3641, %v3645
      %v3660 = vsel %vm1779, %v3651, %v3639
      %v3661 = vsel %vm1779, %v3653, %v3641
      %v3662 = vmul.f32 %v3658, %v1790
      %v3663 = vmul.f32 %v3656, %v1794
      %v3664 = vmul.f32 %v3654, %v1798
      %v3665 = vmul.f32 %v3660, %v1802
      %v3666 = vmul.f32 %v3659, %v1790
      %v3667 = vmul.f32 %v3657, %v1794
      %v3668 = vmul.f32 %v3655, %v1798
      %v3669 = vmul.f32 %v3661, %v1802
      %s3670 = scalar_lea.vmem %s6, 96
      %v3671 = vld [vmem:[%s3670] sm:$0xff]
      %v3672 = vld [vmem:[%s3670 + $0x8] sm:$0xff]
      %v3674 = vsel %vm2537, %v3671, 0
      %v3677 = vsel %vm2537, %v3672, 0
      %3679 = vmatprep.subr.mxu0 %v3663
      %3680 = vmatpush1.msra.mxu0 %v3662
      %3681 = vmatprep.subr.mxu0 %v3667
      %3682 = vmatpush1.msra.mxu0 %v3666
      %3683 = vmatprep.subr.mxu0 0.0
      %3684 = vmatpush1.msra.mxu0 0.0
      %3685 = vmatprep.subr.mxu0 0.0
      %3686 = vmatpush1.msra.mxu0 0.0
      %3687 = vmatprep.subr.mxu0 0.0
      %3688 = vmatpush1.msra.mxu0 0.0
      %3689 = vmatprep.subr.mxu0 0.0
      %3690 = vmatpush1.msra.mxu0 0.0
      %3691 = vmatprep.subr.mxu0 0.0
      %3692 = vmatpush1.msra.mxu0 0.0
      %3693 = vmatprep.subr.mxu0 0.0
      %3694 = vmatpush1.msra.mxu0 0.0
      %3695 = vmatprep.subr.mxu0 0.0
      %3696 = vmatpush1.msra.mxu0 0.0
      %3697 = vmatprep.subr.mxu0 0.0
      %3698 = vmatpush1.msra.mxu0 0.0
      %3699 = vmatprep.subr.mxu0 0.0
      %3700 = vmatpush1.msra.mxu0 0.0
      %3701 = vmatprep.subr.mxu0 0.0
      %3702 = vmatpush1.msra.mxu0 0.0
      %3703 = vmatprep.subr.mxu0 0.0
      %3704 = vmatpush1.msra.mxu0 0.0
      %3705 = vmatprep.subr.mxu0 0.0
      %3706 = vmatpush1.msra.mxu0 0.0
      %3707 = vmatprep.subr.mxu0 0.0
      %3708 = vmatpush1.msra.mxu0 0.0
      %3709 = vmatprep.subr.mxu0 0.0
      %3710 = vmatpush1.msra.mxu0 0.0
      %3711 = vmatprep.subr.mxu0 0.0
      %3712 = vmatpush1.msra.mxu0 0.0
      %3713 = vmatprep.subr.mxu0 0.0
      %3714 = vmatpush1.msra.mxu0 0.0
      %3715 = vmatprep.subr.mxu0 0.0
      %3716 = vmatpush1.msra.mxu0 0.0
      %3717 = vmatprep.subr.mxu0 0.0
      %3718 = vmatpush1.msra.mxu0 0.0
      %3719 = vmatprep.subr.mxu0 0.0
      %3720 = vmatpush1.msra.mxu0 0.0
      %3721 = vmatprep.subr.mxu0 0.0
      %3722 = vmatpush1.msra.mxu0 0.0
      %3723 = vmatprep.subr.mxu0 0.0
      %3724 = vmatpush1.msra.mxu0 0.0
      %3725 = vmatprep.subr.mxu0 0.0
      %3726 = vmatpush1.msra.mxu0 0.0
      %3727 = vmatprep.subr.mxu0 0.0
      %3728 = vmatpush1.msra.mxu0 0.0
      %3729 = vmatprep.subr.mxu0 0.0
      %3730 = vmatpush1.msra.mxu0 0.0
      %3731 = vmatprep.subr.mxu0 0.0
      %3732 = vmatpush1.msra.mxu0 0.0
      %3733 = vmatprep.subr.mxu0 0.0
      %3734 = vmatpush1.msra.mxu0 0.0
      %3735 = vmatprep.subr.mxu0 0.0
      %3736 = vmatpush1.msra.mxu0 0.0
      %3737 = vmatprep.subr.mxu0 0.0
      %3738 = vmatpush1.msra.mxu0 0.0
      %3739 = vmatprep.subr.mxu0 0.0
      %3740 = vmatpush1.msra.mxu0 0.0
      %3741 = vmatprep.subr.mxu0 0.0
      %3742 = vmatpush1.msra.mxu0 0.0
      %3743 = vmatprep.mubr.f32.mxu0 0.0
      %3744 = vmatmul.mubr.f32.gmra.mrb[0].mxu0 %v3674
      %v3745 = vpop.f32.mrb[0].mxu0
      %v3746 = vadd.f32 0.0, %v3745
      %v3747 = vpop.f32.mrb[0].mxu0
      %v3748 = vadd.f32 0.0, %v3747
      %3749 = vmatprep.mubr.f32.mxu0 0.0
      %3750 = vmatmul.mubr.f32.gmra.mrb[0].mxu0 %v3677
      %v3751 = vpop.f32.mrb[0].mxu0
      %v3752 = vadd.f32 0.0, %v3751
      %v3753 = vpop.f32.mrb[0].mxu0
      %v3754 = vadd.f32 0.0, %v3753
      %3755 = vdwg.mxu0
      %3756 = vmatprep.subr.mxu0 %v3665
      %3757 = vmatpush1.msra.mxu0 %v3664
      %3758 = vmatprep.subr.mxu0 %v3669
      %3759 = vmatpush1.msra.mxu0 %v3668
      %3760 = vmatprep.subr.mxu0 0.0
      %3761 = vmatpush1.msra.mxu0 0.0
      %3762 = vmatprep.subr.mxu0 0.0
      %3763 = vmatpush1.msra.mxu0 0.0
      %3764 = vmatprep.subr.mxu0 0.0
      %3765 = vmatpush1.msra.mxu0 0.0
      %3766 = vmatprep.subr.mxu0 0.0
      %3767 = vmatpush1.msra.mxu0 0.0
      %3768 = vmatprep.subr.mxu0 0.0
      %3769 = vmatpush1.msra.mxu0 0.0
      %3770 = vmatprep.subr.mxu0 0.0
      %3771 = vmatpush1.msra.mxu0 0.0
      %3772 = vmatprep.subr.mxu0 0.0
      %3773 = vmatpush1.msra.mxu0 0.0
      %3774 = vmatprep.subr.mxu0 0.0
      %3775 = vmatpush1.msra.mxu0 0.0
      %3776 = vmatprep.subr.mxu0 0.0
      %3777 = vmatpush1.msra.mxu0 0.0
      %3778 = vmatprep.subr.mxu0 0.0
      %3779 = vmatpush1.msra.mxu0 0.0
      %3780 = vmatprep.subr.mxu0 0.0
      %3781 = vmatpush1.msra.mxu0 0.0
      %3782 = vmatprep.subr.mxu0 0.0
      %3783 = vmatpush1.msra.mxu0 0.0
      %3784 = vmatprep.subr.mxu0 0.0
      %3785 = vmatpush1.msra.mxu0 0.0
      %3786 = vmatprep.subr.mxu0 0.0
      %3787 = vmatpush1.msra.mxu0 0.0
      %3788 = vmatprep.subr.mxu0 0.0
      %3789 = vmatpush1.msra.mxu0 0.0
      %3790 = vmatprep.subr.mxu0 0.0
      %3791 = vmatpush1.msra.mxu0 0.0
      %3792 = vmatprep.subr.mxu0 0.0
      %3793 = vmatpush1.msra.mxu0 0.0
      %3794 = vmatprep.subr.mxu0 0.0
      %3795 = vmatpush1.msra.mxu0 0.0
      %3796 = vmatprep.subr.mxu0 0.0
      %3797 = vmatpush1.msra.mxu0 0.0
      %3798 = vmatprep.subr.mxu0 0.0
      %3799 = vmatpush1.msra.mxu0 0.0
      %3800 = vmatprep.subr.mxu0 0.0
      %3801 = vmatpush1.msra.mxu0 0.0
      %3802 = vmatprep.subr.mxu0 0.0
      %3803 = vmatpush1.msra.mxu0 0.0
      %3804 = vmatprep.subr.mxu0 0.0
      %3805 = vmatpush1.msra.mxu0 0.0
      %3806 = vmatprep.subr.mxu0 0.0
      %3807 = vmatpush1.msra.mxu0 0.0
      %3808 = vmatprep.subr.mxu0 0.0
      %3809 = vmatpush1.msra.mxu0 0.0
      %3810 = vmatprep.subr.mxu0 0.0
      %3811 = vmatpush1.msra.mxu0 0.0
      %3812 = vmatprep.subr.mxu0 0.0
      %3813 = vmatpush1.msra.mxu0 0.0
      %3814 = vmatprep.subr.mxu0 0.0
      %3815 = vmatpush1.msra.mxu0 0.0
      %3816 = vmatprep.subr.mxu0 0.0
      %3817 = vmatpush1.msra.mxu0 0.0
      %3818 = vmatprep.subr.mxu0 0.0
      %3819 = vmatpush1.msra.mxu0 0.0
      %3820 = vmatprep.mubr.f32.mxu0 0.0
      %3821 = vmatmul.mubr.f32.gmra.mrb[0].mxu0 %v3674
      %v3822 = vpop.f32.mrb[0].mxu0
      %v3823 = vadd.f32 0.0, %v3822
      %v3824 = vpop.f32.mrb[0].mxu0
      %v3825 = vadd.f32 0.0, %v3824
      %3826 = vmatprep.mubr.f32.mxu0 0.0
      %3827 = vmatmul.mubr.f32.gmra.mrb[0].mxu0 %v3677
      %v3828 = vpop.f32.mrb[0].mxu0
      %v3829 = vadd.f32 0.0, %v3828
      %v3830 = vpop.f32.mrb[0].mxu0
      %v3831 = vadd.f32 0.0, %v3830
      %3832 = vdwg.mxu0
      %v3833 = vadd.f32 %v3630, %v3746
      %v3834 = vadd.f32 %v3631, %v3748
      %v3835 = vadd.f32 %v3632, %v3823
      %v3836 = vadd.f32 %v3633, %v3825
      %v3837 = vadd.f32 %v3634, %v3752
      %v3838 = vadd.f32 %v3635, %v3754
      %v3839 = vadd.f32 %v3636, %v3829
      %v3840 = vadd.f32 %v3637, %v3831
      %3841 = vrot.lane.b32.xlu0 %v2460, 112
      %v3842 = vpop.permute.xlu0 %3841
      %3843 = vrot.lane.b32.xlu0 %v2464, 112
      %v3844 = vpop.permute.xlu0 %3843
      %3845 = vrot.lane.b32.xlu0 %v2461, 112
      %v3846 = vpop.permute.xlu0 %3845
      %3847 = vrot.lane.b32.xlu0 %v2465, 112
      %v3848 = vpop.permute.xlu0 %3847
      %3849 = vrot.lane.b32.xlu0 %v2462, 112
      %v3850 = vpop.permute.xlu0 %3849
      %3851 = vrot.lane.b32.xlu0 %v2466, 112
      %v3852 = vpop.permute.xlu0 %3851
      %3853 = vrot.lane.b32.xlu0 %v2463, 112
      %v3854 = vpop.permute.xlu0 %3853
      %3855 = vrot.lane.b32.xlu0 %v2467, 112
      %v3856 = vpop.permute.xlu0 %3855
      %v3857 = vsel %vm2002, %v3850, %v3854
      %v3858 = vsel %vm2002, %v3852, %v3856
      %v3859 = vsel %vm2002, %v3846, %v3850
      %v3860 = vsel %vm2002, %v3848, %v3852
      %v3861 = vsel %vm2002, %v3842, %v3846
      %v3862 = vsel %vm2002, %v3844, %v3848
      %v3863 = vsel %vm2002, %v3854, %v3842
      %v3864 = vsel %vm2002, %v3856, %v3844
      %v3865 = vmul.f32 %v3861, %v2013
      %v3866 = vmul.f32 %v3859, %v2017
      %v3867 = vmul.f32 %v3857, %v2021
      %v3868 = vmul.f32 %v3863, %v2025
      %v3869 = vmul.f32 %v3862, %v2013
      %v3870 = vmul.f32 %v3860, %v2017
      %v3871 = vmul.f32 %v3858, %v2021
      %v3872 = vmul.f32 %v3864, %v2025
      %s3873 = scalar_lea.vmem %s6, 112
      %v3874 = vld [vmem:[%s3873] sm:$0xff]
      %v3875 = vld [vmem:[%s3873 + $0x8] sm:$0xff]
      %v3877 = vsel %vm2537, %v3874, 0
      %v3880 = vsel %vm2537, %v3875, 0
      %3882 = vmatprep.subr.mxu0 %v3866
      %3883 = vmatpush1.msra.mxu0 %v3865
      %3884 = vmatprep.subr.mxu0 %v3870
      %3885 = vmatpush1.msra.mxu0 %v3869
      %3886 = vmatprep.subr.mxu0 0.0
      %3887 = vmatpush1.msra.mxu0 0.0
      %3888 = vmatprep.subr.mxu0 0.0
      %3889 = vmatpush1.msra.mxu0 0.0
      %3890 = vmatprep.subr.mxu0 0.0
      %3891 = vmatpush1.msra.mxu0 0.0
      %3892 = vmatprep.subr.mxu0 0.0
      %3893 = vmatpush1.msra.mxu0 0.0
      %3894 = vmatprep.subr.mxu0 0.0
      %3895 = vmatpush1.msra.mxu0 0.0
      %3896 = vmatprep.subr.mxu0 0.0
      %3897 = vmatpush1.msra.mxu0 0.0
      %3898 = vmatprep.subr.mxu0 0.0
      %3899 = vmatpush1.msra.mxu0 0.0
      %3900 = vmatprep.subr.mxu0 0.0
      %3901 = vmatpush1.msra.mxu0 0.0
      %3902 = vmatprep.subr.mxu0 0.0
      %3903 = vmatpush1.msra.mxu0 0.0
      %3904 = vmatprep.subr.mxu0 0.0
      %3905 = vmatpush1.msra.mxu0 0.0
      %3906 = vmatprep.subr.mxu0 0.0
      %3907 = vmatpush1.msra.mxu0 0.0
      %3908 = vmatprep.subr.mxu0 0.0
      %3909 = vmatpush1.msra.mxu0 0.0
      %3910 = vmatprep.subr.mxu0 0.0
      %3911 = vmatpush1.msra.mxu0 0.0
      %3912 = vmatprep.subr.mxu0 0.0
      %3913 = vmatpush1.msra.mxu0 0.0
      %3914 = vmatprep.subr.mxu0 0.0
      %3915 = vmatpush1.msra.mxu0 0.0
      %3916 = vmatprep.subr.mxu0 0.0
      %3917 = vmatpush1.msra.mxu0 0.0
      %3918 = vmatprep.subr.mxu0 0.0
      %3919 = vmatpush1.msra.mxu0 0.0
      %3920 = vmatprep.subr.mxu0 0.0
      %3921 = vmatpush1.msra.mxu0 0.0
      %3922 = vmatprep.subr.mxu0 0.0
      %3923 = vmatpush1.msra.mxu0 0.0
      %3924 = vmatprep.subr.mxu0 0.0
      %3925 = vmatpush1.msra.mxu0 0.0
      %3926 = vmatprep.subr.mxu0 0.0
      %3927 = vmatpush1.msra.mxu0 0.0
      %3928 = vmatprep.subr.mxu0 0.0
      %3929 = vmatpush1.msra.mxu0 0.0
      %3930 = vmatprep.subr.mxu0 0.0
      %3931 = vmatpush1.msra.mxu0 0.0
      %3932 = vmatprep.subr.mxu0 0.0
      %3933 = vmatpush1.msra.mxu0 0.0
      %3934 = vmatprep.subr.mxu0 0.0
      %3935 = vmatpush1.msra.mxu0 0.0
      %3936 = vmatprep.subr.mxu0 0.0
      %3937 = vmatpush1.msra.mxu0 0.0
      %3938 = vmatprep.subr.mxu0 0.0
      %3939 = vmatpush1.msra.mxu0 0.0
      %3940 = vmatprep.subr.mxu0 0.0
      %3941 = vmatpush1.msra.mxu0 0.0
      %3942 = vmatprep.subr.mxu0 0.0
      %3943 = vmatpush1.msra.mxu0 0.0
      %3944 = vmatprep.subr.mxu0 0.0
      %3945 = vmatpush1.msra.mxu0 0.0
      %3946 = vmatprep.mubr.f32.mxu0 0.0
      %3947 = vmatmul.mubr.f32.gmra.mrb[0].mxu0 %v3877
      %v3948 = vpop.f32.mrb[0].mxu0
      %v3949 = vadd.f32 0.0, %v3948
      %v3950 = vpop.f32.mrb[0].mxu0
      %v3951 = vadd.f32 0.0, %v3950
      %3952 = vmatprep.mubr.f32.mxu0 0.0
      %3953 = vmatmul.mubr.f32.gmra.mrb[0].mxu0 %v3880
      %v3954 = vpop.f32.mrb[0].mxu0
      %v3955 = vadd.f32 0.0, %v3954
      %v3956 = vpop.f32.mrb[0].mxu0
      %v3957 = vadd.f32 0.0, %v3956
      %3958 = vdwg.mxu0
      %3959 = vmatprep.subr.mxu0 %v3868
      %3960 = vmatpush1.msra.mxu0 %v3867
      %3961 = vmatprep.subr.mxu0 %v3872
      %3962 = vmatpush1.msra.mxu0 %v3871
      %3963 = vmatprep.subr.mxu0 0.0
      %3964 = vmatpush1.msra.mxu0 0.0
      %3965 = vmatprep.subr.mxu0 0.0
      %3966 = vmatpush1.msra.mxu0 0.0
      %3967 = vmatprep.subr.mxu0 0.0
      %3968 = vmatpush1.msra.mxu0 0.0
      %3969 = vmatprep.subr.mxu0 0.0
      %3970 = vmatpush1.msra.mxu0 0.0
      %3971 = vmatprep.subr.mxu0 0.0
      %3972 = vmatpush1.msra.mxu0 0.0
      %3973 = vmatprep.subr.mxu0 0.0
      %3974 = vmatpush1.msra.mxu0 0.0
      %3975 = vmatprep.subr.mxu0 0.0
      %3976 = vmatpush1.msra.mxu0 0.0
      %3977 = vmatprep.subr.mxu0 0.0
      %3978 = vmatpush1.msra.mxu0 0.0
      %3979 = vmatprep.subr.mxu0 0.0
      %3980 = vmatpush1.msra.mxu0 0.0
      %3981 = vmatprep.subr.mxu0 0.0
      %3982 = vmatpush1.msra.mxu0 0.0
      %3983 = vmatprep.subr.mxu0 0.0
      %3984 = vmatpush1.msra.mxu0 0.0
      %3985 = vmatprep.subr.mxu0 0.0
      %3986 = vmatpush1.msra.mxu0 0.0
      %3987 = vmatprep.subr.mxu0 0.0
      %3988 = vmatpush1.msra.mxu0 0.0
      %3989 = vmatprep.subr.mxu0 0.0
      %3990 = vmatpush1.msra.mxu0 0.0
      %3991 = vmatprep.subr.mxu0 0.0
      %3992 = vmatpush1.msra.mxu0 0.0
      %3993 = vmatprep.subr.mxu0 0.0
      %3994 = vmatpush1.msra.mxu0 0.0
      %3995 = vmatprep.subr.mxu0 0.0
      %3996 = vmatpush1.msra.mxu0 0.0
      %3997 = vmatprep.subr.mxu0 0.0
      %3998 = vmatpush1.msra.mxu0 0.0
      %3999 = vmatprep.subr.mxu0 0.0
      %4000 = vmatpush1.msra.mxu0 0.0
      %4001 = vmatprep.subr.mxu0 0.0
      %4002 = vmatpush1.msra.mxu0 0.0
      %4003 = vmatprep.subr.mxu0 0.0
      %4004 = vmatpush1.msra.mxu0 0.0
      %4005 = vmatprep.subr.mxu0 0.0
      %4006 = vmatpush1.msra.mxu0 0.0
      %4007 = vmatprep.subr.mxu0 0.0
      %4008 = vmatpush1.msra.mxu0 0.0
      %4009 = vmatprep.subr.mxu0 0.0
      %4010 = vmatpush1.msra.mxu0 0.0
      %4011 = vmatprep.subr.mxu0 0.0
      %4012 = vmatpush1.msra.mxu0 0.0
      %4013 = vmatprep.subr.mxu0 0.0
      %4014 = vmatpush1.msra.mxu0 0.0
      %4015 = vmatprep.subr.mxu0 0.0
      %4016 = vmatpush1.msra.mxu0 0.0
      %4017 = vmatprep.subr.mxu0 0.0
      %4018 = vmatpush1.msra.mxu0 0.0
      %4019 = vmatprep.subr.mxu0 0.0
      %4020 = vmatpush1.msra.mxu0 0.0
      %4021 = vmatprep.subr.mxu0 0.0
      %4022 = vmatpush1.msra.mxu0 0.0
      %4023 = vmatprep.mubr.f32.mxu0 0.0
      %4024 = vmatmul.mubr.f32.gmra.mrb[0].mxu0 %v3877
      %v4025 = vpop.f32.mrb[0].mxu0
      %v4026 = vadd.f32 0.0, %v4025
      %v4027 = vpop.f32.mrb[0].mxu0
      %v4028 = vadd.f32 0.0, %v4027
      %4029 = vmatprep.mubr.f32.mxu0 0.0
      %4030 = vmatmul.mubr.f32.gmra.mrb[0].mxu0 %v3880
      %v4031 = vpop.f32.mrb[0].mxu0
      %v4032 = vadd.f32 0.0, %v4031
      %v4033 = vpop.f32.mrb[0].mxu0
      %v4034 = vadd.f32 0.0, %v4033
      %4035 = vdwg.mxu0
      %v4036 = vadd.f32 %v3833, %v3949
      %v4037 = vadd.f32 %v3834, %v3951
      %v4038 = vadd.f32 %v3835, %v4026
      %v4039 = vadd.f32 %v3836, %v4028
      %v4040 = vadd.f32 %v3837, %v3955
      %v4041 = vadd.f32 %v3838, %v3957
      %v4042 = vadd.f32 %v3839, %v4032
      %v4043 = vadd.f32 %v3840, %v4034
      %4044 = vrot.lane.b32.xlu0 %v2460, 111
      %v4045 = vpop.permute.xlu0 %4044
      %4046 = vrot.lane.b32.xlu0 %v2464, 111
      %v4047 = vpop.permute.xlu0 %4046
      %4048 = vrot.lane.b32.xlu0 %v2461, 111
      %v4049 = vpop.permute.xlu0 %4048
      %4050 = vrot.lane.b32.xlu0 %v2465, 111
      %v4051 = vpop.permute.xlu0 %4050
      %4052 = vrot.lane.b32.xlu0 %v2462, 111
      %v4053 = vpop.permute.xlu0 %4052
      %4054 = vrot.lane.b32.xlu0 %v2466, 111
      %v4055 = vpop.permute.xlu0 %4054
      %4056 = vrot.lane.b32.xlu0 %v2463, 111
      %v4057 = vpop.permute.xlu0 %4056
      %4058 = vrot.lane.b32.xlu0 %v2467, 111
      %v4059 = vpop.permute.xlu0 %4058
      %v4060 = vsel %vm2225, %v4053, %v4057
      %v4061 = vsel %vm2225, %v4055, %v4059
      %v4062 = vsel %vm2225, %v4049, %v4053
      %v4063 = vsel %vm2225, %v4051, %v4055
      %v4064 = vsel %vm2225, %v4045, %v4049
      %v4065 = vsel %vm2225, %v4047, %v4051
      %v4066 = vsel %vm2225, %v4057, %v4045
      %v4067 = vsel %vm2225, %v4059, %v4047
      %v4068 = vmul.f32 %v4064, %v2236
      %v4069 = vmul.f32 %v4062, %v2240
      %v4070 = vmul.f32 %v4060, %v2244
      %v4071 = vmul.f32 %v4066, %v2248
      %v4072 = vmul.f32 %v4065, %v2236
      %v4073 = vmul.f32 %v4063, %v2240
      %v4074 = vmul.f32 %v4061, %v2244
      %v4075 = vmul.f32 %v4067, %v2248
      %s4076 = scalar_lea.vmem %s6, 128
      %v4077 = vld [vmem:[%s4076] sm:$0xff]
      %v4078 = vld [vmem:[%s4076 + $0x8] sm:$0xff]
      %v4080 = vsel %vm2537, %v4077, 0
      %v4083 = vsel %vm2537, %v4078, 0
      %4085 = vmatprep.subr.mxu0 %v4069
      %4086 = vmatpush1.msra.mxu0 %v4068
      %4087 = vmatprep.subr.mxu0 %v4073
      %4088 = vmatpush1.msra.mxu0 %v4072
      %4089 = vmatprep.subr.mxu0 0.0
      %4090 = vmatpush1.msra.mxu0 0.0
      %4091 = vmatprep.subr.mxu0 0.0
      %4092 = vmatpush1.msra.mxu0 0.0
      %4093 = vmatprep.subr.mxu0 0.0
      %4094 = vmatpush1.msra.mxu0 0.0
      %4095 = vmatprep.subr.mxu0 0.0
      %4096 = vmatpush1.msra.mxu0 0.0
      %4097 = vmatprep.subr.mxu0 0.0
      %4098 = vmatpush1.msra.mxu0 0.0
      %4099 = vmatprep.subr.mxu0 0.0
      %4100 = vmatpush1.msra.mxu0 0.0
      %4101 = vmatprep.subr.mxu0 0.0
      %4102 = vmatpush1.msra.mxu0 0.0
      %4103 = vmatprep.subr.mxu0 0.0
      %4104 = vmatpush1.msra.mxu0 0.0
      %4105 = vmatprep.subr.mxu0 0.0
      %4106 = vmatpush1.msra.mxu0 0.0
      %4107 = vmatprep.subr.mxu0 0.0
      %4108 = vmatpush1.msra.mxu0 0.0
      %4109 = vmatprep.subr.mxu0 0.0
      %4110 = vmatpush1.msra.mxu0 0.0
      %4111 = vmatprep.subr.mxu0 0.0
      %4112 = vmatpush1.msra.mxu0 0.0
      %4113 = vmatprep.subr.mxu0 0.0
      %4114 = vmatpush1.msra.mxu0 0.0
      %4115 = vmatprep.subr.mxu0 0.0
      %4116 = vmatpush1.msra.mxu0 0.0
      %4117 = vmatprep.subr.mxu0 0.0
      %4118 = vmatpush1.msra.mxu0 0.0
      %4119 = vmatprep.subr.mxu0 0.0
      %4120 = vmatpush1.msra.mxu0 0.0
      %4121 = vmatprep.subr.mxu0 0.0
      %4122 = vmatpush1.msra.mxu0 0.0
      %4123 = vmatprep.subr.mxu0 0.0
      %4124 = vmatpush1.msra.mxu0 0.0
      %4125 = vmatprep.subr.mxu0 0.0
      %4126 = vmatpush1.msra.mxu0 0.0
      %4127 = vmatprep.subr.mxu0 0.0
      %4128 = vmatpush1.msra.mxu0 0.0
      %4129 = vmatprep.subr.mxu0 0.0
      %4130 = vmatpush1.msra.mxu0 0.0
      %4131 = vmatprep.subr.mxu0 0.0
      %4132 = vmatpush1.msra.mxu0 0.0
      %4133 = vmatprep.subr.mxu0 0.0
      %4134 = vmatpush1.msra.mxu0 0.0
      %4135 = vmatprep.subr.mxu0 0.0
      %4136 = vmatpush1.msra.mxu0 0.0
      %4137 = vmatprep.subr.mxu0 0.0
      %4138 = vmatpush1.msra.mxu0 0.0
      %4139 = vmatprep.subr.mxu0 0.0
      %4140 = vmatpush1.msra.mxu0 0.0
      %4141 = vmatprep.subr.mxu0 0.0
      %4142 = vmatpush1.msra.mxu0 0.0
      %4143 = vmatprep.subr.mxu0 0.0
      %4144 = vmatpush1.msra.mxu0 0.0
      %4145 = vmatprep.subr.mxu0 0.0
      %4146 = vmatpush1.msra.mxu0 0.0
      %4147 = vmatprep.subr.mxu0 0.0
      %4148 = vmatpush1.msra.mxu0 0.0
      %4149 = vmatprep.mubr.f32.mxu0 0.0
      %4150 = vmatmul.mubr.f32.gmra.mrb[0].mxu0 %v4080
      %v4151 = vpop.f32.mrb[0].mxu0
      %v4152 = vadd.f32 0.0, %v4151
      %v4153 = vpop.f32.mrb[0].mxu0
      %v4154 = vadd.f32 0.0, %v4153
      %4155 = vmatprep.mubr.f32.mxu0 0.0
      %4156 = vmatmul.mubr.f32.gmra.mrb[0].mxu0 %v4083
      %v4157 = vpop.f32.mrb[0].mxu0
      %v4158 = vadd.f32 0.0, %v4157
      %v4159 = vpop.f32.mrb[0].mxu0
      %v4160 = vadd.f32 0.0, %v4159
      %4161 = vdwg.mxu0
      %4162 = vmatprep.subr.mxu0 %v4071
      %4163 = vmatpush1.msra.mxu0 %v4070
      %4164 = vmatprep.subr.mxu0 %v4075
      %4165 = vmatpush1.msra.mxu0 %v4074
      %4166 = vmatprep.subr.mxu0 0.0
      %4167 = vmatpush1.msra.mxu0 0.0
      %4168 = vmatprep.subr.mxu0 0.0
      %4169 = vmatpush1.msra.mxu0 0.0
      %4170 = vmatprep.subr.mxu0 0.0
      %4171 = vmatpush1.msra.mxu0 0.0
      %4172 = vmatprep.subr.mxu0 0.0
      %4173 = vmatpush1.msra.mxu0 0.0
      %4174 = vmatprep.subr.mxu0 0.0
      %4175 = vmatpush1.msra.mxu0 0.0
      %4176 = vmatprep.subr.mxu0 0.0
      %4177 = vmatpush1.msra.mxu0 0.0
      %4178 = vmatprep.subr.mxu0 0.0
      %4179 = vmatpush1.msra.mxu0 0.0
      %4180 = vmatprep.subr.mxu0 0.0
      %4181 = vmatpush1.msra.mxu0 0.0
      %4182 = vmatprep.subr.mxu0 0.0
      %4183 = vmatpush1.msra.mxu0 0.0
      %4184 = vmatprep.subr.mxu0 0.0
      %4185 = vmatpush1.msra.mxu0 0.0
      %4186 = vmatprep.subr.mxu0 0.0
      %4187 = vmatpush1.msra.mxu0 0.0
      %4188 = vmatprep.subr.mxu0 0.0
      %4189 = vmatpush1.msra.mxu0 0.0
      %4190 = vmatprep.subr.mxu0 0.0
      %4191 = vmatpush1.msra.mxu0 0.0
      %4192 = vmatprep.subr.mxu0 0.0
      %4193 = vmatpush1.msra.mxu0 0.0
      %4194 = vmatprep.subr.mxu0 0.0
      %4195 = vmatpush1.msra.mxu0 0.0
      %4196 = vmatprep.subr.mxu0 0.0
      %4197 = vmatpush1.msra.mxu0 0.0
      %4198 = vmatprep.subr.mxu0 0.0
      %4199 = vmatpush1.msra.mxu0 0.0
      %4200 = vmatprep.subr.mxu0 0.0
      %4201 = vmatpush1.msra.mxu0 0.0
      %4202 = vmatprep.subr.mxu0 0.0
      %4203 = vmatpush1.msra.mxu0 0.0
      %4204 = vmatprep.subr.mxu0 0.0
      %4205 = vmatpush1.msra.mxu0 0.0
      %4206 = vmatprep.subr.mxu0 0.0
      %4207 = vmatpush1.msra.mxu0 0.0
      %4208 = vmatprep.subr.mxu0 0.0
      %4209 = vmatpush1.msra.mxu0 0.0
      %4210 = vmatprep.subr.mxu0 0.0
      %4211 = vmatpush1.msra.mxu0 0.0
      %4212 = vmatprep.subr.mxu0 0.0
      %4213 = vmatpush1.msra.mxu0 0.0
      %4214 = vmatprep.subr.mxu0 0.0
      %4215 = vmatpush1.msra.mxu0 0.0
      %4216 = vmatprep.subr.mxu0 0.0
      %4217 = vmatpush1.msra.mxu0 0.0
      %4218 = vmatprep.subr.mxu0 0.0
      %4219 = vmatpush1.msra.mxu0 0.0
      %4220 = vmatprep.subr.mxu0 0.0
      %4221 = vmatpush1.msra.mxu0 0.0
      %4222 = vmatprep.subr.mxu0 0.0
      %4223 = vmatpush1.msra.mxu0 0.0
      %4224 = vmatprep.subr.mxu0 0.0
      %4225 = vmatpush1.msra.mxu0 0.0
      %4226 = vmatprep.mubr.f32.mxu0 0.0
      %4227 = vmatmul.mubr.f32.gmra.mrb[0].mxu0 %v4080
      %v4228 = vpop.f32.mrb[0].mxu0
      %v4229 = vadd.f32 0.0, %v4228
      %v4230 = vpop.f32.mrb[0].mxu0
      %v4231 = vadd.f32 0.0, %v4230
      %4232 = vmatprep.mubr.f32.mxu0 0.0
      %4233 = vmatmul.mubr.f32.gmra.mrb[0].mxu0 %v4083
      %v4234 = vpop.f32.mrb[0].mxu0
      %v4235 = vadd.f32 0.0, %v4234
      %v4236 = vpop.f32.mrb[0].mxu0
      %v4237 = vadd.f32 0.0, %v4236
      %4238 = vdwg.mxu0
      %v4239 = vadd.f32 %v4036, %v4152
      %v4240 = vadd.f32 %v4037, %v4154
      %v4241 = vadd.f32 %v4038, %v4229
      %v4242 = vadd.f32 %v4039, %v4231
      %v4243 = vadd.f32 %v4040, %v4158
      %v4244 = vadd.f32 %v4041, %v4160
      %v4245 = vadd.f32 %v4042, %v4235
      %v4246 = vadd.f32 %v4043, %v4237
      %v4247 = vld [vmem:[%s7] sm:$0xff]
      %v4248 = vld [vmem:[%s7 + $0x8] sm:$0xff]
      %4250 = vset.pattern.permute.xlu0 0
      %4251 = vperm.xlu0 %4250, %v4247
      %v4252 = vpop.permute.xlu0 %4251
      %4255 = vset.pattern.permute.xlu0 0
      %4256 = vperm.xlu0 %4255, %v4248
      %v4257 = vpop.permute.xlu0 %4256
      %v4259 = vadd.f32 %v4239, %v4252
      %v4260 = vadd.f32 %v4240, %v4252
      %v4261 = vadd.f32 %v4241, %v4252
      %v4262 = vadd.f32 %v4242, %v4252
      %v4263 = vadd.f32 %v4243, %v4257
      %v4264 = vadd.f32 %v4244, %v4257
      %v4265 = vadd.f32 %v4245, %v4257
      %v4266 = vadd.f32 %v4246, %v4257
      %v4267 = vmax.f32 %v4259, 0.0
      %v4268 = vmax.f32 %v4260, 0.0
      %v4269 = vmax.f32 %v4261, 0.0
      %v4270 = vmax.f32 %v4262, 0.0
      %v4271 = vmax.f32 %v4263, 0.0
      %v4272 = vmax.f32 %v4264, 0.0
      %v4273 = vmax.f32 %v4265, 0.0
      %v4274 = vmax.f32 %v4266, 0.0
      %4275 = vrot.lane.b32.xlu0 %v4267, 127
      %v4276 = vpop.permute.xlu0 %4275
      %4277 = vrot.lane.b32.xlu0 %v4271, 127
      %v4278 = vpop.permute.xlu0 %4277
      %4279 = vrot.lane.b32.xlu0 %v4268, 127
      %v4280 = vpop.permute.xlu0 %4279
      %4281 = vrot.lane.b32.xlu0 %v4272, 127
      %v4282 = vpop.permute.xlu0 %4281
      %4283 = vrot.lane.b32.xlu0 %v4269, 127
      %v4284 = vpop.permute.xlu0 %4283
      %4285 = vrot.lane.b32.xlu0 %v4273, 127
      %v4286 = vpop.permute.xlu0 %4285
      %4287 = vrot.lane.b32.xlu0 %v4270, 127
      %v4288 = vpop.permute.xlu0 %4287
      %4289 = vrot.lane.b32.xlu0 %v4274, 127
      %v4290 = vpop.permute.xlu0 %4289
      %v4291 = vsel %vm1556, %v4284, %v4288
      %v4292 = vsel %vm1556, %v4286, %v4290
      %v4293 = vsel %vm1556, %v4280, %v4284
      %v4294 = vsel %vm1556, %v4282, %v4286
      %v4295 = vsel %vm1556, %v4276, %v4280
      %v4296 = vsel %vm1556, %v4278, %v4282
      %v4297 = vsel %vm1556, %v4288, %v4276
      %v4298 = vsel %vm1556, %v4290, %v4278
      %v4299 = vmax.f32 %v4267, %v4295
      %v4300 = vmax.f32 %v4268, %v4293
      %v4301 = vmax.f32 %v4269, %v4291
      %v4302 = vmax.f32 %v4270, %v4297
      %v4303 = vmax.f32 %v4271, %v4296
      %v4304 = vmax.f32 %v4272, %v4294
      %v4305 = vmax.f32 %v4273, %v4292
      %v4306 = vmax.f32 %v4274, %v4298
      %4307 = vrot.lane.b32.xlu0 %v4299, 112
      %v4308 = vpop.permute.xlu0 %4307
      %4309 = vrot.lane.b32.xlu0 %v4303, 112
      %v4310 = vpop.permute.xlu0 %4309
      %4311 = vrot.lane.b32.xlu0 %v4300, 112
      %v4312 = vpop.permute.xlu0 %4311
      %4313 = vrot.lane.b32.xlu0 %v4304, 112
      %v4314 = vpop.permute.xlu0 %4313
      %4315 = vrot.lane.b32.xlu0 %v4301, 112
      %v4316 = vpop.permute.xlu0 %4315
      %4317 = vrot.lane.b32.xlu0 %v4305, 112
      %v4318 = vpop.permute.xlu0 %4317
      %4319 = vrot.lane.b32.xlu0 %v4302, 112
      %v4320 = vpop.permute.xlu0 %4319
      %4321 = vrot.lane.b32.xlu0 %v4306, 112
      %v4322 = vpop.permute.xlu0 %4321
      %v4323 = vsel %vm2002, %v4316, %v4320
      %v4324 = vsel %vm2002, %v4318, %v4322
      %v4325 = vsel %vm2002, %v4312, %v4316
      %v4326 = vsel %vm2002, %v4314, %v4318
      %v4327 = vsel %vm2002, %v4308, %v4312
      %v4328 = vsel %vm2002, %v4310, %v4314
      %v4329 = vsel %vm2002, %v4320, %v4308
      %v4330 = vsel %vm2002, %v4322, %v4310
      %v4331 = vmax.f32 %v4299, %v4327
      %v4332 = vmax.f32 %v4300, %v4325
      %v4333 = vmax.f32 %v4301, %v4323
      %v4334 = vmax.f32 %v4302, %v4329
      %v4335 = vmax.f32 %v4303, %v4328
      %v4336 = vmax.f32 %v4304, %v4326
      %v4337 = vmax.f32 %v4305, %v4324
      %v4338 = vmax.f32 %v4306, %v4330
      %4339 = vrot.lane.b32.xlu0 %v4331, 34
      %v4340 = vpop.permute.xlu0 %4339
      %4341 = vrot.lane.b32.xlu0 %v4335, 34
      %v4342 = vpop.permute.xlu0 %4341
      %4343 = vrot.lane.b32.xlu0 %v4332, 34
      %v4344 = vpop.permute.xlu0 %4343
      %4345 = vrot.lane.b32.xlu0 %v4336, 34
      %v4346 = vpop.permute.xlu0 %4345
      %4347 = vrot.lane.b32.xlu0 %v4333, 34
      %v4348 = vpop.permute.xlu0 %4347
      %4349 = vrot.lane.b32.xlu0 %v4337, 34
      %v4350 = vpop.permute.xlu0 %4349
      %4351 = vrot.lane.b32.xlu0 %v4334, 34
      %v4352 = vpop.permute.xlu0 %4351
      %4353 = vrot.lane.b32.xlu0 %v4338, 34
      %v4354 = vpop.permute.xlu0 %4353
      %vm4355 = vcmp.lt.s32.totalorder %v496, 34
      %v4356 = vsel %vm4355, %v4348, %v4352
      %v4357 = vsel %vm4355, %v4350, %v4354
      %v4358 = vsel %vm4355, %v4344, %v4348
      %v4359 = vsel %vm4355, %v4346, %v4350
      %v4360 = vsel %vm4355, %v4340, %v4344
      %v4361 = vsel %vm4355, %v4342, %v4346
      %v4362 = vsel %vm4355, %v4352, %v4340
      %v4363 = vsel %vm4355, %v4354, %v4342
      %v4364 = vld [vmem:[%s11] sm:$0xf]
      %v4366 = vlaneseq
      %v4367 = vshrl.u32 %v4366, 7
      %v4368 = vsub.s32 0, %v4367
      %v4369 = vrot.slane %v4364, %v4368
      %v4370 = vlaneseq
      %v4371 = vshrl.u32 %v4370, 7
      %v4372 = vsub.s32 1, %v4371
      %v4373 = vrot.slane %v4364, %v4372
      %v4374 = vlaneseq
      %v4375 = vshrl.u32 %v4374, 7
      %v4376 = vsub.s32 2, %v4375
      %v4377 = vrot.slane %v4364, %v4376
      %v4378 = vlaneseq
      %v4379 = vshrl.u32 %v4378, 7
      %v4380 = vsub.s32 3, %v4379
      %v4381 = vrot.slane %v4364, %v4380
      %v4386 = vmul.f32 %v4362, %v4369
      %v4387 = vmul.f32 %v4360, %v4373
      %v4388 = vmul.f32 %v4358, %v4377
      %v4389 = vmul.f32 %v4356, %v4381
      %v4390 = vmul.f32 %v4363, %v4369
      %v4391 = vmul.f32 %v4361, %v4373
      %v4392 = vmul.f32 %v4359, %v4377
      %v4393 = vmul.f32 %v4357, %v4381
      %v4394 = vld [vmem:[%s8] sm:$0xff]
      %v4395 = vld [vmem:[%s8 + $0x8] sm:$0xff]
      %v4396 = vld [vmem:[%s8 + $0x10] sm:$0xff]
      %v4397 = vld [vmem:[%s8 + $0x18] sm:$0xff]
      %4398 = vrot.lane.b32.xlu0 %v4331, 32
      %v4399 = vpop.permute.xlu0 %4398
      %4400 = vrot.lane.b32.xlu0 %v4335, 32
      %v4401 = vpop.permute.xlu0 %4400
      %4402 = vrot.lane.b32.xlu0 %v4332, 32
      %v4403 = vpop.permute.xlu0 %4402
      %4404 = vrot.lane.b32.xlu0 %v4336, 32
      %v4405 = vpop.permute.xlu0 %4404
      %4406 = vrot.lane.b32.xlu0 %v4333, 32
      %v4407 = vpop.permute.xlu0 %4406
      %4408 = vrot.lane.b32.xlu0 %v4337, 32
      %v4409 = vpop.permute.xlu0 %4408
      %4410 = vrot.lane.b32.xlu0 %v4334, 32
      %v4411 = vpop.permute.xlu0 %4410
      %4412 = vrot.lane.b32.xlu0 %v4338, 32
      %v4413 = vpop.permute.xlu0 %4412
      %vm4414 = vcmp.lt.s32.totalorder %v496, 32
      %v4415 = vsel %vm4414, %v4407, %v4411
      %v4416 = vsel %vm4414, %v4409, %v4413
      %v4417 = vsel %vm4414, %v4403, %v4407
      %v4418 = vsel %vm4414, %v4405, %v4409
      %v4419 = vsel %vm4414, %v4399, %v4403
      %v4420 = vsel %vm4414, %v4401, %v4405
      %v4421 = vsel %vm4414, %v4411, %v4399
      %v4422 = vsel %vm4414, %v4413, %v4401
      %s4423 = scalar_lea.vmem %s11, 4
      %v4424 = vld [vmem:[%s4423] sm:$0xf]
      %v4426 = vlaneseq
      %v4427 = vshrl.u32 %v4426, 7
      %v4428 = vsub.s32 0, %v4427
      %v4429 = vrot.slane %v4424, %v4428
      %v4430 = vlaneseq
      %v4431 = vshrl.u32 %v4430, 7
      %v4432 = vsub.s32 1, %v4431
      %v4433 = vrot.slane %v4424, %v4432
      %v4434 = vlaneseq
      %v4435 = vshrl.u32 %v4434, 7
      %v4436 = vsub.s32 2, %v4435
      %v4437 = vrot.slane %v4424, %v4436
      %v4438 = vlaneseq
      %v4439 = vshrl.u32 %v4438, 7
      %v4440 = vsub.s32 3, %v4439
      %v4441 = vrot.slane %v4424, %v4440
      %v4446 = vmul.f32 %v4421, %v4429
      %v4447 = vmul.f32 %v4419, %v4433
      %v4448 = vmul.f32 %v4417, %v4437
      %v4449 = vmul.f32 %v4415, %v4441
      %v4450 = vmul.f32 %v4422, %v4429
      %v4451 = vmul.f32 %v4420, %v4433
      %v4452 = vmul.f32 %v4418, %v4437
      %v4453 = vmul.f32 %v4416, %v4441
      %s4454 = scalar_lea.vmem %s8, 32
      %v4455 = vld [vmem:[%s4454] sm:$0xff]
      %v4456 = vld [vmem:[%s4454 + $0x8] sm:$0xff]
      %v4457 = vld [vmem:[%s4454 + $0x10] sm:$0xff]
      %v4458 = vld [vmem:[%s4454 + $0x18] sm:$0xff]
      %v4460 = vsel %vm2537, %v4455, 0
      %v4463 = vsel %vm2537, %v4456, 0
      %v4466 = vsel %vm2537, %v4457, 0
      %v4469 = vsel %vm2537, %v4458, 0
      %4471 = vmatprep.subr.mxu0 %v4447
      %4472 = vmatpush1.msra.mxu0 %v4446
      %4473 = vmatprep.subr.mxu0 %v4451
      %4474 = vmatpush1.msra.mxu0 %v4450
      %4475 = vmatprep.subr.mxu0 0.0
      %4476 = vmatpush1.msra.mxu0 0.0
      %4477 = vmatprep.subr.mxu0 0.0
      %4478 = vmatpush1.msra.mxu0 0.0
      %4479 = vmatprep.subr.mxu0 0.0
      %4480 = vmatpush1.msra.mxu0 0.0
      %4481 = vmatprep.subr.mxu0 0.0
      %4482 = vmatpush1.msra.mxu0 0.0
      %4483 = vmatprep.subr.mxu0 0.0
      %4484 = vmatpush1.msra.mxu0 0.0
      %4485 = vmatprep.subr.mxu0 0.0
      %4486 = vmatpush1.msra.mxu0 0.0
      %4487 = vmatprep.subr.mxu0 0.0
      %4488 = vmatpush1.msra.mxu0 0.0
      %4489 = vmatprep.subr.mxu0 0.0
      %4490 = vmatpush1.msra.mxu0 0.0
      %4491 = vmatprep.subr.mxu0 0.0
      %4492 = vmatpush1.msra.mxu0 0.0
      %4493 = vmatprep.subr.mxu0 0.0
      %4494 = vmatpush1.msra.mxu0 0.0
      %4495 = vmatprep.subr.mxu0 0.0
      %4496 = vmatpush1.msra.mxu0 0.0
      %4497 = vmatprep.subr.mxu0 0.0
      %4498 = vmatpush1.msra.mxu0 0.0
      %4499 = vmatprep.subr.mxu0 0.0
      %4500 = vmatpush1.msra.mxu0 0.0
      %4501 = vmatprep.subr.mxu0 0.0
      %4502 = vmatpush1.msra.mxu0 0.0
      %4503 = vmatprep.subr.mxu0 0.0
      %4504 = vmatpush1.msra.mxu0 0.0
      %4505 = vmatprep.subr.mxu0 0.0
      %4506 = vmatpush1.msra.mxu0 0.0
      %4507 = vmatprep.subr.mxu0 0.0
      %4508 = vmatpush1.msra.mxu0 0.0
      %4509 = vmatprep.subr.mxu0 0.0
      %4510 = vmatpush1.msra.mxu0 0.0
      %4511 = vmatprep.subr.mxu0 0.0
      %4512 = vmatpush1.msra.mxu0 0.0
      %4513 = vmatprep.subr.mxu0 0.0
      %4514 = vmatpush1.msra.mxu0 0.0
      %4515 = vmatprep.subr.mxu0 0.0
      %4516 = vmatpush1.msra.mxu0 0.0
      %4517 = vmatprep.subr.mxu0 0.0
      %4518 = vmatpush1.msra.mxu0 0.0
      %4519 = vmatprep.subr.mxu0 0.0
      %4520 = vmatpush1.msra.mxu0 0.0
      %4521 = vmatprep.subr.mxu0 0.0
      %4522 = vmatpush1.msra.mxu0 0.0
      %4523 = vmatprep.subr.mxu0 0.0
      %4524 = vmatpush1.msra.mxu0 0.0
      %4525 = vmatprep.subr.mxu0 0.0
      %4526 = vmatpush1.msra.mxu0 0.0
      %4527 = vmatprep.subr.mxu0 0.0
      %4528 = vmatpush1.msra.mxu0 0.0
      %4529 = vmatprep.subr.mxu0 0.0
      %4530 = vmatpush1.msra.mxu0 0.0
      %4531 = vmatprep.subr.mxu0 0.0
      %4532 = vmatpush1.msra.mxu0 0.0
      %4533 = vmatprep.subr.mxu0 0.0
      %4534 = vmatpush1.msra.mxu0 0.0
      %4535 = vmatprep.mubr.f32.mxu0 0.0
      %4536 = vmatmul.mubr.f32.gmra.mrb[0].mxu0 %v4460
      %v4537 = vpop.f32.mrb[0].mxu0
      %v4538 = vadd.f32 0.0, %v4537
      %v4539 = vpop.f32.mrb[0].mxu0
      %v4540 = vadd.f32 0.0, %v4539
      %4541 = vmatprep.mubr.f32.mxu0 0.0
      %4542 = vmatmul.mubr.f32.gmra.mrb[0].mxu0 %v4463
      %v4543 = vpop.f32.mrb[0].mxu0
      %v4544 = vadd.f32 0.0, %v4543
      %v4545 = vpop.f32.mrb[0].mxu0
      %v4546 = vadd.f32 0.0, %v4545
      %4547 = vmatprep.mubr.f32.mxu0 0.0
      %4548 = vmatmul.mubr.f32.gmra.mrb[0].mxu0 %v4466
      %v4549 = vpop.f32.mrb[0].mxu0
      %v4550 = vadd.f32 0.0, %v4549
      %v4551 = vpop.f32.mrb[0].mxu0
      %v4552 = vadd.f32 0.0, %v4551
      %4553 = vmatprep.mubr.f32.mxu0 0.0
      %4554 = vmatmul.mubr.f32.gmra.mrb[0].mxu0 %v4469
      %v4555 = vpop.f32.mrb[0].mxu0
      %v4556 = vadd.f32 0.0, %v4555
      %v4557 = vpop.f32.mrb[0].mxu0
      %v4558 = vadd.f32 0.0, %v4557
      %4559 = vdwg.mxu0
      %4560 = vmatprep.subr.mxu0 %v4449
      %4561 = vmatpush1.msra.mxu0 %v4448
      %4562 = vmatprep.subr.mxu0 %v4453
      %4563 = vmatpush1.msra.mxu0 %v4452
      %4564 = vmatprep.subr.mxu0 0.0
      %4565 = vmatpush1.msra.mxu0 0.0
      %4566 = vmatprep.subr.mxu0 0.0
      %4567 = vmatpush1.msra.mxu0 0.0
      %4568 = vmatprep.subr.mxu0 0.0
      %4569 = vmatpush1.msra.mxu0 0.0
      %4570 = vmatprep.subr.mxu0 0.0
      %4571 = vmatpush1.msra.mxu0 0.0
      %4572 = vmatprep.subr.mxu0 0.0
      %4573 = vmatpush1.msra.mxu0 0.0
      %4574 = vmatprep.subr.mxu0 0.0
      %4575 = vmatpush1.msra.mxu0 0.0
      %4576 = vmatprep.subr.mxu0 0.0
      %4577 = vmatpush1.msra.mxu0 0.0
      %4578 = vmatprep.subr.mxu0 0.0
      %4579 = vmatpush1.msra.mxu0 0.0
      %4580 = vmatprep.subr.mxu0 0.0
      %4581 = vmatpush1.msra.mxu0 0.0
      %4582 = vmatprep.subr.mxu0 0.0
      %4583 = vmatpush1.msra.mxu0 0.0
      %4584 = vmatprep.subr.mxu0 0.0
      %4585 = vmatpush1.msra.mxu0 0.0
      %4586 = vmatprep.subr.mxu0 0.0
      %4587 = vmatpush1.msra.mxu0 0.0
      %4588 = vmatprep.subr.mxu0 0.0
      %4589 = vmatpush1.msra.mxu0 0.0
      %4590 = vmatprep.subr.mxu0 0.0
      %4591 = vmatpush1.msra.mxu0 0.0
      %4592 = vmatprep.subr.mxu0 0.0
      %4593 = vmatpush1.msra.mxu0 0.0
      %4594 = vmatprep.subr.mxu0 0.0
      %4595 = vmatpush1.msra.mxu0 0.0
      %4596 = vmatprep.subr.mxu0 0.0
      %4597 = vmatpush1.msra.mxu0 0.0
      %4598 = vmatprep.subr.mxu0 0.0
      %4599 = vmatpush1.msra.mxu0 0.0
      %4600 = vmatprep.subr.mxu0 0.0
      %4601 = vmatpush1.msra.mxu0 0.0
      %4602 = vmatprep.subr.mxu0 0.0
      %4603 = vmatpush1.msra.mxu0 0.0
      %4604 = vmatprep.subr.mxu0 0.0
      %4605 = vmatpush1.msra.mxu0 0.0
      %4606 = vmatprep.subr.mxu0 0.0
      %4607 = vmatpush1.msra.mxu0 0.0
      %4608 = vmatprep.subr.mxu0 0.0
      %4609 = vmatpush1.msra.mxu0 0.0
      %4610 = vmatprep.subr.mxu0 0.0
      %4611 = vmatpush1.msra.mxu0 0.0
      %4612 = vmatprep.subr.mxu0 0.0
      %4613 = vmatpush1.msra.mxu0 0.0
      %4614 = vmatprep.subr.mxu0 0.0
      %4615 = vmatpush1.msra.mxu0 0.0
      %4616 = vmatprep.subr.mxu0 0.0
      %4617 = vmatpush1.msra.mxu0 0.0
      %4618 = vmatprep.subr.mxu0 0.0
      %4619 = vmatpush1.msra.mxu0 0.0
      %4620 = vmatprep.subr.mxu0 0.0
      %4621 = vmatpush1.msra.mxu0 0.0
      %4622 = vmatprep.subr.mxu0 0.0
      %4623 = vmatpush1.msra.mxu0 0.0
      %4624 = vmatprep.mubr.f32.mxu0 0.0
      %4625 = vmatmul.mubr.f32.gmra.mrb[0].mxu0 %v4460
      %v4626 = vpop.f32.mrb[0].mxu0
      %v4627 = vadd.f32 0.0, %v4626
      %v4628 = vpop.f32.mrb[0].mxu0
      %v4629 = vadd.f32 0.0, %v4628
      %4630 = vmatprep.mubr.f32.mxu0 0.0
      %4631 = vmatmul.mubr.f32.gmra.mrb[0].mxu0 %v4463
      %v4632 = vpop.f32.mrb[0].mxu0
      %v4633 = vadd.f32 0.0, %v4632
      %v4634 = vpop.f32.mrb[0].mxu0
      %v4635 = vadd.f32 0.0, %v4634
      %4636 = vmatprep.mubr.f32.mxu0 0.0
      %4637 = vmatmul.mubr.f32.gmra.mrb[0].mxu0 %v4466
      %v4638 = vpop.f32.mrb[0].mxu0
      %v4639 = vadd.f32 0.0, %v4638
      %v4640 = vpop.f32.mrb[0].mxu0
      %v4641 = vadd.f32 0.0, %v4640
      %4642 = vmatprep.mubr.f32.mxu0 0.0
      %4643 = vmatmul.mubr.f32.gmra.mrb[0].mxu0 %v4469
      %v4644 = vpop.f32.mrb[0].mxu0
      %v4645 = vadd.f32 0.0, %v4644
      %v4646 = vpop.f32.mrb[0].mxu0
      %v4647 = vadd.f32 0.0, %v4646
      %4648 = vdwg.mxu0
      %v4650 = vsel %vm2537, %v4394, 0
      %v4653 = vsel %vm2537, %v4395, 0
      %v4656 = vsel %vm2537, %v4396, 0
      %v4659 = vsel %vm2537, %v4397, 0
      %4661 = vmatprep.subr.mxu0 %v4387
      %4662 = vmatpush1.msra.mxu0 %v4386
      %4663 = vmatprep.subr.mxu0 %v4391
      %4664 = vmatpush1.msra.mxu0 %v4390
      %4665 = vmatprep.subr.mxu0 0.0
      %4666 = vmatpush1.msra.mxu0 0.0
      %4667 = vmatprep.subr.mxu0 0.0
      %4668 = vmatpush1.msra.mxu0 0.0
      %4669 = vmatprep.subr.mxu0 0.0
      %4670 = vmatpush1.msra.mxu0 0.0
      %4671 = vmatprep.subr.mxu0 0.0
      %4672 = vmatpush1.msra.mxu0 0.0
      %4673 = vmatprep.subr.mxu0 0.0
      %4674 = vmatpush1.msra.mxu0 0.0
      %4675 = vmatprep.subr.mxu0 0.0
      %4676 = vmatpush1.msra.mxu0 0.0
      %4677 = vmatprep.subr.mxu0 0.0
      %4678 = vmatpush1.msra.mxu0 0.0
      %4679 = vmatprep.subr.mxu0 0.0
      %4680 = vmatpush1.msra.mxu0 0.0
      %4681 = vmatprep.subr.mxu0 0.0
      %4682 = vmatpush1.msra.mxu0 0.0
      %4683 = vmatprep.subr.mxu0 0.0
      %4684 = vmatpush1.msra.mxu0 0.0
      %4685 = vmatprep.subr.mxu0 0.0
      %4686 = vmatpush1.msra.mxu0 0.0
      %4687 = vmatprep.subr.mxu0 0.0
      %4688 = vmatpush1.msra.mxu0 0.0
      %4689 = vmatprep.subr.mxu0 0.0
      %4690 = vmatpush1.msra.mxu0 0.0
      %4691 = vmatprep.subr.mxu0 0.0
      %4692 = vmatpush1.msra.mxu0 0.0
      %4693 = vmatprep.subr.mxu0 0.0
      %4694 = vmatpush1.msra.mxu0 0.0
      %4695 = vmatprep.subr.mxu0 0.0
      %4696 = vmatpush1.msra.mxu0 0.0
      %4697 = vmatprep.subr.mxu0 0.0
      %4698 = vmatpush1.msra.mxu0 0.0
      %4699 = vmatprep.subr.mxu0 0.0
      %4700 = vmatpush1.msra.mxu0 0.0
      %4701 = vmatprep.subr.mxu0 0.0
      %4702 = vmatpush1.msra.mxu0 0.0
      %4703 = vmatprep.subr.mxu0 0.0
      %4704 = vmatpush1.msra.mxu0 0.0
      %4705 = vmatprep.subr.mxu0 0.0
      %4706 = vmatpush1.msra.mxu0 0.0
      %4707 = vmatprep.subr.mxu0 0.0
      %4708 = vmatpush1.msra.mxu0 0.0
      %4709 = vmatprep.subr.mxu0 0.0
      %4710 = vmatpush1.msra.mxu0 0.0
      %4711 = vmatprep.subr.mxu0 0.0
      %4712 = vmatpush1.msra.mxu0 0.0
      %4713 = vmatprep.subr.mxu0 0.0
      %4714 = vmatpush1.msra.mxu0 0.0
      %4715 = vmatprep.subr.mxu0 0.0
      %4716 = vmatpush1.msra.mxu0 0.0
      %4717 = vmatprep.subr.mxu0 0.0
      %4718 = vmatpush1.msra.mxu0 0.0
      %4719 = vmatprep.subr.mxu0 0.0
      %4720 = vmatpush1.msra.mxu0 0.0
      %4721 = vmatprep.subr.mxu0 0.0
      %4722 = vmatpush1.msra.mxu0 0.0
      %4723 = vmatprep.subr.mxu0 0.0
      %4724 = vmatpush1.msra.mxu0 0.0
      %4725 = vmatprep.mubr.f32.mxu0 0.0
      %4726 = vmatmul.mubr.f32.gmra.mrb[0].mxu0 %v4650
      %v4727 = vpop.f32.mrb[0].mxu0
      %v4728 = vadd.f32 %v4538, %v4727
      %v4729 = vpop.f32.mrb[0].mxu0
      %v4730 = vadd.f32 %v4540, %v4729
      %4731 = vmatprep.mubr.f32.mxu0 0.0
      %4732 = vmatmul.mubr.f32.gmra.mrb[0].mxu0 %v4653
      %v4733 = vpop.f32.mrb[0].mxu0
      %v4734 = vadd.f32 %v4544, %v4733
      %v4735 = vpop.f32.mrb[0].mxu0
      %v4736 = vadd.f32 %v4546, %v4735
      %4737 = vmatprep.mubr.f32.mxu0 0.0
      %4738 = vmatmul.mubr.f32.gmra.mrb[0].mxu0 %v4656
      %v4739 = vpop.f32.mrb[0].mxu0
      %v4740 = vadd.f32 %v4550, %v4739
      %v4741 = vpop.f32.mrb[0].mxu0
      %v4742 = vadd.f32 %v4552, %v4741
      %4743 = vmatprep.mubr.f32.mxu0 0.0
      %4744 = vmatmul.mubr.f32.gmra.mrb[0].mxu0 %v4659
      %v4745 = vpop.f32.mrb[0].mxu0
      %v4746 = vadd.f32 %v4556, %v4745
      %v4747 = vpop.f32.mrb[0].mxu0
      %v4748 = vadd.f32 %v4558, %v4747
      %4749 = vdwg.mxu0
      %4750 = vmatprep.subr.mxu0 %v4389
      %4751 = vmatpush1.msra.mxu0 %v4388
      %4752 = vmatprep.subr.mxu0 %v4393
      %4753 = vmatpush1.msra.mxu0 %v4392
      %4754 = vmatprep.subr.mxu0 0.0
      %4755 = vmatpush1.msra.mxu0 0.0
      %4756 = vmatprep.subr.mxu0 0.0
      %4757 = vmatpush1.msra.mxu0 0.0
      %4758 = vmatprep.subr.mxu0 0.0
      %4759 = vmatpush1.msra.mxu0 0.0
      %4760 = vmatprep.subr.mxu0 0.0
      %4761 = vmatpush1.msra.mxu0 0.0
      %4762 = vmatprep.subr.mxu0 0.0
      %4763 = vmatpush1.msra.mxu0 0.0
      %4764 = vmatprep.subr.mxu0 0.0
      %4765 = vmatpush1.msra.mxu0 0.0
      %4766 = vmatprep.subr.mxu0 0.0
      %4767 = vmatpush1.msra.mxu0 0.0
      %4768 = vmatprep.subr.mxu0 0.0
      %4769 = vmatpush1.msra.mxu0 0.0
      %4770 = vmatprep.subr.mxu0 0.0
      %4771 = vmatpush1.msra.mxu0 0.0
      %4772 = vmatprep.subr.mxu0 0.0
      %4773 = vmatpush1.msra.mxu0 0.0
      %4774 = vmatprep.subr.mxu0 0.0
      %4775 = vmatpush1.msra.mxu0 0.0
      %4776 = vmatprep.subr.mxu0 0.0
      %4777 = vmatpush1.msra.mxu0 0.0
      %4778 = vmatprep.subr.mxu0 0.0
      %4779 = vmatpush1.msra.mxu0 0.0
      %4780 = vmatprep.subr.mxu0 0.0
      %4781 = vmatpush1.msra.mxu0 0.0
      %4782 = vmatprep.subr.mxu0 0.0
      %4783 = vmatpush1.msra.mxu0 0.0
      %4784 = vmatprep.subr.mxu0 0.0
      %4785 = vmatpush1.msra.mxu0 0.0
      %4786 = vmatprep.subr.mxu0 0.0
      %4787 = vmatpush1.msra.mxu0 0.0
      %4788 = vmatprep.subr.mxu0 0.0
      %4789 = vmatpush1.msra.mxu0 0.0
      %4790 = vmatprep.subr.mxu0 0.0
      %4791 = vmatpush1.msra.mxu0 0.0
      %4792 = vmatprep.subr.mxu0 0.0
      %4793 = vmatpush1.msra.mxu0 0.0
      %4794 = vmatprep.subr.mxu0 0.0
      %4795 = vmatpush1.msra.mxu0 0.0
      %4796 = vmatprep.subr.mxu0 0.0
      %4797 = vmatpush1.msra.mxu0 0.0
      %4798 = vmatprep.subr.mxu0 0.0
      %4799 = vmatpush1.msra.mxu0 0.0
      %4800 = vmatprep.subr.mxu0 0.0
      %4801 = vmatpush1.msra.mxu0 0.0
      %4802 = vmatprep.subr.mxu0 0.0
      %4803 = vmatpush1.msra.mxu0 0.0
      %4804 = vmatprep.subr.mxu0 0.0
      %4805 = vmatpush1.msra.mxu0 0.0
      %4806 = vmatprep.subr.mxu0 0.0
      %4807 = vmatpush1.msra.mxu0 0.0
      %4808 = vmatprep.subr.mxu0 0.0
      %4809 = vmatpush1.msra.mxu0 0.0
      %4810 = vmatprep.subr.mxu0 0.0
      %4811 = vmatpush1.msra.mxu0 0.0
      %4812 = vmatprep.subr.mxu0 0.0
      %4813 = vmatpush1.msra.mxu0 0.0
      %4814 = vmatprep.mubr.f32.mxu0 0.0
      %4815 = vmatmul.mubr.f32.gmra.mrb[0].mxu0 %v4650
      %v4816 = vpop.f32.mrb[0].mxu0
      %v4817 = vadd.f32 %v4627, %v4816
      %v4818 = vpop.f32.mrb[0].mxu0
      %v4819 = vadd.f32 %v4629, %v4818
      %4820 = vmatprep.mubr.f32.mxu0 0.0
      %4821 = vmatmul.mubr.f32.gmra.mrb[0].mxu0 %v4653
      %v4822 = vpop.f32.mrb[0].mxu0
      %v4823 = vadd.f32 %v4633, %v4822
      %v4824 = vpop.f32.mrb[0].mxu0
      %v4825 = vadd.f32 %v4635, %v4824
      %4826 = vmatprep.mubr.f32.mxu0 0.0
      %4827 = vmatmul.mubr.f32.gmra.mrb[0].mxu0 %v4656
      %v4828 = vpop.f32.mrb[0].mxu0
      %v4829 = vadd.f32 %v4639, %v4828
      %v4830 = vpop.f32.mrb[0].mxu0
      %v4831 = vadd.f32 %v4641, %v4830
      %4832 = vmatprep.mubr.f32.mxu0 0.0
      %4833 = vmatmul.mubr.f32.gmra.mrb[0].mxu0 %v4659
      %v4834 = vpop.f32.mrb[0].mxu0
      %v4835 = vadd.f32 %v4645, %v4834
      %v4836 = vpop.f32.mrb[0].mxu0
      %v4837 = vadd.f32 %v4647, %v4836
      %4838 = vdwg.mxu0
      %4839 = vrot.lane.b32.xlu0 %v4331, 30
      %v4840 = vpop.permute.xlu0 %4839
      %4841 = vrot.lane.b32.xlu0 %v4335, 30
      %v4842 = vpop.permute.xlu0 %4841
      %4843 = vrot.lane.b32.xlu0 %v4332, 30
      %v4844 = vpop.permute.xlu0 %4843
      %4845 = vrot.lane.b32.xlu0 %v4336, 30
      %v4846 = vpop.permute.xlu0 %4845
      %4847 = vrot.lane.b32.xlu0 %v4333, 30
      %v4848 = vpop.permute.xlu0 %4847
      %4849 = vrot.lane.b32.xlu0 %v4337, 30
      %v4850 = vpop.permute.xlu0 %4849
      %4851 = vrot.lane.b32.xlu0 %v4334, 30
      %v4852 = vpop.permute.xlu0 %4851
      %4853 = vrot.lane.b32.xlu0 %v4338, 30
      %v4854 = vpop.permute.xlu0 %4853
      %vm4855 = vcmp.lt.s32.totalorder %v496, 30
      %v4856 = vsel %vm4855, %v4848, %v4852
      %v4857 = vsel %vm4855, %v4850, %v4854
      %v4858 = vsel %vm4855, %v4844, %v4848
      %v4859 = vsel %vm4855, %v4846, %v4850
      %v4860 = vsel %vm4855, %v4840, %v4844
      %v4861 = vsel %vm4855, %v4842, %v4846
      %v4862 = vsel %vm4855, %v4852, %v4840
      %v4863 = vsel %vm4855, %v4854, %v4842
      %s4864 = scalar_lea.vmem %s11, 8
      %v4865 = vld [vmem:[%s4864] sm:$0xf]
      %v4867 = vlaneseq
      %v4868 = vshrl.u32 %v4867, 7
      %v4869 = vsub.s32 0, %v4868
      %v4870 = vrot.slane %v4865, %v4869
      %v4871 = vlaneseq
      %v4872 = vshrl.u32 %v4871, 7
      %v4873 = vsub.s32 1, %v4872
      %v4874 = vrot.slane %v4865, %v4873
      %v4875 = vlaneseq
      %v4876 = vshrl.u32 %v4875, 7
      %v4877 = vsub.s32 2, %v4876
      %v4878 = vrot.slane %v4865, %v4877
      %v4879 = vlaneseq
      %v4880 = vshrl.u32 %v4879, 7
      %v4881 = vsub.s32 3, %v4880
      %v4882 = vrot.slane %v4865, %v4881
      %v4887 = vmul.f32 %v4862, %v4870
      %v4888 = vmul.f32 %v4860, %v4874
      %v4889 = vmul.f32 %v4858, %v4878
      %v4890 = vmul.f32 %v4856, %v4882
      %v4891 = vmul.f32 %v4863, %v4870
      %v4892 = vmul.f32 %v4861, %v4874
      %v4893 = vmul.f32 %v4859, %v4878
      %v4894 = vmul.f32 %v4857, %v4882
      %s4895 = scalar_lea.vmem %s8, 64
      %v4896 = vld [vmem:[%s4895] sm:$0xff]
      %v4897 = vld [vmem:[%s4895 + $0x8] sm:$0xff]
      %v4898 = vld [vmem:[%s4895 + $0x10] sm:$0xff]
      %v4899 = vld [vmem:[%s4895 + $0x18] sm:$0xff]
      %v4901 = vsel %vm2537, %v4896, 0
      %v4904 = vsel %vm2537, %v4897, 0
      %v4907 = vsel %vm2537, %v4898, 0
      %v4910 = vsel %vm2537, %v4899, 0
      %4912 = vmatprep.subr.mxu0 %v4888
      %4913 = vmatpush1.msra.mxu0 %v4887
      %4914 = vmatprep.subr.mxu0 %v4892
      %4915 = vmatpush1.msra.mxu0 %v4891
      %4916 = vmatprep.subr.mxu0 0.0
      %4917 = vmatpush1.msra.mxu0 0.0
      %4918 = vmatprep.subr.mxu0 0.0
      %4919 = vmatpush1.msra.mxu0 0.0
      %4920 = vmatprep.subr.mxu0 0.0
      %4921 = vmatpush1.msra.mxu0 0.0
      %4922 = vmatprep.subr.mxu0 0.0
      %4923 = vmatpush1.msra.mxu0 0.0
      %4924 = vmatprep.subr.mxu0 0.0
      %4925 = vmatpush1.msra.mxu0 0.0
      %4926 = vmatprep.subr.mxu0 0.0
      %4927 = vmatpush1.msra.mxu0 0.0
      %4928 = vmatprep.subr.mxu0 0.0
      %4929 = vmatpush1.msra.mxu0 0.0
      %4930 = vmatprep.subr.mxu0 0.0
      %4931 = vmatpush1.msra.mxu0 0.0
      %4932 = vmatprep.subr.mxu0 0.0
      %4933 = vmatpush1.msra.mxu0 0.0
      %4934 = vmatprep.subr.mxu0 0.0
      %4935 = vmatpush1.msra.mxu0 0.0
      %4936 = vmatprep.subr.mxu0 0.0
      %4937 = vmatpush1.msra.mxu0 0.0
      %4938 = vmatprep.subr.mxu0 0.0
      %4939 = vmatpush1.msra.mxu0 0.0
      %4940 = vmatprep.subr.mxu0 0.0
      %4941 = vmatpush1.msra.mxu0 0.0
      %4942 = vmatprep.subr.mxu0 0.0
      %4943 = vmatpush1.msra.mxu0 0.0
      %4944 = vmatprep.subr.mxu0 0.0
      %4945 = vmatpush1.msra.mxu0 0.0
      %4946 = vmatprep.subr.mxu0 0.0
      %4947 = vmatpush1.msra.mxu0 0.0
      %4948 = vmatprep.subr.mxu0 0.0
      %4949 = vmatpush1.msra.mxu0 0.0
      %4950 = vmatprep.subr.mxu0 0.0
      %4951 = vmatpush1.msra.mxu0 0.0
      %4952 = vmatprep.subr.mxu0 0.0
      %4953 = vmatpush1.msra.mxu0 0.0
      %4954 = vmatprep.subr.mxu0 0.0
      %4955 = vmatpush1.msra.mxu0 0.0
      %4956 = vmatprep.subr.mxu0 0.0
      %4957 = vmatpush1.msra.mxu0 0.0
      %4958 = vmatprep.subr.mxu0 0.0
      %4959 = vmatpush1.msra.mxu0 0.0
      %4960 = vmatprep.subr.mxu0 0.0
      %4961 = vmatpush1.msra.mxu0 0.0
      %4962 = vmatprep.subr.mxu0 0.0
      %4963 = vmatpush1.msra.mxu0 0.0
      %4964 = vmatprep.subr.mxu0 0.0
      %4965 = vmatpush1.msra.mxu0 0.0
      %4966 = vmatprep.subr.mxu0 0.0
      %4967 = vmatpush1.msra.mxu0 0.0
      %4968 = vmatprep.subr.mxu0 0.0
      %4969 = vmatpush1.msra.mxu0 0.0
      %4970 = vmatprep.subr.mxu0 0.0
      %4971 = vmatpush1.msra.mxu0 0.0
      %4972 = vmatprep.subr.mxu0 0.0
      %4973 = vmatpush1.msra.mxu0 0.0
      %4974 = vmatprep.subr.mxu0 0.0
      %4975 = vmatpush1.msra.mxu0 0.0
      %4976 = vmatprep.mubr.f32.mxu0 0.0
      %4977 = vmatmul.mubr.f32.gmra.mrb[0].mxu0 %v4901
      %v4978 = vpop.f32.mrb[0].mxu0
      %v4979 = vadd.f32 0.0, %v4978
      %v4980 = vpop.f32.mrb[0].mxu0
      %v4981 = vadd.f32 0.0, %v4980
      %4982 = vmatprep.mubr.f32.mxu0 0.0
      %4983 = vmatmul.mubr.f32.gmra.mrb[0].mxu0 %v4904
      %v4984 = vpop.f32.mrb[0].mxu0
      %v4985 = vadd.f32 0.0, %v4984
      %v4986 = vpop.f32.mrb[0].mxu0
      %v4987 = vadd.f32 0.0, %v4986
      %4988 = vmatprep.mubr.f32.mxu0 0.0
      %4989 = vmatmul.mubr.f32.gmra.mrb[0].mxu0 %v4907
      %v4990 = vpop.f32.mrb[0].mxu0
      %v4991 = vadd.f32 0.0, %v4990
      %v4992 = vpop.f32.mrb[0].mxu0
      %v4993 = vadd.f32 0.0, %v4992
      %4994 = vmatprep.mubr.f32.mxu0 0.0
      %4995 = vmatmul.mubr.f32.gmra.mrb[0].mxu0 %v4910
      %v4996 = vpop.f32.mrb[0].mxu0
      %v4997 = vadd.f32 0.0, %v4996
      %v4998 = vpop.f32.mrb[0].mxu0
      %v4999 = vadd.f32 0.0, %v4998
      %5000 = vdwg.mxu0
      %5001 = vmatprep.subr.mxu0 %v4890
      %5002 = vmatpush1.msra.mxu0 %v4889
      %5003 = vmatprep.subr.mxu0 %v4894
      %5004 = vmatpush1.msra.mxu0 %v4893
      %5005 = vmatprep.subr.mxu0 0.0
      %5006 = vmatpush1.msra.mxu0 0.0
      %5007 = vmatprep.subr.mxu0 0.0
      %5008 = vmatpush1.msra.mxu0 0.0
      %5009 = vmatprep.subr.mxu0 0.0
      %5010 = vmatpush1.msra.mxu0 0.0
      %5011 = vmatprep.subr.mxu0 0.0
      %5012 = vmatpush1.msra.mxu0 0.0
      %5013 = vmatprep.subr.mxu0 0.0
      %5014 = vmatpush1.msra.mxu0 0.0
      %5015 = vmatprep.subr.mxu0 0.0
      %5016 = vmatpush1.msra.mxu0 0.0
      %5017 = vmatprep.subr.mxu0 0.0
      %5018 = vmatpush1.msra.mxu0 0.0
      %5019 = vmatprep.subr.mxu0 0.0
      %5020 = vmatpush1.msra.mxu0 0.0
      %5021 = vmatprep.subr.mxu0 0.0
      %5022 = vmatpush1.msra.mxu0 0.0
      %5023 = vmatprep.subr.mxu0 0.0
      %5024 = vmatpush1.msra.mxu0 0.0
      %5025 = vmatprep.subr.mxu0 0.0
      %5026 = vmatpush1.msra.mxu0 0.0
      %5027 = vmatprep.subr.mxu0 0.0
      %5028 = vmatpush1.msra.mxu0 0.0
      %5029 = vmatprep.subr.mxu0 0.0
      %5030 = vmatpush1.msra.mxu0 0.0
      %5031 = vmatprep.subr.mxu0 0.0
      %5032 = vmatpush1.msra.mxu0 0.0
      %5033 = vmatprep.subr.mxu0 0.0
      %5034 = vmatpush1.msra.mxu0 0.0
      %5035 = vmatprep.subr.mxu0 0.0
      %5036 = vmatpush1.msra.mxu0 0.0
      %5037 = vmatprep.subr.mxu0 0.0
      %5038 = vmatpush1.msra.mxu0 0.0
      %5039 = vmatprep.subr.mxu0 0.0
      %5040 = vmatpush1.msra.mxu0 0.0
      %5041 = vmatprep.subr.mxu0 0.0
      %5042 = vmatpush1.msra.mxu0 0.0
      %5043 = vmatprep.subr.mxu0 0.0
      %5044 = vmatpush1.msra.mxu0 0.0
      %5045 = vmatprep.subr.mxu0 0.0
      %5046 = vmatpush1.msra.mxu0 0.0
      %5047 = vmatprep.subr.mxu0 0.0
      %5048 = vmatpush1.msra.mxu0 0.0
      %5049 = vmatprep.subr.mxu0 0.0
      %5050 = vmatpush1.msra.mxu0 0.0
      %5051 = vmatprep.subr.mxu0 0.0
      %5052 = vmatpush1.msra.mxu0 0.0
      %5053 = vmatprep.subr.mxu0 0.0
      %5054 = vmatpush1.msra.mxu0 0.0
      %5055 = vmatprep.subr.mxu0 0.0
      %5056 = vmatpush1.msra.mxu0 0.0
      %5057 = vmatprep.subr.mxu0 0.0
      %5058 = vmatpush1.msra.mxu0 0.0
      %5059 = vmatprep.subr.mxu0 0.0
      %5060 = vmatpush1.msra.mxu0 0.0
      %5061 = vmatprep.subr.mxu0 0.0
      %5062 = vmatpush1.msra.mxu0 0.0
      %5063 = vmatprep.subr.mxu0 0.0
      %5064 = vmatpush1.msra.mxu0 0.0
      %5065 = vmatprep.mubr.f32.mxu0 0.0
      %5066 = vmatmul.mubr.f32.gmra.mrb[0].mxu0 %v4901
      %v5067 = vpop.f32.mrb[0].mxu0
      %v5068 = vadd.f32 0.0, %v5067
      %v5069 = vpop.f32.mrb[0].mxu0
      %v5070 = vadd.f32 0.0, %v5069
      %5071 = vmatprep.mubr.f32.mxu0 0.0
      %5072 = vmatmul.mubr.f32.gmra.mrb[0].mxu0 %v4904
      %v5073 = vpop.f32.mrb[0].mxu0
      %v5074 = vadd.f32 0.0, %v5073
      %v5075 = vpop.f32.mrb[0].mxu0
      %v5076 = vadd.f32 0.0, %v5075
      %5077 = vmatprep.mubr.f32.mxu0 0.0
      %5078 = vmatmul.mubr.f32.gmra.mrb[0].mxu0 %v4907
      %v5079 = vpop.f32.mrb[0].mxu0
      %v5080 = vadd.f32 0.0, %v5079
      %v5081 = vpop.f32.mrb[0].mxu0
      %v5082 = vadd.f32 0.0, %v5081
      %5083 = vmatprep.mubr.f32.mxu0 0.0
      %5084 = vmatmul.mubr.f32.gmra.mrb[0].mxu0 %v4910
      %v5085 = vpop.f32.mrb[0].mxu0
      %v5086 = vadd.f32 0.0, %v5085
      %v5087 = vpop.f32.mrb[0].mxu0
      %v5088 = vadd.f32 0.0, %v5087
      %5089 = vdwg.mxu0
      %v5090 = vadd.f32 %v4728, %v4979
      %v5091 = vadd.f32 %v4730, %v4981
      %v5092 = vadd.f32 %v4817, %v5068
      %v5093 = vadd.f32 %v4819, %v5070
      %v5094 = vadd.f32 %v4734, %v4985
      %v5095 = vadd.f32 %v4736, %v4987
      %v5096 = vadd.f32 %v4823, %v5074
      %v5097 = vadd.f32 %v4825, %v5076
      %v5098 = vadd.f32 %v4740, %v4991
      %v5099 = vadd.f32 %v4742, %v4993
      %v5100 = vadd.f32 %v4829, %v5080
      %v5101 = vadd.f32 %v4831, %v5082
      %v5102 = vadd.f32 %v4746, %v4997
      %v5103 = vadd.f32 %v4748, %v4999
      %v5104 = vadd.f32 %v4835, %v5086
      %v5105 = vadd.f32 %v4837, %v5088
      %5106 = vrot.lane.b32.xlu0 %v4331, 2
      %v5107 = vpop.permute.xlu0 %5106
      %5108 = vrot.lane.b32.xlu0 %v4335, 2
      %v5109 = vpop.permute.xlu0 %5108
      %5110 = vrot.lane.b32.xlu0 %v4332, 2
      %v5111 = vpop.permute.xlu0 %5110
      %5112 = vrot.lane.b32.xlu0 %v4336, 2
      %v5113 = vpop.permute.xlu0 %5112
      %5114 = vrot.lane.b32.xlu0 %v4333, 2
      %v5115 = vpop.permute.xlu0 %5114
      %5116 = vrot.lane.b32.xlu0 %v4337, 2
      %v5117 = vpop.permute.xlu0 %5116
      %5118 = vrot.lane.b32.xlu0 %v4334, 2
      %v5119 = vpop.permute.xlu0 %5118
      %5120 = vrot.lane.b32.xlu0 %v4338, 2
      %v5121 = vpop.permute.xlu0 %5120
      %vm5122 = vcmp.lt.s32.totalorder %v496, 2
      %v5123 = vsel %vm5122, %v5115, %v5119
      %v5124 = vsel %vm5122, %v5117, %v5121
      %v5125 = vsel %vm5122, %v5111, %v5115
      %v5126 = vsel %vm5122, %v5113, %v5117
      %v5127 = vsel %vm5122, %v5107, %v5111
      %v5128 = vsel %vm5122, %v5109, %v5113
      %v5129 = vsel %vm5122, %v5119, %v5107
      %v5130 = vsel %vm5122, %v5121, %v5109
      %s5131 = scalar_lea.vmem %s11, 12
      %v5132 = vld [vmem:[%s5131] sm:$0xf]
      %v5134 = vlaneseq
      %v5135 = vshrl.u32 %v5134, 7
      %v5136 = vsub.s32 0, %v5135
      %v5137 = vrot.slane %v5132, %v5136
      %v5138 = vlaneseq
      %v5139 = vshrl.u32 %v5138, 7
      %v5140 = vsub.s32 1, %v5139
      %v5141 = vrot.slane %v5132, %v5140
      %v5142 = vlaneseq
      %v5143 = vshrl.u32 %v5142, 7
      %v5144 = vsub.s32 2, %v5143
      %v5145 = vrot.slane %v5132, %v5144
      %v5146 = vlaneseq
      %v5147 = vshrl.u32 %v5146, 7
      %v5148 = vsub.s32 3, %v5147
      %v5149 = vrot.slane %v5132, %v5148
      %v5154 = vmul.f32 %v5129, %v5137
      %v5155 = vmul.f32 %v5127, %v5141
      %v5156 = vmul.f32 %v5125, %v5145
      %v5157 = vmul.f32 %v5123, %v5149
      %v5158 = vmul.f32 %v5130, %v5137
      %v5159 = vmul.f32 %v5128, %v5141
      %v5160 = vmul.f32 %v5126, %v5145
      %v5161 = vmul.f32 %v5124, %v5149
      %s5162 = scalar_lea.vmem %s8, 96
      %v5163 = vld [vmem:[%s5162] sm:$0xff]
      %v5164 = vld [vmem:[%s5162 + $0x8] sm:$0xff]
      %v5165 = vld [vmem:[%s5162 + $0x10] sm:$0xff]
      %v5166 = vld [vmem:[%s5162 + $0x18] sm:$0xff]
      %v5168 = vsel %vm2537, %v5163, 0
      %v5171 = vsel %vm2537, %v5164, 0
      %v5174 = vsel %vm2537, %v5165, 0
      %v5177 = vsel %vm2537, %v5166, 0
      %5179 = vmatprep.subr.mxu0 %v5155
      %5180 = vmatpush1.msra.mxu0 %v5154
      %5181 = vmatprep.subr.mxu0 %v5159
      %5182 = vmatpush1.msra.mxu0 %v5158
      %5183 = vmatprep.subr.mxu0 0.0
      %5184 = vmatpush1.msra.mxu0 0.0
      %5185 = vmatprep.subr.mxu0 0.0
      %5186 = vmatpush1.msra.mxu0 0.0
      %5187 = vmatprep.subr.mxu0 0.0
      %5188 = vmatpush1.msra.mxu0 0.0
      %5189 = vmatprep.subr.mxu0 0.0
      %5190 = vmatpush1.msra.mxu0 0.0
      %5191 = vmatprep.subr.mxu0 0.0
      %5192 = vmatpush1.msra.mxu0 0.0
      %5193 = vmatprep.subr.mxu0 0.0
      %5194 = vmatpush1.msra.mxu0 0.0
      %5195 = vmatprep.subr.mxu0 0.0
      %5196 = vmatpush1.msra.mxu0 0.0
      %5197 = vmatprep.subr.mxu0 0.0
      %5198 = vmatpush1.msra.mxu0 0.0
      %5199 = vmatprep.subr.mxu0 0.0
      %5200 = vmatpush1.msra.mxu0 0.0
      %5201 = vmatprep.subr.mxu0 0.0
      %5202 = vmatpush1.msra.mxu0 0.0
      %5203 = vmatprep.subr.mxu0 0.0
      %5204 = vmatpush1.msra.mxu0 0.0
      %5205 = vmatprep.subr.mxu0 0.0
      %5206 = vmatpush1.msra.mxu0 0.0
      %5207 = vmatprep.subr.mxu0 0.0
      %5208 = vmatpush1.msra.mxu0 0.0
      %5209 = vmatprep.subr.mxu0 0.0
      %5210 = vmatpush1.msra.mxu0 0.0
      %5211 = vmatprep.subr.mxu0 0.0
      %5212 = vmatpush1.msra.mxu0 0.0
      %5213 = vmatprep.subr.mxu0 0.0
      %5214 = vmatpush1.msra.mxu0 0.0
      %5215 = vmatprep.subr.mxu0 0.0
      %5216 = vmatpush1.msra.mxu0 0.0
      %5217 = vmatprep.subr.mxu0 0.0
      %5218 = vmatpush1.msra.mxu0 0.0
      %5219 = vmatprep.subr.mxu0 0.0
      %5220 = vmatpush1.msra.mxu0 0.0
      %5221 = vmatprep.subr.mxu0 0.0
      %5222 = vmatpush1.msra.mxu0 0.0
      %5223 = vmatprep.subr.mxu0 0.0
      %5224 = vmatpush1.msra.mxu0 0.0
      %5225 = vmatprep.subr.mxu0 0.0
      %5226 = vmatpush1.msra.mxu0 0.0
      %5227 = vmatprep.subr.mxu0 0.0
      %5228 = vmatpush1.msra.mxu0 0.0
      %5229 = vmatprep.subr.mxu0 0.0
      %5230 = vmatpush1.msra.mxu0 0.0
      %5231 = vmatprep.subr.mxu0 0.0
      %5232 = vmatpush1.msra.mxu0 0.0
      %5233 = vmatprep.subr.mxu0 0.0
      %5234 = vmatpush1.msra.mxu0 0.0
      %5235 = vmatprep.subr.mxu0 0.0
      %5236 = vmatpush1.msra.mxu0 0.0
      %5237 = vmatprep.subr.mxu0 0.0
      %5238 = vmatpush1.msra.mxu0 0.0
      %5239 = vmatprep.subr.mxu0 0.0
      %5240 = vmatpush1.msra.mxu0 0.0
      %5241 = vmatprep.subr.mxu0 0.0
      %5242 = vmatpush1.msra.mxu0 0.0
      %5243 = vmatprep.mubr.f32.mxu0 0.0
      %5244 = vmatmul.mubr.f32.gmra.mrb[0].mxu0 %v5168
      %v5245 = vpop.f32.mrb[0].mxu0
      %v5246 = vadd.f32 0.0, %v5245
      %v5247 = vpop.f32.mrb[0].mxu0
      %v5248 = vadd.f32 0.0, %v5247
      %5249 = vmatprep.mubr.f32.mxu0 0.0
      %5250 = vmatmul.mubr.f32.gmra.mrb[0].mxu0 %v5171
      %v5251 = vpop.f32.mrb[0].mxu0
      %v5252 = vadd.f32 0.0, %v5251
      %v5253 = vpop.f32.mrb[0].mxu0
      %v5254 = vadd.f32 0.0, %v5253
      %5255 = vmatprep.mubr.f32.mxu0 0.0
      %5256 = vmatmul.mubr.f32.gmra.mrb[0].mxu0 %v5174
      %v5257 = vpop.f32.mrb[0].mxu0
      %v5258 = vadd.f32 0.0, %v5257
      %v5259 = vpop.f32.mrb[0].mxu0
      %v5260 = vadd.f32 0.0, %v5259
      %5261 = vmatprep.mubr.f32.mxu0 0.0
      %5262 = vmatmul.mubr.f32.gmra.mrb[0].mxu0 %v5177
      %v5263 = vpop.f32.mrb[0].mxu0
      %v5264 = vadd.f32 0.0, %v5263
      %v5265 = vpop.f32.mrb[0].mxu0
      %v5266 = vadd.f32 0.0, %v5265
      %5267 = vdwg.mxu0
      %5268 = vmatprep.subr.mxu0 %v5157
      %5269 = vmatpush1.msra.mxu0 %v5156
      %5270 = vmatprep.subr.mxu0 %v5161
      %5271 = vmatpush1.msra.mxu0 %v5160
      %5272 = vmatprep.subr.mxu0 0.0
      %5273 = vmatpush1.msra.mxu0 0.0
      %5274 = vmatprep.subr.mxu0 0.0
      %5275 = vmatpush1.msra.mxu0 0.0
      %5276 = vmatprep.subr.mxu0 0.0
      %5277 = vmatpush1.msra.mxu0 0.0
      %5278 = vmatprep.subr.mxu0 0.0
      %5279 = vmatpush1.msra.mxu0 0.0
      %5280 = vmatprep.subr.mxu0 0.0
      %5281 = vmatpush1.msra.mxu0 0.0
      %5282 = vmatprep.subr.mxu0 0.0
      %5283 = vmatpush1.msra.mxu0 0.0
      %5284 = vmatprep.subr.mxu0 0.0
      %5285 = vmatpush1.msra.mxu0 0.0
      %5286 = vmatprep.subr.mxu0 0.0
      %5287 = vmatpush1.msra.mxu0 0.0
      %5288 = vmatprep.subr.mxu0 0.0
      %5289 = vmatpush1.msra.mxu0 0.0
      %5290 = vmatprep.subr.mxu0 0.0
      %5291 = vmatpush1.msra.mxu0 0.0
      %5292 = vmatprep.subr.mxu0 0.0
      %5293 = vmatpush1.msra.mxu0 0.0
      %5294 = vmatprep.subr.mxu0 0.0
      %5295 = vmatpush1.msra.mxu0 0.0
      %5296 = vmatprep.subr.mxu0 0.0
      %5297 = vmatpush1.msra.mxu0 0.0
      %5298 = vmatprep.subr.mxu0 0.0
      %5299 = vmatpush1.msra.mxu0 0.0
      %5300 = vmatprep.subr.mxu0 0.0
      %5301 = vmatpush1.msra.mxu0 0.0
      %5302 = vmatprep.subr.mxu0 0.0
      %5303 = vmatpush1.msra.mxu0 0.0
      %5304 = vmatprep.subr.mxu0 0.0
      %5305 = vmatpush1.msra.mxu0 0.0
      %5306 = vmatprep.subr.mxu0 0.0
      %5307 = vmatpush1.msra.mxu0 0.0
      %5308 = vmatprep.subr.mxu0 0.0
      %5309 = vmatpush1.msra.mxu0 0.0
      %5310 = vmatprep.subr.mxu0 0.0
      %5311 = vmatpush1.msra.mxu0 0.0
      %5312 = vmatprep.subr.mxu0 0.0
      %5313 = vmatpush1.msra.mxu0 0.0
      %5314 = vmatprep.subr.mxu0 0.0
      %5315 = vmatpush1.msra.mxu0 0.0
      %5316 = vmatprep.subr.mxu0 0.0
      %5317 = vmatpush1.msra.mxu0 0.0
      %5318 = vmatprep.subr.mxu0 0.0
      %5319 = vmatpush1.msra.mxu0 0.0
      %5320 = vmatprep.subr.mxu0 0.0
      %5321 = vmatpush1.msra.mxu0 0.0
      %5322 = vmatprep.subr.mxu0 0.0
      %5323 = vmatpush1.msra.mxu0 0.0
      %5324 = vmatprep.subr.mxu0 0.0
      %5325 = vmatpush1.msra.mxu0 0.0
      %5326 = vmatprep.subr.mxu0 0.0
      %5327 = vmatpush1.msra.mxu0 0.0
      %5328 = vmatprep.subr.mxu0 0.0
      %5329 = vmatpush1.msra.mxu0 0.0
      %5330 = vmatprep.subr.mxu0 0.0
      %5331 = vmatpush1.msra.mxu0 0.0
      %5332 = vmatprep.mubr.f32.mxu0 0.0
      %5333 = vmatmul.mubr.f32.gmra.mrb[0].mxu0 %v5168
      %v5334 = vpop.f32.mrb[0].mxu0
      %v5335 = vadd.f32 0.0, %v5334
      %v5336 = vpop.f32.mrb[0].mxu0
      %v5337 = vadd.f32 0.0, %v5336
      %5338 = vmatprep.mubr.f32.mxu0 0.0
      %5339 = vmatmul.mubr.f32.gmra.mrb[0].mxu0 %v5171
      %v5340 = vpop.f32.mrb[0].mxu0
      %v5341 = vadd.f32 0.0, %v5340
      %v5342 = vpop.f32.mrb[0].mxu0
      %v5343 = vadd.f32 0.0, %v5342
      %5344 = vmatprep.mubr.f32.mxu0 0.0
      %5345 = vmatmul.mubr.f32.gmra.mrb[0].mxu0 %v5174
      %v5346 = vpop.f32.mrb[0].mxu0
      %v5347 = vadd.f32 0.0, %v5346
      %v5348 = vpop.f32.mrb[0].mxu0
      %v5349 = vadd.f32 0.0, %v5348
      %5350 = vmatprep.mubr.f32.mxu0 0.0
      %5351 = vmatmul.mubr.f32.gmra.mrb[0].mxu0 %v5177
      %v5352 = vpop.f32.mrb[0].mxu0
      %v5353 = vadd.f32 0.0, %v5352
      %v5354 = vpop.f32.mrb[0].mxu0
      %v5355 = vadd.f32 0.0, %v5354
      %5356 = vdwg.mxu0
      %v5357 = vadd.f32 %v5090, %v5246
      %v5358 = vadd.f32 %v5091, %v5248
      %v5359 = vadd.f32 %v5092, %v5335
      %v5360 = vadd.f32 %v5093, %v5337
      %v5361 = vadd.f32 %v5094, %v5252
      %v5362 = vadd.f32 %v5095, %v5254
      %v5363 = vadd.f32 %v5096, %v5341
      %v5364 = vadd.f32 %v5097, %v5343
      %v5365 = vadd.f32 %v5098, %v5258
      %v5366 = vadd.f32 %v5099, %v5260
      %v5367 = vadd.f32 %v5100, %v5347
      %v5368 = vadd.f32 %v5101, %v5349
      %v5369 = vadd.f32 %v5102, %v5264
      %v5370 = vadd.f32 %v5103, %v5266
      %v5371 = vadd.f32 %v5104, %v5353
      %v5372 = vadd.f32 %v5105, %v5355
      %s5373 = scalar_lea.vmem %s8, 128
      %v5374 = vld [vmem:[%s5373] sm:$0xff]
      %v5375 = vld [vmem:[%s5373 + $0x8] sm:$0xff]
      %v5376 = vld [vmem:[%s5373 + $0x10] sm:$0xff]
      %v5377 = vld [vmem:[%s5373 + $0x18] sm:$0xff]
      %v5379 = vsel %vm2537, %v5374, 0
      %v5382 = vsel %vm2537, %v5375, 0
      %v5385 = vsel %vm2537, %v5376, 0
      %v5388 = vsel %vm2537, %v5377, 0
      %5390 = vmatprep.subr.mxu0 %v4332
      %5391 = vmatpush1.msra.mxu0 %v4331
      %5392 = vmatprep.subr.mxu0 %v4336
      %5393 = vmatpush1.msra.mxu0 %v4335
      %5394 = vmatprep.subr.mxu0 0.0
      %5395 = vmatpush1.msra.mxu0 0.0
      %5396 = vmatprep.subr.mxu0 0.0
      %5397 = vmatpush1.msra.mxu0 0.0
      %5398 = vmatprep.subr.mxu0 0.0
      %5399 = vmatpush1.msra.mxu0 0.0
      %5400 = vmatprep.subr.mxu0 0.0
      %5401 = vmatpush1.msra.mxu0 0.0
      %5402 = vmatprep.subr.mxu0 0.0
      %5403 = vmatpush1.msra.mxu0 0.0
      %5404 = vmatprep.subr.mxu0 0.0
      %5405 = vmatpush1.msra.mxu0 0.0
      %5406 = vmatprep.subr.mxu0 0.0
      %5407 = vmatpush1.msra.mxu0 0.0
      %5408 = vmatprep.subr.mxu0 0.0
      %5409 = vmatpush1.msra.mxu0 0.0
      %5410 = vmatprep.subr.mxu0 0.0
      %5411 = vmatpush1.msra.mxu0 0.0
      %5412 = vmatprep.subr.mxu0 0.0
      %5413 = vmatpush1.msra.mxu0 0.0
      %5414 = vmatprep.subr.mxu0 0.0
      %5415 = vmatpush1.msra.mxu0 0.0
      %5416 = vmatprep.subr.mxu0 0.0
      %5417 = vmatpush1.msra.mxu0 0.0
      %5418 = vmatprep.subr.mxu0 0.0
      %5419 = vmatpush1.msra.mxu0 0.0
      %5420 = vmatprep.subr.mxu0 0.0
      %5421 = vmatpush1.msra.mxu0 0.0
      %5422 = vmatprep.subr.mxu0 0.0
      %5423 = vmatpush1.msra.mxu0 0.0
      %5424 = vmatprep.subr.mxu0 0.0
      %5425 = vmatpush1.msra.mxu0 0.0
      %5426 = vmatprep.subr.mxu0 0.0
      %5427 = vmatpush1.msra.mxu0 0.0
      %5428 = vmatprep.subr.mxu0 0.0
      %5429 = vmatpush1.msra.mxu0 0.0
      %5430 = vmatprep.subr.mxu0 0.0
      %5431 = vmatpush1.msra.mxu0 0.0
      %5432 = vmatprep.subr.mxu0 0.0
      %5433 = vmatpush1.msra.mxu0 0.0
      %5434 = vmatprep.subr.mxu0 0.0
      %5435 = vmatpush1.msra.mxu0 0.0
      %5436 = vmatprep.subr.mxu0 0.0
      %5437 = vmatpush1.msra.mxu0 0.0
      %5438 = vmatprep.subr.mxu0 0.0
      %5439 = vmatpush1.msra.mxu0 0.0
      %5440 = vmatprep.subr.mxu0 0.0
      %5441 = vmatpush1.msra.mxu0 0.0
      %5442 = vmatprep.subr.mxu0 0.0
      %5443 = vmatpush1.msra.mxu0 0.0
      %5444 = vmatprep.subr.mxu0 0.0
      %5445 = vmatpush1.msra.mxu0 0.0
      %5446 = vmatprep.subr.mxu0 0.0
      %5447 = vmatpush1.msra.mxu0 0.0
      %5448 = vmatprep.subr.mxu0 0.0
      %5449 = vmatpush1.msra.mxu0 0.0
      %5450 = vmatprep.subr.mxu0 0.0
      %5451 = vmatpush1.msra.mxu0 0.0
      %5452 = vmatprep.subr.mxu0 0.0
      %5453 = vmatpush1.msra.mxu0 0.0
      %5454 = vmatprep.mubr.f32.mxu0 0.0
      %5455 = vmatmul.mubr.f32.gmra.mrb[0].mxu0 %v5379
      %v5456 = vpop.f32.mrb[0].mxu0
      %v5457 = vadd.f32 0.0, %v5456
      %v5458 = vpop.f32.mrb[0].mxu0
      %v5459 = vadd.f32 0.0, %v5458
      %5460 = vmatprep.mubr.f32.mxu0 0.0
      %5461 = vmatmul.mubr.f32.gmra.mrb[0].mxu0 %v5382
      %v5462 = vpop.f32.mrb[0].mxu0
      %v5463 = vadd.f32 0.0, %v5462
      %v5464 = vpop.f32.mrb[0].mxu0
      %v5465 = vadd.f32 0.0, %v5464
      %5466 = vmatprep.mubr.f32.mxu0 0.0
      %5467 = vmatmul.mubr.f32.gmra.mrb[0].mxu0 %v5385
      %v5468 = vpop.f32.mrb[0].mxu0
      %v5469 = vadd.f32 0.0, %v5468
      %v5470 = vpop.f32.mrb[0].mxu0
      %v5471 = vadd.f32 0.0, %v5470
      %5472 = vmatprep.mubr.f32.mxu0 0.0
      %5473 = vmatmul.mubr.f32.gmra.mrb[0].mxu0 %v5388
      %v5474 = vpop.f32.mrb[0].mxu0
      %v5475 = vadd.f32 0.0, %v5474
      %v5476 = vpop.f32.mrb[0].mxu0
      %v5477 = vadd.f32 0.0, %v5476
      %5478 = vdwg.mxu0
      %5479 = vmatprep.subr.mxu0 %v4334
      %5480 = vmatpush1.msra.mxu0 %v4333
      %5481 = vmatprep.subr.mxu0 %v4338
      %5482 = vmatpush1.msra.mxu0 %v4337
      %5483 = vmatprep.subr.mxu0 0.0
      %5484 = vmatpush1.msra.mxu0 0.0
      %5485 = vmatprep.subr.mxu0 0.0
      %5486 = vmatpush1.msra.mxu0 0.0
      %5487 = vmatprep.subr.mxu0 0.0
      %5488 = vmatpush1.msra.mxu0 0.0
      %5489 = vmatprep.subr.mxu0 0.0
      %5490 = vmatpush1.msra.mxu0 0.0
      %5491 = vmatprep.subr.mxu0 0.0
      %5492 = vmatpush1.msra.mxu0 0.0
      %5493 = vmatprep.subr.mxu0 0.0
      %5494 = vmatpush1.msra.mxu0 0.0
      %5495 = vmatprep.subr.mxu0 0.0
      %5496 = vmatpush1.msra.mxu0 0.0
      %5497 = vmatprep.subr.mxu0 0.0
      %5498 = vmatpush1.msra.mxu0 0.0
      %5499 = vmatprep.subr.mxu0 0.0
      %5500 = vmatpush1.msra.mxu0 0.0
      %5501 = vmatprep.subr.mxu0 0.0
      %5502 = vmatpush1.msra.mxu0 0.0
      %5503 = vmatprep.subr.mxu0 0.0
      %5504 = vmatpush1.msra.mxu0 0.0
      %5505 = vmatprep.subr.mxu0 0.0
      %5506 = vmatpush1.msra.mxu0 0.0
      %5507 = vmatprep.subr.mxu0 0.0
      %5508 = vmatpush1.msra.mxu0 0.0
      %5509 = vmatprep.subr.mxu0 0.0
      %5510 = vmatpush1.msra.mxu0 0.0
      %5511 = vmatprep.subr.mxu0 0.0
      %5512 = vmatpush1.msra.mxu0 0.0
      %5513 = vmatprep.subr.mxu0 0.0
      %5514 = vmatpush1.msra.mxu0 0.0
      %5515 = vmatprep.subr.mxu0 0.0
      %5516 = vmatpush1.msra.mxu0 0.0
      %5517 = vmatprep.subr.mxu0 0.0
      %5518 = vmatpush1.msra.mxu0 0.0
      %5519 = vmatprep.subr.mxu0 0.0
      %5520 = vmatpush1.msra.mxu0 0.0
      %5521 = vmatprep.subr.mxu0 0.0
      %5522 = vmatpush1.msra.mxu0 0.0
      %5523 = vmatprep.subr.mxu0 0.0
      %5524 = vmatpush1.msra.mxu0 0.0
      %5525 = vmatprep.subr.mxu0 0.0
      %5526 = vmatpush1.msra.mxu0 0.0
      %5527 = vmatprep.subr.mxu0 0.0
      %5528 = vmatpush1.msra.mxu0 0.0
      %5529 = vmatprep.subr.mxu0 0.0
      %5530 = vmatpush1.msra.mxu0 0.0
      %5531 = vmatprep.subr.mxu0 0.0
      %5532 = vmatpush1.msra.mxu0 0.0
      %5533 = vmatprep.subr.mxu0 0.0
      %5534 = vmatpush1.msra.mxu0 0.0
      %5535 = vmatprep.subr.mxu0 0.0
      %5536 = vmatpush1.msra.mxu0 0.0
      %5537 = vmatprep.subr.mxu0 0.0
      %5538 = vmatpush1.msra.mxu0 0.0
      %5539 = vmatprep.subr.mxu0 0.0
      %5540 = vmatpush1.msra.mxu0 0.0
      %5541 = vmatprep.subr.mxu0 0.0
      %5542 = vmatpush1.msra.mxu0 0.0
      %5543 = vmatprep.mubr.f32.mxu0 0.0
      %5544 = vmatmul.mubr.f32.gmra.mrb[0].mxu0 %v5379
      %v5545 = vpop.f32.mrb[0].mxu0
      %v5546 = vadd.f32 0.0, %v5545
      %v5547 = vpop.f32.mrb[0].mxu0
      %v5548 = vadd.f32 0.0, %v5547
      %5549 = vmatprep.mubr.f32.mxu0 0.0
      %5550 = vmatmul.mubr.f32.gmra.mrb[0].mxu0 %v5382
      %v5551 = vpop.f32.mrb[0].mxu0
      %v5552 = vadd.f32 0.0, %v5551
      %v5553 = vpop.f32.mrb[0].mxu0
      %v5554 = vadd.f32 0.0, %v5553
      %5555 = vmatprep.mubr.f32.mxu0 0.0
      %5556 = vmatmul.mubr.f32.gmra.mrb[0].mxu0 %v5385
      %v5557 = vpop.f32.mrb[0].mxu0
      %v5558 = vadd.f32 0.0, %v5557
      %v5559 = vpop.f32.mrb[0].mxu0
      %v5560 = vadd.f32 0.0, %v5559
      %5561 = vmatprep.mubr.f32.mxu0 0.0
      %5562 = vmatmul.mubr.f32.gmra.mrb[0].mxu0 %v5388
      %v5563 = vpop.f32.mrb[0].mxu0
      %v5564 = vadd.f32 0.0, %v5563
      %v5565 = vpop.f32.mrb[0].mxu0
      %v5566 = vadd.f32 0.0, %v5565
      %5567 = vdwg.mxu0
      %v5568 = vadd.f32 %v5357, %v5457
      %v5569 = vadd.f32 %v5358, %v5459
      %v5570 = vadd.f32 %v5359, %v5546
      %v5571 = vadd.f32 %v5360, %v5548
      %v5572 = vadd.f32 %v5361, %v5463
      %v5573 = vadd.f32 %v5362, %v5465
      %v5574 = vadd.f32 %v5363, %v5552
      %v5575 = vadd.f32 %v5364, %v5554
      %v5576 = vadd.f32 %v5365, %v5469
      %v5577 = vadd.f32 %v5366, %v5471
      %v5578 = vadd.f32 %v5367, %v5558
      %v5579 = vadd.f32 %v5368, %v5560
      %v5580 = vadd.f32 %v5369, %v5475
      %v5581 = vadd.f32 %v5370, %v5477
      %v5582 = vadd.f32 %v5371, %v5564
      %v5583 = vadd.f32 %v5372, %v5566
      %5584 = vrot.lane.b32.xlu0 %v4331, 126
      %v5585 = vpop.permute.xlu0 %5584
      %5586 = vrot.lane.b32.xlu0 %v4335, 126
      %v5587 = vpop.permute.xlu0 %5586
      %5588 = vrot.lane.b32.xlu0 %v4332, 126
      %v5589 = vpop.permute.xlu0 %5588
      %5590 = vrot.lane.b32.xlu0 %v4336, 126
      %v5591 = vpop.permute.xlu0 %5590
      %5592 = vrot.lane.b32.xlu0 %v4333, 126
      %v5593 = vpop.permute.xlu0 %5592
      %5594 = vrot.lane.b32.xlu0 %v4337, 126
      %v5595 = vpop.permute.xlu0 %5594
      %5596 = vrot.lane.b32.xlu0 %v4334, 126
      %v5597 = vpop.permute.xlu0 %5596
      %5598 = vrot.lane.b32.xlu0 %v4338, 126
      %v5599 = vpop.permute.xlu0 %5598
      %vm5600 = vcmp.lt.s32.totalorder %v496, 126
      %v5601 = vsel %vm5600, %v5593, %v5597
      %v5602 = vsel %vm5600, %v5595, %v5599
      %v5603 = vsel %vm5600, %v5589, %v5593
      %v5604 = vsel %vm5600, %v5591, %v5595
      %v5605 = vsel %vm5600, %v5585, %v5589
      %v5606 = vsel %vm5600, %v5587, %v5591
      %v5607 = vsel %vm5600, %v5597, %v5585
      %v5608 = vsel %vm5600, %v5599, %v5587
      %s5609 = scalar_lea.vmem %s11, 20
      %v5610 = vld [vmem:[%s5609] sm:$0xf]
      %v5612 = vlaneseq
      %v5613 = vshrl.u32 %v5612, 7
      %v5614 = vsub.s32 0, %v5613
      %v5615 = vrot.slane %v5610, %v5614
      %v5616 = vlaneseq
      %v5617 = vshrl.u32 %v5616, 7
      %v5618 = vsub.s32 1, %v5617
      %v5619 = vrot.slane %v5610, %v5618
      %v5620 = vlaneseq
      %v5621 = vshrl.u32 %v5620, 7
      %v5622 = vsub.s32 2, %v5621
      %v5623 = vrot.slane %v5610, %v5622
      %v5624 = vlaneseq
      %v5625 = vshrl.u32 %v5624, 7
      %v5626 = vsub.s32 3, %v5625
      %v5627 = vrot.slane %v5610, %v5626
      %v5632 = vmul.f32 %v5605, %v5615
      %v5633 = vmul.f32 %v5603, %v5619
      %v5634 = vmul.f32 %v5601, %v5623
      %v5635 = vmul.f32 %v5607, %v5627
      %v5636 = vmul.f32 %v5606, %v5615
      %v5637 = vmul.f32 %v5604, %v5619
      %v5638 = vmul.f32 %v5602, %v5623
      %v5639 = vmul.f32 %v5608, %v5627
      %s5640 = scalar_lea.vmem %s8, 160
      %v5641 = vld [vmem:[%s5640] sm:$0xff]
      %v5642 = vld [vmem:[%s5640 + $0x8] sm:$0xff]
      %v5643 = vld [vmem:[%s5640 + $0x10] sm:$0xff]
      %v5644 = vld [vmem:[%s5640 + $0x18] sm:$0xff]
      %v5646 = vsel %vm2537, %v5641, 0
      %v5649 = vsel %vm2537, %v5642, 0
      %v5652 = vsel %vm2537, %v5643, 0
      %v5655 = vsel %vm2537, %v5644, 0
      %5657 = vmatprep.subr.mxu0 %v5633
      %5658 = vmatpush1.msra.mxu0 %v5632
      %5659 = vmatprep.subr.mxu0 %v5637
      %5660 = vmatpush1.msra.mxu0 %v5636
      %5661 = vmatprep.subr.mxu0 0.0
      %5662 = vmatpush1.msra.mxu0 0.0
      %5663 = vmatprep.subr.mxu0 0.0
      %5664 = vmatpush1.msra.mxu0 0.0
      %5665 = vmatprep.subr.mxu0 0.0
      %5666 = vmatpush1.msra.mxu0 0.0
      %5667 = vmatprep.subr.mxu0 0.0
      %5668 = vmatpush1.msra.mxu0 0.0
      %5669 = vmatprep.subr.mxu0 0.0
      %5670 = vmatpush1.msra.mxu0 0.0
      %5671 = vmatprep.subr.mxu0 0.0
      %5672 = vmatpush1.msra.mxu0 0.0
      %5673 = vmatprep.subr.mxu0 0.0
      %5674 = vmatpush1.msra.mxu0 0.0
      %5675 = vmatprep.subr.mxu0 0.0
      %5676 = vmatpush1.msra.mxu0 0.0
      %5677 = vmatprep.subr.mxu0 0.0
      %5678 = vmatpush1.msra.mxu0 0.0
      %5679 = vmatprep.subr.mxu0 0.0
      %5680 = vmatpush1.msra.mxu0 0.0
      %5681 = vmatprep.subr.mxu0 0.0
      %5682 = vmatpush1.msra.mxu0 0.0
      %5683 = vmatprep.subr.mxu0 0.0
      %5684 = vmatpush1.msra.mxu0 0.0
      %5685 = vmatprep.subr.mxu0 0.0
      %5686 = vmatpush1.msra.mxu0 0.0
      %5687 = vmatprep.subr.mxu0 0.0
      %5688 = vmatpush1.msra.mxu0 0.0
      %5689 = vmatprep.subr.mxu0 0.0
      %5690 = vmatpush1.msra.mxu0 0.0
      %5691 = vmatprep.subr.mxu0 0.0
      %5692 = vmatpush1.msra.mxu0 0.0
      %5693 = vmatprep.subr.mxu0 0.0
      %5694 = vmatpush1.msra.mxu0 0.0
      %5695 = vmatprep.subr.mxu0 0.0
      %5696 = vmatpush1.msra.mxu0 0.0
      %5697 = vmatprep.subr.mxu0 0.0
      %5698 = vmatpush1.msra.mxu0 0.0
      %5699 = vmatprep.subr.mxu0 0.0
      %5700 = vmatpush1.msra.mxu0 0.0
      %5701 = vmatprep.subr.mxu0 0.0
      %5702 = vmatpush1.msra.mxu0 0.0
      %5703 = vmatprep.subr.mxu0 0.0
      %5704 = vmatpush1.msra.mxu0 0.0
      %5705 = vmatprep.subr.mxu0 0.0
      %5706 = vmatpush1.msra.mxu0 0.0
      %5707 = vmatprep.subr.mxu0 0.0
      %5708 = vmatpush1.msra.mxu0 0.0
      %5709 = vmatprep.subr.mxu0 0.0
      %5710 = vmatpush1.msra.mxu0 0.0
      %5711 = vmatprep.subr.mxu0 0.0
      %5712 = vmatpush1.msra.mxu0 0.0
      %5713 = vmatprep.subr.mxu0 0.0
      %5714 = vmatpush1.msra.mxu0 0.0
      %5715 = vmatprep.subr.mxu0 0.0
      %5716 = vmatpush1.msra.mxu0 0.0
      %5717 = vmatprep.subr.mxu0 0.0
      %5718 = vmatpush1.msra.mxu0 0.0
      %5719 = vmatprep.subr.mxu0 0.0
      %5720 = vmatpush1.msra.mxu0 0.0
      %5721 = vmatprep.mubr.f32.mxu0 0.0
      %5722 = vmatmul.mubr.f32.gmra.mrb[0].mxu0 %v5646
      %v5723 = vpop.f32.mrb[0].mxu0
      %v5724 = vadd.f32 0.0, %v5723
      %v5725 = vpop.f32.mrb[0].mxu0
      %v5726 = vadd.f32 0.0, %v5725
      %5727 = vmatprep.mubr.f32.mxu0 0.0
      %5728 = vmatmul.mubr.f32.gmra.mrb[0].mxu0 %v5649
      %v5729 = vpop.f32.mrb[0].mxu0
      %v5730 = vadd.f32 0.0, %v5729
      %v5731 = vpop.f32.mrb[0].mxu0
      %v5732 = vadd.f32 0.0, %v5731
      %5733 = vmatprep.mubr.f32.mxu0 0.0
      %5734 = vmatmul.mubr.f32.gmra.mrb[0].mxu0 %v5652
      %v5735 = vpop.f32.mrb[0].mxu0
      %v5736 = vadd.f32 0.0, %v5735
      %v5737 = vpop.f32.mrb[0].mxu0
      %v5738 = vadd.f32 0.0, %v5737
      %5739 = vmatprep.mubr.f32.mxu0 0.0
      %5740 = vmatmul.mubr.f32.gmra.mrb[0].mxu0 %v5655
      %v5741 = vpop.f32.mrb[0].mxu0
      %v5742 = vadd.f32 0.0, %v5741
      %v5743 = vpop.f32.mrb[0].mxu0
      %v5744 = vadd.f32 0.0, %v5743
      %5745 = vdwg.mxu0
      %5746 = vmatprep.subr.mxu0 %v5635
      %5747 = vmatpush1.msra.mxu0 %v5634
      %5748 = vmatprep.subr.mxu0 %v5639
      %5749 = vmatpush1.msra.mxu0 %v5638
      %5750 = vmatprep.subr.mxu0 0.0
      %5751 = vmatpush1.msra.mxu0 0.0
      %5752 = vmatprep.subr.mxu0 0.0
      %5753 = vmatpush1.msra.mxu0 0.0
      %5754 = vmatprep.subr.mxu0 0.0
      %5755 = vmatpush1.msra.mxu0 0.0
      %5756 = vmatprep.subr.mxu0 0.0
      %5757 = vmatpush1.msra.mxu0 0.0
      %5758 = vmatprep.subr.mxu0 0.0
      %5759 = vmatpush1.msra.mxu0 0.0
      %5760 = vmatprep.subr.mxu0 0.0
      %5761 = vmatpush1.msra.mxu0 0.0
      %5762 = vmatprep.subr.mxu0 0.0
      %5763 = vmatpush1.msra.mxu0 0.0
      %5764 = vmatprep.subr.mxu0 0.0
      %5765 = vmatpush1.msra.mxu0 0.0
      %5766 = vmatprep.subr.mxu0 0.0
      %5767 = vmatpush1.msra.mxu0 0.0
      %5768 = vmatprep.subr.mxu0 0.0
      %5769 = vmatpush1.msra.mxu0 0.0
      %5770 = vmatprep.subr.mxu0 0.0
      %5771 = vmatpush1.msra.mxu0 0.0
      %5772 = vmatprep.subr.mxu0 0.0
      %5773 = vmatpush1.msra.mxu0 0.0
      %5774 = vmatprep.subr.mxu0 0.0
      %5775 = vmatpush1.msra.mxu0 0.0
      %5776 = vmatprep.subr.mxu0 0.0
      %5777 = vmatpush1.msra.mxu0 0.0
      %5778 = vmatprep.subr.mxu0 0.0
      %5779 = vmatpush1.msra.mxu0 0.0
      %5780 = vmatprep.subr.mxu0 0.0
      %5781 = vmatpush1.msra.mxu0 0.0
      %5782 = vmatprep.subr.mxu0 0.0
      %5783 = vmatpush1.msra.mxu0 0.0
      %5784 = vmatprep.subr.mxu0 0.0
      %5785 = vmatpush1.msra.mxu0 0.0
      %5786 = vmatprep.subr.mxu0 0.0
      %5787 = vmatpush1.msra.mxu0 0.0
      %5788 = vmatprep.subr.mxu0 0.0
      %5789 = vmatpush1.msra.mxu0 0.0
      %5790 = vmatprep.subr.mxu0 0.0
      %5791 = vmatpush1.msra.mxu0 0.0
      %5792 = vmatprep.subr.mxu0 0.0
      %5793 = vmatpush1.msra.mxu0 0.0
      %5794 = vmatprep.subr.mxu0 0.0
      %5795 = vmatpush1.msra.mxu0 0.0
      %5796 = vmatprep.subr.mxu0 0.0
      %5797 = vmatpush1.msra.mxu0 0.0
      %5798 = vmatprep.subr.mxu0 0.0
      %5799 = vmatpush1.msra.mxu0 0.0
      %5800 = vmatprep.subr.mxu0 0.0
      %5801 = vmatpush1.msra.mxu0 0.0
      %5802 = vmatprep.subr.mxu0 0.0
      %5803 = vmatpush1.msra.mxu0 0.0
      %5804 = vmatprep.subr.mxu0 0.0
      %5805 = vmatpush1.msra.mxu0 0.0
      %5806 = vmatprep.subr.mxu0 0.0
      %5807 = vmatpush1.msra.mxu0 0.0
      %5808 = vmatprep.subr.mxu0 0.0
      %5809 = vmatpush1.msra.mxu0 0.0
      %5810 = vmatprep.mubr.f32.mxu0 0.0
      %5811 = vmatmul.mubr.f32.gmra.mrb[0].mxu0 %v5646
      %v5812 = vpop.f32.mrb[0].mxu0
      %v5813 = vadd.f32 0.0, %v5812
      %v5814 = vpop.f32.mrb[0].mxu0
      %v5815 = vadd.f32 0.0, %v5814
      %5816 = vmatprep.mubr.f32.mxu0 0.0
      %5817 = vmatmul.mubr.f32.gmra.mrb[0].mxu0 %v5649
      %v5818 = vpop.f32.mrb[0].mxu0
      %v5819 = vadd.f32 0.0, %v5818
      %v5820 = vpop.f32.mrb[0].mxu0
      %v5821 = vadd.f32 0.0, %v5820
      %5822 = vmatprep.mubr.f32.mxu0 0.0
      %5823 = vmatmul.mubr.f32.gmra.mrb[0].mxu0 %v5652
      %v5824 = vpop.f32.mrb[0].mxu0
      %v5825 = vadd.f32 0.0, %v5824
      %v5826 = vpop.f32.mrb[0].mxu0
      %v5827 = vadd.f32 0.0, %v5826
      %5828 = vmatprep.mubr.f32.mxu0 0.0
      %5829 = vmatmul.mubr.f32.gmra.mrb[0].mxu0 %v5655
      %v5830 = vpop.f32.mrb[0].mxu0
      %v5831 = vadd.f32 0.0, %v5830
      %v5832 = vpop.f32.mrb[0].mxu0
      %v5833 = vadd.f32 0.0, %v5832
      %5834 = vdwg.mxu0
      %v5835 = vadd.f32 %v5568, %v5724
      %v5836 = vadd.f32 %v5569, %v5726
      %v5837 = vadd.f32 %v5570, %v5813
      %v5838 = vadd.f32 %v5571, %v5815
      %v5839 = vadd.f32 %v5572, %v5730
      %v5840 = vadd.f32 %v5573, %v5732
      %v5841 = vadd.f32 %v5574, %v5819
      %v5842 = vadd.f32 %v5575, %v5821
      %v5843 = vadd.f32 %v5576, %v5736
      %v5844 = vadd.f32 %v5577, %v5738
      %v5845 = vadd.f32 %v5578, %v5825
      %v5846 = vadd.f32 %v5579, %v5827
      %v5847 = vadd.f32 %v5580, %v5742
      %v5848 = vadd.f32 %v5581, %v5744
      %v5849 = vadd.f32 %v5582, %v5831
      %v5850 = vadd.f32 %v5583, %v5833
      %5851 = vrot.lane.b32.xlu0 %v4331, 98
      %v5852 = vpop.permute.xlu0 %5851
      %5853 = vrot.lane.b32.xlu0 %v4335, 98
      %v5854 = vpop.permute.xlu0 %5853
      %5855 = vrot.lane.b32.xlu0 %v4332, 98
      %v5856 = vpop.permute.xlu0 %5855
      %5857 = vrot.lane.b32.xlu0 %v4336, 98
      %v5858 = vpop.permute.xlu0 %5857
      %5859 = vrot.lane.b32.xlu0 %v4333, 98
      %v5860 = vpop.permute.xlu0 %5859
      %5861 = vrot.lane.b32.xlu0 %v4337, 98
      %v5862 = vpop.permute.xlu0 %5861
      %5863 = vrot.lane.b32.xlu0 %v4334, 98
      %v5864 = vpop.permute.xlu0 %5863
      %5865 = vrot.lane.b32.xlu0 %v4338, 98
      %v5866 = vpop.permute.xlu0 %5865
      %vm5867 = vcmp.lt.s32.totalorder %v496, 98
      %v5868 = vsel %vm5867, %v5860, %v5864
      %v5869 = vsel %vm5867, %v5862, %v5866
      %v5870 = vsel %vm5867, %v5856, %v5860
      %v5871 = vsel %vm5867, %v5858, %v5862
      %v5872 = vsel %vm5867, %v5852, %v5856
      %v5873 = vsel %vm5867, %v5854, %v5858
      %v5874 = vsel %vm5867, %v5864, %v5852
      %v5875 = vsel %vm5867, %v5866, %v5854
      %s5876 = scalar_lea.vmem %s11, 24
      %v5877 = vld [vmem:[%s5876] sm:$0xf]
      %v5879 = vlaneseq
      %v5880 = vshrl.u32 %v5879, 7
      %v5881 = vsub.s32 0, %v5880
      %v5882 = vrot.slane %v5877, %v5881
      %v5883 = vlaneseq
      %v5884 = vshrl.u32 %v5883, 7
      %v5885 = vsub.s32 1, %v5884
      %v5886 = vrot.slane %v5877, %v5885
      %v5887 = vlaneseq
      %v5888 = vshrl.u32 %v5887, 7
      %v5889 = vsub.s32 2, %v5888
      %v5890 = vrot.slane %v5877, %v5889
      %v5891 = vlaneseq
      %v5892 = vshrl.u32 %v5891, 7
      %v5893 = vsub.s32 3, %v5892
      %v5894 = vrot.slane %v5877, %v5893
      %v5899 = vmul.f32 %v5872, %v5882
      %v5900 = vmul.f32 %v5870, %v5886
      %v5901 = vmul.f32 %v5868, %v5890
      %v5902 = vmul.f32 %v5874, %v5894
      %v5903 = vmul.f32 %v5873, %v5882
      %v5904 = vmul.f32 %v5871, %v5886
      %v5905 = vmul.f32 %v5869, %v5890
      %v5906 = vmul.f32 %v5875, %v5894
      %s5907 = scalar_lea.vmem %s8, 192
      %v5908 = vld [vmem:[%s5907] sm:$0xff]
      %v5909 = vld [vmem:[%s5907 + $0x8] sm:$0xff]
      %v5910 = vld [vmem:[%s5907 + $0x10] sm:$0xff]
      %v5911 = vld [vmem:[%s5907 + $0x18] sm:$0xff]
      %v5913 = vsel %vm2537, %v5908, 0
      %v5916 = vsel %vm2537, %v5909, 0
      %v5919 = vsel %vm2537, %v5910, 0
      %v5922 = vsel %vm2537, %v5911, 0
      %5924 = vmatprep.subr.mxu0 %v5900
      %5925 = vmatpush1.msra.mxu0 %v5899
      %5926 = vmatprep.subr.mxu0 %v5904
      %5927 = vmatpush1.msra.mxu0 %v5903
      %5928 = vmatprep.subr.mxu0 0.0
      %5929 = vmatpush1.msra.mxu0 0.0
      %5930 = vmatprep.subr.mxu0 0.0
      %5931 = vmatpush1.msra.mxu0 0.0
      %5932 = vmatprep.subr.mxu0 0.0
      %5933 = vmatpush1.msra.mxu0 0.0
      %5934 = vmatprep.subr.mxu0 0.0
      %5935 = vmatpush1.msra.mxu0 0.0
      %5936 = vmatprep.subr.mxu0 0.0
      %5937 = vmatpush1.msra.mxu0 0.0
      %5938 = vmatprep.subr.mxu0 0.0
      %5939 = vmatpush1.msra.mxu0 0.0
      %5940 = vmatprep.subr.mxu0 0.0
      %5941 = vmatpush1.msra.mxu0 0.0
      %5942 = vmatprep.subr.mxu0 0.0
      %5943 = vmatpush1.msra.mxu0 0.0
      %5944 = vmatprep.subr.mxu0 0.0
      %5945 = vmatpush1.msra.mxu0 0.0
      %5946 = vmatprep.subr.mxu0 0.0
      %5947 = vmatpush1.msra.mxu0 0.0
      %5948 = vmatprep.subr.mxu0 0.0
      %5949 = vmatpush1.msra.mxu0 0.0
      %5950 = vmatprep.subr.mxu0 0.0
      %5951 = vmatpush1.msra.mxu0 0.0
      %5952 = vmatprep.subr.mxu0 0.0
      %5953 = vmatpush1.msra.mxu0 0.0
      %5954 = vmatprep.subr.mxu0 0.0
      %5955 = vmatpush1.msra.mxu0 0.0
      %5956 = vmatprep.subr.mxu0 0.0
      %5957 = vmatpush1.msra.mxu0 0.0
      %5958 = vmatprep.subr.mxu0 0.0
      %5959 = vmatpush1.msra.mxu0 0.0
      %5960 = vmatprep.subr.mxu0 0.0
      %5961 = vmatpush1.msra.mxu0 0.0
      %5962 = vmatprep.subr.mxu0 0.0
      %5963 = vmatpush1.msra.mxu0 0.0
      %5964 = vmatprep.subr.mxu0 0.0
      %5965 = vmatpush1.msra.mxu0 0.0
      %5966 = vmatprep.subr.mxu0 0.0
      %5967 = vmatpush1.msra.mxu0 0.0
      %5968 = vmatprep.subr.mxu0 0.0
      %5969 = vmatpush1.msra.mxu0 0.0
      %5970 = vmatprep.subr.mxu0 0.0
      %5971 = vmatpush1.msra.mxu0 0.0
      %5972 = vmatprep.subr.mxu0 0.0
      %5973 = vmatpush1.msra.mxu0 0.0
      %5974 = vmatprep.subr.mxu0 0.0
      %5975 = vmatpush1.msra.mxu0 0.0
      %5976 = vmatprep.subr.mxu0 0.0
      %5977 = vmatpush1.msra.mxu0 0.0
      %5978 = vmatprep.subr.mxu0 0.0
      %5979 = vmatpush1.msra.mxu0 0.0
      %5980 = vmatprep.subr.mxu0 0.0
      %5981 = vmatpush1.msra.mxu0 0.0
      %5982 = vmatprep.subr.mxu0 0.0
      %5983 = vmatpush1.msra.mxu0 0.0
      %5984 = vmatprep.subr.mxu0 0.0
      %5985 = vmatpush1.msra.mxu0 0.0
      %5986 = vmatprep.subr.mxu0 0.0
      %5987 = vmatpush1.msra.mxu0 0.0
      %5988 = vmatprep.mubr.f32.mxu0 0.0
      %5989 = vmatmul.mubr.f32.gmra.mrb[0].mxu0 %v5913
      %v5990 = vpop.f32.mrb[0].mxu0
      %v5991 = vadd.f32 0.0, %v5990
      %v5992 = vpop.f32.mrb[0].mxu0
      %v5993 = vadd.f32 0.0, %v5992
      %5994 = vmatprep.mubr.f32.mxu0 0.0
      %5995 = vmatmul.mubr.f32.gmra.mrb[0].mxu0 %v5916
      %v5996 = vpop.f32.mrb[0].mxu0
      %v5997 = vadd.f32 0.0, %v5996
      %v5998 = vpop.f32.mrb[0].mxu0
      %v5999 = vadd.f32 0.0, %v5998
      %6000 = vmatprep.mubr.f32.mxu0 0.0
      %6001 = vmatmul.mubr.f32.gmra.mrb[0].mxu0 %v5919
      %v6002 = vpop.f32.mrb[0].mxu0
      %v6003 = vadd.f32 0.0, %v6002
      %v6004 = vpop.f32.mrb[0].mxu0
      %v6005 = vadd.f32 0.0, %v6004
      %6006 = vmatprep.mubr.f32.mxu0 0.0
      %6007 = vmatmul.mubr.f32.gmra.mrb[0].mxu0 %v5922
      %v6008 = vpop.f32.mrb[0].mxu0
      %v6009 = vadd.f32 0.0, %v6008
      %v6010 = vpop.f32.mrb[0].mxu0
      %v6011 = vadd.f32 0.0, %v6010
      %6012 = vdwg.mxu0
      %6013 = vmatprep.subr.mxu0 %v5902
      %6014 = vmatpush1.msra.mxu0 %v5901
      %6015 = vmatprep.subr.mxu0 %v5906
      %6016 = vmatpush1.msra.mxu0 %v5905
      %6017 = vmatprep.subr.mxu0 0.0
      %6018 = vmatpush1.msra.mxu0 0.0
      %6019 = vmatprep.subr.mxu0 0.0
      %6020 = vmatpush1.msra.mxu0 0.0
      %6021 = vmatprep.subr.mxu0 0.0
      %6022 = vmatpush1.msra.mxu0 0.0
      %6023 = vmatprep.subr.mxu0 0.0
      %6024 = vmatpush1.msra.mxu0 0.0
      %6025 = vmatprep.subr.mxu0 0.0
      %6026 = vmatpush1.msra.mxu0 0.0
      %6027 = vmatprep.subr.mxu0 0.0
      %6028 = vmatpush1.msra.mxu0 0.0
      %6029 = vmatprep.subr.mxu0 0.0
      %6030 = vmatpush1.msra.mxu0 0.0
      %6031 = vmatprep.subr.mxu0 0.0
      %6032 = vmatpush1.msra.mxu0 0.0
      %6033 = vmatprep.subr.mxu0 0.0
      %6034 = vmatpush1.msra.mxu0 0.0
      %6035 = vmatprep.subr.mxu0 0.0
      %6036 = vmatpush1.msra.mxu0 0.0
      %6037 = vmatprep.subr.mxu0 0.0
      %6038 = vmatpush1.msra.mxu0 0.0
      %6039 = vmatprep.subr.mxu0 0.0
      %6040 = vmatpush1.msra.mxu0 0.0
      %6041 = vmatprep.subr.mxu0 0.0
      %6042 = vmatpush1.msra.mxu0 0.0
      %6043 = vmatprep.subr.mxu0 0.0
      %6044 = vmatpush1.msra.mxu0 0.0
      %6045 = vmatprep.subr.mxu0 0.0
      %6046 = vmatpush1.msra.mxu0 0.0
      %6047 = vmatprep.subr.mxu0 0.0
      %6048 = vmatpush1.msra.mxu0 0.0
      %6049 = vmatprep.subr.mxu0 0.0
      %6050 = vmatpush1.msra.mxu0 0.0
      %6051 = vmatprep.subr.mxu0 0.0
      %6052 = vmatpush1.msra.mxu0 0.0
      %6053 = vmatprep.subr.mxu0 0.0
      %6054 = vmatpush1.msra.mxu0 0.0
      %6055 = vmatprep.subr.mxu0 0.0
      %6056 = vmatpush1.msra.mxu0 0.0
      %6057 = vmatprep.subr.mxu0 0.0
      %6058 = vmatpush1.msra.mxu0 0.0
      %6059 = vmatprep.subr.mxu0 0.0
      %6060 = vmatpush1.msra.mxu0 0.0
      %6061 = vmatprep.subr.mxu0 0.0
      %6062 = vmatpush1.msra.mxu0 0.0
      %6063 = vmatprep.subr.mxu0 0.0
      %6064 = vmatpush1.msra.mxu0 0.0
      %6065 = vmatprep.subr.mxu0 0.0
      %6066 = vmatpush1.msra.mxu0 0.0
      %6067 = vmatprep.subr.mxu0 0.0
      %6068 = vmatpush1.msra.mxu0 0.0
      %6069 = vmatprep.subr.mxu0 0.0
      %6070 = vmatpush1.msra.mxu0 0.0
      %6071 = vmatprep.subr.mxu0 0.0
      %6072 = vmatpush1.msra.mxu0 0.0
      %6073 = vmatprep.subr.mxu0 0.0
      %6074 = vmatpush1.msra.mxu0 0.0
      %6075 = vmatprep.subr.mxu0 0.0
      %6076 = vmatpush1.msra.mxu0 0.0
      %6077 = vmatprep.mubr.f32.mxu0 0.0
      %6078 = vmatmul.mubr.f32.gmra.mrb[0].mxu0 %v5913
      %v6079 = vpop.f32.mrb[0].mxu0
      %v6080 = vadd.f32 0.0, %v6079
      %v6081 = vpop.f32.mrb[0].mxu0
      %v6082 = vadd.f32 0.0, %v6081
      %6083 = vmatprep.mubr.f32.mxu0 0.0
      %6084 = vmatmul.mubr.f32.gmra.mrb[0].mxu0 %v5916
      %v6085 = vpop.f32.mrb[0].mxu0
      %v6086 = vadd.f32 0.0, %v6085
      %v6087 = vpop.f32.mrb[0].mxu0
      %v6088 = vadd.f32 0.0, %v6087
      %6089 = vmatprep.mubr.f32.mxu0 0.0
      %6090 = vmatmul.mubr.f32.gmra.mrb[0].mxu0 %v5919
      %v6091 = vpop.f32.mrb[0].mxu0
      %v6092 = vadd.f32 0.0, %v6091
      %v6093 = vpop.f32.mrb[0].mxu0
      %v6094 = vadd.f32 0.0, %v6093
      %6095 = vmatprep.mubr.f32.mxu0 0.0
      %6096 = vmatmul.mubr.f32.gmra.mrb[0].mxu0 %v5922
      %v6097 = vpop.f32.mrb[0].mxu0
      %v6098 = vadd.f32 0.0, %v6097
      %v6099 = vpop.f32.mrb[0].mxu0
      %v6100 = vadd.f32 0.0, %v6099
      %6101 = vdwg.mxu0
      %v6102 = vadd.f32 %v5835, %v5991
      %v6103 = vadd.f32 %v5836, %v5993
      %v6104 = vadd.f32 %v5837, %v6080
      %v6105 = vadd.f32 %v5838, %v6082
      %v6106 = vadd.f32 %v5839, %v5997
      %v6107 = vadd.f32 %v5840, %v5999
      %v6108 = vadd.f32 %v5841, %v6086
      %v6109 = vadd.f32 %v5842, %v6088
      %v6110 = vadd.f32 %v5843, %v6003
      %v6111 = vadd.f32 %v5844, %v6005
      %v6112 = vadd.f32 %v5845, %v6092
      %v6113 = vadd.f32 %v5846, %v6094
      %v6114 = vadd.f32 %v5847, %v6009
      %v6115 = vadd.f32 %v5848, %v6011
      %v6116 = vadd.f32 %v5849, %v6098
      %v6117 = vadd.f32 %v5850, %v6100
      %6118 = vrot.lane.b32.xlu0 %v4331, 96
      %v6119 = vpop.permute.xlu0 %6118
      %6120 = vrot.lane.b32.xlu0 %v4335, 96
      %v6121 = vpop.permute.xlu0 %6120
      %6122 = vrot.lane.b32.xlu0 %v4332, 96
      %v6123 = vpop.permute.xlu0 %6122
      %6124 = vrot.lane.b32.xlu0 %v4336, 96
      %v6125 = vpop.permute.xlu0 %6124
      %6126 = vrot.lane.b32.xlu0 %v4333, 96
      %v6127 = vpop.permute.xlu0 %6126
      %6128 = vrot.lane.b32.xlu0 %v4337, 96
      %v6129 = vpop.permute.xlu0 %6128
      %6130 = vrot.lane.b32.xlu0 %v4334, 96
      %v6131 = vpop.permute.xlu0 %6130
      %6132 = vrot.lane.b32.xlu0 %v4338, 96
      %v6133 = vpop.permute.xlu0 %6132
      %vm6134 = vcmp.lt.s32.totalorder %v496, 96
      %v6135 = vsel %vm6134, %v6127, %v6131
      %v6136 = vsel %vm6134, %v6129, %v6133
      %v6137 = vsel %vm6134, %v6123, %v6127
      %v6138 = vsel %vm6134, %v6125, %v6129
      %v6139 = vsel %vm6134, %v6119, %v6123
      %v6140 = vsel %vm6134, %v6121, %v6125
      %v6141 = vsel %vm6134, %v6131, %v6119
      %v6142 = vsel %vm6134, %v6133, %v6121
      %s6143 = scalar_lea.vmem %s11, 28
      %v6144 = vld [vmem:[%s6143] sm:$0xf]
      %v6146 = vlaneseq
      %v6147 = vshrl.u32 %v6146, 7
      %v6148 = vsub.s32 0, %v6147
      %v6149 = vrot.slane %v6144, %v6148
      %v6150 = vlaneseq
      %v6151 = vshrl.u32 %v6150, 7
      %v6152 = vsub.s32 1, %v6151
      %v6153 = vrot.slane %v6144, %v6152
      %v6154 = vlaneseq
      %v6155 = vshrl.u32 %v6154, 7
      %v6156 = vsub.s32 2, %v6155
      %v6157 = vrot.slane %v6144, %v6156
      %v6158 = vlaneseq
      %v6159 = vshrl.u32 %v6158, 7
      %v6160 = vsub.s32 3, %v6159
      %v6161 = vrot.slane %v6144, %v6160
      %v6166 = vmul.f32 %v6139, %v6149
      %v6167 = vmul.f32 %v6137, %v6153
      %v6168 = vmul.f32 %v6135, %v6157
      %v6169 = vmul.f32 %v6141, %v6161
      %v6170 = vmul.f32 %v6140, %v6149
      %v6171 = vmul.f32 %v6138, %v6153
      %v6172 = vmul.f32 %v6136, %v6157
      %v6173 = vmul.f32 %v6142, %v6161
      %s6174 = scalar_lea.vmem %s8, 224
      %v6175 = vld [vmem:[%s6174] sm:$0xff]
      %v6176 = vld [vmem:[%s6174 + $0x8] sm:$0xff]
      %v6177 = vld [vmem:[%s6174 + $0x10] sm:$0xff]
      %v6178 = vld [vmem:[%s6174 + $0x18] sm:$0xff]
      %v6180 = vsel %vm2537, %v6175, 0
      %v6183 = vsel %vm2537, %v6176, 0
      %v6186 = vsel %vm2537, %v6177, 0
      %v6189 = vsel %vm2537, %v6178, 0
      %6191 = vmatprep.subr.mxu0 %v6167
      %6192 = vmatpush1.msra.mxu0 %v6166
      %6193 = vmatprep.subr.mxu0 %v6171
      %6194 = vmatpush1.msra.mxu0 %v6170
      %6195 = vmatprep.subr.mxu0 0.0
      %6196 = vmatpush1.msra.mxu0 0.0
      %6197 = vmatprep.subr.mxu0 0.0
      %6198 = vmatpush1.msra.mxu0 0.0
      %6199 = vmatprep.subr.mxu0 0.0
      %6200 = vmatpush1.msra.mxu0 0.0
      %6201 = vmatprep.subr.mxu0 0.0
      %6202 = vmatpush1.msra.mxu0 0.0
      %6203 = vmatprep.subr.mxu0 0.0
      %6204 = vmatpush1.msra.mxu0 0.0
      %6205 = vmatprep.subr.mxu0 0.0
      %6206 = vmatpush1.msra.mxu0 0.0
      %6207 = vmatprep.subr.mxu0 0.0
      %6208 = vmatpush1.msra.mxu0 0.0
      %6209 = vmatprep.subr.mxu0 0.0
      %6210 = vmatpush1.msra.mxu0 0.0
      %6211 = vmatprep.subr.mxu0 0.0
      %6212 = vmatpush1.msra.mxu0 0.0
      %6213 = vmatprep.subr.mxu0 0.0
      %6214 = vmatpush1.msra.mxu0 0.0
      %6215 = vmatprep.subr.mxu0 0.0
      %6216 = vmatpush1.msra.mxu0 0.0
      %6217 = vmatprep.subr.mxu0 0.0
      %6218 = vmatpush1.msra.mxu0 0.0
      %6219 = vmatprep.subr.mxu0 0.0
      %6220 = vmatpush1.msra.mxu0 0.0
      %6221 = vmatprep.subr.mxu0 0.0
      %6222 = vmatpush1.msra.mxu0 0.0
      %6223 = vmatprep.subr.mxu0 0.0
      %6224 = vmatpush1.msra.mxu0 0.0
      %6225 = vmatprep.subr.mxu0 0.0
      %6226 = vmatpush1.msra.mxu0 0.0
      %6227 = vmatprep.subr.mxu0 0.0
      %6228 = vmatpush1.msra.mxu0 0.0
      %6229 = vmatprep.subr.mxu0 0.0
      %6230 = vmatpush1.msra.mxu0 0.0
      %6231 = vmatprep.subr.mxu0 0.0
      %6232 = vmatpush1.msra.mxu0 0.0
      %6233 = vmatprep.subr.mxu0 0.0
      %6234 = vmatpush1.msra.mxu0 0.0
      %6235 = vmatprep.subr.mxu0 0.0
      %6236 = vmatpush1.msra.mxu0 0.0
      %6237 = vmatprep.subr.mxu0 0.0
      %6238 = vmatpush1.msra.mxu0 0.0
      %6239 = vmatprep.subr.mxu0 0.0
      %6240 = vmatpush1.msra.mxu0 0.0
      %6241 = vmatprep.subr.mxu0 0.0
      %6242 = vmatpush1.msra.mxu0 0.0
      %6243 = vmatprep.subr.mxu0 0.0
      %6244 = vmatpush1.msra.mxu0 0.0
      %6245 = vmatprep.subr.mxu0 0.0
      %6246 = vmatpush1.msra.mxu0 0.0
      %6247 = vmatprep.subr.mxu0 0.0
      %6248 = vmatpush1.msra.mxu0 0.0
      %6249 = vmatprep.subr.mxu0 0.0
      %6250 = vmatpush1.msra.mxu0 0.0
      %6251 = vmatprep.subr.mxu0 0.0
      %6252 = vmatpush1.msra.mxu0 0.0
      %6253 = vmatprep.subr.mxu0 0.0
      %6254 = vmatpush1.msra.mxu0 0.0
      %6255 = vmatprep.mubr.f32.mxu0 0.0
      %6256 = vmatmul.mubr.f32.gmra.mrb[0].mxu0 %v6180
      %v6257 = vpop.f32.mrb[0].mxu0
      %v6258 = vadd.f32 0.0, %v6257
      %v6259 = vpop.f32.mrb[0].mxu0
      %v6260 = vadd.f32 0.0, %v6259
      %6261 = vmatprep.mubr.f32.mxu0 0.0
      %6262 = vmatmul.mubr.f32.gmra.mrb[0].mxu0 %v6183
      %v6263 = vpop.f32.mrb[0].mxu0
      %v6264 = vadd.f32 0.0, %v6263
      %v6265 = vpop.f32.mrb[0].mxu0
      %v6266 = vadd.f32 0.0, %v6265
      %6267 = vmatprep.mubr.f32.mxu0 0.0
      %6268 = vmatmul.mubr.f32.gmra.mrb[0].mxu0 %v6186
      %v6269 = vpop.f32.mrb[0].mxu0
      %v6270 = vadd.f32 0.0, %v6269
      %v6271 = vpop.f32.mrb[0].mxu0
      %v6272 = vadd.f32 0.0, %v6271
      %6273 = vmatprep.mubr.f32.mxu0 0.0
      %6274 = vmatmul.mubr.f32.gmra.mrb[0].mxu0 %v6189
      %v6275 = vpop.f32.mrb[0].mxu0
      %v6276 = vadd.f32 0.0, %v6275
      %v6277 = vpop.f32.mrb[0].mxu0
      %v6278 = vadd.f32 0.0, %v6277
      %6279 = vdwg.mxu0
      %6280 = vmatprep.subr.mxu0 %v6169
      %6281 = vmatpush1.msra.mxu0 %v6168
      %6282 = vmatprep.subr.mxu0 %v6173
      %6283 = vmatpush1.msra.mxu0 %v6172
      %6284 = vmatprep.subr.mxu0 0.0
      %6285 = vmatpush1.msra.mxu0 0.0
      %6286 = vmatprep.subr.mxu0 0.0
      %6287 = vmatpush1.msra.mxu0 0.0
      %6288 = vmatprep.subr.mxu0 0.0
      %6289 = vmatpush1.msra.mxu0 0.0
      %6290 = vmatprep.subr.mxu0 0.0
      %6291 = vmatpush1.msra.mxu0 0.0
      %6292 = vmatprep.subr.mxu0 0.0
      %6293 = vmatpush1.msra.mxu0 0.0
      %6294 = vmatprep.subr.mxu0 0.0
      %6295 = vmatpush1.msra.mxu0 0.0
      %6296 = vmatprep.subr.mxu0 0.0
      %6297 = vmatpush1.msra.mxu0 0.0
      %6298 = vmatprep.subr.mxu0 0.0
      %6299 = vmatpush1.msra.mxu0 0.0
      %6300 = vmatprep.subr.mxu0 0.0
      %6301 = vmatpush1.msra.mxu0 0.0
      %6302 = vmatprep.subr.mxu0 0.0
      %6303 = vmatpush1.msra.mxu0 0.0
      %6304 = vmatprep.subr.mxu0 0.0
      %6305 = vmatpush1.msra.mxu0 0.0
      %6306 = vmatprep.subr.mxu0 0.0
      %6307 = vmatpush1.msra.mxu0 0.0
      %6308 = vmatprep.subr.mxu0 0.0
      %6309 = vmatpush1.msra.mxu0 0.0
      %6310 = vmatprep.subr.mxu0 0.0
      %6311 = vmatpush1.msra.mxu0 0.0
      %6312 = vmatprep.subr.mxu0 0.0
      %6313 = vmatpush1.msra.mxu0 0.0
      %6314 = vmatprep.subr.mxu0 0.0
      %6315 = vmatpush1.msra.mxu0 0.0
      %6316 = vmatprep.subr.mxu0 0.0
      %6317 = vmatpush1.msra.mxu0 0.0
      %6318 = vmatprep.subr.mxu0 0.0
      %6319 = vmatpush1.msra.mxu0 0.0
      %6320 = vmatprep.subr.mxu0 0.0
      %6321 = vmatpush1.msra.mxu0 0.0
      %6322 = vmatprep.subr.mxu0 0.0
      %6323 = vmatpush1.msra.mxu0 0.0
      %6324 = vmatprep.subr.mxu0 0.0
      %6325 = vmatpush1.msra.mxu0 0.0
      %6326 = vmatprep.subr.mxu0 0.0
      %6327 = vmatpush1.msra.mxu0 0.0
      %6328 = vmatprep.subr.mxu0 0.0
      %6329 = vmatpush1.msra.mxu0 0.0
      %6330 = vmatprep.subr.mxu0 0.0
      %6331 = vmatpush1.msra.mxu0 0.0
      %6332 = vmatprep.subr.mxu0 0.0
      %6333 = vmatpush1.msra.mxu0 0.0
      %6334 = vmatprep.subr.mxu0 0.0
      %6335 = vmatpush1.msra.mxu0 0.0
      %6336 = vmatprep.subr.mxu0 0.0
      %6337 = vmatpush1.msra.mxu0 0.0
      %6338 = vmatprep.subr.mxu0 0.0
      %6339 = vmatpush1.msra.mxu0 0.0
      %6340 = vmatprep.subr.mxu0 0.0
      %6341 = vmatpush1.msra.mxu0 0.0
      %6342 = vmatprep.subr.mxu0 0.0
      %6343 = vmatpush1.msra.mxu0 0.0
      %6344 = vmatprep.mubr.f32.mxu0 0.0
      %6345 = vmatmul.mubr.f32.gmra.mrb[0].mxu0 %v6180
      %v6346 = vpop.f32.mrb[0].mxu0
      %v6347 = vadd.f32 0.0, %v6346
      %v6348 = vpop.f32.mrb[0].mxu0
      %v6349 = vadd.f32 0.0, %v6348
      %6350 = vmatprep.mubr.f32.mxu0 0.0
      %6351 = vmatmul.mubr.f32.gmra.mrb[0].mxu0 %v6183
      %v6352 = vpop.f32.mrb[0].mxu0
      %v6353 = vadd.f32 0.0, %v6352
      %v6354 = vpop.f32.mrb[0].mxu0
      %v6355 = vadd.f32 0.0, %v6354
      %6356 = vmatprep.mubr.f32.mxu0 0.0
      %6357 = vmatmul.mubr.f32.gmra.mrb[0].mxu0 %v6186
      %v6358 = vpop.f32.mrb[0].mxu0
      %v6359 = vadd.f32 0.0, %v6358
      %v6360 = vpop.f32.mrb[0].mxu0
      %v6361 = vadd.f32 0.0, %v6360
      %6362 = vmatprep.mubr.f32.mxu0 0.0
      %6363 = vmatmul.mubr.f32.gmra.mrb[0].mxu0 %v6189
      %v6364 = vpop.f32.mrb[0].mxu0
      %v6365 = vadd.f32 0.0, %v6364
      %v6366 = vpop.f32.mrb[0].mxu0
      %v6367 = vadd.f32 0.0, %v6366
      %6368 = vdwg.mxu0
      %v6369 = vadd.f32 %v6102, %v6258
      %v6370 = vadd.f32 %v6103, %v6260
      %v6371 = vadd.f32 %v6104, %v6347
      %v6372 = vadd.f32 %v6105, %v6349
      %v6373 = vadd.f32 %v6106, %v6264
      %v6374 = vadd.f32 %v6107, %v6266
      %v6375 = vadd.f32 %v6108, %v6353
      %v6376 = vadd.f32 %v6109, %v6355
      %v6377 = vadd.f32 %v6110, %v6270
      %v6378 = vadd.f32 %v6111, %v6272
      %v6379 = vadd.f32 %v6112, %v6359
      %v6380 = vadd.f32 %v6113, %v6361
      %v6381 = vadd.f32 %v6114, %v6276
      %v6382 = vadd.f32 %v6115, %v6278
      %v6383 = vadd.f32 %v6116, %v6365
      %v6384 = vadd.f32 %v6117, %v6367
      %6385 = vrot.lane.b32.xlu0 %v4331, 94
      %v6386 = vpop.permute.xlu0 %6385
      %6387 = vrot.lane.b32.xlu0 %v4335, 94
      %v6388 = vpop.permute.xlu0 %6387
      %6389 = vrot.lane.b32.xlu0 %v4332, 94
      %v6390 = vpop.permute.xlu0 %6389
      %6391 = vrot.lane.b32.xlu0 %v4336, 94
      %v6392 = vpop.permute.xlu0 %6391
      %6393 = vrot.lane.b32.xlu0 %v4333, 94
      %v6394 = vpop.permute.xlu0 %6393
      %6395 = vrot.lane.b32.xlu0 %v4337, 94
      %v6396 = vpop.permute.xlu0 %6395
      %6397 = vrot.lane.b32.xlu0 %v4334, 94
      %v6398 = vpop.permute.xlu0 %6397
      %6399 = vrot.lane.b32.xlu0 %v4338, 94
      %v6400 = vpop.permute.xlu0 %6399
      %vm6401 = vcmp.lt.s32.totalorder %v496, 94
      %v6402 = vsel %vm6401, %v6394, %v6398
      %v6403 = vsel %vm6401, %v6396, %v6400
      %v6404 = vsel %vm6401, %v6390, %v6394
      %v6405 = vsel %vm6401, %v6392, %v6396
      %v6406 = vsel %vm6401, %v6386, %v6390
      %v6407 = vsel %vm6401, %v6388, %v6392
      %v6408 = vsel %vm6401, %v6398, %v6386
      %v6409 = vsel %vm6401, %v6400, %v6388
      %s6410 = scalar_lea.vmem %s11, 32
      %v6411 = vld [vmem:[%s6410] sm:$0xf]
      %v6413 = vlaneseq
      %v6414 = vshrl.u32 %v6413, 7
      %v6415 = vsub.s32 0, %v6414
      %v6416 = vrot.slane %v6411, %v6415
      %v6417 = vlaneseq
      %v6418 = vshrl.u32 %v6417, 7
      %v6419 = vsub.s32 1, %v6418
      %v6420 = vrot.slane %v6411, %v6419
      %v6421 = vlaneseq
      %v6422 = vshrl.u32 %v6421, 7
      %v6423 = vsub.s32 2, %v6422
      %v6424 = vrot.slane %v6411, %v6423
      %v6425 = vlaneseq
      %v6426 = vshrl.u32 %v6425, 7
      %v6427 = vsub.s32 3, %v6426
      %v6428 = vrot.slane %v6411, %v6427
      %v6433 = vmul.f32 %v6406, %v6416
      %v6434 = vmul.f32 %v6404, %v6420
      %v6435 = vmul.f32 %v6402, %v6424
      %v6436 = vmul.f32 %v6408, %v6428
      %v6437 = vmul.f32 %v6407, %v6416
      %v6438 = vmul.f32 %v6405, %v6420
      %v6439 = vmul.f32 %v6403, %v6424
      %v6440 = vmul.f32 %v6409, %v6428
      %s6441 = scalar_lea.vmem %s8, 256
      %v6442 = vld [vmem:[%s6441] sm:$0xff]
      %v6443 = vld [vmem:[%s6441 + $0x8] sm:$0xff]
      %v6444 = vld [vmem:[%s6441 + $0x10] sm:$0xff]
      %v6445 = vld [vmem:[%s6441 + $0x18] sm:$0xff]
      %v6447 = vsel %vm2537, %v6442, 0
      %v6450 = vsel %vm2537, %v6443, 0
      %v6453 = vsel %vm2537, %v6444, 0
      %v6456 = vsel %vm2537, %v6445, 0
      %6458 = vmatprep.subr.mxu0 %v6434
      %6459 = vmatpush1.msra.mxu0 %v6433
      %6460 = vmatprep.subr.mxu0 %v6438
      %6461 = vmatpush1.msra.mxu0 %v6437
      %6462 = vmatprep.subr.mxu0 0.0
      %6463 = vmatpush1.msra.mxu0 0.0
      %6464 = vmatprep.subr.mxu0 0.0
      %6465 = vmatpush1.msra.mxu0 0.0
      %6466 = vmatprep.subr.mxu0 0.0
      %6467 = vmatpush1.msra.mxu0 0.0
      %6468 = vmatprep.subr.mxu0 0.0
      %6469 = vmatpush1.msra.mxu0 0.0
      %6470 = vmatprep.subr.mxu0 0.0
      %6471 = vmatpush1.msra.mxu0 0.0
      %6472 = vmatprep.subr.mxu0 0.0
      %6473 = vmatpush1.msra.mxu0 0.0
      %6474 = vmatprep.subr.mxu0 0.0
      %6475 = vmatpush1.msra.mxu0 0.0
      %6476 = vmatprep.subr.mxu0 0.0
      %6477 = vmatpush1.msra.mxu0 0.0
      %6478 = vmatprep.subr.mxu0 0.0
      %6479 = vmatpush1.msra.mxu0 0.0
      %6480 = vmatprep.subr.mxu0 0.0
      %6481 = vmatpush1.msra.mxu0 0.0
      %6482 = vmatprep.subr.mxu0 0.0
      %6483 = vmatpush1.msra.mxu0 0.0
      %6484 = vmatprep.subr.mxu0 0.0
      %6485 = vmatpush1.msra.mxu0 0.0
      %6486 = vmatprep.subr.mxu0 0.0
      %6487 = vmatpush1.msra.mxu0 0.0
      %6488 = vmatprep.subr.mxu0 0.0
      %6489 = vmatpush1.msra.mxu0 0.0
      %6490 = vmatprep.subr.mxu0 0.0
      %6491 = vmatpush1.msra.mxu0 0.0
      %6492 = vmatprep.subr.mxu0 0.0
      %6493 = vmatpush1.msra.mxu0 0.0
      %6494 = vmatprep.subr.mxu0 0.0
      %6495 = vmatpush1.msra.mxu0 0.0
      %6496 = vmatprep.subr.mxu0 0.0
      %6497 = vmatpush1.msra.mxu0 0.0
      %6498 = vmatprep.subr.mxu0 0.0
      %6499 = vmatpush1.msra.mxu0 0.0
      %6500 = vmatprep.subr.mxu0 0.0
      %6501 = vmatpush1.msra.mxu0 0.0
      %6502 = vmatprep.subr.mxu0 0.0
      %6503 = vmatpush1.msra.mxu0 0.0
      %6504 = vmatprep.subr.mxu0 0.0
      %6505 = vmatpush1.msra.mxu0 0.0
      %6506 = vmatprep.subr.mxu0 0.0
      %6507 = vmatpush1.msra.mxu0 0.0
      %6508 = vmatprep.subr.mxu0 0.0
      %6509 = vmatpush1.msra.mxu0 0.0
      %6510 = vmatprep.subr.mxu0 0.0
      %6511 = vmatpush1.msra.mxu0 0.0
      %6512 = vmatprep.subr.mxu0 0.0
      %6513 = vmatpush1.msra.mxu0 0.0
      %6514 = vmatprep.subr.mxu0 0.0
      %6515 = vmatpush1.msra.mxu0 0.0
      %6516 = vmatprep.subr.mxu0 0.0
      %6517 = vmatpush1.msra.mxu0 0.0
      %6518 = vmatprep.subr.mxu0 0.0
      %6519 = vmatpush1.msra.mxu0 0.0
      %6520 = vmatprep.subr.mxu0 0.0
      %6521 = vmatpush1.msra.mxu0 0.0
      %6522 = vmatprep.mubr.f32.mxu0 0.0
      %6523 = vmatmul.mubr.f32.gmra.mrb[0].mxu0 %v6447
      %v6524 = vpop.f32.mrb[0].mxu0
      %v6525 = vadd.f32 0.0, %v6524
      %v6526 = vpop.f32.mrb[0].mxu0
      %v6527 = vadd.f32 0.0, %v6526
      %6528 = vmatprep.mubr.f32.mxu0 0.0
      %6529 = vmatmul.mubr.f32.gmra.mrb[0].mxu0 %v6450
      %v6530 = vpop.f32.mrb[0].mxu0
      %v6531 = vadd.f32 0.0, %v6530
      %v6532 = vpop.f32.mrb[0].mxu0
      %v6533 = vadd.f32 0.0, %v6532
      %6534 = vmatprep.mubr.f32.mxu0 0.0
      %6535 = vmatmul.mubr.f32.gmra.mrb[0].mxu0 %v6453
      %v6536 = vpop.f32.mrb[0].mxu0
      %v6537 = vadd.f32 0.0, %v6536
      %v6538 = vpop.f32.mrb[0].mxu0
      %v6539 = vadd.f32 0.0, %v6538
      %6540 = vmatprep.mubr.f32.mxu0 0.0
      %6541 = vmatmul.mubr.f32.gmra.mrb[0].mxu0 %v6456
      %v6542 = vpop.f32.mrb[0].mxu0
      %v6543 = vadd.f32 0.0, %v6542
      %v6544 = vpop.f32.mrb[0].mxu0
      %v6545 = vadd.f32 0.0, %v6544
      %6546 = vdwg.mxu0
      %6547 = vmatprep.subr.mxu0 %v6436
      %6548 = vmatpush1.msra.mxu0 %v6435
      %6549 = vmatprep.subr.mxu0 %v6440
      %6550 = vmatpush1.msra.mxu0 %v6439
      %6551 = vmatprep.subr.mxu0 0.0
      %6552 = vmatpush1.msra.mxu0 0.0
      %6553 = vmatprep.subr.mxu0 0.0
      %6554 = vmatpush1.msra.mxu0 0.0
      %6555 = vmatprep.subr.mxu0 0.0
      %6556 = vmatpush1.msra.mxu0 0.0
      %6557 = vmatprep.subr.mxu0 0.0
      %6558 = vmatpush1.msra.mxu0 0.0
      %6559 = vmatprep.subr.mxu0 0.0
      %6560 = vmatpush1.msra.mxu0 0.0
      %6561 = vmatprep.subr.mxu0 0.0
      %6562 = vmatpush1.msra.mxu0 0.0
      %6563 = vmatprep.subr.mxu0 0.0
      %6564 = vmatpush1.msra.mxu0 0.0
      %6565 = vmatprep.subr.mxu0 0.0
      %6566 = vmatpush1.msra.mxu0 0.0
      %6567 = vmatprep.subr.mxu0 0.0
      %6568 = vmatpush1.msra.mxu0 0.0
      %6569 = vmatprep.subr.mxu0 0.0
      %6570 = vmatpush1.msra.mxu0 0.0
      %6571 = vmatprep.subr.mxu0 0.0
      %6572 = vmatpush1.msra.mxu0 0.0
      %6573 = vmatprep.subr.mxu0 0.0
      %6574 = vmatpush1.msra.mxu0 0.0
      %6575 = vmatprep.subr.mxu0 0.0
      %6576 = vmatpush1.msra.mxu0 0.0
      %6577 = vmatprep.subr.mxu0 0.0
      %6578 = vmatpush1.msra.mxu0 0.0
      %6579 = vmatprep.subr.mxu0 0.0
      %6580 = vmatpush1.msra.mxu0 0.0
      %6581 = vmatprep.subr.mxu0 0.0
      %6582 = vmatpush1.msra.mxu0 0.0
      %6583 = vmatprep.subr.mxu0 0.0
      %6584 = vmatpush1.msra.mxu0 0.0
      %6585 = vmatprep.subr.mxu0 0.0
      %6586 = vmatpush1.msra.mxu0 0.0
      %6587 = vmatprep.subr.mxu0 0.0
      %6588 = vmatpush1.msra.mxu0 0.0
      %6589 = vmatprep.subr.mxu0 0.0
      %6590 = vmatpush1.msra.mxu0 0.0
      %6591 = vmatprep.subr.mxu0 0.0
      %6592 = vmatpush1.msra.mxu0 0.0
      %6593 = vmatprep.subr.mxu0 0.0
      %6594 = vmatpush1.msra.mxu0 0.0
      %6595 = vmatprep.subr.mxu0 0.0
      %6596 = vmatpush1.msra.mxu0 0.0
      %6597 = vmatprep.subr.mxu0 0.0
      %6598 = vmatpush1.msra.mxu0 0.0
      %6599 = vmatprep.subr.mxu0 0.0
      %6600 = vmatpush1.msra.mxu0 0.0
      %6601 = vmatprep.subr.mxu0 0.0
      %6602 = vmatpush1.msra.mxu0 0.0
      %6603 = vmatprep.subr.mxu0 0.0
      %6604 = vmatpush1.msra.mxu0 0.0
      %6605 = vmatprep.subr.mxu0 0.0
      %6606 = vmatpush1.msra.mxu0 0.0
      %6607 = vmatprep.subr.mxu0 0.0
      %6608 = vmatpush1.msra.mxu0 0.0
      %6609 = vmatprep.subr.mxu0 0.0
      %6610 = vmatpush1.msra.mxu0 0.0
      %6611 = vmatprep.mubr.f32.mxu0 0.0
      %6612 = vmatmul.mubr.f32.gmra.mrb[0].mxu0 %v6447
      %v6613 = vpop.f32.mrb[0].mxu0
      %v6614 = vadd.f32 0.0, %v6613
      %v6615 = vpop.f32.mrb[0].mxu0
      %v6616 = vadd.f32 0.0, %v6615
      %6617 = vmatprep.mubr.f32.mxu0 0.0
      %6618 = vmatmul.mubr.f32.gmra.mrb[0].mxu0 %v6450
      %v6619 = vpop.f32.mrb[0].mxu0
      %v6620 = vadd.f32 0.0, %v6619
      %v6621 = vpop.f32.mrb[0].mxu0
      %v6622 = vadd.f32 0.0, %v6621
      %6623 = vmatprep.mubr.f32.mxu0 0.0
      %6624 = vmatmul.mubr.f32.gmra.mrb[0].mxu0 %v6453
      %v6625 = vpop.f32.mrb[0].mxu0
      %v6626 = vadd.f32 0.0, %v6625
      %v6627 = vpop.f32.mrb[0].mxu0
      %v6628 = vadd.f32 0.0, %v6627
      %6629 = vmatprep.mubr.f32.mxu0 0.0
      %6630 = vmatmul.mubr.f32.gmra.mrb[0].mxu0 %v6456
      %v6631 = vpop.f32.mrb[0].mxu0
      %v6632 = vadd.f32 0.0, %v6631
      %v6633 = vpop.f32.mrb[0].mxu0
      %v6634 = vadd.f32 0.0, %v6633
      %6635 = vdwg.mxu0
      %v6636 = vadd.f32 %v6369, %v6525
      %v6637 = vadd.f32 %v6370, %v6527
      %v6638 = vadd.f32 %v6371, %v6614
      %v6639 = vadd.f32 %v6372, %v6616
      %v6640 = vadd.f32 %v6373, %v6531
      %v6641 = vadd.f32 %v6374, %v6533
      %v6642 = vadd.f32 %v6375, %v6620
      %v6643 = vadd.f32 %v6376, %v6622
      %v6644 = vadd.f32 %v6377, %v6537
      %v6645 = vadd.f32 %v6378, %v6539
      %v6646 = vadd.f32 %v6379, %v6626
      %v6647 = vadd.f32 %v6380, %v6628
      %v6648 = vadd.f32 %v6381, %v6543
      %v6649 = vadd.f32 %v6382, %v6545
      %v6650 = vadd.f32 %v6383, %v6632
      %v6651 = vadd.f32 %v6384, %v6634
      %v6652 = vld [vmem:[%s9] sm:$0xff]
      %v6653 = vld [vmem:[%s9 + $0x8] sm:$0xff]
      %v6654 = vld [vmem:[%s9 + $0x10] sm:$0xff]
      %v6655 = vld [vmem:[%s9 + $0x18] sm:$0xff]
      %6657 = vset.pattern.permute.xlu0 0
      %6658 = vperm.xlu0 %6657, %v6652
      %v6659 = vpop.permute.xlu0 %6658
      %6662 = vset.pattern.permute.xlu0 0
      %6663 = vperm.xlu0 %6662, %v6653
      %v6664 = vpop.permute.xlu0 %6663
      %6667 = vset.pattern.permute.xlu0 0
      %6668 = vperm.xlu0 %6667, %v6654
      %v6669 = vpop.permute.xlu0 %6668
      %6672 = vset.pattern.permute.xlu0 0
      %6673 = vperm.xlu0 %6672, %v6655
      %v6674 = vpop.permute.xlu0 %6673
      %v6676 = vadd.f32 %v6636, %v6659
      %v6677 = vadd.f32 %v6637, %v6659
      %v6678 = vadd.f32 %v6638, %v6659
      %v6679 = vadd.f32 %v6639, %v6659
      %v6680 = vadd.f32 %v6640, %v6664
      %v6681 = vadd.f32 %v6641, %v6664
      %v6682 = vadd.f32 %v6642, %v6664
      %v6683 = vadd.f32 %v6643, %v6664
      %v6684 = vadd.f32 %v6644, %v6669
      %v6685 = vadd.f32 %v6645, %v6669
      %v6686 = vadd.f32 %v6646, %v6669
      %v6687 = vadd.f32 %v6647, %v6669
      %v6688 = vadd.f32 %v6648, %v6674
      %v6689 = vadd.f32 %v6649, %v6674
      %v6690 = vadd.f32 %v6650, %v6674
      %v6691 = vadd.f32 %v6651, %v6674
      %v6692 = vmax.f32 %v6676, 0.0
      %v6693 = vmax.f32 %v6677, 0.0
      %v6694 = vmax.f32 %v6678, 0.0
      %v6695 = vmax.f32 %v6679, 0.0
      %v6696 = vmax.f32 %v6680, 0.0
      %v6697 = vmax.f32 %v6681, 0.0
      %v6698 = vmax.f32 %v6682, 0.0
      %v6699 = vmax.f32 %v6683, 0.0
      %v6700 = vmax.f32 %v6684, 0.0
      %v6701 = vmax.f32 %v6685, 0.0
      %v6702 = vmax.f32 %v6686, 0.0
      %v6703 = vmax.f32 %v6687, 0.0
      %v6704 = vmax.f32 %v6688, 0.0
      %v6705 = vmax.f32 %v6689, 0.0
      %v6706 = vmax.f32 %v6690, 0.0
      %v6707 = vmax.f32 %v6691, 0.0
      %v6708 = vsub.f32 %v6692, %v6694
      %v6709 = vsub.f32 %v6693, %v6695
      %v6710 = vsub.f32 %v6696, %v6698
      %v6711 = vsub.f32 %v6697, %v6699
      %v6712 = vsub.f32 %v6700, %v6702
      %v6713 = vsub.f32 %v6701, %v6703
      %v6714 = vsub.f32 %v6704, %v6706
      %v6715 = vsub.f32 %v6705, %v6707
      %v6716 = vand.u32 2147483647, %v6708
      %v6717 = vand.u32 2147483647, %v6709
      %v6718 = vand.u32 2147483647, %v6710
      %v6719 = vand.u32 2147483647, %v6711
      %v6720 = vand.u32 2147483647, %v6712
      %v6721 = vand.u32 2147483647, %v6713
      %v6722 = vand.u32 2147483647, %v6714
      %v6723 = vand.u32 2147483647, %v6715
      %v6724 = vld [vmem:[%s12] sm:$0x3]
      %v6726 = vlaneseq
      %v6727 = vshrl.u32 %v6726, 7
      %v6728 = vsub.s32 0, %v6727
      %v6729 = vrot.slane %v6724, %v6728
      %v6730 = vlaneseq
      %v6731 = vshrl.u32 %v6730, 7
      %v6732 = vsub.s32 1, %v6731
      %v6733 = vrot.slane %v6724, %v6732
      %v6736 = vmul.f32 %v6716, %v6729
      %v6737 = vmul.f32 %v6717, %v6733
      %v6738 = vmul.f32 %v6718, %v6729
      %v6739 = vmul.f32 %v6719, %v6733
      %v6740 = vmul.f32 %v6720, %v6729
      %v6741 = vmul.f32 %v6721, %v6733
      %v6742 = vmul.f32 %v6722, %v6729
      %v6743 = vmul.f32 %v6723, %v6733
      %v6744 = vadd.f32 %v6736, %v6738
      %v6745 = vadd.f32 %v6744, %v6740
      %v6746 = vadd.f32 %v6745, %v6742
      %v6747 = vrot.slane %v6746, 4
      %v6748 = vadd.f32 %v6746, %v6747
      %v6749 = vrot.slane %v6748, 2
      %v6750 = vadd.f32 %v6748, %v6749
      %v6751 = vrot.slane %v6750, 1
      %v6752 = vadd.f32 %v6750, %v6751
      %v6753 = vadd.f32 %v6737, %v6739
      %v6754 = vadd.f32 %v6753, %v6741
      %v6755 = vadd.f32 %v6754, %v6743
      %v6756 = vrot.slane %v6755, 4
      %v6757 = vadd.f32 %v6755, %v6756
      %v6758 = vrot.slane %v6757, 2
      %v6759 = vadd.f32 %v6757, %v6758
      %v6760 = vrot.slane %v6759, 1
      %v6761 = vadd.f32 %v6759, %v6760
      %v6764 = vcombine.low %v6752, %v6761
      %v6766 = vunpack.c.l.s4 1966171168
      %v6767 = vunpack.c.0.s8 %v6766
      %v6768 = vlaneseq
      %v6769 = vshrl.u32 %v6768, 7
      %v6770 = vsub.s32 %v6767, %v6769
      %v6771 = vrot.slane %v6764, %v6770
      %v6773 = vunpack.c.l.s4 1966171168
      %v6774 = vunpack.c.0.s8 %v6773
      %v6775 = vlaneseq
      %v6776 = vshrl.u32 %v6775, 7
      %v6777 = vsub.s32 %v6774, %v6776
      %v6778 = vrot.slane %v6771, %v6777
      %v6780 = vlaneseq
      %vm6781 = vcmp.ge.s32.totalorder %v6780, 0
      %vm6782 = vcmp.lt.s32.totalorder %v6780, 256
      %vm6783 = vmand %vm6781, %vm6782
      %6784 = vst.msk [vmem:[%s458] sm:$0x3] %vm6783, %v6778
      %p6785 = scmp.lt.s32.totalorder %s24, 1
      %s6786 = scalar_select %p6785, %s24, 1
      %s6787 = smul.addr %s6786, 2
      %s6788 = scalar_lea.vmem %s13, %s6787
      // Predicated region
      $region73: #{content_loss.1} parent=71 // pred_check
        %p6789 = pneg %p325
      $region74: #{content_loss.1} parent=71 // pred_check_branch
        %6791 = sbr.rel (%p6789) target = $region76
      $region75: #{content_loss.1} parent=71 // pred_region
        _
      $region76: #{content_loss.1} parent=71 // pred_fallthru
        _
    $region72: #{content_loss.1} parent=5 // pred_fallthru
      _
    %p6792 = scmp.le.s32.totalorder 2, %s19
    // Predicated region
    $region77: #{content_loss.1} parent=5 // pred_check
      %p6793 = pneg %p6792
    $region78: #{content_loss.1} parent=5 // pred_check_branch
      %6795 = sbr.rel (%p6793) target = $region80
    $region79: #{content_loss.1} parent=5 // pred_region
      %s6796 = ssub.s32 %s19, 2
      // Predicated region
      $region81: #{content_loss.1} parent=79 // pred_check
        %p6797 = pneg %p331
      $region82: #{content_loss.1} parent=79 // pred_check_branch
        %6799 = sbr.rel (%p6797) target = $region84
      $region83: #{content_loss.1} parent=79 // pred_region
        %p6800 = scmp.lt.s32.totalorder %s25, 1
        %s6801 = scalar_select %p6800, %s25, 1
        %s6802 = smul.addr %s6801, 2
        %s6803 = scalar_lea.vmem %s13, %s6802
      $region84: #{content_loss.1} parent=79 // pred_fallthru
        _
    $region80: #{content_loss.1} parent=5 // pred_fallthru
      _
  $region6: #{content_loss.1} parent=0 // loop_footer
    %s23 = sadd.s32 1, %s19
  $region7: #{content_loss.1} parent=0 // loop_footer_branch
    %18 = sbr.rel target = $region3
  $region8: #{content_loss.1} parent=0 // loop_exit
    _

</llo_original>
